<compile_context>
chip_gen: v7x
topology: tpu7x:2x2x1
jax: 0.10.0
libtpu: 0.0.40
codegen_flags: <defaults>
</compile_context>

<pallas_src>
import functools

import jax
import jax.numpy as jnp
from jax import lax
from jax.experimental import pallas as pl
from jax.experimental.pallas import tpu as pltpu


# ----------------------------- Pallas kernels -----------------------------

def _mvit_core_kernel(xc_ref, w1_ref, b1_ref, w2_ref, b2_ref,
                      lng_ref, lnb_ref, wqkv_ref, wout_ref, bout_ref,
                      wf1_ref, bf1_ref, wf2_ref, bf2_ref, w3_ref, b3_ref,
                      o_ref, *, depth, n_tokens, slabs_per_block, inner):
    """conv1 + conv2 + `depth` transformer layers + conv3, one slab at a time.

    xc_ref : (rows, 9*C_pad) bf16 im2col rows, already in transformer token
             order (b, ph, pw, hn, wn); rows = slabs_per_block * n_tokens.
    o_ref  : (C, rows) f32, channels-major (lane-dense store).
    """
    f32, bf16 = jnp.float32, jnp.bfloat16

    def layer_norm(v, g, b):
        mu = jnp.mean(v, axis=-1, keepdims=True)
        vc = v - mu
        var = jnp.mean(vc * vc, axis=-1, keepdims=True)
        return vc * lax.rsqrt(var + 1e-5) * g + b

    pieces = []
    for s in range(slabs_per_block):            # slabs are fully independent
        xc = xc_ref[pl.ds(s * n_tokens, n_tokens), :]             # (N, 9C_pad)
        # ---- conv1 (3x3 as matmul) + folded BN + SiLU -----------------------
        h = jnp.dot(xc, w1_ref[...], preferred_element_type=f32) + b1_ref[...]
        h = h * jax.nn.sigmoid(h)
        # ---- conv2 (1x1) + folded BN + SiLU -> residual stream (f32) --------
        x = jnp.dot(h.astype(bf16), w2_ref[...],
                    preferred_element_type=f32) + b2_ref[...]
        x = x * jax.nn.sigmoid(x)                                  # (N, dim)

        for l in range(depth):
            # ---- PreNorm + Attention + residual -----------------------------
            hb = layer_norm(x, lng_ref[l, 0], lnb_ref[l, 0]).astype(bf16)
            qkv = jnp.dot(hb, wqkv_ref[l], preferred_element_type=f32)
            q = qkv[:, :inner].astype(bf16)          # scale pre-folded into Wq
            k = qkv[:, inner:2 * inner].astype(bf16)
            v = qkv[:, 2 * inner:3 * inner].astype(bf16)
            sc = lax.dot_general(q, k, (((1,), (1,)), ((), ())),
                                 preferred_element_type=f32)       # (N, N)
            sc = sc - jnp.max(sc, axis=-1, keepdims=True)
            p = jnp.exp(sc)
            p = p * pl.reciprocal(jnp.sum(p, axis=-1, keepdims=True),
                                  approx=True)
            attn = jnp.dot(p.astype(bf16), v, preferred_element_type=f32)
            x = x + jnp.dot(attn.astype(bf16), wout_ref[l],
                            preferred_element_type=f32) + bout_ref[l]
            # ---- PreNorm + FeedForward + residual ---------------------------
            hb = layer_norm(x, lng_ref[l, 1], lnb_ref[l, 1]).astype(bf16)
            a = jnp.dot(hb, wf1_ref[l], preferred_element_type=f32) + bf1_ref[l]
            a = a * jax.nn.sigmoid(a)                               # SiLU
            x = x + jnp.dot(a.astype(bf16), wf2_ref[l],
                            preferred_element_type=f32) + bf2_ref[l]

        # ---- conv3 (1x1) + folded BN + SiLU, directly channels-major --------
        cT = lax.dot_general(w3_ref[...], x.astype(bf16),
                             (((1,), (1,)), ((), ())),
                             preferred_element_type=f32) + b3_ref[...]
        cT = cT * jax.nn.sigmoid(cT)                                # (C, N)
        pieces.append(cT)

    out = pieces[0] if len(pieces) == 1 else jnp.concatenate(pieces, axis=1)
    o_ref[...] = out.astype(o_ref.dtype)         # single lane-dense (C, rows) store


def _conv4_kernel(x_ref, w_ref, b_ref, o_ref):
    """conv4 (3x3 as matmul) + folded BN + SiLU; channels-major output so the
    result lands directly in NCHW order with a lane-dense store."""
    cT = lax.dot_general(w_ref[...], x_ref[...], (((1,), (1,)), ((), ())),
                         preferred_element_type=jnp.float32) + b_ref[...]
    cT = cT * jax.nn.sigmoid(cT)
    o_ref[...] = cT[None].astype(o_ref.dtype)


# ------------------------------ kernel wrappers -----------------------------

def _slab_group(n_slabs, n_tokens):
    """Smallest whole-slab group whose row count is lane-dense (mult of 128)."""
    for g in range(1, n_slabs + 1):
        if n_slabs % g == 0 and (g * n_tokens) % 128 == 0:
            return g
    return n_slabs          # fallback: one block == full array (always legal)


def mvit_core(x_cols, packed, *, n_tokens, depth, inner, out_c):
    M, K1 = x_cols.shape
    n_slabs = M // n_tokens
    g = _slab_group(n_slabs, n_tokens)
    rows = g * n_tokens
    n_blocks = M // rows
    assert rows % 16 == 0, "bf16 row blocks must be a multiple of 16"
    kernel = functools.partial(_mvit_core_kernel, depth=depth,
                               n_tokens=n_tokens, slabs_per_block=g,
                               inner=inner)

    def full(a):
        nd = a.ndim
        return pl.BlockSpec(a.shape, lambda i, _n=nd: (0,) * _n)

    order = ("w1", "b1", "w2", "b2", "lng", "lnb", "wqkv", "wout", "bout",
             "wf1", "bf1", "wf2", "bf2", "w3", "b3")
    return pl.pallas_call(
        kernel,
        out_shape=jax.ShapeDtypeStruct((out_c, M), jnp.float32),
        grid=(n_blocks,),
        in_specs=[pl.BlockSpec((rows, K1), lambda i: (i, 0))]
                 + [full(packed[k]) for k in order],
        out_specs=pl.BlockSpec((out_c, rows), lambda i: (0, i)),
        compiler_params=pltpu.CompilerParams(
            dimension_semantics=("parallel",)),
    )(x_cols, *[packed[k] for k in order])


def conv4_call(cat_cols, w, b, *, batch, hw, out_c):
    M, K = cat_cols.shape
    assert M == batch * hw and hw % 16 == 0
    return pl.pallas_call(
        _conv4_kernel,
        out_shape=jax.ShapeDtypeStruct((batch, out_c, hw), jnp.float32),
        grid=(batch,),
        in_specs=[pl.BlockSpec((hw, K), lambda i: (i, 0)),
                  pl.BlockSpec((out_c, K), lambda i: (0, 0)),
                  pl.BlockSpec((out_c, 1), lambda i: (0, 0))],
        out_specs=pl.BlockSpec((1, out_c, hw), lambda i: (i, 0, 0)),
        compiler_params=pltpu.CompilerParams(
            dimension_semantics=("parallel",)),
    )(cat_cols, w, b)


# ------------------------------- JAX glue ----------------------------------

def im2col_3x3(x):
    """x: (B,H,W,C) -> (B,H,W,9C) of 3x3 neighbourhoods, stride 1, padding 1."""
    B, H, W, C = x.shape
    xp = jnp.pad(x, ((0, 0), (1, 1), (1, 1), (0, 0)))
    cols = [xp[:, dy:dy + H, dx:dx + W, :]
            for dy in range(3) for dx in range(3)]
    return jnp.concatenate(cols, axis=-1)


def fold_bn(w, b, gamma, beta, mean, var, eps=1e-5):
    """Fold eval-mode BatchNorm into conv weight/bias.  w: (O,I,kh,kw)."""
    scale = gamma / jnp.sqrt(var + eps)
    w = w * scale[:, None, None, None]
    b = (b - mean) * scale + beta
    return w, b


def _pad_cols(a, mult):
    pad = (-a.shape[-1]) % mult
    if pad:
        a = jnp.pad(a, [(0, 0)] * (a.ndim - 1) + [(0, pad)])
    return a


def _pad_rows(a, mult):
    pad = (-a.shape[0]) % mult
    if pad:
        a = jnp.pad(a, [(0, pad)] + [(0, 0)] * (a.ndim - 1))
    return a


def _normal(key, shape, std=0.05):
    return std * jax.random.normal(key, shape, dtype=jnp.float32)


def init_params(key, channel, dim, depth, mlp_dim, heads=1, dim_head=32):
    inner = heads * dim_head
    keys = iter(jax.random.split(key, 128))

    def conv_bn(cin, cout, k):
        return dict(
            w=_normal(next(keys), (cout, cin, k, k)),
            b=_normal(next(keys), (cout,)),
            gamma=1.0 + _normal(next(keys), (cout,)),
            beta=_normal(next(keys), (cout,)),
            mean=_normal(next(keys), (cout,)),
            var=1.0 + 0.1 * jnp.abs(jax.random.normal(next(keys), (cout,))),
        )

    params = {
        "conv1": conv_bn(channel, channel, 3),
        "conv2": conv_bn(channel, dim, 1),
        "conv3": conv_bn(dim, channel, 1),
        "conv4": conv_bn(2 * channel, channel, 3),
        "layers": [],
    }
    for _ in range(depth):
        params["layers"].append(dict(
            ln1_g=jnp.ones((dim,), jnp.float32),
            ln1_b=jnp.zeros((dim,), jnp.float32),
            wqkv=_normal(next(keys), (3 * inner, dim)),   # torch Linear (out,in)
            wout=_normal(next(keys), (dim, inner)),
            bout=_normal(next(keys), (dim,)),
            ln2_g=jnp.ones((dim,), jnp.float32),
            ln2_b=jnp.zeros((dim,), jnp.float32),
            w1=_normal(next(keys), (mlp_dim, dim)),
            b1=_normal(next(keys), (mlp_dim,)),
            w2=_normal(next(keys), (dim, mlp_dim)),
            b2=_normal(next(keys), (dim,)),
        ))
    return params


def mobilevit_block(x_nchw, params, patch_size=(2, 2), heads=1, dim_head=32):
    assert heads == 1, "per-head split not implemented (module uses heads=1)"
    ph, pw = patch_size
    bf = jnp.bfloat16
    x = jnp.transpose(x_nchw, (0, 2, 3, 1)).astype(jnp.float32)    # NHWC
    B, H, W, C = x.shape
    y = x                                                          # skip branch
    Hn, Wn = H // ph, W // pw
    P, N = ph * pw, Hn * Wn

    # ---- fold BN (eval mode) into every conv --------------------------------
    def folded(name):
        p = params[name]
        return fold_bn(p["w"], p["b"], p["gamma"], p["beta"], p["mean"], p["var"])

    w1, b1 = folded("conv1")
    w2, b2 = folded("conv2")
    w3, b3 = folded("conv3")
    w4, b4 = folded("conv4")
    dim = w2.shape[0]
    assert dim != dim_head, "PyTorch Attention uses Identity out-proj when dim==dim_head"
    inner = heads * dim_head
    scale = float(dim_head) ** -0.5

    # ---- conv1/conv2 weights as matmuls (bf16-tile-friendly padding) --------
    w1m = jnp.transpose(w1, (2, 3, 1, 0)).reshape(9 * C, C)        # rows = (dy,dx,cin)
    w1m = _pad_cols(_pad_rows(w1m, 16), 16)                        # (K1p, Cmp)
    b1v = _pad_cols(b1.reshape(1, C), 16)
    w2m = _pad_rows(w2.reshape(dim, C).T, 16)                      # (Cmp, dim)

    # ---- pack transformer (+conv3) weights -----------------------------------
    layers = params["layers"]

    def stack(fn):
        return jnp.stack([fn(lp) for lp in layers])

    def qkv_pack(lp):
        wq = lp["wqkv"][:inner].T * scale          # fold attention scale into Wq
        wk = lp["wqkv"][inner:2 * inner].T
        wv = lp["wqkv"][2 * inner:].T
        return _pad_cols(jnp.concatenate([wq, wk, wv], axis=1), 128)

    packed = dict(
        w1=w1m.astype(bf), b1=b1v, w2=w2m.astype(bf), b2=b2.reshape(1, dim),
        lng=stack(lambda lp: jnp.stack([lp["ln1_g"], lp["ln2_g"]]))[:, :, None, :],
        lnb=stack(lambda lp: jnp.stack([lp["ln1_b"], lp["ln2_b"]]))[:, :, None, :],
        wqkv=stack(qkv_pack).astype(bf),                           # (depth, dim, 128)
        wout=stack(lambda lp: lp["wout"].T).astype(bf),            # (depth, inner, dim)
        bout=stack(lambda lp: lp["bout"])[:, None, :],
        wf1=stack(lambda lp: lp["w1"].T).astype(bf),               # (depth, dim, mlp)
        bf1=stack(lambda lp: lp["b1"])[:, None, :],
        wf2=stack(lambda lp: lp["w2"].T).astype(bf),               # (depth, mlp, dim)
        bf2=stack(lambda lp: lp["b2"])[:, None, :],
        w3=w3.reshape(C, dim).astype(bf),                          # (C, dim) channels-major
        b3=b3.reshape(C, 1),
    )

    # ---- im2col for conv1, rows already in transformer token order ----------
    xc = im2col_3x3(x).reshape(B, Hn, ph, Wn, pw, 9 * C)
    xc = jnp.transpose(xc, (0, 2, 4, 1, 3, 5)).reshape(B * P * N, 9 * C)
    x_cols = _pad_cols(xc, 16).astype(bf)

    # ---- Kernel AB: conv1+conv2+transformer+conv3 (channels-major output) ---
    xc3 = mvit_core(x_cols, packed, n_tokens=N, depth=len(layers),
                    inner=inner, out_c=C)                          # (C, B*P*N)

    # ---- token order -> spatial NHWC, concat skip, im2col for conv4 ---------
    xs = xc3.reshape(C, B, ph, pw, Hn, Wn)
    xs = jnp.transpose(xs, (1, 4, 2, 5, 3, 0)).reshape(B, H, W, C)
    cat = jnp.concatenate([xs, y], axis=-1)
    cat_cols = _pad_cols(im2col_3x3(cat).reshape(B * H * W, 9 * 2 * C), 16).astype(bf)
    w4m = _pad_cols(jnp.transpose(w4, (0, 2, 3, 1)).reshape(C, 9 * 2 * C), 16)

    # ---- Kernel C: conv4 per image, output already NCHW-ordered -------------
    out = conv4_call(cat_cols, w4m.astype(bf), b4.reshape(C, 1),
                     batch=B, hw=H * W, out_c=C)                   # (B, C, H*W)
    return out.reshape(B, C, H, W)


# --------------------------------- main -------------------------------------

if __name__ == "__main__":
    B, C, Hs, Ws = 2, 4, 16, 16
    dim, depth, mlp_dim = 64, 2, 128
    patch = (2, 2)

    key = jax.random.PRNGKey(0)
    kx, kp = jax.random.split(key)
    x = jax.random.normal(kx, (B, C, Hs, Ws), dtype=jnp.float32)
    params = init_params(kp, C, dim, depth, mlp_dim)

    fwd = jax.jit(functools.partial(mobilevit_block, patch_size=patch,
                                    heads=1, dim_head=32))
    out = jax.block_until_ready(fwd(x, params))
    assert out.shape == (B, C, Hs, Ws), out.shape
    assert bool(jnp.all(jnp.isfinite(out)))
    print("KERNEL_OK")
</pallas_src>

<mosaic_0001>
module attributes {stable_mosaic.version = 11 : i64} {
  func.func @_mvit_core_kernel(%arg0: i32, %arg1: memref<128x48xbf16, #tpu.memory_space<vmem>>, %arg2: memref<48x16xbf16, #tpu.memory_space<vmem>>, %arg3: memref<1x16xf32, #tpu.memory_space<vmem>>, %arg4: memref<16x64xbf16, #tpu.memory_space<vmem>>, %arg5: memref<1x64xf32, #tpu.memory_space<vmem>>, %arg6: memref<2x2x1x64xf32, #tpu.memory_space<vmem>>, %arg7: memref<2x2x1x64xf32, #tpu.memory_space<vmem>>, %arg8: memref<2x64x128xbf16, #tpu.memory_space<vmem>>, %arg9: memref<2x32x64xbf16, #tpu.memory_space<vmem>>, %arg10: memref<2x1x64xf32, #tpu.memory_space<vmem>>, %arg11: memref<2x64x128xbf16, #tpu.memory_space<vmem>>, %arg12: memref<2x1x128xf32, #tpu.memory_space<vmem>>, %arg13: memref<2x128x64xbf16, #tpu.memory_space<vmem>>, %arg14: memref<2x1x64xf32, #tpu.memory_space<vmem>>, %arg15: memref<4x64xbf16, #tpu.memory_space<vmem>>, %arg16: memref<4x1xf32, #tpu.memory_space<vmem>>, %arg17: memref<4x128xf32, #tpu.memory_space<vmem>>) attributes {dimension_semantics = [#tpu.dimension_semantics<parallel>], iteration_bounds = array<i64: 4>, scalar_prefetch = 0 : i64, scratch_operands = 0 : i64, tpu.core_type = #tpu.core_type<tc>, window_params = [{transform_indices = @transform_0, window_bounds = array<i64: 128, 48>}, {pipeline_mode = #tpu.pipeline_mode<synchronous>, transform_indices = @transform_1, window_bounds = array<i64: 48, 16>}, {pipeline_mode = #tpu.pipeline_mode<synchronous>, transform_indices = @transform_2, window_bounds = array<i64: 1, 16>}, {pipeline_mode = #tpu.pipeline_mode<synchronous>, transform_indices = @transform_3, window_bounds = array<i64: 16, 64>}, {pipeline_mode = #tpu.pipeline_mode<synchronous>, transform_indices = @transform_4, window_bounds = array<i64: 1, 64>}, {pipeline_mode = #tpu.pipeline_mode<synchronous>, transform_indices = @transform_5, window_bounds = array<i64: 2, 2, 1, 64>}, {pipeline_mode = #tpu.pipeline_mode<synchronous>, transform_indices = @transform_6, window_bounds = array<i64: 2, 2, 1, 64>}, {pipeline_mode = #tpu.pipeline_mode<synchronous>, transform_indices = @transform_7, window_bounds = array<i64: 2, 64, 128>}, {pipeline_mode = #tpu.pipeline_mode<synchronous>, transform_indices = @transform_8, window_bounds = array<i64: 2, 32, 64>}, {pipeline_mode = #tpu.pipeline_mode<synchronous>, transform_indices = @transform_9, window_bounds = array<i64: 2, 1, 64>}, {pipeline_mode = #tpu.pipeline_mode<synchronous>, transform_indices = @transform_10, window_bounds = array<i64: 2, 64, 128>}, {pipeline_mode = #tpu.pipeline_mode<synchronous>, transform_indices = @transform_11, window_bounds = array<i64: 2, 1, 128>}, {pipeline_mode = #tpu.pipeline_mode<synchronous>, transform_indices = @transform_12, window_bounds = array<i64: 2, 128, 64>}, {pipeline_mode = #tpu.pipeline_mode<synchronous>, transform_indices = @transform_13, window_bounds = array<i64: 2, 1, 64>}, {pipeline_mode = #tpu.pipeline_mode<synchronous>, transform_indices = @transform_14, window_bounds = array<i64: 4, 64>}, {pipeline_mode = #tpu.pipeline_mode<synchronous>, transform_indices = @transform_15, window_bounds = array<i64: 4, 1>}, {transform_indices = @transform_16, window_bounds = array<i64: 4, 128>}]} {
    %c0 = arith.constant 0 : index
    %c0_0 = arith.constant 0 : index
    %0 = vector.load %arg1[%c0, %c0_0] : memref<128x48xbf16, #tpu.memory_space<vmem>>, vector<64x48xbf16>
    %c0_1 = arith.constant 0 : index
    %c0_2 = arith.constant 0 : index
    %1 = vector.load %arg2[%c0_1, %c0_2] : memref<48x16xbf16, #tpu.memory_space<vmem>>, vector<48x16xbf16>
    %cst = arith.constant dense<0.000000e+00> : vector<64x16xf32>
    %2 = tpu.matmul %0, %1, %cst {dimension_numbers = #tpu.dot_dimension_numbers<[1], [0], [0], [1], [0, 0, 1, 1], [], []>} : vector<64x48xbf16>, vector<48x16xbf16>, vector<64x16xf32> -> vector<64x16xf32>
    %c0_3 = arith.constant 0 : index
    %c0_4 = arith.constant 0 : index
    %3 = vector.load %arg3[%c0_3, %c0_4] : memref<1x16xf32, #tpu.memory_space<vmem>>, vector<1x16xf32>
    %4 = vector.broadcast %3 : vector<1x16xf32> to vector<64x16xf32>
    %5 = arith.addf %2, %4 : vector<64x16xf32>
    %6 = arith.negf %5 : vector<64x16xf32>
    %7 = math.exp %6 : vector<64x16xf32>
    %cst_5 = arith.constant 1.000000e+00 : f32
    %8 = vector.broadcast %cst_5 : f32 to vector<64x16xf32>
    %9 = arith.addf %8, %7 : vector<64x16xf32>
    %10 = arith.divf %8, %9 : vector<64x16xf32>
    %11 = arith.mulf %5, %10 : vector<64x16xf32>
    %12 = arith.truncf %11 : vector<64x16xf32> to vector<64x16xbf16>
    %c0_6 = arith.constant 0 : index
    %c0_7 = arith.constant 0 : index
    %13 = vector.load %arg4[%c0_6, %c0_7] : memref<16x64xbf16, #tpu.memory_space<vmem>>, vector<16x64xbf16>
    %cst_8 = arith.constant dense<0.000000e+00> : vector<64x64xf32>
    %14 = tpu.matmul %12, %13, %cst_8 {dimension_numbers = #tpu.dot_dimension_numbers<[1], [0], [0], [1], [0, 0, 1, 1], [], []>} : vector<64x16xbf16>, vector<16x64xbf16>, vector<64x64xf32> -> vector<64x64xf32>
    %c0_9 = arith.constant 0 : index
    %c0_10 = arith.constant 0 : index
    %15 = vector.load %arg5[%c0_9, %c0_10] : memref<1x64xf32, #tpu.memory_space<vmem>>, vector<1x64xf32>
    %16 = vector.broadcast %15 : vector<1x64xf32> to vector<64x64xf32>
    %17 = arith.addf %14, %16 : vector<64x64xf32>
    %18 = arith.negf %17 : vector<64x64xf32>
    %19 = math.exp %18 : vector<64x64xf32>
    %cst_11 = arith.constant 1.000000e+00 : f32
    %20 = vector.broadcast %cst_11 : f32 to vector<64x64xf32>
    %21 = arith.addf %20, %19 : vector<64x64xf32>
    %22 = arith.divf %20, %21 : vector<64x64xf32>
    %23 = arith.mulf %17, %22 : vector<64x64xf32>
    %c0_12 = arith.constant 0 : index
    %c0_13 = arith.constant 0 : index
    %c0_14 = arith.constant 0 : index
    %c0_15 = arith.constant 0 : index
    %24 = vector.load %arg6[%c0_12, %c0_13, %c0_14, %c0_15] : memref<2x2x1x64xf32, #tpu.memory_space<vmem>>, vector<1x1x1x64xf32>
    %25 = vector.shape_cast %24 : vector<1x1x1x64xf32> to vector<1x64xf32>
    %c0_16 = arith.constant 0 : index
    %c0_17 = arith.constant 0 : index
    %c0_18 = arith.constant 0 : index
    %c0_19 = arith.constant 0 : index
    %26 = vector.load %arg7[%c0_16, %c0_17, %c0_18, %c0_19] : memref<2x2x1x64xf32, #tpu.memory_space<vmem>>, vector<1x1x1x64xf32>
    %27 = vector.shape_cast %26 : vector<1x1x1x64xf32> to vector<1x64xf32>
    %cst_20 = arith.constant dense<0.000000e+00> : vector<64xf32>
    %28 = vector.multi_reduction <add>, %23, %cst_20 [1] : vector<64x64xf32> to vector<64xf32>
    %29 = vector.shape_cast %28 : vector<64xf32> to vector<64x1xf32>
    %cst_21 = arith.constant 6.400000e+01 : f32
    %30 = vector.broadcast %cst_21 : f32 to vector<64x1xf32>
    %31 = arith.divf %29, %30 : vector<64x1xf32>
    %32 = vector.broadcast %31 : vector<64x1xf32> to vector<64x64xf32>
    %33 = arith.subf %23, %32 : vector<64x64xf32>
    %34 = arith.mulf %33, %33 : vector<64x64xf32>
    %cst_22 = arith.constant dense<0.000000e+00> : vector<64xf32>
    %35 = vector.multi_reduction <add>, %34, %cst_22 [1] : vector<64x64xf32> to vector<64xf32>
    %36 = vector.shape_cast %35 : vector<64xf32> to vector<64x1xf32>
    %cst_23 = arith.constant 6.400000e+01 : f32
    %37 = vector.broadcast %cst_23 : f32 to vector<64x1xf32>
    %38 = arith.divf %36, %37 : vector<64x1xf32>
    %cst_24 = arith.constant 9.99999974E-6 : f32
    %39 = vector.broadcast %cst_24 : f32 to vector<64x1xf32>
    %40 = arith.addf %38, %39 : vector<64x1xf32>
    %41 = math.rsqrt %40 : vector<64x1xf32>
    %42 = vector.broadcast %41 : vector<64x1xf32> to vector<64x64xf32>
    %43 = arith.mulf %33, %42 : vector<64x64xf32>
    %44 = vector.broadcast %25 : vector<1x64xf32> to vector<64x64xf32>
    %45 = arith.mulf %43, %44 : vector<64x64xf32>
    %46 = vector.broadcast %27 : vector<1x64xf32> to vector<64x64xf32>
    %47 = arith.addf %45, %46 : vector<64x64xf32>
    %48 = arith.truncf %47 : vector<64x64xf32> to vector<64x64xbf16>
    %c0_25 = arith.constant 0 : index
    %c0_26 = arith.constant 0 : index
    %c0_27 = arith.constant 0 : index
    %49 = vector.load %arg8[%c0_25, %c0_26, %c0_27] : memref<2x64x128xbf16, #tpu.memory_space<vmem>>, vector<1x64x128xbf16>
    %50 = vector.shape_cast %49 : vector<1x64x128xbf16> to vector<64x128xbf16>
    %cst_28 = arith.constant dense<0.000000e+00> : vector<64x128xf32>
    %51 = tpu.matmul %48, %50, %cst_28 {dimension_numbers = #tpu.dot_dimension_numbers<[1], [0], [0], [1], [0, 0, 1, 1], [], []>} : vector<64x64xbf16>, vector<64x128xbf16>, vector<64x128xf32> -> vector<64x128xf32>
    %52 = vector.extract_strided_slice %51 {offsets = [0, 0], sizes = [64, 32], strides = [1, 1]} : vector<64x128xf32> to vector<64x32xf32>
    %53 = arith.truncf %52 : vector<64x32xf32> to vector<64x32xbf16>
    %54 = vector.extract_strided_slice %51 {offsets = [0, 32], sizes = [64, 32], strides = [1, 1]} : vector<64x128xf32> to vector<64x32xf32>
    %55 = arith.truncf %54 : vector<64x32xf32> to vector<64x32xbf16>
    %56 = vector.extract_strided_slice %51 {offsets = [0, 64], sizes = [64, 32], strides = [1, 1]} : vector<64x128xf32> to vector<64x32xf32>
    %57 = arith.truncf %56 : vector<64x32xf32> to vector<64x32xbf16>
    %cst_29 = arith.constant dense<0.000000e+00> : vector<64x64xf32>
    %58 = tpu.matmul %53, %55, %cst_29 {dimension_numbers = #tpu.dot_dimension_numbers<[1], [1], [0], [0], [0, 0, 1, 0], [], []>} : vector<64x32xbf16>, vector<64x32xbf16>, vector<64x64xf32> -> vector<64x64xf32>
    %cst_30 = arith.constant dense<0xFF800000> : vector<64xf32>
    %59 = vector.multi_reduction <maximumf>, %58, %cst_30 [1] : vector<64x64xf32> to vector<64xf32>
    %60 = vector.shape_cast %59 : vector<64xf32> to vector<64x1xf32>
    %61 = vector.broadcast %60 : vector<64x1xf32> to vector<64x64xf32>
    %62 = arith.subf %58, %61 : vector<64x64xf32>
    %63 = math.exp %62 : vector<64x64xf32>
    %cst_31 = arith.constant dense<0.000000e+00> : vector<64xf32>
    %64 = vector.multi_reduction <add>, %63, %cst_31 [1] : vector<64x64xf32> to vector<64xf32>
    %65 = vector.shape_cast %64 : vector<64xf32> to vector<64x1xf32>
    %66 = tpu.reciprocal %65 {approx = true} : vector<64x1xf32> -> vector<64x1xf32>
    %67 = vector.broadcast %66 : vector<64x1xf32> to vector<64x64xf32>
    %68 = arith.mulf %63, %67 : vector<64x64xf32>
    %69 = arith.truncf %68 : vector<64x64xf32> to vector<64x64xbf16>
    %cst_32 = arith.constant dense<0.000000e+00> : vector<64x32xf32>
    %70 = tpu.matmul %69, %57, %cst_32 {dimension_numbers = #tpu.dot_dimension_numbers<[1], [0], [0], [1], [0, 0, 1, 1], [], []>} : vector<64x64xbf16>, vector<64x32xbf16>, vector<64x32xf32> -> vector<64x32xf32>
    %71 = arith.truncf %70 : vector<64x32xf32> to vector<64x32xbf16>
    %c0_33 = arith.constant 0 : index
    %c0_34 = arith.constant 0 : index
    %c0_35 = arith.constant 0 : index
    %72 = vector.load %arg9[%c0_33, %c0_34, %c0_35] : memref<2x32x64xbf16, #tpu.memory_space<vmem>>, vector<1x32x64xbf16>
    %73 = vector.shape_cast %72 : vector<1x32x64xbf16> to vector<32x64xbf16>
    %cst_36 = arith.constant dense<0.000000e+00> : vector<64x64xf32>
    %74 = tpu.matmul %71, %73, %cst_36 {dimension_numbers = #tpu.dot_dimension_numbers<[1], [0], [0], [1], [0, 0, 1, 1], [], []>} : vector<64x32xbf16>, vector<32x64xbf16>, vector<64x64xf32> -> vector<64x64xf32>
    %75 = arith.addf %23, %74 : vector<64x64xf32>
    %c0_37 = arith.constant 0 : index
    %c0_38 = arith.constant 0 : index
    %c0_39 = arith.constant 0 : index
    %76 = vector.load %arg10[%c0_37, %c0_38, %c0_39] : memref<2x1x64xf32, #tpu.memory_space<vmem>>, vector<1x1x64xf32>
    %77 = vector.shape_cast %76 : vector<1x1x64xf32> to vector<1x64xf32>
    %78 = vector.broadcast %77 : vector<1x64xf32> to vector<64x64xf32>
    %79 = arith.addf %75, %78 : vector<64x64xf32>
    %c0_40 = arith.constant 0 : index
    %c1 = arith.constant 1 : index
    %c0_41 = arith.constant 0 : index
    %c0_42 = arith.constant 0 : index
    %80 = vector.load %arg6[%c0_40, %c1, %c0_41, %c0_42] : memref<2x2x1x64xf32, #tpu.memory_space<vmem>>, vector<1x1x1x64xf32>
    %81 = vector.shape_cast %80 : vector<1x1x1x64xf32> to vector<1x64xf32>
    %c0_43 = arith.constant 0 : index
    %c1_44 = arith.constant 1 : index
    %c0_45 = arith.constant 0 : index
    %c0_46 = arith.constant 0 : index
    %82 = vector.load %arg7[%c0_43, %c1_44, %c0_45, %c0_46] : memref<2x2x1x64xf32, #tpu.memory_space<vmem>>, vector<1x1x1x64xf32>
    %83 = vector.shape_cast %82 : vector<1x1x1x64xf32> to vector<1x64xf32>
    %cst_47 = arith.constant dense<0.000000e+00> : vector<64xf32>
    %84 = vector.multi_reduction <add>, %79, %cst_47 [1] : vector<64x64xf32> to vector<64xf32>
    %85 = vector.shape_cast %84 : vector<64xf32> to vector<64x1xf32>
    %cst_48 = arith.constant 6.400000e+01 : f32
    %86 = vector.broadcast %cst_48 : f32 to vector<64x1xf32>
    %87 = arith.divf %85, %86 : vector<64x1xf32>
    %88 = vector.broadcast %87 : vector<64x1xf32> to vector<64x64xf32>
    %89 = arith.subf %79, %88 : vector<64x64xf32>
    %90 = arith.mulf %89, %89 : vector<64x64xf32>
    %cst_49 = arith.constant dense<0.000000e+00> : vector<64xf32>
    %91 = vector.multi_reduction <add>, %90, %cst_49 [1] : vector<64x64xf32> to vector<64xf32>
    %92 = vector.shape_cast %91 : vector<64xf32> to vector<64x1xf32>
    %cst_50 = arith.constant 6.400000e+01 : f32
    %93 = vector.broadcast %cst_50 : f32 to vector<64x1xf32>
    %94 = arith.divf %92, %93 : vector<64x1xf32>
    %cst_51 = arith.constant 9.99999974E-6 : f32
    %95 = vector.broadcast %cst_51 : f32 to vector<64x1xf32>
    %96 = arith.addf %94, %95 : vector<64x1xf32>
    %97 = math.rsqrt %96 : vector<64x1xf32>
    %98 = vector.broadcast %97 : vector<64x1xf32> to vector<64x64xf32>
    %99 = arith.mulf %89, %98 : vector<64x64xf32>
    %100 = vector.broadcast %81 : vector<1x64xf32> to vector<64x64xf32>
    %101 = arith.mulf %99, %100 : vector<64x64xf32>
    %102 = vector.broadcast %83 : vector<1x64xf32> to vector<64x64xf32>
    %103 = arith.addf %101, %102 : vector<64x64xf32>
    %104 = arith.truncf %103 : vector<64x64xf32> to vector<64x64xbf16>
    %c0_52 = arith.constant 0 : index
    %c0_53 = arith.constant 0 : index
    %c0_54 = arith.constant 0 : index
    %105 = vector.load %arg11[%c0_52, %c0_53, %c0_54] : memref<2x64x128xbf16, #tpu.memory_space<vmem>>, vector<1x64x128xbf16>
    %106 = vector.shape_cast %105 : vector<1x64x128xbf16> to vector<64x128xbf16>
    %cst_55 = arith.constant dense<0.000000e+00> : vector<64x128xf32>
    %107 = tpu.matmul %104, %106, %cst_55 {dimension_numbers = #tpu.dot_dimension_numbers<[1], [0], [0], [1], [0, 0, 1, 1], [], []>} : vector<64x64xbf16>, vector<64x128xbf16>, vector<64x128xf32> -> vector<64x128xf32>
    %c0_56 = arith.constant 0 : index
    %c0_57 = arith.constant 0 : index
    %c0_58 = arith.constant 0 : index
    %108 = vector.load %arg12[%c0_56, %c0_57, %c0_58] : memref<2x1x128xf32, #tpu.memory_space<vmem>>, vector<1x1x128xf32>
    %109 = vector.shape_cast %108 : vector<1x1x128xf32> to vector<1x128xf32>
    %110 = vector.broadcast %109 : vector<1x128xf32> to vector<64x128xf32>
    %111 = arith.addf %107, %110 : vector<64x128xf32>
    %112 = arith.negf %111 : vector<64x128xf32>
    %113 = math.exp %112 : vector<64x128xf32>
    %cst_59 = arith.constant 1.000000e+00 : f32
    %114 = vector.broadcast %cst_59 : f32 to vector<64x128xf32>
    %115 = arith.addf %114, %113 : vector<64x128xf32>
    %116 = arith.divf %114, %115 : vector<64x128xf32>
    %117 = arith.mulf %111, %116 : vector<64x128xf32>
    %118 = arith.truncf %117 : vector<64x128xf32> to vector<64x128xbf16>
    %c0_60 = arith.constant 0 : index
    %c0_61 = arith.constant 0 : index
    %c0_62 = arith.constant 0 : index
    %119 = vector.load %arg13[%c0_60, %c0_61, %c0_62] : memref<2x128x64xbf16, #tpu.memory_space<vmem>>, vector<1x128x64xbf16>
    %120 = vector.shape_cast %119 : vector<1x128x64xbf16> to vector<128x64xbf16>
    %cst_63 = arith.constant dense<0.000000e+00> : vector<64x64xf32>
    %121 = tpu.matmul %118, %120, %cst_63 {dimension_numbers = #tpu.dot_dimension_numbers<[1], [0], [0], [1], [0, 0, 1, 1], [], []>} : vector<64x128xbf16>, vector<128x64xbf16>, vector<64x64xf32> -> vector<64x64xf32>
    %122 = arith.addf %79, %121 : vector<64x64xf32>
    %c0_64 = arith.constant 0 : index
    %c0_65 = arith.constant 0 : index
    %c0_66 = arith.constant 0 : index
    %123 = vector.load %arg14[%c0_64, %c0_65, %c0_66] : memref<2x1x64xf32, #tpu.memory_space<vmem>>, vector<1x1x64xf32>
    %124 = vector.shape_cast %123 : vector<1x1x64xf32> to vector<1x64xf32>
    %125 = vector.broadcast %124 : vector<1x64xf32> to vector<64x64xf32>
    %126 = arith.addf %122, %125 : vector<64x64xf32>
    %c1_67 = arith.constant 1 : index
    %c0_68 = arith.constant 0 : index
    %c0_69 = arith.constant 0 : index
    %c0_70 = arith.constant 0 : index
    %127 = vector.load %arg6[%c1_67, %c0_68, %c0_69, %c0_70] : memref<2x2x1x64xf32, #tpu.memory_space<vmem>>, vector<1x1x1x64xf32>
    %128 = vector.shape_cast %127 : vector<1x1x1x64xf32> to vector<1x64xf32>
    %c1_71 = arith.constant 1 : index
    %c0_72 = arith.constant 0 : index
    %c0_73 = arith.constant 0 : index
    %c0_74 = arith.constant 0 : index
    %129 = vector.load %arg7[%c1_71, %c0_72, %c0_73, %c0_74] : memref<2x2x1x64xf32, #tpu.memory_space<vmem>>, vector<1x1x1x64xf32>
    %130 = vector.shape_cast %129 : vector<1x1x1x64xf32> to vector<1x64xf32>
    %cst_75 = arith.constant dense<0.000000e+00> : vector<64xf32>
    %131 = vector.multi_reduction <add>, %126, %cst_75 [1] : vector<64x64xf32> to vector<64xf32>
    %132 = vector.shape_cast %131 : vector<64xf32> to vector<64x1xf32>
    %cst_76 = arith.constant 6.400000e+01 : f32
    %133 = vector.broadcast %cst_76 : f32 to vector<64x1xf32>
    %134 = arith.divf %132, %133 : vector<64x1xf32>
    %135 = vector.broadcast %134 : vector<64x1xf32> to vector<64x64xf32>
    %136 = arith.subf %126, %135 : vector<64x64xf32>
    %137 = arith.mulf %136, %136 : vector<64x64xf32>
    %cst_77 = arith.constant dense<0.000000e+00> : vector<64xf32>
    %138 = vector.multi_reduction <add>, %137, %cst_77 [1] : vector<64x64xf32> to vector<64xf32>
    %139 = vector.shape_cast %138 : vector<64xf32> to vector<64x1xf32>
    %cst_78 = arith.constant 6.400000e+01 : f32
    %140 = vector.broadcast %cst_78 : f32 to vector<64x1xf32>
    %141 = arith.divf %139, %140 : vector<64x1xf32>
    %cst_79 = arith.constant 9.99999974E-6 : f32
    %142 = vector.broadcast %cst_79 : f32 to vector<64x1xf32>
    %143 = arith.addf %141, %142 : vector<64x1xf32>
    %144 = math.rsqrt %143 : vector<64x1xf32>
    %145 = vector.broadcast %144 : vector<64x1xf32> to vector<64x64xf32>
    %146 = arith.mulf %136, %145 : vector<64x64xf32>
    %147 = vector.broadcast %128 : vector<1x64xf32> to vector<64x64xf32>
    %148 = arith.mulf %146, %147 : vector<64x64xf32>
    %149 = vector.broadcast %130 : vector<1x64xf32> to vector<64x64xf32>
    %150 = arith.addf %148, %149 : vector<64x64xf32>
    %151 = arith.truncf %150 : vector<64x64xf32> to vector<64x64xbf16>
    %c1_80 = arith.constant 1 : index
    %c0_81 = arith.constant 0 : index
    %c0_82 = arith.constant 0 : index
    %152 = vector.load %arg8[%c1_80, %c0_81, %c0_82] : memref<2x64x128xbf16, #tpu.memory_space<vmem>>, vector<1x64x128xbf16>
    %153 = vector.shape_cast %152 : vector<1x64x128xbf16> to vector<64x128xbf16>
    %cst_83 = arith.constant dense<0.000000e+00> : vector<64x128xf32>
    %154 = tpu.matmul %151, %153, %cst_83 {dimension_numbers = #tpu.dot_dimension_numbers<[1], [0], [0], [1], [0, 0, 1, 1], [], []>} : vector<64x64xbf16>, vector<64x128xbf16>, vector<64x128xf32> -> vector<64x128xf32>
    %155 = vector.extract_strided_slice %154 {offsets = [0, 0], sizes = [64, 32], strides = [1, 1]} : vector<64x128xf32> to vector<64x32xf32>
    %156 = arith.truncf %155 : vector<64x32xf32> to vector<64x32xbf16>
    %157 = vector.extract_strided_slice %154 {offsets = [0, 32], sizes = [64, 32], strides = [1, 1]} : vector<64x128xf32> to vector<64x32xf32>
    %158 = arith.truncf %157 : vector<64x32xf32> to vector<64x32xbf16>
    %159 = vector.extract_strided_slice %154 {offsets = [0, 64], sizes = [64, 32], strides = [1, 1]} : vector<64x128xf32> to vector<64x32xf32>
    %160 = arith.truncf %159 : vector<64x32xf32> to vector<64x32xbf16>
    %cst_84 = arith.constant dense<0.000000e+00> : vector<64x64xf32>
    %161 = tpu.matmul %156, %158, %cst_84 {dimension_numbers = #tpu.dot_dimension_numbers<[1], [1], [0], [0], [0, 0, 1, 0], [], []>} : vector<64x32xbf16>, vector<64x32xbf16>, vector<64x64xf32> -> vector<64x64xf32>
    %cst_85 = arith.constant dense<0xFF800000> : vector<64xf32>
    %162 = vector.multi_reduction <maximumf>, %161, %cst_85 [1] : vector<64x64xf32> to vector<64xf32>
    %163 = vector.shape_cast %162 : vector<64xf32> to vector<64x1xf32>
    %164 = vector.broadcast %163 : vector<64x1xf32> to vector<64x64xf32>
    %165 = arith.subf %161, %164 : vector<64x64xf32>
    %166 = math.exp %165 : vector<64x64xf32>
    %cst_86 = arith.constant dense<0.000000e+00> : vector<64xf32>
    %167 = vector.multi_reduction <add>, %166, %cst_86 [1] : vector<64x64xf32> to vector<64xf32>
    %168 = vector.shape_cast %167 : vector<64xf32> to vector<64x1xf32>
    %169 = tpu.reciprocal %168 {approx = true} : vector<64x1xf32> -> vector<64x1xf32>
    %170 = vector.broadcast %169 : vector<64x1xf32> to vector<64x64xf32>
    %171 = arith.mulf %166, %170 : vector<64x64xf32>
    %172 = arith.truncf %171 : vector<64x64xf32> to vector<64x64xbf16>
    %cst_87 = arith.constant dense<0.000000e+00> : vector<64x32xf32>
    %173 = tpu.matmul %172, %160, %cst_87 {dimension_numbers = #tpu.dot_dimension_numbers<[1], [0], [0], [1], [0, 0, 1, 1], [], []>} : vector<64x64xbf16>, vector<64x32xbf16>, vector<64x32xf32> -> vector<64x32xf32>
    %174 = arith.truncf %173 : vector<64x32xf32> to vector<64x32xbf16>
    %c1_88 = arith.constant 1 : index
    %c0_89 = arith.constant 0 : index
    %c0_90 = arith.constant 0 : index
    %175 = vector.load %arg9[%c1_88, %c0_89, %c0_90] : memref<2x32x64xbf16, #tpu.memory_space<vmem>>, vector<1x32x64xbf16>
    %176 = vector.shape_cast %175 : vector<1x32x64xbf16> to vector<32x64xbf16>
    %cst_91 = arith.constant dense<0.000000e+00> : vector<64x64xf32>
    %177 = tpu.matmul %174, %176, %cst_91 {dimension_numbers = #tpu.dot_dimension_numbers<[1], [0], [0], [1], [0, 0, 1, 1], [], []>} : vector<64x32xbf16>, vector<32x64xbf16>, vector<64x64xf32> -> vector<64x64xf32>
    %178 = arith.addf %126, %177 : vector<64x64xf32>
    %c1_92 = arith.constant 1 : index
    %c0_93 = arith.constant 0 : index
    %c0_94 = arith.constant 0 : index
    %179 = vector.load %arg10[%c1_92, %c0_93, %c0_94] : memref<2x1x64xf32, #tpu.memory_space<vmem>>, vector<1x1x64xf32>
    %180 = vector.shape_cast %179 : vector<1x1x64xf32> to vector<1x64xf32>
    %181 = vector.broadcast %180 : vector<1x64xf32> to vector<64x64xf32>
    %182 = arith.addf %178, %181 : vector<64x64xf32>
    %c1_95 = arith.constant 1 : index
    %c1_96 = arith.constant 1 : index
    %c0_97 = arith.constant 0 : index
    %c0_98 = arith.constant 0 : index
    %183 = vector.load %arg6[%c1_95, %c1_96, %c0_97, %c0_98] : memref<2x2x1x64xf32, #tpu.memory_space<vmem>>, vector<1x1x1x64xf32>
    %184 = vector.shape_cast %183 : vector<1x1x1x64xf32> to vector<1x64xf32>
    %c1_99 = arith.constant 1 : index
    %c1_100 = arith.constant 1 : index
    %c0_101 = arith.constant 0 : index
    %c0_102 = arith.constant 0 : index
    %185 = vector.load %arg7[%c1_99, %c1_100, %c0_101, %c0_102] : memref<2x2x1x64xf32, #tpu.memory_space<vmem>>, vector<1x1x1x64xf32>
    %186 = vector.shape_cast %185 : vector<1x1x1x64xf32> to vector<1x64xf32>
    %cst_103 = arith.constant dense<0.000000e+00> : vector<64xf32>
    %187 = vector.multi_reduction <add>, %182, %cst_103 [1] : vector<64x64xf32> to vector<64xf32>
    %188 = vector.shape_cast %187 : vector<64xf32> to vector<64x1xf32>
    %cst_104 = arith.constant 6.400000e+01 : f32
    %189 = vector.broadcast %cst_104 : f32 to vector<64x1xf32>
    %190 = arith.divf %188, %189 : vector<64x1xf32>
    %191 = vector.broadcast %190 : vector<64x1xf32> to vector<64x64xf32>
    %192 = arith.subf %182, %191 : vector<64x64xf32>
    %193 = arith.mulf %192, %192 : vector<64x64xf32>
    %cst_105 = arith.constant dense<0.000000e+00> : vector<64xf32>
    %194 = vector.multi_reduction <add>, %193, %cst_105 [1] : vector<64x64xf32> to vector<64xf32>
    %195 = vector.shape_cast %194 : vector<64xf32> to vector<64x1xf32>
    %cst_106 = arith.constant 6.400000e+01 : f32
    %196 = vector.broadcast %cst_106 : f32 to vector<64x1xf32>
    %197 = arith.divf %195, %196 : vector<64x1xf32>
    %cst_107 = arith.constant 9.99999974E-6 : f32
    %198 = vector.broadcast %cst_107 : f32 to vector<64x1xf32>
    %199 = arith.addf %197, %198 : vector<64x1xf32>
    %200 = math.rsqrt %199 : vector<64x1xf32>
    %201 = vector.broadcast %200 : vector<64x1xf32> to vector<64x64xf32>
    %202 = arith.mulf %192, %201 : vector<64x64xf32>
    %203 = vector.broadcast %184 : vector<1x64xf32> to vector<64x64xf32>
    %204 = arith.mulf %202, %203 : vector<64x64xf32>
    %205 = vector.broadcast %186 : vector<1x64xf32> to vector<64x64xf32>
    %206 = arith.addf %204, %205 : vector<64x64xf32>
    %207 = arith.truncf %206 : vector<64x64xf32> to vector<64x64xbf16>
    %c1_108 = arith.constant 1 : index
    %c0_109 = arith.constant 0 : index
    %c0_110 = arith.constant 0 : index
    %208 = vector.load %arg11[%c1_108, %c0_109, %c0_110] : memref<2x64x128xbf16, #tpu.memory_space<vmem>>, vector<1x64x128xbf16>
    %209 = vector.shape_cast %208 : vector<1x64x128xbf16> to vector<64x128xbf16>
    %cst_111 = arith.constant dense<0.000000e+00> : vector<64x128xf32>
    %210 = tpu.matmul %207, %209, %cst_111 {dimension_numbers = #tpu.dot_dimension_numbers<[1], [0], [0], [1], [0, 0, 1, 1], [], []>} : vector<64x64xbf16>, vector<64x128xbf16>, vector<64x128xf32> -> vector<64x128xf32>
    %c1_112 = arith.constant 1 : index
    %c0_113 = arith.constant 0 : index
    %c0_114 = arith.constant 0 : index
    %211 = vector.load %arg12[%c1_112, %c0_113, %c0_114] : memref<2x1x128xf32, #tpu.memory_space<vmem>>, vector<1x1x128xf32>
    %212 = vector.shape_cast %211 : vector<1x1x128xf32> to vector<1x128xf32>
    %213 = vector.broadcast %212 : vector<1x128xf32> to vector<64x128xf32>
    %214 = arith.addf %210, %213 : vector<64x128xf32>
    %215 = arith.negf %214 : vector<64x128xf32>
    %216 = math.exp %215 : vector<64x128xf32>
    %cst_115 = arith.constant 1.000000e+00 : f32
    %217 = vector.broadcast %cst_115 : f32 to vector<64x128xf32>
    %218 = arith.addf %217, %216 : vector<64x128xf32>
    %219 = arith.divf %217, %218 : vector<64x128xf32>
    %220 = arith.mulf %214, %219 : vector<64x128xf32>
    %221 = arith.truncf %220 : vector<64x128xf32> to vector<64x128xbf16>
    %c1_116 = arith.constant 1 : index
    %c0_117 = arith.constant 0 : index
    %c0_118 = arith.constant 0 : index
    %222 = vector.load %arg13[%c1_116, %c0_117, %c0_118] : memref<2x128x64xbf16, #tpu.memory_space<vmem>>, vector<1x128x64xbf16>
    %223 = vector.shape_cast %222 : vector<1x128x64xbf16> to vector<128x64xbf16>
    %cst_119 = arith.constant dense<0.000000e+00> : vector<64x64xf32>
    %224 = tpu.matmul %221, %223, %cst_119 {dimension_numbers = #tpu.dot_dimension_numbers<[1], [0], [0], [1], [0, 0, 1, 1], [], []>} : vector<64x128xbf16>, vector<128x64xbf16>, vector<64x64xf32> -> vector<64x64xf32>
    %225 = arith.addf %182, %224 : vector<64x64xf32>
    %c1_120 = arith.constant 1 : index
    %c0_121 = arith.constant 0 : index
    %c0_122 = arith.constant 0 : index
    %226 = vector.load %arg14[%c1_120, %c0_121, %c0_122] : memref<2x1x64xf32, #tpu.memory_space<vmem>>, vector<1x1x64xf32>
    %227 = vector.shape_cast %226 : vector<1x1x64xf32> to vector<1x64xf32>
    %228 = vector.broadcast %227 : vector<1x64xf32> to vector<64x64xf32>
    %229 = arith.addf %225, %228 : vector<64x64xf32>
    %c0_123 = arith.constant 0 : index
    %c0_124 = arith.constant 0 : index
    %230 = vector.load %arg15[%c0_123, %c0_124] : memref<4x64xbf16, #tpu.memory_space<vmem>>, vector<4x64xbf16>
    %231 = arith.truncf %229 : vector<64x64xf32> to vector<64x64xbf16>
    %cst_125 = arith.constant dense<0.000000e+00> : vector<4x64xf32>
    %232 = tpu.matmul %230, %231, %cst_125 {dimension_numbers = #tpu.dot_dimension_numbers<[1], [1], [0], [0], [0, 0, 1, 0], [], []>} : vector<4x64xbf16>, vector<64x64xbf16>, vector<4x64xf32> -> vector<4x64xf32>
    %c0_126 = arith.constant 0 : index
    %c0_127 = arith.constant 0 : index
    %233 = vector.load %arg16[%c0_126, %c0_127] : memref<4x1xf32, #tpu.memory_space<vmem>>, vector<4x1xf32>
    %234 = vector.broadcast %233 : vector<4x1xf32> to vector<4x64xf32>
    %235 = arith.addf %232, %234 : vector<4x64xf32>
    %236 = arith.negf %235 : vector<4x64xf32>
    %237 = math.exp %236 : vector<4x64xf32>
    %cst_128 = arith.constant 1.000000e+00 : f32
    %238 = vector.broadcast %cst_128 : f32 to vector<4x64xf32>
    %239 = arith.addf %238, %237 : vector<4x64xf32>
    %240 = arith.divf %238, %239 : vector<4x64xf32>
    %241 = arith.mulf %235, %240 : vector<4x64xf32>
    %c64 = arith.constant 64 : index
    %c0_129 = arith.constant 0 : index
    %242 = vector.load %arg1[%c64, %c0_129] : memref<128x48xbf16, #tpu.memory_space<vmem>>, vector<64x48xbf16>
    %c0_130 = arith.constant 0 : index
    %c0_131 = arith.constant 0 : index
    %243 = vector.load %arg2[%c0_130, %c0_131] : memref<48x16xbf16, #tpu.memory_space<vmem>>, vector<48x16xbf16>
    %cst_132 = arith.constant dense<0.000000e+00> : vector<64x16xf32>
    %244 = tpu.matmul %242, %243, %cst_132 {dimension_numbers = #tpu.dot_dimension_numbers<[1], [0], [0], [1], [0, 0, 1, 1], [], []>} : vector<64x48xbf16>, vector<48x16xbf16>, vector<64x16xf32> -> vector<64x16xf32>
    %c0_133 = arith.constant 0 : index
    %c0_134 = arith.constant 0 : index
    %245 = vector.load %arg3[%c0_133, %c0_134] : memref<1x16xf32, #tpu.memory_space<vmem>>, vector<1x16xf32>
    %246 = vector.broadcast %245 : vector<1x16xf32> to vector<64x16xf32>
    %247 = arith.addf %244, %246 : vector<64x16xf32>
    %248 = arith.negf %247 : vector<64x16xf32>
    %249 = math.exp %248 : vector<64x16xf32>
    %cst_135 = arith.constant 1.000000e+00 : f32
    %250 = vector.broadcast %cst_135 : f32 to vector<64x16xf32>
    %251 = arith.addf %250, %249 : vector<64x16xf32>
    %252 = arith.divf %250, %251 : vector<64x16xf32>
    %253 = arith.mulf %247, %252 : vector<64x16xf32>
    %254 = arith.truncf %253 : vector<64x16xf32> to vector<64x16xbf16>
    %c0_136 = arith.constant 0 : index
    %c0_137 = arith.constant 0 : index
    %255 = vector.load %arg4[%c0_136, %c0_137] : memref<16x64xbf16, #tpu.memory_space<vmem>>, vector<16x64xbf16>
    %cst_138 = arith.constant dense<0.000000e+00> : vector<64x64xf32>
    %256 = tpu.matmul %254, %255, %cst_138 {dimension_numbers = #tpu.dot_dimension_numbers<[1], [0], [0], [1], [0, 0, 1, 1], [], []>} : vector<64x16xbf16>, vector<16x64xbf16>, vector<64x64xf32> -> vector<64x64xf32>
    %c0_139 = arith.constant 0 : index
    %c0_140 = arith.constant 0 : index
    %257 = vector.load %arg5[%c0_139, %c0_140] : memref<1x64xf32, #tpu.memory_space<vmem>>, vector<1x64xf32>
    %258 = vector.broadcast %257 : vector<1x64xf32> to vector<64x64xf32>
    %259 = arith.addf %256, %258 : vector<64x64xf32>
    %260 = arith.negf %259 : vector<64x64xf32>
    %261 = math.exp %260 : vector<64x64xf32>
    %cst_141 = arith.constant 1.000000e+00 : f32
    %262 = vector.broadcast %cst_141 : f32 to vector<64x64xf32>
    %263 = arith.addf %262, %261 : vector<64x64xf32>
    %264 = arith.divf %262, %263 : vector<64x64xf32>
    %265 = arith.mulf %259, %264 : vector<64x64xf32>
    %c0_142 = arith.constant 0 : index
    %c0_143 = arith.constant 0 : index
    %c0_144 = arith.constant 0 : index
    %c0_145 = arith.constant 0 : index
    %266 = vector.load %arg6[%c0_142, %c0_143, %c0_144, %c0_145] : memref<2x2x1x64xf32, #tpu.memory_space<vmem>>, vector<1x1x1x64xf32>
    %267 = vector.shape_cast %266 : vector<1x1x1x64xf32> to vector<1x64xf32>
    %c0_146 = arith.constant 0 : index
    %c0_147 = arith.constant 0 : index
    %c0_148 = arith.constant 0 : index
    %c0_149 = arith.constant 0 : index
    %268 = vector.load %arg7[%c0_146, %c0_147, %c0_148, %c0_149] : memref<2x2x1x64xf32, #tpu.memory_space<vmem>>, vector<1x1x1x64xf32>
    %269 = vector.shape_cast %268 : vector<1x1x1x64xf32> to vector<1x64xf32>
    %cst_150 = arith.constant dense<0.000000e+00> : vector<64xf32>
    %270 = vector.multi_reduction <add>, %265, %cst_150 [1] : vector<64x64xf32> to vector<64xf32>
    %271 = vector.shape_cast %270 : vector<64xf32> to vector<64x1xf32>
    %cst_151 = arith.constant 6.400000e+01 : f32
    %272 = vector.broadcast %cst_151 : f32 to vector<64x1xf32>
    %273 = arith.divf %271, %272 : vector<64x1xf32>
    %274 = vector.broadcast %273 : vector<64x1xf32> to vector<64x64xf32>
    %275 = arith.subf %265, %274 : vector<64x64xf32>
    %276 = arith.mulf %275, %275 : vector<64x64xf32>
    %cst_152 = arith.constant dense<0.000000e+00> : vector<64xf32>
    %277 = vector.multi_reduction <add>, %276, %cst_152 [1] : vector<64x64xf32> to vector<64xf32>
    %278 = vector.shape_cast %277 : vector<64xf32> to vector<64x1xf32>
    %cst_153 = arith.constant 6.400000e+01 : f32
    %279 = vector.broadcast %cst_153 : f32 to vector<64x1xf32>
    %280 = arith.divf %278, %279 : vector<64x1xf32>
    %cst_154 = arith.constant 9.99999974E-6 : f32
    %281 = vector.broadcast %cst_154 : f32 to vector<64x1xf32>
    %282 = arith.addf %280, %281 : vector<64x1xf32>
    %283 = math.rsqrt %282 : vector<64x1xf32>
    %284 = vector.broadcast %283 : vector<64x1xf32> to vector<64x64xf32>
    %285 = arith.mulf %275, %284 : vector<64x64xf32>
    %286 = vector.broadcast %267 : vector<1x64xf32> to vector<64x64xf32>
    %287 = arith.mulf %285, %286 : vector<64x64xf32>
    %288 = vector.broadcast %269 : vector<1x64xf32> to vector<64x64xf32>
    %289 = arith.addf %287, %288 : vector<64x64xf32>
    %290 = arith.truncf %289 : vector<64x64xf32> to vector<64x64xbf16>
    %c0_155 = arith.constant 0 : index
    %c0_156 = arith.constant 0 : index
    %c0_157 = arith.constant 0 : index
    %291 = vector.load %arg8[%c0_155, %c0_156, %c0_157] : memref<2x64x128xbf16, #tpu.memory_space<vmem>>, vector<1x64x128xbf16>
    %292 = vector.shape_cast %291 : vector<1x64x128xbf16> to vector<64x128xbf16>
    %cst_158 = arith.constant dense<0.000000e+00> : vector<64x128xf32>
    %293 = tpu.matmul %290, %292, %cst_158 {dimension_numbers = #tpu.dot_dimension_numbers<[1], [0], [0], [1], [0, 0, 1, 1], [], []>} : vector<64x64xbf16>, vector<64x128xbf16>, vector<64x128xf32> -> vector<64x128xf32>
    %294 = vector.extract_strided_slice %293 {offsets = [0, 0], sizes = [64, 32], strides = [1, 1]} : vector<64x128xf32> to vector<64x32xf32>
    %295 = arith.truncf %294 : vector<64x32xf32> to vector<64x32xbf16>
    %296 = vector.extract_strided_slice %293 {offsets = [0, 32], sizes = [64, 32], strides = [1, 1]} : vector<64x128xf32> to vector<64x32xf32>
    %297 = arith.truncf %296 : vector<64x32xf32> to vector<64x32xbf16>
    %298 = vector.extract_strided_slice %293 {offsets = [0, 64], sizes = [64, 32], strides = [1, 1]} : vector<64x128xf32> to vector<64x32xf32>
    %299 = arith.truncf %298 : vector<64x32xf32> to vector<64x32xbf16>
    %cst_159 = arith.constant dense<0.000000e+00> : vector<64x64xf32>
    %300 = tpu.matmul %295, %297, %cst_159 {dimension_numbers = #tpu.dot_dimension_numbers<[1], [1], [0], [0], [0, 0, 1, 0], [], []>} : vector<64x32xbf16>, vector<64x32xbf16>, vector<64x64xf32> -> vector<64x64xf32>
    %cst_160 = arith.constant dense<0xFF800000> : vector<64xf32>
    %301 = vector.multi_reduction <maximumf>, %300, %cst_160 [1] : vector<64x64xf32> to vector<64xf32>
    %302 = vector.shape_cast %301 : vector<64xf32> to vector<64x1xf32>
    %303 = vector.broadcast %302 : vector<64x1xf32> to vector<64x64xf32>
    %304 = arith.subf %300, %303 : vector<64x64xf32>
    %305 = math.exp %304 : vector<64x64xf32>
    %cst_161 = arith.constant dense<0.000000e+00> : vector<64xf32>
    %306 = vector.multi_reduction <add>, %305, %cst_161 [1] : vector<64x64xf32> to vector<64xf32>
    %307 = vector.shape_cast %306 : vector<64xf32> to vector<64x1xf32>
    %308 = tpu.reciprocal %307 {approx = true} : vector<64x1xf32> -> vector<64x1xf32>
    %309 = vector.broadcast %308 : vector<64x1xf32> to vector<64x64xf32>
    %310 = arith.mulf %305, %309 : vector<64x64xf32>
    %311 = arith.truncf %310 : vector<64x64xf32> to vector<64x64xbf16>
    %cst_162 = arith.constant dense<0.000000e+00> : vector<64x32xf32>
    %312 = tpu.matmul %311, %299, %cst_162 {dimension_numbers = #tpu.dot_dimension_numbers<[1], [0], [0], [1], [0, 0, 1, 1], [], []>} : vector<64x64xbf16>, vector<64x32xbf16>, vector<64x32xf32> -> vector<64x32xf32>
    %313 = arith.truncf %312 : vector<64x32xf32> to vector<64x32xbf16>
    %c0_163 = arith.constant 0 : index
    %c0_164 = arith.constant 0 : index
    %c0_165 = arith.constant 0 : index
    %314 = vector.load %arg9[%c0_163, %c0_164, %c0_165] : memref<2x32x64xbf16, #tpu.memory_space<vmem>>, vector<1x32x64xbf16>
    %315 = vector.shape_cast %314 : vector<1x32x64xbf16> to vector<32x64xbf16>
    %cst_166 = arith.constant dense<0.000000e+00> : vector<64x64xf32>
    %316 = tpu.matmul %313, %315, %cst_166 {dimension_numbers = #tpu.dot_dimension_numbers<[1], [0], [0], [1], [0, 0, 1, 1], [], []>} : vector<64x32xbf16>, vector<32x64xbf16>, vector<64x64xf32> -> vector<64x64xf32>
    %317 = arith.addf %265, %316 : vector<64x64xf32>
    %c0_167 = arith.constant 0 : index
    %c0_168 = arith.constant 0 : index
    %c0_169 = arith.constant 0 : index
    %318 = vector.load %arg10[%c0_167, %c0_168, %c0_169] : memref<2x1x64xf32, #tpu.memory_space<vmem>>, vector<1x1x64xf32>
    %319 = vector.shape_cast %318 : vector<1x1x64xf32> to vector<1x64xf32>
    %320 = vector.broadcast %319 : vector<1x64xf32> to vector<64x64xf32>
    %321 = arith.addf %317, %320 : vector<64x64xf32>
    %c0_170 = arith.constant 0 : index
    %c1_171 = arith.constant 1 : index
    %c0_172 = arith.constant 0 : index
    %c0_173 = arith.constant 0 : index
    %322 = vector.load %arg6[%c0_170, %c1_171, %c0_172, %c0_173] : memref<2x2x1x64xf32, #tpu.memory_space<vmem>>, vector<1x1x1x64xf32>
    %323 = vector.shape_cast %322 : vector<1x1x1x64xf32> to vector<1x64xf32>
    %c0_174 = arith.constant 0 : index
    %c1_175 = arith.constant 1 : index
    %c0_176 = arith.constant 0 : index
    %c0_177 = arith.constant 0 : index
    %324 = vector.load %arg7[%c0_174, %c1_175, %c0_176, %c0_177] : memref<2x2x1x64xf32, #tpu.memory_space<vmem>>, vector<1x1x1x64xf32>
    %325 = vector.shape_cast %324 : vector<1x1x1x64xf32> to vector<1x64xf32>
    %cst_178 = arith.constant dense<0.000000e+00> : vector<64xf32>
    %326 = vector.multi_reduction <add>, %321, %cst_178 [1] : vector<64x64xf32> to vector<64xf32>
    %327 = vector.shape_cast %326 : vector<64xf32> to vector<64x1xf32>
    %cst_179 = arith.constant 6.400000e+01 : f32
    %328 = vector.broadcast %cst_179 : f32 to vector<64x1xf32>
    %329 = arith.divf %327, %328 : vector<64x1xf32>
    %330 = vector.broadcast %329 : vector<64x1xf32> to vector<64x64xf32>
    %331 = arith.subf %321, %330 : vector<64x64xf32>
    %332 = arith.mulf %331, %331 : vector<64x64xf32>
    %cst_180 = arith.constant dense<0.000000e+00> : vector<64xf32>
    %333 = vector.multi_reduction <add>, %332, %cst_180 [1] : vector<64x64xf32> to vector<64xf32>
    %334 = vector.shape_cast %333 : vector<64xf32> to vector<64x1xf32>
    %cst_181 = arith.constant 6.400000e+01 : f32
    %335 = vector.broadcast %cst_181 : f32 to vector<64x1xf32>
    %336 = arith.divf %334, %335 : vector<64x1xf32>
    %cst_182 = arith.constant 9.99999974E-6 : f32
    %337 = vector.broadcast %cst_182 : f32 to vector<64x1xf32>
    %338 = arith.addf %336, %337 : vector<64x1xf32>
    %339 = math.rsqrt %338 : vector<64x1xf32>
    %340 = vector.broadcast %339 : vector<64x1xf32> to vector<64x64xf32>
    %341 = arith.mulf %331, %340 : vector<64x64xf32>
    %342 = vector.broadcast %323 : vector<1x64xf32> to vector<64x64xf32>
    %343 = arith.mulf %341, %342 : vector<64x64xf32>
    %344 = vector.broadcast %325 : vector<1x64xf32> to vector<64x64xf32>
    %345 = arith.addf %343, %344 : vector<64x64xf32>
    %346 = arith.truncf %345 : vector<64x64xf32> to vector<64x64xbf16>
    %c0_183 = arith.constant 0 : index
    %c0_184 = arith.constant 0 : index
    %c0_185 = arith.constant 0 : index
    %347 = vector.load %arg11[%c0_183, %c0_184, %c0_185] : memref<2x64x128xbf16, #tpu.memory_space<vmem>>, vector<1x64x128xbf16>
    %348 = vector.shape_cast %347 : vector<1x64x128xbf16> to vector<64x128xbf16>
    %cst_186 = arith.constant dense<0.000000e+00> : vector<64x128xf32>
    %349 = tpu.matmul %346, %348, %cst_186 {dimension_numbers = #tpu.dot_dimension_numbers<[1], [0], [0], [1], [0, 0, 1, 1], [], []>} : vector<64x64xbf16>, vector<64x128xbf16>, vector<64x128xf32> -> vector<64x128xf32>
    %c0_187 = arith.constant 0 : index
    %c0_188 = arith.constant 0 : index
    %c0_189 = arith.constant 0 : index
    %350 = vector.load %arg12[%c0_187, %c0_188, %c0_189] : memref<2x1x128xf32, #tpu.memory_space<vmem>>, vector<1x1x128xf32>
    %351 = vector.shape_cast %350 : vector<1x1x128xf32> to vector<1x128xf32>
    %352 = vector.broadcast %351 : vector<1x128xf32> to vector<64x128xf32>
    %353 = arith.addf %349, %352 : vector<64x128xf32>
    %354 = arith.negf %353 : vector<64x128xf32>
    %355 = math.exp %354 : vector<64x128xf32>
    %cst_190 = arith.constant 1.000000e+00 : f32
    %356 = vector.broadcast %cst_190 : f32 to vector<64x128xf32>
    %357 = arith.addf %356, %355 : vector<64x128xf32>
    %358 = arith.divf %356, %357 : vector<64x128xf32>
    %359 = arith.mulf %353, %358 : vector<64x128xf32>
    %360 = arith.truncf %359 : vector<64x128xf32> to vector<64x128xbf16>
    %c0_191 = arith.constant 0 : index
    %c0_192 = arith.constant 0 : index
    %c0_193 = arith.constant 0 : index
    %361 = vector.load %arg13[%c0_191, %c0_192, %c0_193] : memref<2x128x64xbf16, #tpu.memory_space<vmem>>, vector<1x128x64xbf16>
    %362 = vector.shape_cast %361 : vector<1x128x64xbf16> to vector<128x64xbf16>
    %cst_194 = arith.constant dense<0.000000e+00> : vector<64x64xf32>
    %363 = tpu.matmul %360, %362, %cst_194 {dimension_numbers = #tpu.dot_dimension_numbers<[1], [0], [0], [1], [0, 0, 1, 1], [], []>} : vector<64x128xbf16>, vector<128x64xbf16>, vector<64x64xf32> -> vector<64x64xf32>
    %364 = arith.addf %321, %363 : vector<64x64xf32>
    %c0_195 = arith.constant 0 : index
    %c0_196 = arith.constant 0 : index
    %c0_197 = arith.constant 0 : index
    %365 = vector.load %arg14[%c0_195, %c0_196, %c0_197] : memref<2x1x64xf32, #tpu.memory_space<vmem>>, vector<1x1x64xf32>
    %366 = vector.shape_cast %365 : vector<1x1x64xf32> to vector<1x64xf32>
    %367 = vector.broadcast %366 : vector<1x64xf32> to vector<64x64xf32>
    %368 = arith.addf %364, %367 : vector<64x64xf32>
    %c1_198 = arith.constant 1 : index
    %c0_199 = arith.constant 0 : index
    %c0_200 = arith.constant 0 : index
    %c0_201 = arith.constant 0 : index
    %369 = vector.load %arg6[%c1_198, %c0_199, %c0_200, %c0_201] : memref<2x2x1x64xf32, #tpu.memory_space<vmem>>, vector<1x1x1x64xf32>
    %370 = vector.shape_cast %369 : vector<1x1x1x64xf32> to vector<1x64xf32>
    %c1_202 = arith.constant 1 : index
    %c0_203 = arith.constant 0 : index
    %c0_204 = arith.constant 0 : index
    %c0_205 = arith.constant 0 : index
    %371 = vector.load %arg7[%c1_202, %c0_203, %c0_204, %c0_205] : memref<2x2x1x64xf32, #tpu.memory_space<vmem>>, vector<1x1x1x64xf32>
    %372 = vector.shape_cast %371 : vector<1x1x1x64xf32> to vector<1x64xf32>
    %cst_206 = arith.constant dense<0.000000e+00> : vector<64xf32>
    %373 = vector.multi_reduction <add>, %368, %cst_206 [1] : vector<64x64xf32> to vector<64xf32>
    %374 = vector.shape_cast %373 : vector<64xf32> to vector<64x1xf32>
    %cst_207 = arith.constant 6.400000e+01 : f32
    %375 = vector.broadcast %cst_207 : f32 to vector<64x1xf32>
    %376 = arith.divf %374, %375 : vector<64x1xf32>
    %377 = vector.broadcast %376 : vector<64x1xf32> to vector<64x64xf32>
    %378 = arith.subf %368, %377 : vector<64x64xf32>
    %379 = arith.mulf %378, %378 : vector<64x64xf32>
    %cst_208 = arith.constant dense<0.000000e+00> : vector<64xf32>
    %380 = vector.multi_reduction <add>, %379, %cst_208 [1] : vector<64x64xf32> to vector<64xf32>
    %381 = vector.shape_cast %380 : vector<64xf32> to vector<64x1xf32>
    %cst_209 = arith.constant 6.400000e+01 : f32
    %382 = vector.broadcast %cst_209 : f32 to vector<64x1xf32>
    %383 = arith.divf %381, %382 : vector<64x1xf32>
    %cst_210 = arith.constant 9.99999974E-6 : f32
    %384 = vector.broadcast %cst_210 : f32 to vector<64x1xf32>
    %385 = arith.addf %383, %384 : vector<64x1xf32>
    %386 = math.rsqrt %385 : vector<64x1xf32>
    %387 = vector.broadcast %386 : vector<64x1xf32> to vector<64x64xf32>
    %388 = arith.mulf %378, %387 : vector<64x64xf32>
    %389 = vector.broadcast %370 : vector<1x64xf32> to vector<64x64xf32>
    %390 = arith.mulf %388, %389 : vector<64x64xf32>
    %391 = vector.broadcast %372 : vector<1x64xf32> to vector<64x64xf32>
    %392 = arith.addf %390, %391 : vector<64x64xf32>
    %393 = arith.truncf %392 : vector<64x64xf32> to vector<64x64xbf16>
    %c1_211 = arith.constant 1 : index
    %c0_212 = arith.constant 0 : index
    %c0_213 = arith.constant 0 : index
    %394 = vector.load %arg8[%c1_211, %c0_212, %c0_213] : memref<2x64x128xbf16, #tpu.memory_space<vmem>>, vector<1x64x128xbf16>
    %395 = vector.shape_cast %394 : vector<1x64x128xbf16> to vector<64x128xbf16>
    %cst_214 = arith.constant dense<0.000000e+00> : vector<64x128xf32>
    %396 = tpu.matmul %393, %395, %cst_214 {dimension_numbers = #tpu.dot_dimension_numbers<[1], [0], [0], [1], [0, 0, 1, 1], [], []>} : vector<64x64xbf16>, vector<64x128xbf16>, vector<64x128xf32> -> vector<64x128xf32>
    %397 = vector.extract_strided_slice %396 {offsets = [0, 0], sizes = [64, 32], strides = [1, 1]} : vector<64x128xf32> to vector<64x32xf32>
    %398 = arith.truncf %397 : vector<64x32xf32> to vector<64x32xbf16>
    %399 = vector.extract_strided_slice %396 {offsets = [0, 32], sizes = [64, 32], strides = [1, 1]} : vector<64x128xf32> to vector<64x32xf32>
    %400 = arith.truncf %399 : vector<64x32xf32> to vector<64x32xbf16>
    %401 = vector.extract_strided_slice %396 {offsets = [0, 64], sizes = [64, 32], strides = [1, 1]} : vector<64x128xf32> to vector<64x32xf32>
    %402 = arith.truncf %401 : vector<64x32xf32> to vector<64x32xbf16>
    %cst_215 = arith.constant dense<0.000000e+00> : vector<64x64xf32>
    %403 = tpu.matmul %398, %400, %cst_215 {dimension_numbers = #tpu.dot_dimension_numbers<[1], [1], [0], [0], [0, 0, 1, 0], [], []>} : vector<64x32xbf16>, vector<64x32xbf16>, vector<64x64xf32> -> vector<64x64xf32>
    %cst_216 = arith.constant dense<0xFF800000> : vector<64xf32>
    %404 = vector.multi_reduction <maximumf>, %403, %cst_216 [1] : vector<64x64xf32> to vector<64xf32>
    %405 = vector.shape_cast %404 : vector<64xf32> to vector<64x1xf32>
    %406 = vector.broadcast %405 : vector<64x1xf32> to vector<64x64xf32>
    %407 = arith.subf %403, %406 : vector<64x64xf32>
    %408 = math.exp %407 : vector<64x64xf32>
    %cst_217 = arith.constant dense<0.000000e+00> : vector<64xf32>
    %409 = vector.multi_reduction <add>, %408, %cst_217 [1] : vector<64x64xf32> to vector<64xf32>
    %410 = vector.shape_cast %409 : vector<64xf32> to vector<64x1xf32>
    %411 = tpu.reciprocal %410 {approx = true} : vector<64x1xf32> -> vector<64x1xf32>
    %412 = vector.broadcast %411 : vector<64x1xf32> to vector<64x64xf32>
    %413 = arith.mulf %408, %412 : vector<64x64xf32>
    %414 = arith.truncf %413 : vector<64x64xf32> to vector<64x64xbf16>
    %cst_218 = arith.constant dense<0.000000e+00> : vector<64x32xf32>
    %415 = tpu.matmul %414, %402, %cst_218 {dimension_numbers = #tpu.dot_dimension_numbers<[1], [0], [0], [1], [0, 0, 1, 1], [], []>} : vector<64x64xbf16>, vector<64x32xbf16>, vector<64x32xf32> -> vector<64x32xf32>
    %416 = arith.truncf %415 : vector<64x32xf32> to vector<64x32xbf16>
    %c1_219 = arith.constant 1 : index
    %c0_220 = arith.constant 0 : index
    %c0_221 = arith.constant 0 : index
    %417 = vector.load %arg9[%c1_219, %c0_220, %c0_221] : memref<2x32x64xbf16, #tpu.memory_space<vmem>>, vector<1x32x64xbf16>
    %418 = vector.shape_cast %417 : vector<1x32x64xbf16> to vector<32x64xbf16>
    %cst_222 = arith.constant dense<0.000000e+00> : vector<64x64xf32>
    %419 = tpu.matmul %416, %418, %cst_222 {dimension_numbers = #tpu.dot_dimension_numbers<[1], [0], [0], [1], [0, 0, 1, 1], [], []>} : vector<64x32xbf16>, vector<32x64xbf16>, vector<64x64xf32> -> vector<64x64xf32>
    %420 = arith.addf %368, %419 : vector<64x64xf32>
    %c1_223 = arith.constant 1 : index
    %c0_224 = arith.constant 0 : index
    %c0_225 = arith.constant 0 : index
    %421 = vector.load %arg10[%c1_223, %c0_224, %c0_225] : memref<2x1x64xf32, #tpu.memory_space<vmem>>, vector<1x1x64xf32>
    %422 = vector.shape_cast %421 : vector<1x1x64xf32> to vector<1x64xf32>
    %423 = vector.broadcast %422 : vector<1x64xf32> to vector<64x64xf32>
    %424 = arith.addf %420, %423 : vector<64x64xf32>
    %c1_226 = arith.constant 1 : index
    %c1_227 = arith.constant 1 : index
    %c0_228 = arith.constant 0 : index
    %c0_229 = arith.constant 0 : index
    %425 = vector.load %arg6[%c1_226, %c1_227, %c0_228, %c0_229] : memref<2x2x1x64xf32, #tpu.memory_space<vmem>>, vector<1x1x1x64xf32>
    %426 = vector.shape_cast %425 : vector<1x1x1x64xf32> to vector<1x64xf32>
    %c1_230 = arith.constant 1 : index
    %c1_231 = arith.constant 1 : index
    %c0_232 = arith.constant 0 : index
    %c0_233 = arith.constant 0 : index
    %427 = vector.load %arg7[%c1_230, %c1_231, %c0_232, %c0_233] : memref<2x2x1x64xf32, #tpu.memory_space<vmem>>, vector<1x1x1x64xf32>
    %428 = vector.shape_cast %427 : vector<1x1x1x64xf32> to vector<1x64xf32>
    %cst_234 = arith.constant dense<0.000000e+00> : vector<64xf32>
    %429 = vector.multi_reduction <add>, %424, %cst_234 [1] : vector<64x64xf32> to vector<64xf32>
    %430 = vector.shape_cast %429 : vector<64xf32> to vector<64x1xf32>
    %cst_235 = arith.constant 6.400000e+01 : f32
    %431 = vector.broadcast %cst_235 : f32 to vector<64x1xf32>
    %432 = arith.divf %430, %431 : vector<64x1xf32>
    %433 = vector.broadcast %432 : vector<64x1xf32> to vector<64x64xf32>
    %434 = arith.subf %424, %433 : vector<64x64xf32>
    %435 = arith.mulf %434, %434 : vector<64x64xf32>
    %cst_236 = arith.constant dense<0.000000e+00> : vector<64xf32>
    %436 = vector.multi_reduction <add>, %435, %cst_236 [1] : vector<64x64xf32> to vector<64xf32>
    %437 = vector.shape_cast %436 : vector<64xf32> to vector<64x1xf32>
    %cst_237 = arith.constant 6.400000e+01 : f32
    %438 = vector.broadcast %cst_237 : f32 to vector<64x1xf32>
    %439 = arith.divf %437, %438 : vector<64x1xf32>
    %cst_238 = arith.constant 9.99999974E-6 : f32
    %440 = vector.broadcast %cst_238 : f32 to vector<64x1xf32>
    %441 = arith.addf %439, %440 : vector<64x1xf32>
    %442 = math.rsqrt %441 : vector<64x1xf32>
    %443 = vector.broadcast %442 : vector<64x1xf32> to vector<64x64xf32>
    %444 = arith.mulf %434, %443 : vector<64x64xf32>
    %445 = vector.broadcast %426 : vector<1x64xf32> to vector<64x64xf32>
    %446 = arith.mulf %444, %445 : vector<64x64xf32>
    %447 = vector.broadcast %428 : vector<1x64xf32> to vector<64x64xf32>
    %448 = arith.addf %446, %447 : vector<64x64xf32>
    %449 = arith.truncf %448 : vector<64x64xf32> to vector<64x64xbf16>
    %c1_239 = arith.constant 1 : index
    %c0_240 = arith.constant 0 : index
    %c0_241 = arith.constant 0 : index
    %450 = vector.load %arg11[%c1_239, %c0_240, %c0_241] : memref<2x64x128xbf16, #tpu.memory_space<vmem>>, vector<1x64x128xbf16>
    %451 = vector.shape_cast %450 : vector<1x64x128xbf16> to vector<64x128xbf16>
    %cst_242 = arith.constant dense<0.000000e+00> : vector<64x128xf32>
    %452 = tpu.matmul %449, %451, %cst_242 {dimension_numbers = #tpu.dot_dimension_numbers<[1], [0], [0], [1], [0, 0, 1, 1], [], []>} : vector<64x64xbf16>, vector<64x128xbf16>, vector<64x128xf32> -> vector<64x128xf32>
    %c1_243 = arith.constant 1 : index
    %c0_244 = arith.constant 0 : index
    %c0_245 = arith.constant 0 : index
    %453 = vector.load %arg12[%c1_243, %c0_244, %c0_245] : memref<2x1x128xf32, #tpu.memory_space<vmem>>, vector<1x1x128xf32>
    %454 = vector.shape_cast %453 : vector<1x1x128xf32> to vector<1x128xf32>
    %455 = vector.broadcast %454 : vector<1x128xf32> to vector<64x128xf32>
    %456 = arith.addf %452, %455 : vector<64x128xf32>
    %457 = arith.negf %456 : vector<64x128xf32>
    %458 = math.exp %457 : vector<64x128xf32>
    %cst_246 = arith.constant 1.000000e+00 : f32
    %459 = vector.broadcast %cst_246 : f32 to vector<64x128xf32>
    %460 = arith.addf %459, %458 : vector<64x128xf32>
    %461 = arith.divf %459, %460 : vector<64x128xf32>
    %462 = arith.mulf %456, %461 : vector<64x128xf32>
    %463 = arith.truncf %462 : vector<64x128xf32> to vector<64x128xbf16>
    %c1_247 = arith.constant 1 : index
    %c0_248 = arith.constant 0 : index
    %c0_249 = arith.constant 0 : index
    %464 = vector.load %arg13[%c1_247, %c0_248, %c0_249] : memref<2x128x64xbf16, #tpu.memory_space<vmem>>, vector<1x128x64xbf16>
    %465 = vector.shape_cast %464 : vector<1x128x64xbf16> to vector<128x64xbf16>
    %cst_250 = arith.constant dense<0.000000e+00> : vector<64x64xf32>
    %466 = tpu.matmul %463, %465, %cst_250 {dimension_numbers = #tpu.dot_dimension_numbers<[1], [0], [0], [1], [0, 0, 1, 1], [], []>} : vector<64x128xbf16>, vector<128x64xbf16>, vector<64x64xf32> -> vector<64x64xf32>
    %467 = arith.addf %424, %466 : vector<64x64xf32>
    %c1_251 = arith.constant 1 : index
    %c0_252 = arith.constant 0 : index
    %c0_253 = arith.constant 0 : index
    %468 = vector.load %arg14[%c1_251, %c0_252, %c0_253] : memref<2x1x64xf32, #tpu.memory_space<vmem>>, vector<1x1x64xf32>
    %469 = vector.shape_cast %468 : vector<1x1x64xf32> to vector<1x64xf32>
    %470 = vector.broadcast %469 : vector<1x64xf32> to vector<64x64xf32>
    %471 = arith.addf %467, %470 : vector<64x64xf32>
    %c0_254 = arith.constant 0 : index
    %c0_255 = arith.constant 0 : index
    %472 = vector.load %arg15[%c0_254, %c0_255] : memref<4x64xbf16, #tpu.memory_space<vmem>>, vector<4x64xbf16>
    %473 = arith.truncf %471 : vector<64x64xf32> to vector<64x64xbf16>
    %cst_256 = arith.constant dense<0.000000e+00> : vector<4x64xf32>
    %474 = tpu.matmul %472, %473, %cst_256 {dimension_numbers = #tpu.dot_dimension_numbers<[1], [1], [0], [0], [0, 0, 1, 0], [], []>} : vector<4x64xbf16>, vector<64x64xbf16>, vector<4x64xf32> -> vector<4x64xf32>
    %c0_257 = arith.constant 0 : index
    %c0_258 = arith.constant 0 : index
    %475 = vector.load %arg16[%c0_257, %c0_258] : memref<4x1xf32, #tpu.memory_space<vmem>>, vector<4x1xf32>
    %476 = vector.broadcast %475 : vector<4x1xf32> to vector<4x64xf32>
    %477 = arith.addf %474, %476 : vector<4x64xf32>
    %478 = arith.negf %477 : vector<4x64xf32>
    %479 = math.exp %478 : vector<4x64xf32>
    %cst_259 = arith.constant 1.000000e+00 : f32
    %480 = vector.broadcast %cst_259 : f32 to vector<4x64xf32>
    %481 = arith.addf %480, %479 : vector<4x64xf32>
    %482 = arith.divf %480, %481 : vector<4x64xf32>
    %483 = arith.mulf %477, %482 : vector<4x64xf32>
    %484 = tpu.concatenate %241, %483 in 1 : vector<4x64xf32>, vector<4x64xf32> -> vector<4x128xf32>
    %c0_260 = arith.constant 0 : index
    %c0_261 = arith.constant 0 : index
    %485 = vector.load %arg17[%c0_260, %c0_261] : memref<4x128xf32, #tpu.memory_space<vmem>>, vector<4x128xf32>
    tpu.vector_store %arg17[%c0_260, %c0_261], %484 {strides = array<i32>} : memref<4x128xf32, #tpu.memory_space<vmem>>, vector<4x128xf32>,
    return
  }
  func.func @transform_0(%arg0: i32) -> (i32, i32) {
    %c0_i32 = arith.constant 0 : i32
    %c0_i32_0 = arith.constant 0 : i32
    return %arg0, %c0_i32 : i32, i32
  }
  func.func @transform_1(%arg0: i32) -> (i32, i32) {
    %c0_i32 = arith.constant 0 : i32
    %c0_i32_0 = arith.constant 0 : i32
    %c0_i32_1 = arith.constant 0 : i32
    return %c0_i32, %c0_i32_0 : i32, i32
  }
  func.func @transform_2(%arg0: i32) -> (i32, i32) {
    %c0_i32 = arith.constant 0 : i32
    %c0_i32_0 = arith.constant 0 : i32
    %c0_i32_1 = arith.constant 0 : i32
    return %c0_i32, %c0_i32_0 : i32, i32
  }
  func.func @transform_3(%arg0: i32) -> (i32, i32) {
    %c0_i32 = arith.constant 0 : i32
    %c0_i32_0 = arith.constant 0 : i32
    %c0_i32_1 = arith.constant 0 : i32
    return %c0_i32, %c0_i32_0 : i32, i32
  }
  func.func @transform_4(%arg0: i32) -> (i32, i32) {
    %c0_i32 = arith.constant 0 : i32
    %c0_i32_0 = arith.constant 0 : i32
    %c0_i32_1 = arith.constant 0 : i32
    return %c0_i32, %c0_i32_0 : i32, i32
  }
  func.func @transform_5(%arg0: i32) -> (i32, i32, i32, i32) {
    %c0_i32 = arith.constant 0 : i32
    %c0_i32_0 = arith.constant 0 : i32
    %c0_i32_1 = arith.constant 0 : i32
    %c0_i32_2 = arith.constant 0 : i32
    %c0_i32_3 = arith.constant 0 : i32
    return %c0_i32, %c0_i32_0, %c0_i32_1, %c0_i32_2 : i32, i32, i32, i32
  }
  func.func @transform_6(%arg0: i32) -> (i32, i32, i32, i32) {
    %c0_i32 = arith.constant 0 : i32
    %c0_i32_0 = arith.constant 0 : i32
    %c0_i32_1 = arith.constant 0 : i32
    %c0_i32_2 = arith.constant 0 : i32
    %c0_i32_3 = arith.constant 0 : i32
    return %c0_i32, %c0_i32_0, %c0_i32_1, %c0_i32_2 : i32, i32, i32, i32
  }
  func.func @transform_7(%arg0: i32) -> (i32, i32, i32) {
    %c0_i32 = arith.constant 0 : i32
    %c0_i32_0 = arith.constant 0 : i32
    %c0_i32_1 = arith.constant 0 : i32
    %c0_i32_2 = arith.constant 0 : i32
    return %c0_i32, %c0_i32_0, %c0_i32_1 : i32, i32, i32
  }
  func.func @transform_8(%arg0: i32) -> (i32, i32, i32) {
    %c0_i32 = arith.constant 0 : i32
    %c0_i32_0 = arith.constant 0 : i32
    %c0_i32_1 = arith.constant 0 : i32
    %c0_i32_2 = arith.constant 0 : i32
    return %c0_i32, %c0_i32_0, %c0_i32_1 : i32, i32, i32
  }
  func.func @transform_9(%arg0: i32) -> (i32, i32, i32) {
    %c0_i32 = arith.constant 0 : i32
    %c0_i32_0 = arith.constant 0 : i32
    %c0_i32_1 = arith.constant 0 : i32
    %c0_i32_2 = arith.constant 0 : i32
    return %c0_i32, %c0_i32_0, %c0_i32_1 : i32, i32, i32
  }
  func.func @transform_10(%arg0: i32) -> (i32, i32, i32) {
    %c0_i32 = arith.constant 0 : i32
    %c0_i32_0 = arith.constant 0 : i32
    %c0_i32_1 = arith.constant 0 : i32
    %c0_i32_2 = arith.constant 0 : i32
    return %c0_i32, %c0_i32_0, %c0_i32_1 : i32, i32, i32
  }
  func.func @transform_11(%arg0: i32) -> (i32, i32, i32) {
    %c0_i32 = arith.constant 0 : i32
    %c0_i32_0 = arith.constant 0 : i32
    %c0_i32_1 = arith.constant 0 : i32
    %c0_i32_2 = arith.constant 0 : i32
    return %c0_i32, %c0_i32_0, %c0_i32_1 : i32, i32, i32
  }
  func.func @transform_12(%arg0: i32) -> (i32, i32, i32) {
    %c0_i32 = arith.constant 0 : i32
    %c0_i32_0 = arith.constant 0 : i32
    %c0_i32_1 = arith.constant 0 : i32
    %c0_i32_2 = arith.constant 0 : i32
    return %c0_i32, %c0_i32_0, %c0_i32_1 : i32, i32, i32
  }
  func.func @transform_13(%arg0: i32) -> (i32, i32, i32) {
    %c0_i32 = arith.constant 0 : i32
    %c0_i32_0 = arith.constant 0 : i32
    %c0_i32_1 = arith.constant 0 : i32
    %c0_i32_2 = arith.constant 0 : i32
    return %c0_i32, %c0_i32_0, %c0_i32_1 : i32, i32, i32
  }
  func.func @transform_14(%arg0: i32) -> (i32, i32) {
    %c0_i32 = arith.constant 0 : i32
    %c0_i32_0 = arith.constant 0 : i32
    %c0_i32_1 = arith.constant 0 : i32
    return %c0_i32, %c0_i32_0 : i32, i32
  }
  func.func @transform_15(%arg0: i32) -> (i32, i32) {
    %c0_i32 = arith.constant 0 : i32
    %c0_i32_0 = arith.constant 0 : i32
    %c0_i32_1 = arith.constant 0 : i32
    return %c0_i32, %c0_i32_0 : i32, i32
  }
  func.func @transform_16(%arg0: i32) -> (i32, i32) {
    %c0_i32 = arith.constant 0 : i32
    %c0_i32_0 = arith.constant 0 : i32
    return %c0_i32, %arg0 : i32, i32
  }
}

module attributes {stable_mosaic.version = 11 : i64} {
  func.func @_conv4_kernel(%arg0: i32, %arg1: memref<256x80xbf16, #tpu.memory_space<vmem>>, %arg2: memref<4x80xbf16, #tpu.memory_space<vmem>>, %arg3: memref<4x1xf32, #tpu.memory_space<vmem>>, %arg4: memref<1x4x256xf32, #tpu.memory_space<vmem>>) attributes {dimension_semantics = [#tpu.dimension_semantics<parallel>], iteration_bounds = array<i64: 2>, scalar_prefetch = 0 : i64, scratch_operands = 0 : i64, tpu.core_type = #tpu.core_type<tc>, window_params = [{transform_indices = @transform_0, window_bounds = array<i64: 256, 80>}, {pipeline_mode = #tpu.pipeline_mode<synchronous>, transform_indices = @transform_1, window_bounds = array<i64: 4, 80>}, {pipeline_mode = #tpu.pipeline_mode<synchronous>, transform_indices = @transform_2, window_bounds = array<i64: 4, 1>}, {transform_indices = @transform_3, window_bounds = array<i64: 1, 4, 256>}]} {
    %c0 = arith.constant 0 : index
    %c0_0 = arith.constant 0 : index
    %0 = vector.load %arg2[%c0, %c0_0] : memref<4x80xbf16, #tpu.memory_space<vmem>>, vector<4x80xbf16>
    %c0_1 = arith.constant 0 : index
    %c0_2 = arith.constant 0 : index
    %1 = vector.load %arg1[%c0_1, %c0_2] : memref<256x80xbf16, #tpu.memory_space<vmem>>, vector<256x80xbf16>
    %cst = arith.constant dense<0.000000e+00> : vector<4x256xf32>
    %2 = tpu.matmul %0, %1, %cst {dimension_numbers = #tpu.dot_dimension_numbers<[1], [1], [0], [0], [0, 0, 1, 0], [], []>} : vector<4x80xbf16>, vector<256x80xbf16>, vector<4x256xf32> -> vector<4x256xf32>
    %c0_3 = arith.constant 0 : index
    %c0_4 = arith.constant 0 : index
    %3 = vector.load %arg3[%c0_3, %c0_4] : memref<4x1xf32, #tpu.memory_space<vmem>>, vector<4x1xf32>
    %4 = vector.broadcast %3 : vector<4x1xf32> to vector<4x256xf32>
    %5 = arith.addf %2, %4 : vector<4x256xf32>
    %6 = arith.negf %5 : vector<4x256xf32>
    %7 = math.exp %6 : vector<4x256xf32>
    %cst_5 = arith.constant 1.000000e+00 : f32
    %8 = vector.broadcast %cst_5 : f32 to vector<4x256xf32>
    %9 = arith.addf %8, %7 : vector<4x256xf32>
    %10 = arith.divf %8, %9 : vector<4x256xf32>
    %11 = arith.mulf %5, %10 : vector<4x256xf32>
    %12 = vector.shape_cast %11 : vector<4x256xf32> to vector<1x4x256xf32>
    %c0_6 = arith.constant 0 : index
    %c0_7 = arith.constant 0 : index
    %c0_8 = arith.constant 0 : index
    %13 = vector.load %arg4[%c0_6, %c0_7, %c0_8] : memref<1x4x256xf32, #tpu.memory_space<vmem>>, vector<1x4x256xf32>
    tpu.vector_store %arg4[%c0_6, %c0_7, %c0_8], %12 {strides = array<i32>} : memref<1x4x256xf32, #tpu.memory_space<vmem>>, vector<1x4x256xf32>,
    return
  }
  func.func @transform_0(%arg0: i32) -> (i32, i32) {
    %c0_i32 = arith.constant 0 : i32
    %c0_i32_0 = arith.constant 0 : i32
    return %arg0, %c0_i32 : i32, i32
  }
  func.func @transform_1(%arg0: i32) -> (i32, i32) {
    %c0_i32 = arith.constant 0 : i32
    %c0_i32_0 = arith.constant 0 : i32
    %c0_i32_1 = arith.constant 0 : i32
    return %c0_i32, %c0_i32_0 : i32, i32
  }
  func.func @transform_2(%arg0: i32) -> (i32, i32) {
    %c0_i32 = arith.constant 0 : i32
    %c0_i32_0 = arith.constant 0 : i32
    %c0_i32_1 = arith.constant 0 : i32
    return %c0_i32, %c0_i32_0 : i32, i32
  }
  func.func @transform_3(%arg0: i32) -> (i32, i32, i32) {
    %c0_i32 = arith.constant 0 : i32
    %c0_i32_0 = arith.constant 0 : i32
    %c0_i32_1 = arith.constant 0 : i32
    return %arg0, %c0_i32, %c0_i32_0 : i32, i32, i32
  }
}

</mosaic_0001>

<llo_original>
// kernel: mobilevit_block.3
$region0: #{mobilevit_block.3}
  #allocation0 [shape = 'u32[]', space=smem, size = 0x4, offset = 0x4, fixed_abs, tag = 'smem constant byte address 0x4 - core index']
  #allocation1 [shape = 'u32[144,128]{1,0:T(1,128)}', space=vmem, size = 0x12000, scoped, tag = 'internal scratch']
  %s0 = inlined_call_operand.vmem [shape: bf16[512,80], index: 0, kind: input, shape index: {}]
  %s1 = inlined_call_operand.vmem [shape: bf16[4,80], index: 1, kind: input, shape index: {}]
  %s2 = inlined_call_operand.vmem [shape: f32[4,1], index: 2, kind: input, shape index: {}]
  %s3 = inlined_call_operand.vmem [shape: f32[2,4,256], index: 3, kind: output, shape index: {}]
  %s4 = sld [smem:[#allocation0]]
  $region45: #{mobilevit_block.3} parent=0
    _
  %s6 = ssub.s32 1, %s4
  %s7 = scalar_select 0, %s6, %s4
  loop: start=0, step=1, limit=4
  $region2: #{mobilevit_block.3} parent=0 // loop_pre_header
    _
  $region3: #{mobilevit_block.3} parent=0 // loop_header
    %s9 = sphi 0, %s13
    %p10 = scmp.ge.s32.totalorder %s9, 4
    %s19 = sphi 0, %s21
    %s22 = sphi 0, %s19
    %s23 = sphi 0, %s22
    %s39 = sphi 0, %s23
    %s43 = sphi 0, %s43
    %s45 = sphi 0, %s43
    %s46 = sphi 0, %s45
    %s60 = sphi 0, %s46
    %s64 = sphi 0, %s64
    %s66 = sphi 0, %s64
    %s67 = sphi 0, %s66
    %s81 = sphi 0, %s67
    %s87 = sphi 0, %s89
    %s90 = sphi 0, %s87
    %s91 = sphi 0, %s90
    %s107 = sphi 0, %s91
  $region4: #{mobilevit_block.3} parent=0 // loop_header_branch
    %12 = sbr.rel (%p10) target = $region8
  $region5: #{mobilevit_block.3} parent=0 // loop_body
    %s14 = ssub.s32 %s9, 1
    %s15 = ssub.s32 %s9, 2
    %s16 = sadd.s32 %s9, 1
    %s17 = ssub.s32 %s9, %s16
    %p18 = scmp.eq.s32.totalorder %s17, 0
    %s20 = sadd.s32 %s19, 1
    %s21 = scalar_select %p18, %s19, %s20
    %p24 = pneg %p18
    %p25 = scmp.eq.s32.totalorder %s9, 1
    %p26 = por %p24, %p25
    %p27 = scmp.ne.s32.totalorder %s19, %s22
    %p28 = scmp.eq.s32.totalorder %s9, 0
    %p29 = por %p27, %p28
    %p30 = scmp.ne.s32.totalorder %s19, %s22
    %p31 = scmp.eq.s32.totalorder %s14, 1
    %p32 = por %p30, %p31
    %p33 = scmp.ne.s32.totalorder %s22, %s23
    %p34 = scmp.eq.s32.totalorder %s14, 0
    %p35 = por %p33, %p34
    %p36 = scmp.ne.s32.totalorder %s22, %s23
    %p37 = scmp.eq.s32.totalorder %s15, 1
    %p38 = por %p36, %p37
    %p40 = scmp.ne.s32.totalorder %s23, %s39
    %p41 = scmp.eq.s32.totalorder %s15, 0
    %p42 = por %p40, %p41
    %s44 = sadd.s32 %s43, 1
    %p47 = scmp.eq.s32.totalorder %s9, 1
    %p48 = scmp.ne.s32.totalorder %s43, %s45
    %p49 = scmp.eq.s32.totalorder %s9, 0
    %p50 = por %p48, %p49
    %p51 = scmp.ne.s32.totalorder %s43, %s45
    %p52 = scmp.eq.s32.totalorder %s14, 1
    %p53 = por %p51, %p52
    %p54 = scmp.ne.s32.totalorder %s45, %s46
    %p55 = scmp.eq.s32.totalorder %s14, 0
    %p56 = por %p54, %p55
    %p57 = scmp.ne.s32.totalorder %s45, %s46
    %p58 = scmp.eq.s32.totalorder %s15, 1
    %p59 = por %p57, %p58
    %p61 = scmp.ne.s32.totalorder %s46, %s60
    %p62 = scmp.eq.s32.totalorder %s15, 0
    %p63 = por %p61, %p62
    %s65 = sadd.s32 %s64, 1
    %p68 = scmp.eq.s32.totalorder %s9, 1
    %p69 = scmp.ne.s32.totalorder %s64, %s66
    %p70 = scmp.eq.s32.totalorder %s9, 0
    %p71 = por %p69, %p70
    %p72 = scmp.ne.s32.totalorder %s64, %s66
    %p73 = scmp.eq.s32.totalorder %s14, 1
    %p74 = por %p72, %p73
    %p75 = scmp.ne.s32.totalorder %s66, %s67
    %p76 = scmp.eq.s32.totalorder %s14, 0
    %p77 = por %p75, %p76
    %p78 = scmp.ne.s32.totalorder %s66, %s67
    %p79 = scmp.eq.s32.totalorder %s15, 1
    %p80 = por %p78, %p79
    %p82 = scmp.ne.s32.totalorder %s67, %s81
    %p83 = scmp.eq.s32.totalorder %s15, 0
    %p84 = por %p82, %p83
    %s85 = ssub.s32 %s9, %s16
    %p86 = scmp.eq.s32.totalorder %s85, 0
    %s88 = sadd.s32 %s87, 1
    %s89 = scalar_select %p86, %s87, %s88
    %p92 = pneg %p86
    %p93 = scmp.eq.s32.totalorder %s9, 1
    %p94 = por %p92, %p93
    %p95 = scmp.ne.s32.totalorder %s87, %s90
    %p96 = scmp.eq.s32.totalorder %s9, 0
    %p97 = por %p95, %p96
    %p98 = scmp.ne.s32.totalorder %s87, %s90
    %p99 = scmp.eq.s32.totalorder %s14, 1
    %p100 = por %p98, %p99
    %p101 = scmp.ne.s32.totalorder %s90, %s91
    %p102 = scmp.eq.s32.totalorder %s14, 0
    %p103 = por %p101, %p102
    %p104 = scmp.ne.s32.totalorder %s90, %s91
    %p105 = scmp.eq.s32.totalorder %s15, 1
    %p106 = por %p104, %p105
    %p108 = scmp.ne.s32.totalorder %s91, %s107
    %p109 = scmp.eq.s32.totalorder %s15, 0
    %p110 = por %p108, %p109
    %p111 = scmp.le.s32.totalorder 1, %s9
    %p112 = scmp.lt.s32.totalorder %s9, 3
    %p113 = pnand %p111, %p112
    %p114 = pneg %p113
    // Predicated region
    $region9: #{mobilevit_block.3} parent=5 // pred_check
      _
    $region10: #{mobilevit_block.3} parent=5 // pred_check_branch
      %116 = sbr.rel (%p113) target = $region12
    $region11: #{mobilevit_block.3} parent=5 // pred_region
      %s117 = ssub.s32 %s9, 1
      // Predicated region
      $region13: #{mobilevit_block.3} parent=11 // pred_check
        %p118 = pneg %p56
      $region14: #{mobilevit_block.3} parent=11 // pred_check_branch
        %120 = sbr.rel (%p118) target = $region16
      $region15: #{mobilevit_block.3} parent=11 // pred_region
        _
      $region16: #{mobilevit_block.3} parent=11 // pred_fallthru
        _
      // Predicated region
      $region17: #{mobilevit_block.3} parent=11 // pred_check
        %p121 = pneg %p77
      $region18: #{mobilevit_block.3} parent=11 // pred_check_branch
        %123 = sbr.rel (%p121) target = $region20
      $region19: #{mobilevit_block.3} parent=11 // pred_region
        _
      $region20: #{mobilevit_block.3} parent=11 // pred_fallthru
        _
    $region12: #{mobilevit_block.3} parent=5 // pred_fallthru
      _
    %p124 = scmp.lt.s32.totalorder %s9, 2
    // Predicated region
    $region21: #{mobilevit_block.3} parent=5 // pred_check
      %p125 = pneg %p124
    $region22: #{mobilevit_block.3} parent=5 // pred_check_branch
      %127 = sbr.rel (%p125) target = $region24
    $region23: #{mobilevit_block.3} parent=5 // pred_region
      // Predicated region
      $region25: #{mobilevit_block.3} parent=23 // pred_check
        %p128 = pneg %p29
      $region26: #{mobilevit_block.3} parent=23 // pred_check_branch
        %130 = sbr.rel (%p128) target = $region28
      $region27: #{mobilevit_block.3} parent=23 // pred_region
        %s131 = smul.u32 32, %s9
        %p132 = scmp.lt.s32.totalorder %s131, 63
        %s133 = scalar_select %p132, %s131, 63
        %s134 = smul.addr %s133, 4
        %s135 = scalar_lea.vmem %s0, %s134
        %s136 = smul.u32 32, %s9
      $region28: #{mobilevit_block.3} parent=23 // pred_fallthru
        _
    $region24: #{mobilevit_block.3} parent=5 // pred_fallthru
      _
    %p137 = scmp.le.s32.totalorder 1, %s9
    %p138 = scmp.lt.s32.totalorder %s9, 3
    %p139 = pnand %p137, %p138
    %p140 = pneg %p139
    // Predicated region
    $region29: #{mobilevit_block.3} parent=5 // pred_check
      _
    $region30: #{mobilevit_block.3} parent=5 // pred_check_branch
      %142 = sbr.rel (%p139) target = $region32
    $region31: #{mobilevit_block.3} parent=5 // pred_region
      %s143 = ssub.s32 %s9, 1
      %s144 = smul.u32 32, %s14
      %p145 = scmp.lt.s32.totalorder %s144, 63
      %s146 = scalar_select %p145, %s144, 63
      %s147 = smul.addr %s146, 4
      %s148 = scalar_lea.vmem %s0, %s147
      %p149 = pneg %p35
      %p150 = pneg %p32
      %p151 = pneg %p56
      %p152 = pneg %p53
      %p153 = pneg %p77
      %p154 = pneg %p74
      %p155 = pneg %p103
      %p156 = pneg %p100
      %p157 = scmp.lt.s32.totalorder %s14, 1
      %s158 = scalar_select %p157, %s14, 1
      %s159 = smul.addr %s158, 2
      %s160 = smul.addr %s159, 4
      %s161 = scalar_lea.vmem %s3, %s160
      %s162 = smul.u32 32, %s14
      %p163 = scmp.lt.s32.totalorder %s162, 63
      %s164 = scalar_select %p163, %s162, 63
      %s165 = smul.addr %s164, 4
      %s166 = scalar_lea.vmem %s0, %s165
      %s167 = smul.u32 32, %s14
      %p168 = scmp.lt.s32.totalorder %s14, 1
      %s169 = scalar_select %p168, %s14, 1
      %s170 = smul.addr %s169, 2
      %s171 = smul.addr %s170, 4
      %s172 = scalar_lea.vmem %s3, %s171
      %v174 = vld [vmem:[%s1] sm:$0x3]
      %v175 = vld [vmem:[%s166] sm:$0xf]
      %v176 = vld [vmem:[%s166 + $0x4] sm:$0xf]
      %v177 = vld [vmem:[%s166 + $0x8] sm:$0xf]
      %v178 = vld [vmem:[%s166 + $0xc] sm:$0xf]
      %v179 = vld [vmem:[%s166 + $0x10] sm:$0xf]
      %v180 = vld [vmem:[%s166 + $0x14] sm:$0xf]
      %v181 = vld [vmem:[%s166 + $0x18] sm:$0xf]
      %v182 = vld [vmem:[%s166 + $0x1c] sm:$0xf]
      %v183 = vld [vmem:[%s166 + $0x20] sm:$0xf]
      %v184 = vld [vmem:[%s166 + $0x24] sm:$0xf]
      %v185 = vld [vmem:[%s166 + $0x28] sm:$0xf]
      %v186 = vld [vmem:[%s166 + $0x2c] sm:$0xf]
      %v187 = vld [vmem:[%s166 + $0x30] sm:$0xf]
      %v188 = vld [vmem:[%s166 + $0x34] sm:$0xf]
      %v189 = vld [vmem:[%s166 + $0x38] sm:$0xf]
      %v190 = vld [vmem:[%s166 + $0x3c] sm:$0xf]
      %v191 = vld [vmem:[%s166 + $0x40] sm:$0xf]
      %v192 = vld [vmem:[%s166 + $0x44] sm:$0xf]
      %v193 = vld [vmem:[%s166 + $0x48] sm:$0xf]
      %v194 = vld [vmem:[%s166 + $0x4c] sm:$0xf]
      %v195 = vld [vmem:[%s166 + $0x50] sm:$0xf]
      %v196 = vld [vmem:[%s166 + $0x54] sm:$0xf]
      %v197 = vld [vmem:[%s166 + $0x58] sm:$0xf]
      %v198 = vld [vmem:[%s166 + $0x5c] sm:$0xf]
      %v199 = vld [vmem:[%s166 + $0x60] sm:$0xf]
      %v200 = vld [vmem:[%s166 + $0x64] sm:$0xf]
      %v201 = vld [vmem:[%s166 + $0x68] sm:$0xf]
      %v202 = vld [vmem:[%s166 + $0x6c] sm:$0xf]
      %v203 = vld [vmem:[%s166 + $0x70] sm:$0xf]
      %v204 = vld [vmem:[%s166 + $0x74] sm:$0xf]
      %v205 = vld [vmem:[%s166 + $0x78] sm:$0xf]
      %v206 = vld [vmem:[%s166 + $0x7c] sm:$0xf]
      %v207 = vld [vmem:[%s2] sm:$0xf]
      %209 = vset.pattern.permute.xlu0 0
      %210 = vperm.xlu0 %209, %v207
      %v211 = vpop.permute.xlu0 %210
      %v245 = vunpack.c.l.b16 %v175
      %v246 = vunpack.c.l.b16 %v176
      %v247 = vunpack.c.l.b16 %v177
      %v248 = vunpack.c.l.b16 %v178
      %v249 = vunpack.c.l.b16 %v179
      %v250 = vunpack.c.l.b16 %v180
      %v251 = vunpack.c.l.b16 %v181
      %v252 = vunpack.c.l.b16 %v182
      %v253 = vunpack.c.l.b16 %v183
      %v254 = vunpack.c.l.b16 %v184
      %v255 = vunpack.c.l.b16 %v185
      %v256 = vunpack.c.l.b16 %v186
      %v257 = vunpack.c.l.b16 %v187
      %v258 = vunpack.c.l.b16 %v188
      %v259 = vunpack.c.l.b16 %v189
      %v260 = vunpack.c.l.b16 %v190
      %v261 = vunpack.c.l.b16 %v191
      %v262 = vunpack.c.l.b16 %v192
      %v263 = vunpack.c.l.b16 %v193
      %v264 = vunpack.c.l.b16 %v194
      %v265 = vunpack.c.l.b16 %v195
      %v266 = vunpack.c.l.b16 %v196
      %v267 = vunpack.c.l.b16 %v197
      %v268 = vunpack.c.l.b16 %v198
      %v269 = vunpack.c.l.b16 %v199
      %v270 = vunpack.c.l.b16 %v200
      %v271 = vunpack.c.l.b16 %v201
      %v272 = vunpack.c.l.b16 %v202
      %v273 = vunpack.c.l.b16 %v203
      %v274 = vunpack.c.l.b16 %v204
      %v275 = vunpack.c.l.b16 %v205
      %v276 = vunpack.c.l.b16 %v206
      %v277 = vpack.c.b16 %v246, %v245
      %v278 = vpack.c.b16 %v248, %v247
      %v279 = vpack.c.b16 %v250, %v249
      %v280 = vpack.c.b16 %v252, %v251
      %v281 = vpack.c.b16 %v254, %v253
      %v282 = vpack.c.b16 %v256, %v255
      %v283 = vpack.c.b16 %v258, %v257
      %v284 = vpack.c.b16 %v260, %v259
      %v285 = vpack.c.b16 %v262, %v261
      %v286 = vpack.c.b16 %v264, %v263
      %v287 = vpack.c.b16 %v266, %v265
      %v288 = vpack.c.b16 %v268, %v267
      %v289 = vpack.c.b16 %v270, %v269
      %v290 = vpack.c.b16 %v272, %v271
      %v291 = vpack.c.b16 %v274, %v273
      %v292 = vpack.c.b16 %v276, %v275
      %vm293 = vcmask 654336
      %v295 = vsel %vm293, %v174, 0
      %v298 = vsel %vm293, %v277, 0
      %v301 = vsel %vm293, %v278, 0
      %v304 = vsel %vm293, %v279, 0
      %v307 = vsel %vm293, %v280, 0
      %v310 = vsel %vm293, %v281, 0
      %v313 = vsel %vm293, %v282, 0
      %v316 = vsel %vm293, %v283, 0
      %v319 = vsel %vm293, %v284, 0
      %v322 = vsel %vm293, %v285, 0
      %v325 = vsel %vm293, %v286, 0
      %v328 = vsel %vm293, %v287, 0
      %v331 = vsel %vm293, %v288, 0
      %v334 = vsel %vm293, %v289, 0
      %v337 = vsel %vm293, %v290, 0
      %v340 = vsel %vm293, %v291, 0
      %v343 = vsel %vm293, %v292, 0
      %345 = vmatprep.subr.bf16.mxu0 0
      %346 = vmatpush1.bf16.xpose.msra.mxu0 %v298
      %347 = vmatprep.subr.bf16.mxu0 0
      %348 = vmatpush1.bf16.xpose.msra.mxu0 %v301
      %349 = vmatprep.subr.bf16.mxu0 0
      %350 = vmatpush1.bf16.xpose.msra.mxu0 %v304
      %351 = vmatprep.subr.bf16.mxu0 0
      %352 = vmatpush1.bf16.xpose.msra.mxu0 %v307
      %353 = vmatprep.subr.bf16.mxu0 0
      %354 = vmatpush1.bf16.xpose.msra.mxu0 %v310
      %355 = vmatprep.subr.bf16.mxu0 0
      %356 = vmatpush1.bf16.xpose.msra.mxu0 %v313
      %357 = vmatprep.subr.bf16.mxu0 0
      %358 = vmatpush1.bf16.xpose.msra.mxu0 %v316
      %359 = vmatprep.subr.bf16.mxu0 0
      %360 = vmatpush1.bf16.xpose.msra.mxu0 %v319
      %361 = vmatprep.subr.bf16.mxu0 0
      %362 = vmatpush1.bf16.xpose.msra.mxu0 %v322
      %363 = vmatprep.subr.bf16.mxu0 0
      %364 = vmatpush1.bf16.xpose.msra.mxu0 %v325
      %365 = vmatprep.subr.bf16.mxu0 0
      %366 = vmatpush1.bf16.xpose.msra.mxu0 %v328
      %367 = vmatprep.subr.bf16.mxu0 0
      %368 = vmatpush1.bf16.xpose.msra.mxu0 %v331
      %369 = vmatprep.subr.bf16.mxu0 0
      %370 = vmatpush1.bf16.xpose.msra.mxu0 %v334
      %371 = vmatprep.subr.bf16.mxu0 0
      %372 = vmatpush1.bf16.xpose.msra.mxu0 %v337
      %373 = vmatprep.subr.bf16.mxu0 0
      %374 = vmatpush1.bf16.xpose.msra.mxu0 %v340
      %375 = vmatprep.subr.bf16.mxu0 0
      %376 = vmatpush1.bf16.xpose.msra.mxu0 %v343
      %377 = vmatprep.mubr.bf16.mxu0 0
      %378 = vmatmul.mubr.bf16.gmra.mrb[0].mxu0 %v295
      %v379 = vpop.f32.mrb[0].mxu0
      %v380 = vadd.f32 %v211, %v379
      %v381 = vpop.f32.mrb[0].mxu0
      %v382 = vadd.f32 %v211, %v381
      %v383 = vpop.f32.mrb[0].mxu0
      %v384 = vpop.f32.mrb[0].mxu0
      %385 = vdwg.mxu0
      %v386 = vxor.u32 %v380, 2147483648
      %v387 = vxor.u32 %v382, 2147483648
      %v388 = vmul.f32 %v386, 1.442695
      %v389 = vpow.pop %v388
      %v390 = vmul.f32 %v387, 1.442695
      %v391 = vpow.pop %v390
      %v392 = vadd.f32 %v389, 1.0
      %v393 = vadd.f32 %v391, 1.0
      %v394 = vrcp.pop %v392
      %v395 = vmul.f32 1.0, %v394
      %v396 = vrcp.pop %v393
      %v397 = vmul.f32 1.0, %v396
      %v398 = vmul.f32 %v380, %v395
      %v399 = vmul.f32 %v382, %v397
      %v402 = vcombine.low %v398, %v399
      %404 = vst [vmem:[%s172] sm:$0xff] %v402
      %p405 = scmp.lt.s32.totalorder %s14, 1
      %s406 = scalar_select %p405, %s14, 1
      %s407 = smul.addr %s406, 2
      %s408 = smul.addr %s407, 4
      %s409 = scalar_lea.vmem %s3, %s408
      // Predicated region
      $region33: #{mobilevit_block.3} parent=31 // pred_check
        %p410 = pneg %p100
      $region34: #{mobilevit_block.3} parent=31 // pred_check_branch
        %412 = sbr.rel (%p410) target = $region36
      $region35: #{mobilevit_block.3} parent=31 // pred_region
        _
      $region36: #{mobilevit_block.3} parent=31 // pred_fallthru
        _
    $region32: #{mobilevit_block.3} parent=5 // pred_fallthru
      _
    %p413 = scmp.le.s32.totalorder 2, %s9
    // Predicated region
    $region37: #{mobilevit_block.3} parent=5 // pred_check
      %p414 = pneg %p413
    $region38: #{mobilevit_block.3} parent=5 // pred_check_branch
      %416 = sbr.rel (%p414) target = $region40
    $region39: #{mobilevit_block.3} parent=5 // pred_region
      %s417 = ssub.s32 %s9, 2
      // Predicated region
      $region41: #{mobilevit_block.3} parent=39 // pred_check
        %p418 = pneg %p106
      $region42: #{mobilevit_block.3} parent=39 // pred_check_branch
        %420 = sbr.rel (%p418) target = $region44
      $region43: #{mobilevit_block.3} parent=39 // pred_region
        %p421 = scmp.lt.s32.totalorder %s15, 1
        %s422 = scalar_select %p421, %s15, 1
        %s423 = smul.addr %s422, 2
        %s424 = smul.addr %s423, 4
        %s425 = scalar_lea.vmem %s3, %s424
      $region44: #{mobilevit_block.3} parent=39 // pred_fallthru
        _
    $region40: #{mobilevit_block.3} parent=5 // pred_fallthru
      _
  $region6: #{mobilevit_block.3} parent=0 // loop_footer
    %s13 = sadd.s32 1, %s9
  $region7: #{mobilevit_block.3} parent=0 // loop_footer_branch
    %8 = sbr.rel target = $region3
  $region8: #{mobilevit_block.3} parent=0 // loop_exit
    _

// kernel: mobilevit_block.2
$region0: #{mobilevit_block.2}
  #allocation0 [shape = 'u32[]', space=smem, size = 0x4, offset = 0x4, fixed_abs, tag = 'smem constant byte address 0x4 - core index']
  #allocation1 [shape = 'u32[144,128]{1,0:T(1,128)}', space=vmem, size = 0x12000, scoped, tag = 'internal scratch']
  %s0 = inlined_call_operand.vmem [shape: bf16[512,48], index: 0, kind: input, shape index: {}]
  %s1 = inlined_call_operand.vmem [shape: bf16[48,16], index: 1, kind: input, shape index: {}]
  %s2 = inlined_call_operand.vmem [shape: f32[1,16], index: 2, kind: input, shape index: {}]
  %s3 = inlined_call_operand.vmem [shape: bf16[16,64], index: 3, kind: input, shape index: {}]
  %s4 = inlined_call_operand.vmem [shape: f32[1,64], index: 4, kind: input, shape index: {}]
  %s5 = inlined_call_operand.vmem [shape: f32[2,2,1,64], index: 5, kind: input, shape index: {}]
  %s6 = inlined_call_operand.vmem [shape: f32[2,2,1,64], index: 6, kind: input, shape index: {}]
  %s7 = inlined_call_operand.vmem [shape: bf16[2,64,128], index: 7, kind: input, shape index: {}]
  %s8 = inlined_call_operand.vmem [shape: bf16[2,32,64], index: 8, kind: input, shape index: {}]
  %s9 = inlined_call_operand.vmem [shape: f32[2,1,64], index: 9, kind: input, shape index: {}]
  %s10 = inlined_call_operand.vmem [shape: bf16[2,64,128], index: 10, kind: input, shape index: {}]
  %s11 = inlined_call_operand.vmem [shape: f32[2,1,128], index: 11, kind: input, shape index: {}]
  %s12 = inlined_call_operand.vmem [shape: bf16[2,128,64], index: 12, kind: input, shape index: {}]
  %s13 = inlined_call_operand.vmem [shape: f32[2,1,64], index: 13, kind: input, shape index: {}]
  %s14 = inlined_call_operand.vmem [shape: bf16[4,64], index: 14, kind: input, shape index: {}]
  %s15 = inlined_call_operand.vmem [shape: f32[4,1], index: 15, kind: input, shape index: {}]
  %s16 = inlined_call_operand.vmem [shape: f32[4,512], index: 16, kind: output, shape index: {}]
  %s17 = sld [smem:[#allocation0]]
  $region97: #{mobilevit_block.2} parent=0
    _
  %s19 = ssub.s32 1, %s17
  %s20 = scalar_select 0, %s19, %s17
  loop: start=0, step=1, limit=6
  $region2: #{mobilevit_block.2} parent=0 // loop_pre_header
    _
  $region3: #{mobilevit_block.2} parent=0 // loop_header
    %s22 = sphi 0, %s26
    %p23 = scmp.ge.s32.totalorder %s22, 6
    %s32 = sphi 0, %s34
    %s35 = sphi 0, %s32
    %s36 = sphi 0, %s35
    %s52 = sphi 0, %s36
    %s56 = sphi 0, %s56
    %s58 = sphi 0, %s56
    %s59 = sphi 0, %s58
    %s73 = sphi 0, %s59
    %s77 = sphi 0, %s77
    %s79 = sphi 0, %s77
    %s80 = sphi 0, %s79
    %s94 = sphi 0, %s80
    %s98 = sphi 0, %s98
    %s100 = sphi 0, %s98
    %s101 = sphi 0, %s100
    %s115 = sphi 0, %s101
    %s119 = sphi 0, %s119
    %s121 = sphi 0, %s119
    %s122 = sphi 0, %s121
    %s136 = sphi 0, %s122
    %s140 = sphi 0, %s140
    %s142 = sphi 0, %s140
    %s143 = sphi 0, %s142
    %s157 = sphi 0, %s143
    %s161 = sphi 0, %s161
    %s163 = sphi 0, %s161
    %s164 = sphi 0, %s163
    %s178 = sphi 0, %s164
    %s182 = sphi 0, %s182
    %s184 = sphi 0, %s182
    %s185 = sphi 0, %s184
    %s199 = sphi 0, %s185
    %s203 = sphi 0, %s203
    %s205 = sphi 0, %s203
    %s206 = sphi 0, %s205
    %s220 = sphi 0, %s206
    %s224 = sphi 0, %s224
    %s226 = sphi 0, %s224
    %s227 = sphi 0, %s226
    %s241 = sphi 0, %s227
    %s245 = sphi 0, %s245
    %s247 = sphi 0, %s245
    %s248 = sphi 0, %s247
    %s262 = sphi 0, %s248
    %s266 = sphi 0, %s266
    %s268 = sphi 0, %s266
    %s269 = sphi 0, %s268
    %s283 = sphi 0, %s269
    %s287 = sphi 0, %s287
    %s289 = sphi 0, %s287
    %s290 = sphi 0, %s289
    %s304 = sphi 0, %s290
    %s308 = sphi 0, %s308
    %s310 = sphi 0, %s308
    %s311 = sphi 0, %s310
    %s325 = sphi 0, %s311
    %s329 = sphi 0, %s329
    %s331 = sphi 0, %s329
    %s332 = sphi 0, %s331
    %s346 = sphi 0, %s332
    %s350 = sphi 0, %s350
    %s352 = sphi 0, %s350
    %s353 = sphi 0, %s352
    %s367 = sphi 0, %s353
    %s373 = sphi 0, %s375
    %s376 = sphi 0, %s373
    %s377 = sphi 0, %s376
    %s393 = sphi 0, %s377
  $region4: #{mobilevit_block.2} parent=0 // loop_header_branch
    %25 = sbr.rel (%p23) target = $region8
  $region5: #{mobilevit_block.2} parent=0 // loop_body
    %s27 = ssub.s32 %s22, 1
    %s28 = ssub.s32 %s22, 2
    %s29 = sadd.s32 %s22, 1
    %s30 = ssub.s32 %s22, %s29
    %p31 = scmp.eq.s32.totalorder %s30, 0
    %s33 = sadd.s32 %s32, 1
    %s34 = scalar_select %p31, %s32, %s33
    %p37 = pneg %p31
    %p38 = scmp.eq.s32.totalorder %s22, 3
    %p39 = por %p37, %p38
    %p40 = scmp.ne.s32.totalorder %s32, %s35
    %p41 = scmp.eq.s32.totalorder %s22, 0
    %p42 = por %p40, %p41
    %p43 = scmp.ne.s32.totalorder %s32, %s35
    %p44 = scmp.eq.s32.totalorder %s27, 3
    %p45 = por %p43, %p44
    %p46 = scmp.ne.s32.totalorder %s35, %s36
    %p47 = scmp.eq.s32.totalorder %s27, 0
    %p48 = por %p46, %p47
    %p49 = scmp.ne.s32.totalorder %s35, %s36
    %p50 = scmp.eq.s32.totalorder %s28, 3
    %p51 = por %p49, %p50
    %p53 = scmp.ne.s32.totalorder %s36, %s52
    %p54 = scmp.eq.s32.totalorder %s28, 0
    %p55 = por %p53, %p54
    %s57 = sadd.s32 %s56, 1
    %p60 = scmp.eq.s32.totalorder %s22, 3
    %p61 = scmp.ne.s32.totalorder %s56, %s58
    %p62 = scmp.eq.s32.totalorder %s22, 0
    %p63 = por %p61, %p62
    %p64 = scmp.ne.s32.totalorder %s56, %s58
    %p65 = scmp.eq.s32.totalorder %s27, 3
    %p66 = por %p64, %p65
    %p67 = scmp.ne.s32.totalorder %s58, %s59
    %p68 = scmp.eq.s32.totalorder %s27, 0
    %p69 = por %p67, %p68
    %p70 = scmp.ne.s32.totalorder %s58, %s59
    %p71 = scmp.eq.s32.totalorder %s28, 3
    %p72 = por %p70, %p71
    %p74 = scmp.ne.s32.totalorder %s59, %s73
    %p75 = scmp.eq.s32.totalorder %s28, 0
    %p76 = por %p74, %p75
    %s78 = sadd.s32 %s77, 1
    %p81 = scmp.eq.s32.totalorder %s22, 3
    %p82 = scmp.ne.s32.totalorder %s77, %s79
    %p83 = scmp.eq.s32.totalorder %s22, 0
    %p84 = por %p82, %p83
    %p85 = scmp.ne.s32.totalorder %s77, %s79
    %p86 = scmp.eq.s32.totalorder %s27, 3
    %p87 = por %p85, %p86
    %p88 = scmp.ne.s32.totalorder %s79, %s80
    %p89 = scmp.eq.s32.totalorder %s27, 0
    %p90 = por %p88, %p89
    %p91 = scmp.ne.s32.totalorder %s79, %s80
    %p92 = scmp.eq.s32.totalorder %s28, 3
    %p93 = por %p91, %p92
    %p95 = scmp.ne.s32.totalorder %s80, %s94
    %p96 = scmp.eq.s32.totalorder %s28, 0
    %p97 = por %p95, %p96
    %s99 = sadd.s32 %s98, 1
    %p102 = scmp.eq.s32.totalorder %s22, 3
    %p103 = scmp.ne.s32.totalorder %s98, %s100
    %p104 = scmp.eq.s32.totalorder %s22, 0
    %p105 = por %p103, %p104
    %p106 = scmp.ne.s32.totalorder %s98, %s100
    %p107 = scmp.eq.s32.totalorder %s27, 3
    %p108 = por %p106, %p107
    %p109 = scmp.ne.s32.totalorder %s100, %s101
    %p110 = scmp.eq.s32.totalorder %s27, 0
    %p111 = por %p109, %p110
    %p112 = scmp.ne.s32.totalorder %s100, %s101
    %p113 = scmp.eq.s32.totalorder %s28, 3
    %p114 = por %p112, %p113
    %p116 = scmp.ne.s32.totalorder %s101, %s115
    %p117 = scmp.eq.s32.totalorder %s28, 0
    %p118 = por %p116, %p117
    %s120 = sadd.s32 %s119, 1
    %p123 = scmp.eq.s32.totalorder %s22, 3
    %p124 = scmp.ne.s32.totalorder %s119, %s121
    %p125 = scmp.eq.s32.totalorder %s22, 0
    %p126 = por %p124, %p125
    %p127 = scmp.ne.s32.totalorder %s119, %s121
    %p128 = scmp.eq.s32.totalorder %s27, 3
    %p129 = por %p127, %p128
    %p130 = scmp.ne.s32.totalorder %s121, %s122
    %p131 = scmp.eq.s32.totalorder %s27, 0
    %p132 = por %p130, %p131
    %p133 = scmp.ne.s32.totalorder %s121, %s122
    %p134 = scmp.eq.s32.totalorder %s28, 3
    %p135 = por %p133, %p134
    %p137 = scmp.ne.s32.totalorder %s122, %s136
    %p138 = scmp.eq.s32.totalorder %s28, 0
    %p139 = por %p137, %p138
    %s141 = sadd.s32 %s140, 1
    %p144 = scmp.eq.s32.totalorder %s22, 3
    %p145 = scmp.ne.s32.totalorder %s140, %s142
    %p146 = scmp.eq.s32.totalorder %s22, 0
    %p147 = por %p145, %p146
    %p148 = scmp.ne.s32.totalorder %s140, %s142
    %p149 = scmp.eq.s32.totalorder %s27, 3
    %p150 = por %p148, %p149
    %p151 = scmp.ne.s32.totalorder %s142, %s143
    %p152 = scmp.eq.s32.totalorder %s27, 0
    %p153 = por %p151, %p152
    %p154 = scmp.ne.s32.totalorder %s142, %s143
    %p155 = scmp.eq.s32.totalorder %s28, 3
    %p156 = por %p154, %p155
    %p158 = scmp.ne.s32.totalorder %s143, %s157
    %p159 = scmp.eq.s32.totalorder %s28, 0
    %p160 = por %p158, %p159
    %s162 = sadd.s32 %s161, 1
    %p165 = scmp.eq.s32.totalorder %s22, 3
    %p166 = scmp.ne.s32.totalorder %s161, %s163
    %p167 = scmp.eq.s32.totalorder %s22, 0
    %p168 = por %p166, %p167
    %p169 = scmp.ne.s32.totalorder %s161, %s163
    %p170 = scmp.eq.s32.totalorder %s27, 3
    %p171 = por %p169, %p170
    %p172 = scmp.ne.s32.totalorder %s163, %s164
    %p173 = scmp.eq.s32.totalorder %s27, 0
    %p174 = por %p172, %p173
    %p175 = scmp.ne.s32.totalorder %s163, %s164
    %p176 = scmp.eq.s32.totalorder %s28, 3
    %p177 = por %p175, %p176
    %p179 = scmp.ne.s32.totalorder %s164, %s178
    %p180 = scmp.eq.s32.totalorder %s28, 0
    %p181 = por %p179, %p180
    %s183 = sadd.s32 %s182, 1
    %p186 = scmp.eq.s32.totalorder %s22, 3
    %p187 = scmp.ne.s32.totalorder %s182, %s184
    %p188 = scmp.eq.s32.totalorder %s22, 0
    %p189 = por %p187, %p188
    %p190 = scmp.ne.s32.totalorder %s182, %s184
    %p191 = scmp.eq.s32.totalorder %s27, 3
    %p192 = por %p190, %p191
    %p193 = scmp.ne.s32.totalorder %s184, %s185
    %p194 = scmp.eq.s32.totalorder %s27, 0
    %p195 = por %p193, %p194
    %p196 = scmp.ne.s32.totalorder %s184, %s185
    %p197 = scmp.eq.s32.totalorder %s28, 3
    %p198 = por %p196, %p197
    %p200 = scmp.ne.s32.totalorder %s185, %s199
    %p201 = scmp.eq.s32.totalorder %s28, 0
    %p202 = por %p200, %p201
    %s204 = sadd.s32 %s203, 1
    %p207 = scmp.eq.s32.totalorder %s22, 3
    %p208 = scmp.ne.s32.totalorder %s203, %s205
    %p209 = scmp.eq.s32.totalorder %s22, 0
    %p210 = por %p208, %p209
    %p211 = scmp.ne.s32.totalorder %s203, %s205
    %p212 = scmp.eq.s32.totalorder %s27, 3
    %p213 = por %p211, %p212
    %p214 = scmp.ne.s32.totalorder %s205, %s206
    %p215 = scmp.eq.s32.totalorder %s27, 0
    %p216 = por %p214, %p215
    %p217 = scmp.ne.s32.totalorder %s205, %s206
    %p218 = scmp.eq.s32.totalorder %s28, 3
    %p219 = por %p217, %p218
    %p221 = scmp.ne.s32.totalorder %s206, %s220
    %p222 = scmp.eq.s32.totalorder %s28, 0
    %p223 = por %p221, %p222
    %s225 = sadd.s32 %s224, 1
    %p228 = scmp.eq.s32.totalorder %s22, 3
    %p229 = scmp.ne.s32.totalorder %s224, %s226
    %p230 = scmp.eq.s32.totalorder %s22, 0
    %p231 = por %p229, %p230
    %p232 = scmp.ne.s32.totalorder %s224, %s226
    %p233 = scmp.eq.s32.totalorder %s27, 3
    %p234 = por %p232, %p233
    %p235 = scmp.ne.s32.totalorder %s226, %s227
    %p236 = scmp.eq.s32.totalorder %s27, 0
    %p237 = por %p235, %p236
    %p238 = scmp.ne.s32.totalorder %s226, %s227
    %p239 = scmp.eq.s32.totalorder %s28, 3
    %p240 = por %p238, %p239
    %p242 = scmp.ne.s32.totalorder %s227, %s241
    %p243 = scmp.eq.s32.totalorder %s28, 0
    %p244 = por %p242, %p243
    %s246 = sadd.s32 %s245, 1
    %p249 = scmp.eq.s32.totalorder %s22, 3
    %p250 = scmp.ne.s32.totalorder %s245, %s247
    %p251 = scmp.eq.s32.totalorder %s22, 0
    %p252 = por %p250, %p251
    %p253 = scmp.ne.s32.totalorder %s245, %s247
    %p254 = scmp.eq.s32.totalorder %s27, 3
    %p255 = por %p253, %p254
    %p256 = scmp.ne.s32.totalorder %s247, %s248
    %p257 = scmp.eq.s32.totalorder %s27, 0
    %p258 = por %p256, %p257
    %p259 = scmp.ne.s32.totalorder %s247, %s248
    %p260 = scmp.eq.s32.totalorder %s28, 3
    %p261 = por %p259, %p260
    %p263 = scmp.ne.s32.totalorder %s248, %s262
    %p264 = scmp.eq.s32.totalorder %s28, 0
    %p265 = por %p263, %p264
    %s267 = sadd.s32 %s266, 1
    %p270 = scmp.eq.s32.totalorder %s22, 3
    %p271 = scmp.ne.s32.totalorder %s266, %s268
    %p272 = scmp.eq.s32.totalorder %s22, 0
    %p273 = por %p271, %p272
    %p274 = scmp.ne.s32.totalorder %s266, %s268
    %p275 = scmp.eq.s32.totalorder %s27, 3
    %p276 = por %p274, %p275
    %p277 = scmp.ne.s32.totalorder %s268, %s269
    %p278 = scmp.eq.s32.totalorder %s27, 0
    %p279 = por %p277, %p278
    %p280 = scmp.ne.s32.totalorder %s268, %s269
    %p281 = scmp.eq.s32.totalorder %s28, 3
    %p282 = por %p280, %p281
    %p284 = scmp.ne.s32.totalorder %s269, %s283
    %p285 = scmp.eq.s32.totalorder %s28, 0
    %p286 = por %p284, %p285
    %s288 = sadd.s32 %s287, 1
    %p291 = scmp.eq.s32.totalorder %s22, 3
    %p292 = scmp.ne.s32.totalorder %s287, %s289
    %p293 = scmp.eq.s32.totalorder %s22, 0
    %p294 = por %p292, %p293
    %p295 = scmp.ne.s32.totalorder %s287, %s289
    %p296 = scmp.eq.s32.totalorder %s27, 3
    %p297 = por %p295, %p296
    %p298 = scmp.ne.s32.totalorder %s289, %s290
    %p299 = scmp.eq.s32.totalorder %s27, 0
    %p300 = por %p298, %p299
    %p301 = scmp.ne.s32.totalorder %s289, %s290
    %p302 = scmp.eq.s32.totalorder %s28, 3
    %p303 = por %p301, %p302
    %p305 = scmp.ne.s32.totalorder %s290, %s304
    %p306 = scmp.eq.s32.totalorder %s28, 0
    %p307 = por %p305, %p306
    %s309 = sadd.s32 %s308, 1
    %p312 = scmp.eq.s32.totalorder %s22, 3
    %p313 = scmp.ne.s32.totalorder %s308, %s310
    %p314 = scmp.eq.s32.totalorder %s22, 0
    %p315 = por %p313, %p314
    %p316 = scmp.ne.s32.totalorder %s308, %s310
    %p317 = scmp.eq.s32.totalorder %s27, 3
    %p318 = por %p316, %p317
    %p319 = scmp.ne.s32.totalorder %s310, %s311
    %p320 = scmp.eq.s32.totalorder %s27, 0
    %p321 = por %p319, %p320
    %p322 = scmp.ne.s32.totalorder %s310, %s311
    %p323 = scmp.eq.s32.totalorder %s28, 3
    %p324 = por %p322, %p323
    %p326 = scmp.ne.s32.totalorder %s311, %s325
    %p327 = scmp.eq.s32.totalorder %s28, 0
    %p328 = por %p326, %p327
    %s330 = sadd.s32 %s329, 1
    %p333 = scmp.eq.s32.totalorder %s22, 3
    %p334 = scmp.ne.s32.totalorder %s329, %s331
    %p335 = scmp.eq.s32.totalorder %s22, 0
    %p336 = por %p334, %p335
    %p337 = scmp.ne.s32.totalorder %s329, %s331
    %p338 = scmp.eq.s32.totalorder %s27, 3
    %p339 = por %p337, %p338
    %p340 = scmp.ne.s32.totalorder %s331, %s332
    %p341 = scmp.eq.s32.totalorder %s27, 0
    %p342 = por %p340, %p341
    %p343 = scmp.ne.s32.totalorder %s331, %s332
    %p344 = scmp.eq.s32.totalorder %s28, 3
    %p345 = por %p343, %p344
    %p347 = scmp.ne.s32.totalorder %s332, %s346
    %p348 = scmp.eq.s32.totalorder %s28, 0
    %p349 = por %p347, %p348
    %s351 = sadd.s32 %s350, 1
    %p354 = scmp.eq.s32.totalorder %s22, 3
    %p355 = scmp.ne.s32.totalorder %s350, %s352
    %p356 = scmp.eq.s32.totalorder %s22, 0
    %p357 = por %p355, %p356
    %p358 = scmp.ne.s32.totalorder %s350, %s352
    %p359 = scmp.eq.s32.totalorder %s27, 3
    %p360 = por %p358, %p359
    %p361 = scmp.ne.s32.totalorder %s352, %s353
    %p362 = scmp.eq.s32.totalorder %s27, 0
    %p363 = por %p361, %p362
    %p364 = scmp.ne.s32.totalorder %s352, %s353
    %p365 = scmp.eq.s32.totalorder %s28, 3
    %p366 = por %p364, %p365
    %p368 = scmp.ne.s32.totalorder %s353, %s367
    %p369 = scmp.eq.s32.totalorder %s28, 0
    %p370 = por %p368, %p369
    %s371 = ssub.s32 %s22, %s29
    %p372 = scmp.eq.s32.totalorder %s371, 0
    %s374 = sadd.s32 %s373, 1
    %s375 = scalar_select %p372, %s373, %s374
    %p378 = pneg %p372
    %p379 = scmp.eq.s32.totalorder %s22, 3
    %p380 = por %p378, %p379
    %p381 = scmp.ne.s32.totalorder %s373, %s376
    %p382 = scmp.eq.s32.totalorder %s22, 0
    %p383 = por %p381, %p382
    %p384 = scmp.ne.s32.totalorder %s373, %s376
    %p385 = scmp.eq.s32.totalorder %s27, 3
    %p386 = por %p384, %p385
    %p387 = scmp.ne.s32.totalorder %s376, %s377
    %p388 = scmp.eq.s32.totalorder %s27, 0
    %p389 = por %p387, %p388
    %p390 = scmp.ne.s32.totalorder %s376, %s377
    %p391 = scmp.eq.s32.totalorder %s28, 3
    %p392 = por %p390, %p391
    %p394 = scmp.ne.s32.totalorder %s377, %s393
    %p395 = scmp.eq.s32.totalorder %s28, 0
    %p396 = por %p394, %p395
    %p397 = scmp.le.s32.totalorder 1, %s22
    %p398 = scmp.lt.s32.totalorder %s22, 5
    %p399 = pnand %p397, %p398
    %p400 = pneg %p399
    // Predicated region
    $region9: #{mobilevit_block.2} parent=5 // pred_check
      _
    $region10: #{mobilevit_block.2} parent=5 // pred_check_branch
      %402 = sbr.rel (%p399) target = $region12
    $region11: #{mobilevit_block.2} parent=5 // pred_region
      %s403 = ssub.s32 %s22, 1
      // Predicated region
      $region13: #{mobilevit_block.2} parent=11 // pred_check
        %p404 = pneg %p69
      $region14: #{mobilevit_block.2} parent=11 // pred_check_branch
        %406 = sbr.rel (%p404) target = $region16
      $region15: #{mobilevit_block.2} parent=11 // pred_region
        _
      $region16: #{mobilevit_block.2} parent=11 // pred_fallthru
        _
      // Predicated region
      $region17: #{mobilevit_block.2} parent=11 // pred_check
        %p407 = pneg %p90
      $region18: #{mobilevit_block.2} parent=11 // pred_check_branch
        %409 = sbr.rel (%p407) target = $region20
      $region19: #{mobilevit_block.2} parent=11 // pred_region
        _
      $region20: #{mobilevit_block.2} parent=11 // pred_fallthru
        _
      // Predicated region
      $region21: #{mobilevit_block.2} parent=11 // pred_check
        %p410 = pneg %p111
      $region22: #{mobilevit_block.2} parent=11 // pred_check_branch
        %412 = sbr.rel (%p410) target = $region24
      $region23: #{mobilevit_block.2} parent=11 // pred_region
        _
      $region24: #{mobilevit_block.2} parent=11 // pred_fallthru
        _
      // Predicated region
      $region25: #{mobilevit_block.2} parent=11 // pred_check
        %p413 = pneg %p132
      $region26: #{mobilevit_block.2} parent=11 // pred_check_branch
        %415 = sbr.rel (%p413) target = $region28
      $region27: #{mobilevit_block.2} parent=11 // pred_region
        _
      $region28: #{mobilevit_block.2} parent=11 // pred_fallthru
        _
      // Predicated region
      $region29: #{mobilevit_block.2} parent=11 // pred_check
        %p416 = pneg %p153
      $region30: #{mobilevit_block.2} parent=11 // pred_check_branch
        %418 = sbr.rel (%p416) target = $region32
      $region31: #{mobilevit_block.2} parent=11 // pred_region
        _
      $region32: #{mobilevit_block.2} parent=11 // pred_fallthru
        _
      // Predicated region
      $region33: #{mobilevit_block.2} parent=11 // pred_check
        %p419 = pneg %p174
      $region34: #{mobilevit_block.2} parent=11 // pred_check_branch
        %421 = sbr.rel (%p419) target = $region36
      $region35: #{mobilevit_block.2} parent=11 // pred_region
        _
      $region36: #{mobilevit_block.2} parent=11 // pred_fallthru
        _
      // Predicated region
      $region37: #{mobilevit_block.2} parent=11 // pred_check
        %p422 = pneg %p195
      $region38: #{mobilevit_block.2} parent=11 // pred_check_branch
        %424 = sbr.rel (%p422) target = $region40
      $region39: #{mobilevit_block.2} parent=11 // pred_region
        _
      $region40: #{mobilevit_block.2} parent=11 // pred_fallthru
        _
      // Predicated region
      $region41: #{mobilevit_block.2} parent=11 // pred_check
        %p425 = pneg %p216
      $region42: #{mobilevit_block.2} parent=11 // pred_check_branch
        %427 = sbr.rel (%p425) target = $region44
      $region43: #{mobilevit_block.2} parent=11 // pred_region
        _
      $region44: #{mobilevit_block.2} parent=11 // pred_fallthru
        _
      // Predicated region
      $region45: #{mobilevit_block.2} parent=11 // pred_check
        %p428 = pneg %p237
      $region46: #{mobilevit_block.2} parent=11 // pred_check_branch
        %430 = sbr.rel (%p428) target = $region48
      $region47: #{mobilevit_block.2} parent=11 // pred_region
        _
      $region48: #{mobilevit_block.2} parent=11 // pred_fallthru
        _
      // Predicated region
      $region49: #{mobilevit_block.2} parent=11 // pred_check
        %p431 = pneg %p258
      $region50: #{mobilevit_block.2} parent=11 // pred_check_branch
        %433 = sbr.rel (%p431) target = $region52
      $region51: #{mobilevit_block.2} parent=11 // pred_region
        _
      $region52: #{mobilevit_block.2} parent=11 // pred_fallthru
        _
      // Predicated region
      $region53: #{mobilevit_block.2} parent=11 // pred_check
        %p434 = pneg %p279
      $region54: #{mobilevit_block.2} parent=11 // pred_check_branch
        %436 = sbr.rel (%p434) target = $region56
      $region55: #{mobilevit_block.2} parent=11 // pred_region
        _
      $region56: #{mobilevit_block.2} parent=11 // pred_fallthru
        _
      // Predicated region
      $region57: #{mobilevit_block.2} parent=11 // pred_check
        %p437 = pneg %p300
      $region58: #{mobilevit_block.2} parent=11 // pred_check_branch
        %439 = sbr.rel (%p437) target = $region60
      $region59: #{mobilevit_block.2} parent=11 // pred_region
        _
      $region60: #{mobilevit_block.2} parent=11 // pred_fallthru
        _
      // Predicated region
      $region61: #{mobilevit_block.2} parent=11 // pred_check
        %p440 = pneg %p321
      $region62: #{mobilevit_block.2} parent=11 // pred_check_branch
        %442 = sbr.rel (%p440) target = $region64
      $region63: #{mobilevit_block.2} parent=11 // pred_region
        _
      $region64: #{mobilevit_block.2} parent=11 // pred_fallthru
        _
      // Predicated region
      $region65: #{mobilevit_block.2} parent=11 // pred_check
        %p443 = pneg %p342
      $region66: #{mobilevit_block.2} parent=11 // pred_check_branch
        %445 = sbr.rel (%p443) target = $region68
      $region67: #{mobilevit_block.2} parent=11 // pred_region
        _
      $region68: #{mobilevit_block.2} parent=11 // pred_fallthru
        _
      // Predicated region
      $region69: #{mobilevit_block.2} parent=11 // pred_check
        %p446 = pneg %p363
      $region70: #{mobilevit_block.2} parent=11 // pred_check_branch
        %448 = sbr.rel (%p446) target = $region72
      $region71: #{mobilevit_block.2} parent=11 // pred_region
        _
      $region72: #{mobilevit_block.2} parent=11 // pred_fallthru
        _
    $region12: #{mobilevit_block.2} parent=5 // pred_fallthru
      _
    %p449 = scmp.lt.s32.totalorder %s22, 4
    // Predicated region
    $region73: #{mobilevit_block.2} parent=5 // pred_check
      %p450 = pneg %p449
    $region74: #{mobilevit_block.2} parent=5 // pred_check_branch
      %452 = sbr.rel (%p450) target = $region76
    $region75: #{mobilevit_block.2} parent=5 // pred_region
      // Predicated region
      $region77: #{mobilevit_block.2} parent=75 // pred_check
        %p453 = pneg %p42
      $region78: #{mobilevit_block.2} parent=75 // pred_check_branch
        %455 = sbr.rel (%p453) target = $region80
      $region79: #{mobilevit_block.2} parent=75 // pred_region
        %s456 = smul.u32 16, %s22
        %p457 = scmp.lt.s32.totalorder %s456, 63
        %s458 = scalar_select %p457, %s456, 63
        %s459 = smul.addr %s458, 4
        %s460 = scalar_lea.vmem %s0, %s459
        %s461 = smul.u32 16, %s22
      $region80: #{mobilevit_block.2} parent=75 // pred_fallthru
        _
    $region76: #{mobilevit_block.2} parent=5 // pred_fallthru
      _
    %p462 = scmp.le.s32.totalorder 1, %s22
    %p463 = scmp.lt.s32.totalorder %s22, 5
    %p464 = pnand %p462, %p463
    %p465 = pneg %p464
    // Predicated region
    $region81: #{mobilevit_block.2} parent=5 // pred_check
      _
    $region82: #{mobilevit_block.2} parent=5 // pred_check_branch
      %467 = sbr.rel (%p464) target = $region84
    $region83: #{mobilevit_block.2} parent=5 // pred_region
      %s468 = ssub.s32 %s22, 1
      %s469 = smul.u32 16, %s27
      %p470 = scmp.lt.s32.totalorder %s469, 63
      %s471 = scalar_select %p470, %s469, 63
      %s472 = smul.addr %s471, 4
      %s473 = scalar_lea.vmem %s0, %s472
      %p474 = pneg %p48
      %p475 = pneg %p45
      %p476 = pneg %p69
      %p477 = pneg %p66
      %p478 = pneg %p90
      %p479 = pneg %p87
      %p480 = pneg %p111
      %p481 = pneg %p108
      %p482 = pneg %p132
      %p483 = pneg %p129
      %p484 = pneg %p153
      %p485 = pneg %p150
      %p486 = pneg %p174
      %p487 = pneg %p171
      %p488 = pneg %p195
      %p489 = pneg %p192
      %p490 = pneg %p216
      %p491 = pneg %p213
      %p492 = pneg %p237
      %p493 = pneg %p234
      %p494 = pneg %p258
      %p495 = pneg %p255
      %p496 = pneg %p279
      %p497 = pneg %p276
      %p498 = pneg %p300
      %p499 = pneg %p297
      %p500 = pneg %p321
      %p501 = pneg %p318
      %p502 = pneg %p342
      %p503 = pneg %p339
      %p504 = pneg %p363
      %p505 = pneg %p360
      %p506 = pneg %p389
      %p507 = pneg %p386
      %p508 = scmp.lt.s32.totalorder %s27, 3
      %s509 = scalar_select %p508, %s27, 3
      %s510 = smul.addr %s509, 4
      %s511 = scalar_lea.vmem %s16, %s510
      %s512 = smul.u32 16, %s27
      %p513 = scmp.lt.s32.totalorder %s512, 63
      %s514 = scalar_select %p513, %s512, 63
      %s515 = smul.addr %s514, 4
      %s516 = scalar_lea.vmem %s0, %s515
      %s517 = smul.u32 16, %s27
      %p518 = scmp.lt.s32.totalorder %s27, 3
      %s519 = scalar_select %p518, %s27, 3
      %s520 = smul.addr %s519, 4
      %s521 = scalar_lea.vmem %s16, %s520
      %v523 = vld [vmem:[%s516] sm:$0xf]
      %v524 = vld [vmem:[%s516 + $0x4] sm:$0xf]
      %v525 = vld [vmem:[%s516 + $0x8] sm:$0xf]
      %v526 = vld [vmem:[%s516 + $0xc] sm:$0xf]
      %v527 = vld [vmem:[%s516 + $0x10] sm:$0xf]
      %v528 = vld [vmem:[%s516 + $0x14] sm:$0xf]
      %v529 = vld [vmem:[%s516 + $0x18] sm:$0xf]
      %v530 = vld [vmem:[%s516 + $0x1c] sm:$0xf]
      %v531 = vld [vmem:[%s1] sm:$0xf]
      %v532 = vld [vmem:[%s1 + $0x4] sm:$0xf]
      %v533 = vld [vmem:[%s1 + $0x8] sm:$0xf]
      %v534 = vld [vmem:[%s1 + $0xc] sm:$0xf]
      %v535 = vld [vmem:[%s1 + $0x10] sm:$0xf]
      %v536 = vld [vmem:[%s1 + $0x14] sm:$0xf]
      %v537 = vld [vmem:[%s2] sm:$0x1]
      %v539 = vlaneseq
      %v540 = vshrl.u32 %v539, 7
      %v541 = vsub.s32 0, %v540
      %v542 = vrot.slane %v537, %v541
      %v552 = vunpack.c.l.b16 %v523
      %v553 = vunpack.c.l.b16 %v524
      %v554 = vunpack.c.l.b16 %v525
      %v555 = vunpack.c.l.b16 %v526
      %v556 = vunpack.c.l.b16 %v527
      %v557 = vunpack.c.l.b16 %v528
      %v558 = vunpack.c.l.b16 %v529
      %v559 = vunpack.c.l.b16 %v530
      %v560 = vpack.c.b16 %v553, %v552
      %v561 = vpack.c.b16 %v555, %v554
      %v562 = vpack.c.b16 %v557, %v556
      %v563 = vpack.c.b16 %v559, %v558
      %v570 = vunpack.c.l.b16 %v531
      %v571 = vunpack.c.l.b16 %v532
      %v572 = vunpack.c.l.b16 %v533
      %v573 = vunpack.c.l.b16 %v534
      %v574 = vunpack.c.l.b16 %v535
      %v575 = vunpack.c.l.b16 %v536
      %v576 = vpack.c.b16 %v571, %v570
      %v577 = vpack.c.b16 %v573, %v572
      %v578 = vpack.c.b16 %v575, %v574
      %vm582 = vcmask 392192
      %v584 = vsel %vm582, %v560, 0
      %v587 = vsel %vm582, %v561, 0
      %v590 = vsel %vm582, %v562, 0
      %v593 = vsel %vm582, %v563, 0
      %595 = vmatprep.subr.bf16.mxu0 0
      %596 = vmatpush1.bf16.msra.mxu0 %v576
      %597 = vmatprep.subr.bf16.mxu0 0
      %598 = vmatpush1.bf16.msra.mxu0 %v577
      %599 = vmatprep.subr.bf16.mxu0 0
      %600 = vmatpush1.bf16.msra.mxu0 %v578
      %601 = vmatprep.subr.bf16.mxu0 0
      %602 = vmatpush1.bf16.msra.mxu0 0
      %603 = vmatprep.subr.bf16.mxu0 0
      %604 = vmatpush1.bf16.msra.mxu0 0
      %605 = vmatprep.subr.bf16.mxu0 0
      %606 = vmatpush1.bf16.msra.mxu0 0
      %607 = vmatprep.subr.bf16.mxu0 0
      %608 = vmatpush1.bf16.msra.mxu0 0
      %609 = vmatprep.subr.bf16.mxu0 0
      %610 = vmatpush1.bf16.msra.mxu0 0
      %611 = vmatprep.subr.bf16.mxu0 0
      %612 = vmatpush1.bf16.msra.mxu0 0
      %613 = vmatprep.subr.bf16.mxu0 0
      %614 = vmatpush1.bf16.msra.mxu0 0
      %615 = vmatprep.subr.bf16.mxu0 0
      %616 = vmatpush1.bf16.msra.mxu0 0
      %617 = vmatprep.subr.bf16.mxu0 0
      %618 = vmatpush1.bf16.msra.mxu0 0
      %619 = vmatprep.subr.bf16.mxu0 0
      %620 = vmatpush1.bf16.msra.mxu0 0
      %621 = vmatprep.subr.bf16.mxu0 0
      %622 = vmatpush1.bf16.msra.mxu0 0
      %623 = vmatprep.subr.bf16.mxu0 0
      %624 = vmatpush1.bf16.msra.mxu0 0
      %625 = vmatprep.subr.bf16.mxu0 0
      %626 = vmatpush1.bf16.msra.mxu0 0
      %627 = vmatprep.mubr.bf16.mxu0 0
      %628 = vmatmul.mubr.bf16.gmra.mrb[0].mxu0 %v584
      %v629 = vpop.f32.mrb[0].mxu0
      %v630 = vadd.f32 %v542, %v629
      %v631 = vpop.f32.mrb[0].mxu0
      %v632 = vpop.f32.mrb[0].mxu0
      %v633 = vadd.f32 %v542, %v632
      %v634 = vpop.f32.mrb[0].mxu0
      %635 = vmatprep.mubr.bf16.mxu0 0
      %636 = vmatmul.mubr.bf16.gmra.mrb[0].mxu0 %v587
      %v637 = vpop.f32.mrb[0].mxu0
      %v638 = vadd.f32 %v542, %v637
      %v639 = vpop.f32.mrb[0].mxu0
      %v640 = vpop.f32.mrb[0].mxu0
      %v641 = vadd.f32 %v542, %v640
      %v642 = vpop.f32.mrb[0].mxu0
      %643 = vmatprep.mubr.bf16.mxu0 0
      %644 = vmatmul.mubr.bf16.gmra.mrb[0].mxu0 %v590
      %v645 = vpop.f32.mrb[0].mxu0
      %v646 = vadd.f32 %v542, %v645
      %v647 = vpop.f32.mrb[0].mxu0
      %v648 = vpop.f32.mrb[0].mxu0
      %v649 = vadd.f32 %v542, %v648
      %v650 = vpop.f32.mrb[0].mxu0
      %651 = vmatprep.mubr.bf16.mxu0 0
      %652 = vmatmul.mubr.bf16.gmra.mrb[0].mxu0 %v593
      %v653 = vpop.f32.mrb[0].mxu0
      %v654 = vadd.f32 %v542, %v653
      %v655 = vpop.f32.mrb[0].mxu0
      %v656 = vpop.f32.mrb[0].mxu0
      %v657 = vadd.f32 %v542, %v656
      %v658 = vpop.f32.mrb[0].mxu0
      %659 = vdwg.mxu0
      %v660 = vxor.u32 %v630, 2147483648
      %v661 = vxor.u32 %v633, 2147483648
      %v662 = vxor.u32 %v638, 2147483648
      %v663 = vxor.u32 %v641, 2147483648
      %v664 = vxor.u32 %v646, 2147483648
      %v665 = vxor.u32 %v649, 2147483648
      %v666 = vxor.u32 %v654, 2147483648
      %v667 = vxor.u32 %v657, 2147483648
      %v668 = vmul.f32 %v660, 1.442695
      %v669 = vpow.pop %v668
      %v670 = vmul.f32 %v661, 1.442695
      %v671 = vpow.pop %v670
      %v672 = vmul.f32 %v662, 1.442695
      %v673 = vpow.pop %v672
      %v674 = vmul.f32 %v663, 1.442695
      %v675 = vpow.pop %v674
      %v676 = vmul.f32 %v664, 1.442695
      %v677 = vpow.pop %v676
      %v678 = vmul.f32 %v665, 1.442695
      %v679 = vpow.pop %v678
      %v680 = vmul.f32 %v666, 1.442695
      %v681 = vpow.pop %v680
      %v682 = vmul.f32 %v667, 1.442695
      %v683 = vpow.pop %v682
      %v684 = vadd.f32 %v669, 1.0
      %v685 = vadd.f32 %v671, 1.0
      %v686 = vadd.f32 %v673, 1.0
      %v687 = vadd.f32 %v675, 1.0
      %v688 = vadd.f32 %v677, 1.0
      %v689 = vadd.f32 %v679, 1.0
      %v690 = vadd.f32 %v681, 1.0
      %v691 = vadd.f32 %v683, 1.0
      %v692 = vrcp.pop %v684
      %v693 = vmul.f32 1.0, %v692
      %v694 = vrcp.pop %v685
      %v695 = vmul.f32 1.0, %v694
      %v696 = vrcp.pop %v686
      %v697 = vmul.f32 1.0, %v696
      %v698 = vrcp.pop %v687
      %v699 = vmul.f32 1.0, %v698
      %v700 = vrcp.pop %v688
      %v701 = vmul.f32 1.0, %v700
      %v702 = vrcp.pop %v689
      %v703 = vmul.f32 1.0, %v702
      %v704 = vrcp.pop %v690
      %v705 = vmul.f32 1.0, %v704
      %v706 = vrcp.pop %v691
      %v707 = vmul.f32 1.0, %v706
      %v708 = vmul.f32 %v630, %v693
      %v709 = vmul.f32 %v633, %v695
      %v710 = vmul.f32 %v638, %v697
      %v711 = vmul.f32 %v641, %v699
      %v712 = vmul.f32 %v646, %v701
      %v713 = vmul.f32 %v649, %v703
      %v714 = vmul.f32 %v654, %v705
      %v715 = vmul.f32 %v657, %v707
      %v716 = vpack.c.bf16 %v709, %v708
      %v717 = vpack.c.bf16 %v711, %v710
      %v718 = vpack.c.bf16 %v713, %v712
      %v719 = vpack.c.bf16 %v715, %v714
      %v720 = vld [vmem:[%s3] sm:$0xf]
      %v721 = vld [vmem:[%s3 + $0x4] sm:$0xf]
      %v722 = vld [vmem:[%s4] sm:$0x1]
      %v724 = vlaneseq
      %v725 = vshrl.u32 %v724, 7
      %v726 = vsub.s32 0, %v725
      %v727 = vrot.slane %v722, %v726
      %v731 = vunpack.c.l.b16 %v720
      %v732 = vunpack.c.l.b16 %v721
      %v733 = vpack.c.b16 %v732, %v731
      %vm735 = vcmask 130048
      %v737 = vsel %vm735, %v716, 0
      %v740 = vsel %vm735, %v717, 0
      %v743 = vsel %vm735, %v718, 0
      %v746 = vsel %vm735, %v719, 0
      %748 = vmatprep.subr.bf16.mxu0 0
      %749 = vmatpush1.bf16.msra.mxu0 %v733
      %750 = vmatprep.subr.bf16.mxu0 0
      %751 = vmatpush1.bf16.msra.mxu0 0
      %752 = vmatprep.subr.bf16.mxu0 0
      %753 = vmatpush1.bf16.msra.mxu0 0
      %754 = vmatprep.subr.bf16.mxu0 0
      %755 = vmatpush1.bf16.msra.mxu0 0
      %756 = vmatprep.subr.bf16.mxu0 0
      %757 = vmatpush1.bf16.msra.mxu0 0
      %758 = vmatprep.subr.bf16.mxu0 0
      %759 = vmatpush1.bf16.msra.mxu0 0
      %760 = vmatprep.subr.bf16.mxu0 0
      %761 = vmatpush1.bf16.msra.mxu0 0
      %762 = vmatprep.subr.bf16.mxu0 0
      %763 = vmatpush1.bf16.msra.mxu0 0
      %764 = vmatprep.subr.bf16.mxu0 0
      %765 = vmatpush1.bf16.msra.mxu0 0
      %766 = vmatprep.subr.bf16.mxu0 0
      %767 = vmatpush1.bf16.msra.mxu0 0
      %768 = vmatprep.subr.bf16.mxu0 0
      %769 = vmatpush1.bf16.msra.mxu0 0
      %770 = vmatprep.subr.bf16.mxu0 0
      %771 = vmatpush1.bf16.msra.mxu0 0
      %772 = vmatprep.subr.bf16.mxu0 0
      %773 = vmatpush1.bf16.msra.mxu0 0
      %774 = vmatprep.subr.bf16.mxu0 0
      %775 = vmatpush1.bf16.msra.mxu0 0
      %776 = vmatprep.subr.bf16.mxu0 0
      %777 = vmatpush1.bf16.msra.mxu0 0
      %778 = vmatprep.subr.bf16.mxu0 0
      %779 = vmatpush1.bf16.msra.mxu0 0
      %780 = vmatprep.mubr.bf16.mxu0 0
      %781 = vmatmul.mubr.bf16.gmra.mrb[0].mxu0 %v737
      %v782 = vpop.f32.mrb[0].mxu0
      %v783 = vadd.f32 %v727, %v782
      %v784 = vpop.f32.mrb[0].mxu0
      %v785 = vpop.f32.mrb[0].mxu0
      %v786 = vadd.f32 %v727, %v785
      %v787 = vpop.f32.mrb[0].mxu0
      %788 = vmatprep.mubr.bf16.mxu0 0
      %789 = vmatmul.mubr.bf16.gmra.mrb[0].mxu0 %v740
      %v790 = vpop.f32.mrb[0].mxu0
      %v791 = vadd.f32 %v727, %v790
      %v792 = vpop.f32.mrb[0].mxu0
      %v793 = vpop.f32.mrb[0].mxu0
      %v794 = vadd.f32 %v727, %v793
      %v795 = vpop.f32.mrb[0].mxu0
      %796 = vmatprep.mubr.bf16.mxu0 0
      %797 = vmatmul.mubr.bf16.gmra.mrb[0].mxu0 %v743
      %v798 = vpop.f32.mrb[0].mxu0
      %v799 = vadd.f32 %v727, %v798
      %v800 = vpop.f32.mrb[0].mxu0
      %v801 = vpop.f32.mrb[0].mxu0
      %v802 = vadd.f32 %v727, %v801
      %v803 = vpop.f32.mrb[0].mxu0
      %804 = vmatprep.mubr.bf16.mxu0 0
      %805 = vmatmul.mubr.bf16.gmra.mrb[0].mxu0 %v746
      %v806 = vpop.f32.mrb[0].mxu0
      %v807 = vadd.f32 %v727, %v806
      %v808 = vpop.f32.mrb[0].mxu0
      %v809 = vpop.f32.mrb[0].mxu0
      %v810 = vadd.f32 %v727, %v809
      %v811 = vpop.f32.mrb[0].mxu0
      %812 = vdwg.mxu0
      %v813 = vxor.u32 %v783, 2147483648
      %v814 = vxor.u32 %v786, 2147483648
      %v815 = vxor.u32 %v791, 2147483648
      %v816 = vxor.u32 %v794, 2147483648
      %v817 = vxor.u32 %v799, 2147483648
      %v818 = vxor.u32 %v802, 2147483648
      %v819 = vxor.u32 %v807, 2147483648
      %v820 = vxor.u32 %v810, 2147483648
      %v821 = vmul.f32 %v813, 1.442695
      %v822 = vpow.pop %v821
      %v823 = vmul.f32 %v814, 1.442695
      %v824 = vpow.pop %v823
      %v825 = vmul.f32 %v815, 1.442695
      %v826 = vpow.pop %v825
      %v827 = vmul.f32 %v816, 1.442695
      %v828 = vpow.pop %v827
      %v829 = vmul.f32 %v817, 1.442695
      %v830 = vpow.pop %v829
      %v831 = vmul.f32 %v818, 1.442695
      %v832 = vpow.pop %v831
      %v833 = vmul.f32 %v819, 1.442695
      %v834 = vpow.pop %v833
      %v835 = vmul.f32 %v820, 1.442695
      %v836 = vpow.pop %v835
      %v837 = vadd.f32 %v822, 1.0
      %v838 = vadd.f32 %v824, 1.0
      %v839 = vadd.f32 %v826, 1.0
      %v840 = vadd.f32 %v828, 1.0
      %v841 = vadd.f32 %v830, 1.0
      %v842 = vadd.f32 %v832, 1.0
      %v843 = vadd.f32 %v834, 1.0
      %v844 = vadd.f32 %v836, 1.0
      %v845 = vrcp.pop %v837
      %v846 = vmul.f32 1.0, %v845
      %v847 = vrcp.pop %v838
      %v848 = vmul.f32 1.0, %v847
      %v849 = vrcp.pop %v839
      %v850 = vmul.f32 1.0, %v849
      %v851 = vrcp.pop %v840
      %v852 = vmul.f32 1.0, %v851
      %v853 = vrcp.pop %v841
      %v854 = vmul.f32 1.0, %v853
      %v855 = vrcp.pop %v842
      %v856 = vmul.f32 1.0, %v855
      %v857 = vrcp.pop %v843
      %v858 = vmul.f32 1.0, %v857
      %v859 = vrcp.pop %v844
      %v860 = vmul.f32 1.0, %v859
      %v861 = vmul.f32 %v783, %v846
      %v862 = vmul.f32 %v786, %v848
      %v863 = vmul.f32 %v791, %v850
      %v864 = vmul.f32 %v794, %v852
      %v865 = vmul.f32 %v799, %v854
      %v866 = vmul.f32 %v802, %v856
      %v867 = vmul.f32 %v807, %v858
      %v868 = vmul.f32 %v810, %v860
      %v869 = vld [vmem:[%s5] sm:$0x1]
      %v870 = vld [vmem:[%s6] sm:$0x1]
      %vm871 = vcmask 523264
      %v872 = vsel %vm871, %v861, 0.0
      %873 = vadd.xlane.f32.xlu0 %v872
      %v874 = vpop.xlane.xlu0 %873
      %v875 = vsel %vm871, %v862, 0.0
      %876 = vadd.xlane.f32.xlu0 %v875
      %v877 = vpop.xlane.xlu0 %876
      %v878 = vsel %vm871, %v863, 0.0
      %879 = vadd.xlane.f32.xlu0 %v878
      %v880 = vpop.xlane.xlu0 %879
      %v881 = vsel %vm871, %v864, 0.0
      %882 = vadd.xlane.f32.xlu0 %v881
      %v883 = vpop.xlane.xlu0 %882
      %v884 = vsel %vm871, %v865, 0.0
      %885 = vadd.xlane.f32.xlu0 %v884
      %v886 = vpop.xlane.xlu0 %885
      %v887 = vsel %vm871, %v866, 0.0
      %888 = vadd.xlane.f32.xlu0 %v887
      %v889 = vpop.xlane.xlu0 %888
      %v890 = vsel %vm871, %v867, 0.0
      %891 = vadd.xlane.f32.xlu0 %v890
      %v892 = vpop.xlane.xlu0 %891
      %v893 = vsel %vm871, %v868, 0.0
      %894 = vadd.xlane.f32.xlu0 %v893
      %v895 = vpop.xlane.xlu0 %894
      %v896 = vrcp.pop 64.0
      %v897 = vmul.f32 %v874, %v896
      %v898 = vmul.f32 %v877, %v896
      %v899 = vmul.f32 %v880, %v896
      %v900 = vmul.f32 %v883, %v896
      %v901 = vmul.f32 %v886, %v896
      %v902 = vmul.f32 %v889, %v896
      %v903 = vmul.f32 %v892, %v896
      %v904 = vmul.f32 %v895, %v896
      %v905 = vsub.f32 %v861, %v897
      %v906 = vsub.f32 %v862, %v898
      %v907 = vsub.f32 %v863, %v899
      %v908 = vsub.f32 %v864, %v900
      %v909 = vsub.f32 %v865, %v901
      %v910 = vsub.f32 %v866, %v902
      %v911 = vsub.f32 %v867, %v903
      %v912 = vsub.f32 %v868, %v904
      %v913 = vmul.f32 %v905, %v905
      %v914 = vmul.f32 %v906, %v906
      %v915 = vmul.f32 %v907, %v907
      %v916 = vmul.f32 %v908, %v908
      %v917 = vmul.f32 %v909, %v909
      %v918 = vmul.f32 %v910, %v910
      %v919 = vmul.f32 %v911, %v911
      %v920 = vmul.f32 %v912, %v912
      %v921 = vsel %vm871, %v913, 0.0
      %922 = vadd.xlane.f32.xlu0 %v921
      %v923 = vpop.xlane.xlu0 %922
      %v924 = vsel %vm871, %v914, 0.0
      %925 = vadd.xlane.f32.xlu0 %v924
      %v926 = vpop.xlane.xlu0 %925
      %v927 = vsel %vm871, %v915, 0.0
      %928 = vadd.xlane.f32.xlu0 %v927
      %v929 = vpop.xlane.xlu0 %928
      %v930 = vsel %vm871, %v916, 0.0
      %931 = vadd.xlane.f32.xlu0 %v930
      %v932 = vpop.xlane.xlu0 %931
      %v933 = vsel %vm871, %v917, 0.0
      %934 = vadd.xlane.f32.xlu0 %v933
      %v935 = vpop.xlane.xlu0 %934
      %v936 = vsel %vm871, %v918, 0.0
      %937 = vadd.xlane.f32.xlu0 %v936
      %v938 = vpop.xlane.xlu0 %937
      %v939 = vsel %vm871, %v919, 0.0
      %940 = vadd.xlane.f32.xlu0 %v939
      %v941 = vpop.xlane.xlu0 %940
      %v942 = vsel %vm871, %v920, 0.0
      %943 = vadd.xlane.f32.xlu0 %v942
      %v944 = vpop.xlane.xlu0 %943
      %v945 = vmul.f32 %v923, %v896
      %v946 = vmul.f32 %v926, %v896
      %v947 = vmul.f32 %v929, %v896
      %v948 = vmul.f32 %v932, %v896
      %v949 = vmul.f32 %v935, %v896
      %v950 = vmul.f32 %v938, %v896
      %v951 = vmul.f32 %v941, %v896
      %v952 = vmul.f32 %v944, %v896
      %v953 = vadd.f32 %v945, 1e-05
      %v954 = vadd.f32 %v946, 1e-05
      %v955 = vadd.f32 %v947, 1e-05
      %v956 = vadd.f32 %v948, 1e-05
      %v957 = vadd.f32 %v949, 1e-05
      %v958 = vadd.f32 %v950, 1e-05
      %v959 = vadd.f32 %v951, 1e-05
      %v960 = vadd.f32 %v952, 1e-05
      %v961 = vrsqrt.pop %v953
      %v962 = vrsqrt.pop %v954
      %v963 = vrsqrt.pop %v955
      %v964 = vrsqrt.pop %v956
      %v965 = vrsqrt.pop %v957
      %v966 = vrsqrt.pop %v958
      %v967 = vrsqrt.pop %v959
      %v968 = vrsqrt.pop %v960
      %v969 = vmul.f32 %v905, %v961
      %v970 = vmul.f32 %v906, %v962
      %v971 = vmul.f32 %v907, %v963
      %v972 = vmul.f32 %v908, %v964
      %v973 = vmul.f32 %v909, %v965
      %v974 = vmul.f32 %v910, %v966
      %v975 = vmul.f32 %v911, %v967
      %v976 = vmul.f32 %v912, %v968
      %v978 = vlaneseq
      %v979 = vshrl.u32 %v978, 7
      %v980 = vsub.s32 0, %v979
      %v981 = vrot.slane %v869, %v980
      %v983 = vmul.f32 %v969, %v981
      %v984 = vmul.f32 %v970, %v981
      %v985 = vmul.f32 %v971, %v981
      %v986 = vmul.f32 %v972, %v981
      %v987 = vmul.f32 %v973, %v981
      %v988 = vmul.f32 %v974, %v981
      %v989 = vmul.f32 %v975, %v981
      %v990 = vmul.f32 %v976, %v981
      %v992 = vlaneseq
      %v993 = vshrl.u32 %v992, 7
      %v994 = vsub.s32 0, %v993
      %v995 = vrot.slane %v870, %v994
      %v997 = vadd.f32 %v983, %v995
      %v998 = vadd.f32 %v984, %v995
      %v999 = vadd.f32 %v985, %v995
      %v1000 = vadd.f32 %v986, %v995
      %v1001 = vadd.f32 %v987, %v995
      %v1002 = vadd.f32 %v988, %v995
      %v1003 = vadd.f32 %v989, %v995
      %v1004 = vadd.f32 %v990, %v995
      %v1005 = vpack.c.bf16 %v998, %v997
      %v1006 = vpack.c.bf16 %v1000, %v999
      %v1007 = vpack.c.bf16 %v1002, %v1001
      %v1008 = vpack.c.bf16 %v1004, %v1003
      %v1009 = vld [vmem:[%s7] sm:$0xf]
      %v1010 = vld [vmem:[%s7 + $0x4] sm:$0xf]
      %v1011 = vld [vmem:[%s7 + $0x8] sm:$0xf]
      %v1012 = vld [vmem:[%s7 + $0xc] sm:$0xf]
      %v1013 = vld [vmem:[%s7 + $0x10] sm:$0xf]
      %v1014 = vld [vmem:[%s7 + $0x14] sm:$0xf]
      %v1015 = vld [vmem:[%s7 + $0x18] sm:$0xf]
      %v1016 = vld [vmem:[%s7 + $0x1c] sm:$0xf]
      %v1025 = vunpack.c.l.b16 %v1009
      %v1026 = vunpack.c.l.b16 %v1010
      %v1027 = vunpack.c.l.b16 %v1011
      %v1028 = vunpack.c.l.b16 %v1012
      %v1029 = vunpack.c.l.b16 %v1013
      %v1030 = vunpack.c.l.b16 %v1014
      %v1031 = vunpack.c.l.b16 %v1015
      %v1032 = vunpack.c.l.b16 %v1016
      %v1033 = vpack.c.b16 %v1026, %v1025
      %v1034 = vpack.c.b16 %v1028, %v1027
      %v1035 = vpack.c.b16 %v1030, %v1029
      %v1036 = vpack.c.b16 %v1032, %v1031
      %v1042 = vsel %vm871, %v1005, 0
      %v1045 = vsel %vm871, %v1006, 0
      %v1048 = vsel %vm871, %v1007, 0
      %v1051 = vsel %vm871, %v1008, 0
      %1053 = vmatprep.subr.bf16.mxu0 0
      %1054 = vmatpush1.bf16.msra.mxu0 %v1033
      %1055 = vmatprep.subr.bf16.mxu0 0
      %1056 = vmatpush1.bf16.msra.mxu0 %v1034
      %1057 = vmatprep.subr.bf16.mxu0 0
      %1058 = vmatpush1.bf16.msra.mxu0 %v1035
      %1059 = vmatprep.subr.bf16.mxu0 0
      %1060 = vmatpush1.bf16.msra.mxu0 %v1036
      %1061 = vmatprep.subr.bf16.mxu0 0
      %1062 = vmatpush1.bf16.msra.mxu0 0
      %1063 = vmatprep.subr.bf16.mxu0 0
      %1064 = vmatpush1.bf16.msra.mxu0 0
      %1065 = vmatprep.subr.bf16.mxu0 0
      %1066 = vmatpush1.bf16.msra.mxu0 0
      %1067 = vmatprep.subr.bf16.mxu0 0
      %1068 = vmatpush1.bf16.msra.mxu0 0
      %1069 = vmatprep.subr.bf16.mxu0 0
      %1070 = vmatpush1.bf16.msra.mxu0 0
      %1071 = vmatprep.subr.bf16.mxu0 0
      %1072 = vmatpush1.bf16.msra.mxu0 0
      %1073 = vmatprep.subr.bf16.mxu0 0
      %1074 = vmatpush1.bf16.msra.mxu0 0
      %1075 = vmatprep.subr.bf16.mxu0 0
      %1076 = vmatpush1.bf16.msra.mxu0 0
      %1077 = vmatprep.subr.bf16.mxu0 0
      %1078 = vmatpush1.bf16.msra.mxu0 0
      %1079 = vmatprep.subr.bf16.mxu0 0
      %1080 = vmatpush1.bf16.msra.mxu0 0
      %1081 = vmatprep.subr.bf16.mxu0 0
      %1082 = vmatpush1.bf16.msra.mxu0 0
      %1083 = vmatprep.subr.bf16.mxu0 0
      %1084 = vmatpush1.bf16.msra.mxu0 0
      %1085 = vmatprep.mubr.bf16.mxu0 0
      %1086 = vmatmul.mubr.bf16.gmra.mrb[0].mxu0 %v1042
      %v1087 = vpop.f32.mrb[0].mxu0
      %v1088 = vadd.f32 0.0, %v1087
      %v1089 = vpop.f32.mrb[0].mxu0
      %v1090 = vpop.f32.mrb[0].mxu0
      %v1091 = vadd.f32 0.0, %v1090
      %v1092 = vpop.f32.mrb[0].mxu0
      %1093 = vmatprep.mubr.bf16.mxu0 0
      %1094 = vmatmul.mubr.bf16.gmra.mrb[0].mxu0 %v1045
      %v1095 = vpop.f32.mrb[0].mxu0
      %v1096 = vadd.f32 0.0, %v1095
      %v1097 = vpop.f32.mrb[0].mxu0
      %v1098 = vpop.f32.mrb[0].mxu0
      %v1099 = vadd.f32 0.0, %v1098
      %v1100 = vpop.f32.mrb[0].mxu0
      %1101 = vmatprep.mubr.bf16.mxu0 0
      %1102 = vmatmul.mubr.bf16.gmra.mrb[0].mxu0 %v1048
      %v1103 = vpop.f32.mrb[0].mxu0
      %v1104 = vadd.f32 0.0, %v1103
      %v1105 = vpop.f32.mrb[0].mxu0
      %v1106 = vpop.f32.mrb[0].mxu0
      %v1107 = vadd.f32 0.0, %v1106
      %v1108 = vpop.f32.mrb[0].mxu0
      %1109 = vmatprep.mubr.bf16.mxu0 0
      %1110 = vmatmul.mubr.bf16.gmra.mrb[0].mxu0 %v1051
      %v1111 = vpop.f32.mrb[0].mxu0
      %v1112 = vadd.f32 0.0, %v1111
      %v1113 = vpop.f32.mrb[0].mxu0
      %v1114 = vpop.f32.mrb[0].mxu0
      %v1115 = vadd.f32 0.0, %v1114
      %v1116 = vpop.f32.mrb[0].mxu0
      %1117 = vdwg.mxu0
      %v1118 = vpack.c.bf16 %v1091, %v1088
      %v1119 = vpack.c.bf16 %v1099, %v1096
      %v1120 = vpack.c.bf16 %v1107, %v1104
      %v1121 = vpack.c.bf16 %v1115, %v1112
      %1126 = vrot.lane.b32.xlu0 %v1118, 96
      %v1127 = vpop.permute.xlu0 %1126
      %1128 = vrot.lane.b32.xlu0 %v1119, 96
      %v1129 = vpop.permute.xlu0 %1128
      %1130 = vrot.lane.b32.xlu0 %v1120, 96
      %v1131 = vpop.permute.xlu0 %1130
      %1132 = vrot.lane.b32.xlu0 %v1121, 96
      %v1133 = vpop.permute.xlu0 %1132
      %vm1134 = vcmask 261120
      %v1136 = vsel %vm1134, %v1118, 0
      %v1139 = vsel %vm1134, %v1119, 0
      %v1142 = vsel %vm1134, %v1120, 0
      %v1145 = vsel %vm1134, %v1121, 0
      %v1148 = vsel %vm1134, %v1127, 0
      %v1151 = vsel %vm1134, %v1129, 0
      %v1154 = vsel %vm1134, %v1131, 0
      %v1157 = vsel %vm1134, %v1133, 0
      %1159 = vmatprep.subr.bf16.mxu0 0
      %1160 = vmatpush1.bf16.xpose.msra.mxu0 %v1148
      %1161 = vmatprep.subr.bf16.mxu0 0
      %1162 = vmatpush1.bf16.xpose.msra.mxu0 %v1151
      %1163 = vmatprep.subr.bf16.mxu0 0
      %1164 = vmatpush1.bf16.xpose.msra.mxu0 %v1154
      %1165 = vmatprep.subr.bf16.mxu0 0
      %1166 = vmatpush1.bf16.xpose.msra.mxu0 %v1157
      %1167 = vmatprep.subr.bf16.mxu0 0
      %1168 = vmatpush1.bf16.xpose.msra.mxu0 0
      %1169 = vmatprep.subr.bf16.mxu0 0
      %1170 = vmatpush1.bf16.xpose.msra.mxu0 0
      %1171 = vmatprep.subr.bf16.mxu0 0
      %1172 = vmatpush1.bf16.xpose.msra.mxu0 0
      %1173 = vmatprep.subr.bf16.mxu0 0
      %1174 = vmatpush1.bf16.xpose.msra.mxu0 0
      %1175 = vmatprep.subr.bf16.mxu0 0
      %1176 = vmatpush1.bf16.xpose.msra.mxu0 0
      %1177 = vmatprep.subr.bf16.mxu0 0
      %1178 = vmatpush1.bf16.xpose.msra.mxu0 0
      %1179 = vmatprep.subr.bf16.mxu0 0
      %1180 = vmatpush1.bf16.xpose.msra.mxu0 0
      %1181 = vmatprep.subr.bf16.mxu0 0
      %1182 = vmatpush1.bf16.xpose.msra.mxu0 0
      %1183 = vmatprep.subr.bf16.mxu0 0
      %1184 = vmatpush1.bf16.xpose.msra.mxu0 0
      %1185 = vmatprep.subr.bf16.mxu0 0
      %1186 = vmatpush1.bf16.xpose.msra.mxu0 0
      %1187 = vmatprep.subr.bf16.mxu0 0
      %1188 = vmatpush1.bf16.xpose.msra.mxu0 0
      %1189 = vmatprep.subr.bf16.mxu0 0
      %1190 = vmatpush1.bf16.xpose.msra.mxu0 0
      %1191 = vmatprep.mubr.bf16.mxu0 0
      %1192 = vmatmul.mubr.bf16.gmra.mrb[0].mxu0 %v1136
      %v1193 = vpop.f32.mrb[0].mxu0
      %v1194 = vadd.f32 0.0, %v1193
      %v1195 = vpop.f32.mrb[0].mxu0
      %v1196 = vpop.f32.mrb[0].mxu0
      %v1197 = vadd.f32 0.0, %v1196
      %v1198 = vpop.f32.mrb[0].mxu0
      %1199 = vmatprep.mubr.bf16.mxu0 0
      %1200 = vmatmul.mubr.bf16.gmra.mrb[0].mxu0 %v1139
      %v1201 = vpop.f32.mrb[0].mxu0
      %v1202 = vadd.f32 0.0, %v1201
      %v1203 = vpop.f32.mrb[0].mxu0
      %v1204 = vpop.f32.mrb[0].mxu0
      %v1205 = vadd.f32 0.0, %v1204
      %v1206 = vpop.f32.mrb[0].mxu0
      %1207 = vmatprep.mubr.bf16.mxu0 0
      %1208 = vmatmul.mubr.bf16.gmra.mrb[0].mxu0 %v1142
      %v1209 = vpop.f32.mrb[0].mxu0
      %v1210 = vadd.f32 0.0, %v1209
      %v1211 = vpop.f32.mrb[0].mxu0
      %v1212 = vpop.f32.mrb[0].mxu0
      %v1213 = vadd.f32 0.0, %v1212
      %v1214 = vpop.f32.mrb[0].mxu0
      %1215 = vmatprep.mubr.bf16.mxu0 0
      %1216 = vmatmul.mubr.bf16.gmra.mrb[0].mxu0 %v1145
      %v1217 = vpop.f32.mrb[0].mxu0
      %v1218 = vadd.f32 0.0, %v1217
      %v1219 = vpop.f32.mrb[0].mxu0
      %v1220 = vpop.f32.mrb[0].mxu0
      %v1221 = vadd.f32 0.0, %v1220
      %v1222 = vpop.f32.mrb[0].mxu0
      %1223 = vdwg.mxu0
      %v1224 = vsel %vm871, %v1194, -inf
      %1225 = vmax.xlane.f32.xlu0 %v1224
      %v1226 = vpop.xlane.xlu0 %1225
      %v1227 = vsel %vm871, %v1197, -inf
      %1228 = vmax.xlane.f32.xlu0 %v1227
      %v1229 = vpop.xlane.xlu0 %1228
      %v1230 = vsel %vm871, %v1202, -inf
      %1231 = vmax.xlane.f32.xlu0 %v1230
      %v1232 = vpop.xlane.xlu0 %1231
      %v1233 = vsel %vm871, %v1205, -inf
      %1234 = vmax.xlane.f32.xlu0 %v1233
      %v1235 = vpop.xlane.xlu0 %1234
      %v1236 = vsel %vm871, %v1210, -inf
      %1237 = vmax.xlane.f32.xlu0 %v1236
      %v1238 = vpop.xlane.xlu0 %1237
      %v1239 = vsel %vm871, %v1213, -inf
      %1240 = vmax.xlane.f32.xlu0 %v1239
      %v1241 = vpop.xlane.xlu0 %1240
      %v1242 = vsel %vm871, %v1218, -inf
      %1243 = vmax.xlane.f32.xlu0 %v1242
      %v1244 = vpop.xlane.xlu0 %1243
      %v1245 = vsel %vm871, %v1221, -inf
      %1246 = vmax.xlane.f32.xlu0 %v1245
      %v1247 = vpop.xlane.xlu0 %1246
      %v1248 = vsub.f32 %v1194, %v1226
      %v1249 = vsub.f32 %v1197, %v1229
      %v1250 = vsub.f32 %v1202, %v1232
      %v1251 = vsub.f32 %v1205, %v1235
      %v1252 = vsub.f32 %v1210, %v1238
      %v1253 = vsub.f32 %v1213, %v1241
      %v1254 = vsub.f32 %v1218, %v1244
      %v1255 = vsub.f32 %v1221, %v1247
      %v1256 = vmul.f32 %v1248, 1.442695
      %v1257 = vpow.pop %v1256
      %v1258 = vmul.f32 %v1249, 1.442695
      %v1259 = vpow.pop %v1258
      %v1260 = vmul.f32 %v1250, 1.442695
      %v1261 = vpow.pop %v1260
      %v1262 = vmul.f32 %v1251, 1.442695
      %v1263 = vpow.pop %v1262
      %v1264 = vmul.f32 %v1252, 1.442695
      %v1265 = vpow.pop %v1264
      %v1266 = vmul.f32 %v1253, 1.442695
      %v1267 = vpow.pop %v1266
      %v1268 = vmul.f32 %v1254, 1.442695
      %v1269 = vpow.pop %v1268
      %v1270 = vmul.f32 %v1255, 1.442695
      %v1271 = vpow.pop %v1270
      %v1272 = vsel %vm871, %v1257, 0.0
      %1273 = vadd.xlane.f32.xlu0 %v1272
      %v1274 = vpop.xlane.xlu0 %1273
      %v1275 = vsel %vm871, %v1259, 0.0
      %1276 = vadd.xlane.f32.xlu0 %v1275
      %v1277 = vpop.xlane.xlu0 %1276
      %v1278 = vsel %vm871, %v1261, 0.0
      %1279 = vadd.xlane.f32.xlu0 %v1278
      %v1280 = vpop.xlane.xlu0 %1279
      %v1281 = vsel %vm871, %v1263, 0.0
      %1282 = vadd.xlane.f32.xlu0 %v1281
      %v1283 = vpop.xlane.xlu0 %1282
      %v1284 = vsel %vm871, %v1265, 0.0
      %1285 = vadd.xlane.f32.xlu0 %v1284
      %v1286 = vpop.xlane.xlu0 %1285
      %v1287 = vsel %vm871, %v1267, 0.0
      %1288 = vadd.xlane.f32.xlu0 %v1287
      %v1289 = vpop.xlane.xlu0 %1288
      %v1290 = vsel %vm871, %v1269, 0.0
      %1291 = vadd.xlane.f32.xlu0 %v1290
      %v1292 = vpop.xlane.xlu0 %1291
      %v1293 = vsel %vm871, %v1271, 0.0
      %1294 = vadd.xlane.f32.xlu0 %v1293
      %v1295 = vpop.xlane.xlu0 %1294
      %v1296 = vrcp.pop %v1274
      %v1297 = vrcp.pop %v1277
      %v1298 = vrcp.pop %v1280
      %v1299 = vrcp.pop %v1283
      %v1300 = vrcp.pop %v1286
      %v1301 = vrcp.pop %v1289
      %v1302 = vrcp.pop %v1292
      %v1303 = vrcp.pop %v1295
      %v1304 = vmul.f32 %v1257, %v1296
      %v1305 = vmul.f32 %v1259, %v1297
      %v1306 = vmul.f32 %v1261, %v1298
      %v1307 = vmul.f32 %v1263, %v1299
      %v1308 = vmul.f32 %v1265, %v1300
      %v1309 = vmul.f32 %v1267, %v1301
      %v1310 = vmul.f32 %v1269, %v1302
      %v1311 = vmul.f32 %v1271, %v1303
      %v1312 = vpack.c.bf16 %v1305, %v1304
      %v1313 = vpack.c.bf16 %v1307, %v1306
      %v1314 = vpack.c.bf16 %v1309, %v1308
      %v1315 = vpack.c.bf16 %v1311, %v1310
      %1316 = vrot.lane.b32.xlu0 %v1118, 64
      %v1317 = vpop.permute.xlu0 %1316
      %1318 = vrot.lane.b32.xlu0 %v1119, 64
      %v1319 = vpop.permute.xlu0 %1318
      %1320 = vrot.lane.b32.xlu0 %v1120, 64
      %v1321 = vpop.permute.xlu0 %1320
      %1322 = vrot.lane.b32.xlu0 %v1121, 64
      %v1323 = vpop.permute.xlu0 %1322
      %v1329 = vsel %vm871, %v1312, 0
      %v1332 = vsel %vm871, %v1313, 0
      %v1335 = vsel %vm871, %v1314, 0
      %v1338 = vsel %vm871, %v1315, 0
      %1340 = vmatprep.subr.bf16.mxu0 0
      %1341 = vmatpush1.bf16.msra.mxu0 %v1317
      %1342 = vmatprep.subr.bf16.mxu0 0
      %1343 = vmatpush1.bf16.msra.mxu0 %v1319
      %1344 = vmatprep.subr.bf16.mxu0 0
      %1345 = vmatpush1.bf16.msra.mxu0 %v1321
      %1346 = vmatprep.subr.bf16.mxu0 0
      %1347 = vmatpush1.bf16.msra.mxu0 %v1323
      %1348 = vmatprep.subr.bf16.mxu0 0
      %1349 = vmatpush1.bf16.msra.mxu0 0
      %1350 = vmatprep.subr.bf16.mxu0 0
      %1351 = vmatpush1.bf16.msra.mxu0 0
      %1352 = vmatprep.subr.bf16.mxu0 0
      %1353 = vmatpush1.bf16.msra.mxu0 0
      %1354 = vmatprep.subr.bf16.mxu0 0
      %1355 = vmatpush1.bf16.msra.mxu0 0
      %1356 = vmatprep.subr.bf16.mxu0 0
      %1357 = vmatpush1.bf16.msra.mxu0 0
      %1358 = vmatprep.subr.bf16.mxu0 0
      %1359 = vmatpush1.bf16.msra.mxu0 0
      %1360 = vmatprep.subr.bf16.mxu0 0
      %1361 = vmatpush1.bf16.msra.mxu0 0
      %1362 = vmatprep.subr.bf16.mxu0 0
      %1363 = vmatpush1.bf16.msra.mxu0 0
      %1364 = vmatprep.subr.bf16.mxu0 0
      %1365 = vmatpush1.bf16.msra.mxu0 0
      %1366 = vmatprep.subr.bf16.mxu0 0
      %1367 = vmatpush1.bf16.msra.mxu0 0
      %1368 = vmatprep.subr.bf16.mxu0 0
      %1369 = vmatpush1.bf16.msra.mxu0 0
      %1370 = vmatprep.subr.bf16.mxu0 0
      %1371 = vmatpush1.bf16.msra.mxu0 0
      %1372 = vmatprep.mubr.bf16.mxu0 0
      %1373 = vmatmul.mubr.bf16.gmra.mrb[0].mxu0 %v1329
      %v1374 = vpop.f32.mrb[0].mxu0
      %v1375 = vadd.f32 0.0, %v1374
      %v1376 = vpop.f32.mrb[0].mxu0
      %v1377 = vpop.f32.mrb[0].mxu0
      %v1378 = vadd.f32 0.0, %v1377
      %v1379 = vpop.f32.mrb[0].mxu0
      %1380 = vmatprep.mubr.bf16.mxu0 0
      %1381 = vmatmul.mubr.bf16.gmra.mrb[0].mxu0 %v1332
      %v1382 = vpop.f32.mrb[0].mxu0
      %v1383 = vadd.f32 0.0, %v1382
      %v1384 = vpop.f32.mrb[0].mxu0
      %v1385 = vpop.f32.mrb[0].mxu0
      %v1386 = vadd.f32 0.0, %v1385
      %v1387 = vpop.f32.mrb[0].mxu0
      %1388 = vmatprep.mubr.bf16.mxu0 0
      %1389 = vmatmul.mubr.bf16.gmra.mrb[0].mxu0 %v1335
      %v1390 = vpop.f32.mrb[0].mxu0
      %v1391 = vadd.f32 0.0, %v1390
      %v1392 = vpop.f32.mrb[0].mxu0
      %v1393 = vpop.f32.mrb[0].mxu0
      %v1394 = vadd.f32 0.0, %v1393
      %v1395 = vpop.f32.mrb[0].mxu0
      %1396 = vmatprep.mubr.bf16.mxu0 0
      %1397 = vmatmul.mubr.bf16.gmra.mrb[0].mxu0 %v1338
      %v1398 = vpop.f32.mrb[0].mxu0
      %v1399 = vadd.f32 0.0, %v1398
      %v1400 = vpop.f32.mrb[0].mxu0
      %v1401 = vpop.f32.mrb[0].mxu0
      %v1402 = vadd.f32 0.0, %v1401
      %v1403 = vpop.f32.mrb[0].mxu0
      %1404 = vdwg.mxu0
      %v1405 = vpack.c.bf16 %v1378, %v1375
      %v1406 = vpack.c.bf16 %v1386, %v1383
      %v1407 = vpack.c.bf16 %v1394, %v1391
      %v1408 = vpack.c.bf16 %v1402, %v1399
      %v1409 = vld [vmem:[%s8] sm:$0xf]
      %v1410 = vld [vmem:[%s8 + $0x4] sm:$0xf]
      %v1411 = vld [vmem:[%s8 + $0x8] sm:$0xf]
      %v1412 = vld [vmem:[%s8 + $0xc] sm:$0xf]
      %v1417 = vunpack.c.l.b16 %v1409
      %v1418 = vunpack.c.l.b16 %v1410
      %v1419 = vunpack.c.l.b16 %v1411
      %v1420 = vunpack.c.l.b16 %v1412
      %v1421 = vpack.c.b16 %v1418, %v1417
      %v1422 = vpack.c.b16 %v1420, %v1419
      %v1426 = vsel %vm1134, %v1405, 0
      %v1429 = vsel %vm1134, %v1406, 0
      %v1432 = vsel %vm1134, %v1407, 0
      %v1435 = vsel %vm1134, %v1408, 0
      %1437 = vmatprep.subr.bf16.mxu0 0
      %1438 = vmatpush1.bf16.msra.mxu0 %v1421
      %1439 = vmatprep.subr.bf16.mxu0 0
      %1440 = vmatpush1.bf16.msra.mxu0 %v1422
      %1441 = vmatprep.subr.bf16.mxu0 0
      %1442 = vmatpush1.bf16.msra.mxu0 0
      %1443 = vmatprep.subr.bf16.mxu0 0
      %1444 = vmatpush1.bf16.msra.mxu0 0
      %1445 = vmatprep.subr.bf16.mxu0 0
      %1446 = vmatpush1.bf16.msra.mxu0 0
      %1447 = vmatprep.subr.bf16.mxu0 0
      %1448 = vmatpush1.bf16.msra.mxu0 0
      %1449 = vmatprep.subr.bf16.mxu0 0
      %1450 = vmatpush1.bf16.msra.mxu0 0
      %1451 = vmatprep.subr.bf16.mxu0 0
      %1452 = vmatpush1.bf16.msra.mxu0 0
      %1453 = vmatprep.subr.bf16.mxu0 0
      %1454 = vmatpush1.bf16.msra.mxu0 0
      %1455 = vmatprep.subr.bf16.mxu0 0
      %1456 = vmatpush1.bf16.msra.mxu0 0
      %1457 = vmatprep.subr.bf16.mxu0 0
      %1458 = vmatpush1.bf16.msra.mxu0 0
      %1459 = vmatprep.subr.bf16.mxu0 0
      %1460 = vmatpush1.bf16.msra.mxu0 0
      %1461 = vmatprep.subr.bf16.mxu0 0
      %1462 = vmatpush1.bf16.msra.mxu0 0
      %1463 = vmatprep.subr.bf16.mxu0 0
      %1464 = vmatpush1.bf16.msra.mxu0 0
      %1465 = vmatprep.subr.bf16.mxu0 0
      %1466 = vmatpush1.bf16.msra.mxu0 0
      %1467 = vmatprep.subr.bf16.mxu0 0
      %1468 = vmatpush1.bf16.msra.mxu0 0
      %1469 = vmatprep.mubr.bf16.mxu0 0
      %1470 = vmatmul.mubr.bf16.gmra.mrb[0].mxu0 %v1426
      %v1471 = vpop.f32.mrb[0].mxu0
      %v1472 = vadd.f32 0.0, %v1471
      %v1473 = vpop.f32.mrb[0].mxu0
      %v1474 = vpop.f32.mrb[0].mxu0
      %v1475 = vadd.f32 0.0, %v1474
      %v1476 = vpop.f32.mrb[0].mxu0
      %1477 = vmatprep.mubr.bf16.mxu0 0
      %1478 = vmatmul.mubr.bf16.gmra.mrb[0].mxu0 %v1429
      %v1479 = vpop.f32.mrb[0].mxu0
      %v1480 = vadd.f32 0.0, %v1479
      %v1481 = vpop.f32.mrb[0].mxu0
      %v1482 = vpop.f32.mrb[0].mxu0
      %v1483 = vadd.f32 0.0, %v1482
      %v1484 = vpop.f32.mrb[0].mxu0
      %1485 = vmatprep.mubr.bf16.mxu0 0
      %1486 = vmatmul.mubr.bf16.gmra.mrb[0].mxu0 %v1432
      %v1487 = vpop.f32.mrb[0].mxu0
      %v1488 = vadd.f32 0.0, %v1487
      %v1489 = vpop.f32.mrb[0].mxu0
      %v1490 = vpop.f32.mrb[0].mxu0
      %v1491 = vadd.f32 0.0, %v1490
      %v1492 = vpop.f32.mrb[0].mxu0
      %1493 = vmatprep.mubr.bf16.mxu0 0
      %1494 = vmatmul.mubr.bf16.gmra.mrb[0].mxu0 %v1435
      %v1495 = vpop.f32.mrb[0].mxu0
      %v1496 = vadd.f32 0.0, %v1495
      %v1497 = vpop.f32.mrb[0].mxu0
      %v1498 = vpop.f32.mrb[0].mxu0
      %v1499 = vadd.f32 0.0, %v1498
      %v1500 = vpop.f32.mrb[0].mxu0
      %1501 = vdwg.mxu0
      %v1502 = vadd.f32 %v861, %v1472
      %v1503 = vadd.f32 %v862, %v1475
      %v1504 = vadd.f32 %v863, %v1480
      %v1505 = vadd.f32 %v864, %v1483
      %v1506 = vadd.f32 %v865, %v1488
      %v1507 = vadd.f32 %v866, %v1491
      %v1508 = vadd.f32 %v867, %v1496
      %v1509 = vadd.f32 %v868, %v1499
      %v1510 = vld [vmem:[%s9] sm:$0x1]
      %v1512 = vlaneseq
      %v1513 = vshrl.u32 %v1512, 7
      %v1514 = vsub.s32 0, %v1513
      %v1515 = vrot.slane %v1510, %v1514
      %v1517 = vadd.f32 %v1502, %v1515
      %v1518 = vadd.f32 %v1503, %v1515
      %v1519 = vadd.f32 %v1504, %v1515
      %v1520 = vadd.f32 %v1505, %v1515
      %v1521 = vadd.f32 %v1506, %v1515
      %v1522 = vadd.f32 %v1507, %v1515
      %v1523 = vadd.f32 %v1508, %v1515
      %v1524 = vadd.f32 %v1509, %v1515
      %s1525 = scalar_lea.vmem %s5, 1
      %v1526 = vld [vmem:[%s1525] sm:$0x1]
      %s1527 = scalar_lea.vmem %s6, 1
      %v1528 = vld [vmem:[%s1527] sm:$0x1]
      %v1529 = vsel %vm871, %v1517, 0.0
      %1530 = vadd.xlane.f32.xlu0 %v1529
      %v1531 = vpop.xlane.xlu0 %1530
      %v1532 = vsel %vm871, %v1518, 0.0
      %1533 = vadd.xlane.f32.xlu0 %v1532
      %v1534 = vpop.xlane.xlu0 %1533
      %v1535 = vsel %vm871, %v1519, 0.0
      %1536 = vadd.xlane.f32.xlu0 %v1535
      %v1537 = vpop.xlane.xlu0 %1536
      %v1538 = vsel %vm871, %v1520, 0.0
      %1539 = vadd.xlane.f32.xlu0 %v1538
      %v1540 = vpop.xlane.xlu0 %1539
      %v1541 = vsel %vm871, %v1521, 0.0
      %1542 = vadd.xlane.f32.xlu0 %v1541
      %v1543 = vpop.xlane.xlu0 %1542
      %v1544 = vsel %vm871, %v1522, 0.0
      %1545 = vadd.xlane.f32.xlu0 %v1544
      %v1546 = vpop.xlane.xlu0 %1545
      %v1547 = vsel %vm871, %v1523, 0.0
      %1548 = vadd.xlane.f32.xlu0 %v1547
      %v1549 = vpop.xlane.xlu0 %1548
      %v1550 = vsel %vm871, %v1524, 0.0
      %1551 = vadd.xlane.f32.xlu0 %v1550
      %v1552 = vpop.xlane.xlu0 %1551
      %v1553 = vmul.f32 %v1531, %v896
      %v1554 = vmul.f32 %v1534, %v896
      %v1555 = vmul.f32 %v1537, %v896
      %v1556 = vmul.f32 %v1540, %v896
      %v1557 = vmul.f32 %v1543, %v896
      %v1558 = vmul.f32 %v1546, %v896
      %v1559 = vmul.f32 %v1549, %v896
      %v1560 = vmul.f32 %v1552, %v896
      %v1561 = vsub.f32 %v1517, %v1553
      %v1562 = vsub.f32 %v1518, %v1554
      %v1563 = vsub.f32 %v1519, %v1555
      %v1564 = vsub.f32 %v1520, %v1556
      %v1565 = vsub.f32 %v1521, %v1557
      %v1566 = vsub.f32 %v1522, %v1558
      %v1567 = vsub.f32 %v1523, %v1559
      %v1568 = vsub.f32 %v1524, %v1560
      %v1569 = vmul.f32 %v1561, %v1561
      %v1570 = vmul.f32 %v1562, %v1562
      %v1571 = vmul.f32 %v1563, %v1563
      %v1572 = vmul.f32 %v1564, %v1564
      %v1573 = vmul.f32 %v1565, %v1565
      %v1574 = vmul.f32 %v1566, %v1566
      %v1575 = vmul.f32 %v1567, %v1567
      %v1576 = vmul.f32 %v1568, %v1568
      %v1577 = vsel %vm871, %v1569, 0.0
      %1578 = vadd.xlane.f32.xlu0 %v1577
      %v1579 = vpop.xlane.xlu0 %1578
      %v1580 = vsel %vm871, %v1570, 0.0
      %1581 = vadd.xlane.f32.xlu0 %v1580
      %v1582 = vpop.xlane.xlu0 %1581
      %v1583 = vsel %vm871, %v1571, 0.0
      %1584 = vadd.xlane.f32.xlu0 %v1583
      %v1585 = vpop.xlane.xlu0 %1584
      %v1586 = vsel %vm871, %v1572, 0.0
      %1587 = vadd.xlane.f32.xlu0 %v1586
      %v1588 = vpop.xlane.xlu0 %1587
      %v1589 = vsel %vm871, %v1573, 0.0
      %1590 = vadd.xlane.f32.xlu0 %v1589
      %v1591 = vpop.xlane.xlu0 %1590
      %v1592 = vsel %vm871, %v1574, 0.0
      %1593 = vadd.xlane.f32.xlu0 %v1592
      %v1594 = vpop.xlane.xlu0 %1593
      %v1595 = vsel %vm871, %v1575, 0.0
      %1596 = vadd.xlane.f32.xlu0 %v1595
      %v1597 = vpop.xlane.xlu0 %1596
      %v1598 = vsel %vm871, %v1576, 0.0
      %1599 = vadd.xlane.f32.xlu0 %v1598
      %v1600 = vpop.xlane.xlu0 %1599
      %v1601 = vmul.f32 %v1579, %v896
      %v1602 = vmul.f32 %v1582, %v896
      %v1603 = vmul.f32 %v1585, %v896
      %v1604 = vmul.f32 %v1588, %v896
      %v1605 = vmul.f32 %v1591, %v896
      %v1606 = vmul.f32 %v1594, %v896
      %v1607 = vmul.f32 %v1597, %v896
      %v1608 = vmul.f32 %v1600, %v896
      %v1609 = vadd.f32 %v1601, 1e-05
      %v1610 = vadd.f32 %v1602, 1e-05
      %v1611 = vadd.f32 %v1603, 1e-05
      %v1612 = vadd.f32 %v1604, 1e-05
      %v1613 = vadd.f32 %v1605, 1e-05
      %v1614 = vadd.f32 %v1606, 1e-05
      %v1615 = vadd.f32 %v1607, 1e-05
      %v1616 = vadd.f32 %v1608, 1e-05
      %v1617 = vrsqrt.pop %v1609
      %v1618 = vrsqrt.pop %v1610
      %v1619 = vrsqrt.pop %v1611
      %v1620 = vrsqrt.pop %v1612
      %v1621 = vrsqrt.pop %v1613
      %v1622 = vrsqrt.pop %v1614
      %v1623 = vrsqrt.pop %v1615
      %v1624 = vrsqrt.pop %v1616
      %v1625 = vmul.f32 %v1561, %v1617
      %v1626 = vmul.f32 %v1562, %v1618
      %v1627 = vmul.f32 %v1563, %v1619
      %v1628 = vmul.f32 %v1564, %v1620
      %v1629 = vmul.f32 %v1565, %v1621
      %v1630 = vmul.f32 %v1566, %v1622
      %v1631 = vmul.f32 %v1567, %v1623
      %v1632 = vmul.f32 %v1568, %v1624
      %v1634 = vlaneseq
      %v1635 = vshrl.u32 %v1634, 7
      %v1636 = vsub.s32 0, %v1635
      %v1637 = vrot.slane %v1526, %v1636
      %v1639 = vmul.f32 %v1625, %v1637
      %v1640 = vmul.f32 %v1626, %v1637
      %v1641 = vmul.f32 %v1627, %v1637
      %v1642 = vmul.f32 %v1628, %v1637
      %v1643 = vmul.f32 %v1629, %v1637
      %v1644 = vmul.f32 %v1630, %v1637
      %v1645 = vmul.f32 %v1631, %v1637
      %v1646 = vmul.f32 %v1632, %v1637
      %v1648 = vlaneseq
      %v1649 = vshrl.u32 %v1648, 7
      %v1650 = vsub.s32 0, %v1649
      %v1651 = vrot.slane %v1528, %v1650
      %v1653 = vadd.f32 %v1639, %v1651
      %v1654 = vadd.f32 %v1640, %v1651
      %v1655 = vadd.f32 %v1641, %v1651
      %v1656 = vadd.f32 %v1642, %v1651
      %v1657 = vadd.f32 %v1643, %v1651
      %v1658 = vadd.f32 %v1644, %v1651
      %v1659 = vadd.f32 %v1645, %v1651
      %v1660 = vadd.f32 %v1646, %v1651
      %v1661 = vpack.c.bf16 %v1654, %v1653
      %v1662 = vpack.c.bf16 %v1656, %v1655
      %v1663 = vpack.c.bf16 %v1658, %v1657
      %v1664 = vpack.c.bf16 %v1660, %v1659
      %v1665 = vld [vmem:[%s10] sm:$0xf]
      %v1666 = vld [vmem:[%s10 + $0x4] sm:$0xf]
      %v1667 = vld [vmem:[%s10 + $0x8] sm:$0xf]
      %v1668 = vld [vmem:[%s10 + $0xc] sm:$0xf]
      %v1669 = vld [vmem:[%s10 + $0x10] sm:$0xf]
      %v1670 = vld [vmem:[%s10 + $0x14] sm:$0xf]
      %v1671 = vld [vmem:[%s10 + $0x18] sm:$0xf]
      %v1672 = vld [vmem:[%s10 + $0x1c] sm:$0xf]
      %v1673 = vld [vmem:[%s11] sm:$0x1]
      %v1675 = vlaneseq
      %v1676 = vshrl.u32 %v1675, 7
      %v1677 = vsub.s32 0, %v1676
      %v1678 = vrot.slane %v1673, %v1677
      %v1688 = vunpack.c.l.b16 %v1665
      %v1689 = vunpack.c.l.b16 %v1666
      %v1690 = vunpack.c.l.b16 %v1667
      %v1691 = vunpack.c.l.b16 %v1668
      %v1692 = vunpack.c.l.b16 %v1669
      %v1693 = vunpack.c.l.b16 %v1670
      %v1694 = vunpack.c.l.b16 %v1671
      %v1695 = vunpack.c.l.b16 %v1672
      %v1696 = vpack.c.b16 %v1689, %v1688
      %v1697 = vpack.c.b16 %v1691, %v1690
      %v1698 = vpack.c.b16 %v1693, %v1692
      %v1699 = vpack.c.b16 %v1695, %v1694
      %v1705 = vsel %vm871, %v1661, 0
      %v1708 = vsel %vm871, %v1662, 0
      %v1711 = vsel %vm871, %v1663, 0
      %v1714 = vsel %vm871, %v1664, 0
      %1716 = vmatprep.subr.bf16.mxu0 0
      %1717 = vmatpush1.bf16.msra.mxu0 %v1696
      %1718 = vmatprep.subr.bf16.mxu0 0
      %1719 = vmatpush1.bf16.msra.mxu0 %v1697
      %1720 = vmatprep.subr.bf16.mxu0 0
      %1721 = vmatpush1.bf16.msra.mxu0 %v1698
      %1722 = vmatprep.subr.bf16.mxu0 0
      %1723 = vmatpush1.bf16.msra.mxu0 %v1699
      %1724 = vmatprep.subr.bf16.mxu0 0
      %1725 = vmatpush1.bf16.msra.mxu0 0
      %1726 = vmatprep.subr.bf16.mxu0 0
      %1727 = vmatpush1.bf16.msra.mxu0 0
      %1728 = vmatprep.subr.bf16.mxu0 0
      %1729 = vmatpush1.bf16.msra.mxu0 0
      %1730 = vmatprep.subr.bf16.mxu0 0
      %1731 = vmatpush1.bf16.msra.mxu0 0
      %1732 = vmatprep.subr.bf16.mxu0 0
      %1733 = vmatpush1.bf16.msra.mxu0 0
      %1734 = vmatprep.subr.bf16.mxu0 0
      %1735 = vmatpush1.bf16.msra.mxu0 0
      %1736 = vmatprep.subr.bf16.mxu0 0
      %1737 = vmatpush1.bf16.msra.mxu0 0
      %1738 = vmatprep.subr.bf16.mxu0 0
      %1739 = vmatpush1.bf16.msra.mxu0 0
      %1740 = vmatprep.subr.bf16.mxu0 0
      %1741 = vmatpush1.bf16.msra.mxu0 0
      %1742 = vmatprep.subr.bf16.mxu0 0
      %1743 = vmatpush1.bf16.msra.mxu0 0
      %1744 = vmatprep.subr.bf16.mxu0 0
      %1745 = vmatpush1.bf16.msra.mxu0 0
      %1746 = vmatprep.subr.bf16.mxu0 0
      %1747 = vmatpush1.bf16.msra.mxu0 0
      %1748 = vmatprep.mubr.bf16.mxu0 0
      %1749 = vmatmul.mubr.bf16.gmra.mrb[0].mxu0 %v1705
      %v1750 = vpop.f32.mrb[0].mxu0
      %v1751 = vadd.f32 %v1678, %v1750
      %v1752 = vpop.f32.mrb[0].mxu0
      %v1753 = vpop.f32.mrb[0].mxu0
      %v1754 = vadd.f32 %v1678, %v1753
      %v1755 = vpop.f32.mrb[0].mxu0
      %1756 = vmatprep.mubr.bf16.mxu0 0
      %1757 = vmatmul.mubr.bf16.gmra.mrb[0].mxu0 %v1708
      %v1758 = vpop.f32.mrb[0].mxu0
      %v1759 = vadd.f32 %v1678, %v1758
      %v1760 = vpop.f32.mrb[0].mxu0
      %v1761 = vpop.f32.mrb[0].mxu0
      %v1762 = vadd.f32 %v1678, %v1761
      %v1763 = vpop.f32.mrb[0].mxu0
      %1764 = vmatprep.mubr.bf16.mxu0 0
      %1765 = vmatmul.mubr.bf16.gmra.mrb[0].mxu0 %v1711
      %v1766 = vpop.f32.mrb[0].mxu0
      %v1767 = vadd.f32 %v1678, %v1766
      %v1768 = vpop.f32.mrb[0].mxu0
      %v1769 = vpop.f32.mrb[0].mxu0
      %v1770 = vadd.f32 %v1678, %v1769
      %v1771 = vpop.f32.mrb[0].mxu0
      %1772 = vmatprep.mubr.bf16.mxu0 0
      %1773 = vmatmul.mubr.bf16.gmra.mrb[0].mxu0 %v1714
      %v1774 = vpop.f32.mrb[0].mxu0
      %v1775 = vadd.f32 %v1678, %v1774
      %v1776 = vpop.f32.mrb[0].mxu0
      %v1777 = vpop.f32.mrb[0].mxu0
      %v1778 = vadd.f32 %v1678, %v1777
      %v1779 = vpop.f32.mrb[0].mxu0
      %1780 = vdwg.mxu0
      %v1781 = vxor.u32 %v1751, 2147483648
      %v1782 = vxor.u32 %v1754, 2147483648
      %v1783 = vxor.u32 %v1759, 2147483648
      %v1784 = vxor.u32 %v1762, 2147483648
      %v1785 = vxor.u32 %v1767, 2147483648
      %v1786 = vxor.u32 %v1770, 2147483648
      %v1787 = vxor.u32 %v1775, 2147483648
      %v1788 = vxor.u32 %v1778, 2147483648
      %v1789 = vmul.f32 %v1781, 1.442695
      %v1790 = vpow.pop %v1789
      %v1791 = vmul.f32 %v1782, 1.442695
      %v1792 = vpow.pop %v1791
      %v1793 = vmul.f32 %v1783, 1.442695
      %v1794 = vpow.pop %v1793
      %v1795 = vmul.f32 %v1784, 1.442695
      %v1796 = vpow.pop %v1795
      %v1797 = vmul.f32 %v1785, 1.442695
      %v1798 = vpow.pop %v1797
      %v1799 = vmul.f32 %v1786, 1.442695
      %v1800 = vpow.pop %v1799
      %v1801 = vmul.f32 %v1787, 1.442695
      %v1802 = vpow.pop %v1801
      %v1803 = vmul.f32 %v1788, 1.442695
      %v1804 = vpow.pop %v1803
      %v1805 = vadd.f32 %v1790, 1.0
      %v1806 = vadd.f32 %v1792, 1.0
      %v1807 = vadd.f32 %v1794, 1.0
      %v1808 = vadd.f32 %v1796, 1.0
      %v1809 = vadd.f32 %v1798, 1.0
      %v1810 = vadd.f32 %v1800, 1.0
      %v1811 = vadd.f32 %v1802, 1.0
      %v1812 = vadd.f32 %v1804, 1.0
      %v1813 = vrcp.pop %v1805
      %v1814 = vmul.f32 1.0, %v1813
      %v1815 = vrcp.pop %v1806
      %v1816 = vmul.f32 1.0, %v1815
      %v1817 = vrcp.pop %v1807
      %v1818 = vmul.f32 1.0, %v1817
      %v1819 = vrcp.pop %v1808
      %v1820 = vmul.f32 1.0, %v1819
      %v1821 = vrcp.pop %v1809
      %v1822 = vmul.f32 1.0, %v1821
      %v1823 = vrcp.pop %v1810
      %v1824 = vmul.f32 1.0, %v1823
      %v1825 = vrcp.pop %v1811
      %v1826 = vmul.f32 1.0, %v1825
      %v1827 = vrcp.pop %v1812
      %v1828 = vmul.f32 1.0, %v1827
      %v1829 = vmul.f32 %v1751, %v1814
      %v1830 = vmul.f32 %v1754, %v1816
      %v1831 = vmul.f32 %v1759, %v1818
      %v1832 = vmul.f32 %v1762, %v1820
      %v1833 = vmul.f32 %v1767, %v1822
      %v1834 = vmul.f32 %v1770, %v1824
      %v1835 = vmul.f32 %v1775, %v1826
      %v1836 = vmul.f32 %v1778, %v1828
      %v1837 = vpack.c.bf16 %v1830, %v1829
      %v1838 = vpack.c.bf16 %v1832, %v1831
      %v1839 = vpack.c.bf16 %v1834, %v1833
      %v1840 = vpack.c.bf16 %v1836, %v1835
      %v1841 = vld [vmem:[%s12] sm:$0xf]
      %v1842 = vld [vmem:[%s12 + $0x4] sm:$0xf]
      %v1843 = vld [vmem:[%s12 + $0x8] sm:$0xf]
      %v1844 = vld [vmem:[%s12 + $0xc] sm:$0xf]
      %v1845 = vld [vmem:[%s12 + $0x10] sm:$0xf]
      %v1846 = vld [vmem:[%s12 + $0x14] sm:$0xf]
      %v1847 = vld [vmem:[%s12 + $0x18] sm:$0xf]
      %v1848 = vld [vmem:[%s12 + $0x1c] sm:$0xf]
      %v1849 = vld [vmem:[%s12 + $0x20] sm:$0xf]
      %v1850 = vld [vmem:[%s12 + $0x24] sm:$0xf]
      %v1851 = vld [vmem:[%s12 + $0x28] sm:$0xf]
      %v1852 = vld [vmem:[%s12 + $0x2c] sm:$0xf]
      %v1853 = vld [vmem:[%s12 + $0x30] sm:$0xf]
      %v1854 = vld [vmem:[%s12 + $0x34] sm:$0xf]
      %v1855 = vld [vmem:[%s12 + $0x38] sm:$0xf]
      %v1856 = vld [vmem:[%s12 + $0x3c] sm:$0xf]
      %v1873 = vunpack.c.l.b16 %v1841
      %v1874 = vunpack.c.l.b16 %v1842
      %v1875 = vunpack.c.l.b16 %v1843
      %v1876 = vunpack.c.l.b16 %v1844
      %v1877 = vunpack.c.l.b16 %v1845
      %v1878 = vunpack.c.l.b16 %v1846
      %v1879 = vunpack.c.l.b16 %v1847
      %v1880 = vunpack.c.l.b16 %v1848
      %v1881 = vunpack.c.l.b16 %v1849
      %v1882 = vunpack.c.l.b16 %v1850
      %v1883 = vunpack.c.l.b16 %v1851
      %v1884 = vunpack.c.l.b16 %v1852
      %v1885 = vunpack.c.l.b16 %v1853
      %v1886 = vunpack.c.l.b16 %v1854
      %v1887 = vunpack.c.l.b16 %v1855
      %v1888 = vunpack.c.l.b16 %v1856
      %v1889 = vpack.c.b16 %v1874, %v1873
      %v1890 = vpack.c.b16 %v1876, %v1875
      %v1891 = vpack.c.b16 %v1878, %v1877
      %v1892 = vpack.c.b16 %v1880, %v1879
      %v1893 = vpack.c.b16 %v1882, %v1881
      %v1894 = vpack.c.b16 %v1884, %v1883
      %v1895 = vpack.c.b16 %v1886, %v1885
      %v1896 = vpack.c.b16 %v1888, %v1887
      %1905 = vmatprep.subr.bf16.mxu0 0
      %1906 = vmatpush1.bf16.msra.mxu0 %v1889
      %1907 = vmatprep.subr.bf16.mxu0 0
      %1908 = vmatpush1.bf16.msra.mxu0 %v1890
      %1909 = vmatprep.subr.bf16.mxu0 0
      %1910 = vmatpush1.bf16.msra.mxu0 %v1891
      %1911 = vmatprep.subr.bf16.mxu0 0
      %1912 = vmatpush1.bf16.msra.mxu0 %v1892
      %1913 = vmatprep.subr.bf16.mxu0 0
      %1914 = vmatpush1.bf16.msra.mxu0 %v1893
      %1915 = vmatprep.subr.bf16.mxu0 0
      %1916 = vmatpush1.bf16.msra.mxu0 %v1894
      %1917 = vmatprep.subr.bf16.mxu0 0
      %1918 = vmatpush1.bf16.msra.mxu0 %v1895
      %1919 = vmatprep.subr.bf16.mxu0 0
      %1920 = vmatpush1.bf16.msra.mxu0 %v1896
      %1921 = vmatprep.subr.bf16.mxu0 0
      %1922 = vmatpush1.bf16.msra.mxu0 0
      %1923 = vmatprep.subr.bf16.mxu0 0
      %1924 = vmatpush1.bf16.msra.mxu0 0
      %1925 = vmatprep.subr.bf16.mxu0 0
      %1926 = vmatpush1.bf16.msra.mxu0 0
      %1927 = vmatprep.subr.bf16.mxu0 0
      %1928 = vmatpush1.bf16.msra.mxu0 0
      %1929 = vmatprep.subr.bf16.mxu0 0
      %1930 = vmatpush1.bf16.msra.mxu0 0
      %1931 = vmatprep.subr.bf16.mxu0 0
      %1932 = vmatpush1.bf16.msra.mxu0 0
      %1933 = vmatprep.subr.bf16.mxu0 0
      %1934 = vmatpush1.bf16.msra.mxu0 0
      %1935 = vmatprep.subr.bf16.mxu0 0
      %1936 = vmatpush1.bf16.msra.mxu0 0
      %1937 = vmatprep.mubr.bf16.mxu0 0
      %1938 = vmatmul.mubr.bf16.gmra.mrb[0].mxu0 %v1837
      %v1939 = vpop.f32.mrb[0].mxu0
      %v1940 = vadd.f32 0.0, %v1939
      %v1941 = vpop.f32.mrb[0].mxu0
      %v1942 = vpop.f32.mrb[0].mxu0
      %v1943 = vadd.f32 0.0, %v1942
      %v1944 = vpop.f32.mrb[0].mxu0
      %1945 = vmatprep.mubr.bf16.mxu0 0
      %1946 = vmatmul.mubr.bf16.gmra.mrb[0].mxu0 %v1838
      %v1947 = vpop.f32.mrb[0].mxu0
      %v1948 = vadd.f32 0.0, %v1947
      %v1949 = vpop.f32.mrb[0].mxu0
      %v1950 = vpop.f32.mrb[0].mxu0
      %v1951 = vadd.f32 0.0, %v1950
      %v1952 = vpop.f32.mrb[0].mxu0
      %1953 = vmatprep.mubr.bf16.mxu0 0
      %1954 = vmatmul.mubr.bf16.gmra.mrb[0].mxu0 %v1839
      %v1955 = vpop.f32.mrb[0].mxu0
      %v1956 = vadd.f32 0.0, %v1955
      %v1957 = vpop.f32.mrb[0].mxu0
      %v1958 = vpop.f32.mrb[0].mxu0
      %v1959 = vadd.f32 0.0, %v1958
      %v1960 = vpop.f32.mrb[0].mxu0
      %1961 = vmatprep.mubr.bf16.mxu0 0
      %1962 = vmatmul.mubr.bf16.gmra.mrb[0].mxu0 %v1840
      %v1963 = vpop.f32.mrb[0].mxu0
      %v1964 = vadd.f32 0.0, %v1963
      %v1965 = vpop.f32.mrb[0].mxu0
      %v1966 = vpop.f32.mrb[0].mxu0
      %v1967 = vadd.f32 0.0, %v1966
      %v1968 = vpop.f32.mrb[0].mxu0
      %1969 = vdwg.mxu0
      %v1970 = vadd.f32 %v1517, %v1940
      %v1971 = vadd.f32 %v1518, %v1943
      %v1972 = vadd.f32 %v1519, %v1948
      %v1973 = vadd.f32 %v1520, %v1951
      %v1974 = vadd.f32 %v1521, %v1956
      %v1975 = vadd.f32 %v1522, %v1959
      %v1976 = vadd.f32 %v1523, %v1964
      %v1977 = vadd.f32 %v1524, %v1967
      %v1978 = vld [vmem:[%s13] sm:$0x1]
      %v1980 = vlaneseq
      %v1981 = vshrl.u32 %v1980, 7
      %v1982 = vsub.s32 0, %v1981
      %v1983 = vrot.slane %v1978, %v1982
      %v1985 = vadd.f32 %v1970, %v1983
      %v1986 = vadd.f32 %v1971, %v1983
      %v1987 = vadd.f32 %v1972, %v1983
      %v1988 = vadd.f32 %v1973, %v1983
      %v1989 = vadd.f32 %v1974, %v1983
      %v1990 = vadd.f32 %v1975, %v1983
      %v1991 = vadd.f32 %v1976, %v1983
      %v1992 = vadd.f32 %v1977, %v1983
      %s1993 = scalar_lea.vmem %s5, 2
      %v1994 = vld [vmem:[%s1993] sm:$0x1]
      %s1995 = scalar_lea.vmem %s6, 2
      %v1996 = vld [vmem:[%s1995] sm:$0x1]
      %v1997 = vsel %vm871, %v1985, 0.0
      %1998 = vadd.xlane.f32.xlu0 %v1997
      %v1999 = vpop.xlane.xlu0 %1998
      %v2000 = vsel %vm871, %v1986, 0.0
      %2001 = vadd.xlane.f32.xlu0 %v2000
      %v2002 = vpop.xlane.xlu0 %2001
      %v2003 = vsel %vm871, %v1987, 0.0
      %2004 = vadd.xlane.f32.xlu0 %v2003
      %v2005 = vpop.xlane.xlu0 %2004
      %v2006 = vsel %vm871, %v1988, 0.0
      %2007 = vadd.xlane.f32.xlu0 %v2006
      %v2008 = vpop.xlane.xlu0 %2007
      %v2009 = vsel %vm871, %v1989, 0.0
      %2010 = vadd.xlane.f32.xlu0 %v2009
      %v2011 = vpop.xlane.xlu0 %2010
      %v2012 = vsel %vm871, %v1990, 0.0
      %2013 = vadd.xlane.f32.xlu0 %v2012
      %v2014 = vpop.xlane.xlu0 %2013
      %v2015 = vsel %vm871, %v1991, 0.0
      %2016 = vadd.xlane.f32.xlu0 %v2015
      %v2017 = vpop.xlane.xlu0 %2016
      %v2018 = vsel %vm871, %v1992, 0.0
      %2019 = vadd.xlane.f32.xlu0 %v2018
      %v2020 = vpop.xlane.xlu0 %2019
      %v2021 = vmul.f32 %v1999, %v896
      %v2022 = vmul.f32 %v2002, %v896
      %v2023 = vmul.f32 %v2005, %v896
      %v2024 = vmul.f32 %v2008, %v896
      %v2025 = vmul.f32 %v2011, %v896
      %v2026 = vmul.f32 %v2014, %v896
      %v2027 = vmul.f32 %v2017, %v896
      %v2028 = vmul.f32 %v2020, %v896
      %v2029 = vsub.f32 %v1985, %v2021
      %v2030 = vsub.f32 %v1986, %v2022
      %v2031 = vsub.f32 %v1987, %v2023
      %v2032 = vsub.f32 %v1988, %v2024
      %v2033 = vsub.f32 %v1989, %v2025
      %v2034 = vsub.f32 %v1990, %v2026
      %v2035 = vsub.f32 %v1991, %v2027
      %v2036 = vsub.f32 %v1992, %v2028
      %v2037 = vmul.f32 %v2029, %v2029
      %v2038 = vmul.f32 %v2030, %v2030
      %v2039 = vmul.f32 %v2031, %v2031
      %v2040 = vmul.f32 %v2032, %v2032
      %v2041 = vmul.f32 %v2033, %v2033
      %v2042 = vmul.f32 %v2034, %v2034
      %v2043 = vmul.f32 %v2035, %v2035
      %v2044 = vmul.f32 %v2036, %v2036
      %v2045 = vsel %vm871, %v2037, 0.0
      %2046 = vadd.xlane.f32.xlu0 %v2045
      %v2047 = vpop.xlane.xlu0 %2046
      %v2048 = vsel %vm871, %v2038, 0.0
      %2049 = vadd.xlane.f32.xlu0 %v2048
      %v2050 = vpop.xlane.xlu0 %2049
      %v2051 = vsel %vm871, %v2039, 0.0
      %2052 = vadd.xlane.f32.xlu0 %v2051
      %v2053 = vpop.xlane.xlu0 %2052
      %v2054 = vsel %vm871, %v2040, 0.0
      %2055 = vadd.xlane.f32.xlu0 %v2054
      %v2056 = vpop.xlane.xlu0 %2055
      %v2057 = vsel %vm871, %v2041, 0.0
      %2058 = vadd.xlane.f32.xlu0 %v2057
      %v2059 = vpop.xlane.xlu0 %2058
      %v2060 = vsel %vm871, %v2042, 0.0
      %2061 = vadd.xlane.f32.xlu0 %v2060
      %v2062 = vpop.xlane.xlu0 %2061
      %v2063 = vsel %vm871, %v2043, 0.0
      %2064 = vadd.xlane.f32.xlu0 %v2063
      %v2065 = vpop.xlane.xlu0 %2064
      %v2066 = vsel %vm871, %v2044, 0.0
      %2067 = vadd.xlane.f32.xlu0 %v2066
      %v2068 = vpop.xlane.xlu0 %2067
      %v2069 = vmul.f32 %v2047, %v896
      %v2070 = vmul.f32 %v2050, %v896
      %v2071 = vmul.f32 %v2053, %v896
      %v2072 = vmul.f32 %v2056, %v896
      %v2073 = vmul.f32 %v2059, %v896
      %v2074 = vmul.f32 %v2062, %v896
      %v2075 = vmul.f32 %v2065, %v896
      %v2076 = vmul.f32 %v2068, %v896
      %v2077 = vadd.f32 %v2069, 1e-05
      %v2078 = vadd.f32 %v2070, 1e-05
      %v2079 = vadd.f32 %v2071, 1e-05
      %v2080 = vadd.f32 %v2072, 1e-05
      %v2081 = vadd.f32 %v2073, 1e-05
      %v2082 = vadd.f32 %v2074, 1e-05
      %v2083 = vadd.f32 %v2075, 1e-05
      %v2084 = vadd.f32 %v2076, 1e-05
      %v2085 = vrsqrt.pop %v2077
      %v2086 = vrsqrt.pop %v2078
      %v2087 = vrsqrt.pop %v2079
      %v2088 = vrsqrt.pop %v2080
      %v2089 = vrsqrt.pop %v2081
      %v2090 = vrsqrt.pop %v2082
      %v2091 = vrsqrt.pop %v2083
      %v2092 = vrsqrt.pop %v2084
      %v2093 = vmul.f32 %v2029, %v2085
      %v2094 = vmul.f32 %v2030, %v2086
      %v2095 = vmul.f32 %v2031, %v2087
      %v2096 = vmul.f32 %v2032, %v2088
      %v2097 = vmul.f32 %v2033, %v2089
      %v2098 = vmul.f32 %v2034, %v2090
      %v2099 = vmul.f32 %v2035, %v2091
      %v2100 = vmul.f32 %v2036, %v2092
      %v2102 = vlaneseq
      %v2103 = vshrl.u32 %v2102, 7
      %v2104 = vsub.s32 0, %v2103
      %v2105 = vrot.slane %v1994, %v2104
      %v2107 = vmul.f32 %v2093, %v2105
      %v2108 = vmul.f32 %v2094, %v2105
      %v2109 = vmul.f32 %v2095, %v2105
      %v2110 = vmul.f32 %v2096, %v2105
      %v2111 = vmul.f32 %v2097, %v2105
      %v2112 = vmul.f32 %v2098, %v2105
      %v2113 = vmul.f32 %v2099, %v2105
      %v2114 = vmul.f32 %v2100, %v2105
      %v2116 = vlaneseq
      %v2117 = vshrl.u32 %v2116, 7
      %v2118 = vsub.s32 0, %v2117
      %v2119 = vrot.slane %v1996, %v2118
      %v2121 = vadd.f32 %v2107, %v2119
      %v2122 = vadd.f32 %v2108, %v2119
      %v2123 = vadd.f32 %v2109, %v2119
      %v2124 = vadd.f32 %v2110, %v2119
      %v2125 = vadd.f32 %v2111, %v2119
      %v2126 = vadd.f32 %v2112, %v2119
      %v2127 = vadd.f32 %v2113, %v2119
      %v2128 = vadd.f32 %v2114, %v2119
      %v2129 = vpack.c.bf16 %v2122, %v2121
      %v2130 = vpack.c.bf16 %v2124, %v2123
      %v2131 = vpack.c.bf16 %v2126, %v2125
      %v2132 = vpack.c.bf16 %v2128, %v2127
      %s2133 = scalar_lea.vmem %s7, 32
      %v2134 = vld [vmem:[%s2133] sm:$0xf]
      %v2135 = vld [vmem:[%s2133 + $0x4] sm:$0xf]
      %v2136 = vld [vmem:[%s2133 + $0x8] sm:$0xf]
      %v2137 = vld [vmem:[%s2133 + $0xc] sm:$0xf]
      %v2138 = vld [vmem:[%s2133 + $0x10] sm:$0xf]
      %v2139 = vld [vmem:[%s2133 + $0x14] sm:$0xf]
      %v2140 = vld [vmem:[%s2133 + $0x18] sm:$0xf]
      %v2141 = vld [vmem:[%s2133 + $0x1c] sm:$0xf]
      %v2150 = vunpack.c.l.b16 %v2134
      %v2151 = vunpack.c.l.b16 %v2135
      %v2152 = vunpack.c.l.b16 %v2136
      %v2153 = vunpack.c.l.b16 %v2137
      %v2154 = vunpack.c.l.b16 %v2138
      %v2155 = vunpack.c.l.b16 %v2139
      %v2156 = vunpack.c.l.b16 %v2140
      %v2157 = vunpack.c.l.b16 %v2141
      %v2158 = vpack.c.b16 %v2151, %v2150
      %v2159 = vpack.c.b16 %v2153, %v2152
      %v2160 = vpack.c.b16 %v2155, %v2154
      %v2161 = vpack.c.b16 %v2157, %v2156
      %v2167 = vsel %vm871, %v2129, 0
      %v2170 = vsel %vm871, %v2130, 0
      %v2173 = vsel %vm871, %v2131, 0
      %v2176 = vsel %vm871, %v2132, 0
      %2178 = vmatprep.subr.bf16.mxu0 0
      %2179 = vmatpush1.bf16.msra.mxu0 %v2158
      %2180 = vmatprep.subr.bf16.mxu0 0
      %2181 = vmatpush1.bf16.msra.mxu0 %v2159
      %2182 = vmatprep.subr.bf16.mxu0 0
      %2183 = vmatpush1.bf16.msra.mxu0 %v2160
      %2184 = vmatprep.subr.bf16.mxu0 0
      %2185 = vmatpush1.bf16.msra.mxu0 %v2161
      %2186 = vmatprep.subr.bf16.mxu0 0
      %2187 = vmatpush1.bf16.msra.mxu0 0
      %2188 = vmatprep.subr.bf16.mxu0 0
      %2189 = vmatpush1.bf16.msra.mxu0 0
      %2190 = vmatprep.subr.bf16.mxu0 0
      %2191 = vmatpush1.bf16.msra.mxu0 0
      %2192 = vmatprep.subr.bf16.mxu0 0
      %2193 = vmatpush1.bf16.msra.mxu0 0
      %2194 = vmatprep.subr.bf16.mxu0 0
      %2195 = vmatpush1.bf16.msra.mxu0 0
      %2196 = vmatprep.subr.bf16.mxu0 0
      %2197 = vmatpush1.bf16.msra.mxu0 0
      %2198 = vmatprep.subr.bf16.mxu0 0
      %2199 = vmatpush1.bf16.msra.mxu0 0
      %2200 = vmatprep.subr.bf16.mxu0 0
      %2201 = vmatpush1.bf16.msra.mxu0 0
      %2202 = vmatprep.subr.bf16.mxu0 0
      %2203 = vmatpush1.bf16.msra.mxu0 0
      %2204 = vmatprep.subr.bf16.mxu0 0
      %2205 = vmatpush1.bf16.msra.mxu0 0
      %2206 = vmatprep.subr.bf16.mxu0 0
      %2207 = vmatpush1.bf16.msra.mxu0 0
      %2208 = vmatprep.subr.bf16.mxu0 0
      %2209 = vmatpush1.bf16.msra.mxu0 0
      %2210 = vmatprep.mubr.bf16.mxu0 0
      %2211 = vmatmul.mubr.bf16.gmra.mrb[0].mxu0 %v2167
      %v2212 = vpop.f32.mrb[0].mxu0
      %v2213 = vadd.f32 0.0, %v2212
      %v2214 = vpop.f32.mrb[0].mxu0
      %v2215 = vpop.f32.mrb[0].mxu0
      %v2216 = vadd.f32 0.0, %v2215
      %v2217 = vpop.f32.mrb[0].mxu0
      %2218 = vmatprep.mubr.bf16.mxu0 0
      %2219 = vmatmul.mubr.bf16.gmra.mrb[0].mxu0 %v2170
      %v2220 = vpop.f32.mrb[0].mxu0
      %v2221 = vadd.f32 0.0, %v2220
      %v2222 = vpop.f32.mrb[0].mxu0
      %v2223 = vpop.f32.mrb[0].mxu0
      %v2224 = vadd.f32 0.0, %v2223
      %v2225 = vpop.f32.mrb[0].mxu0
      %2226 = vmatprep.mubr.bf16.mxu0 0
      %2227 = vmatmul.mubr.bf16.gmra.mrb[0].mxu0 %v2173
      %v2228 = vpop.f32.mrb[0].mxu0
      %v2229 = vadd.f32 0.0, %v2228
      %v2230 = vpop.f32.mrb[0].mxu0
      %v2231 = vpop.f32.mrb[0].mxu0
      %v2232 = vadd.f32 0.0, %v2231
      %v2233 = vpop.f32.mrb[0].mxu0
      %2234 = vmatprep.mubr.bf16.mxu0 0
      %2235 = vmatmul.mubr.bf16.gmra.mrb[0].mxu0 %v2176
      %v2236 = vpop.f32.mrb[0].mxu0
      %v2237 = vadd.f32 0.0, %v2236
      %v2238 = vpop.f32.mrb[0].mxu0
      %v2239 = vpop.f32.mrb[0].mxu0
      %v2240 = vadd.f32 0.0, %v2239
      %v2241 = vpop.f32.mrb[0].mxu0
      %2242 = vdwg.mxu0
      %v2243 = vpack.c.bf16 %v2216, %v2213
      %v2244 = vpack.c.bf16 %v2224, %v2221
      %v2245 = vpack.c.bf16 %v2232, %v2229
      %v2246 = vpack.c.bf16 %v2240, %v2237
      %2251 = vrot.lane.b32.xlu0 %v2243, 96
      %v2252 = vpop.permute.xlu0 %2251
      %2253 = vrot.lane.b32.xlu0 %v2244, 96
      %v2254 = vpop.permute.xlu0 %2253
      %2255 = vrot.lane.b32.xlu0 %v2245, 96
      %v2256 = vpop.permute.xlu0 %2255
      %2257 = vrot.lane.b32.xlu0 %v2246, 96
      %v2258 = vpop.permute.xlu0 %2257
      %v2260 = vsel %vm1134, %v2243, 0
      %v2263 = vsel %vm1134, %v2244, 0
      %v2266 = vsel %vm1134, %v2245, 0
      %v2269 = vsel %vm1134, %v2246, 0
      %v2272 = vsel %vm1134, %v2252, 0
      %v2275 = vsel %vm1134, %v2254, 0
      %v2278 = vsel %vm1134, %v2256, 0
      %v2281 = vsel %vm1134, %v2258, 0
      %2283 = vmatprep.subr.bf16.mxu0 0
      %2284 = vmatpush1.bf16.xpose.msra.mxu0 %v2272
      %2285 = vmatprep.subr.bf16.mxu0 0
      %2286 = vmatpush1.bf16.xpose.msra.mxu0 %v2275
      %2287 = vmatprep.subr.bf16.mxu0 0
      %2288 = vmatpush1.bf16.xpose.msra.mxu0 %v2278
      %2289 = vmatprep.subr.bf16.mxu0 0
      %2290 = vmatpush1.bf16.xpose.msra.mxu0 %v2281
      %2291 = vmatprep.subr.bf16.mxu0 0
      %2292 = vmatpush1.bf16.xpose.msra.mxu0 0
      %2293 = vmatprep.subr.bf16.mxu0 0
      %2294 = vmatpush1.bf16.xpose.msra.mxu0 0
      %2295 = vmatprep.subr.bf16.mxu0 0
      %2296 = vmatpush1.bf16.xpose.msra.mxu0 0
      %2297 = vmatprep.subr.bf16.mxu0 0
      %2298 = vmatpush1.bf16.xpose.msra.mxu0 0
      %2299 = vmatprep.subr.bf16.mxu0 0
      %2300 = vmatpush1.bf16.xpose.msra.mxu0 0
      %2301 = vmatprep.subr.bf16.mxu0 0
      %2302 = vmatpush1.bf16.xpose.msra.mxu0 0
      %2303 = vmatprep.subr.bf16.mxu0 0
      %2304 = vmatpush1.bf16.xpose.msra.mxu0 0
      %2305 = vmatprep.subr.bf16.mxu0 0
      %2306 = vmatpush1.bf16.xpose.msra.mxu0 0
      %2307 = vmatprep.subr.bf16.mxu0 0
      %2308 = vmatpush1.bf16.xpose.msra.mxu0 0
      %2309 = vmatprep.subr.bf16.mxu0 0
      %2310 = vmatpush1.bf16.xpose.msra.mxu0 0
      %2311 = vmatprep.subr.bf16.mxu0 0
      %2312 = vmatpush1.bf16.xpose.msra.mxu0 0
      %2313 = vmatprep.subr.bf16.mxu0 0
      %2314 = vmatpush1.bf16.xpose.msra.mxu0 0
      %2315 = vmatprep.mubr.bf16.mxu0 0
      %2316 = vmatmul.mubr.bf16.gmra.mrb[0].mxu0 %v2260
      %v2317 = vpop.f32.mrb[0].mxu0
      %v2318 = vadd.f32 0.0, %v2317
      %v2319 = vpop.f32.mrb[0].mxu0
      %v2320 = vpop.f32.mrb[0].mxu0
      %v2321 = vadd.f32 0.0, %v2320
      %v2322 = vpop.f32.mrb[0].mxu0
      %2323 = vmatprep.mubr.bf16.mxu0 0
      %2324 = vmatmul.mubr.bf16.gmra.mrb[0].mxu0 %v2263
      %v2325 = vpop.f32.mrb[0].mxu0
      %v2326 = vadd.f32 0.0, %v2325
      %v2327 = vpop.f32.mrb[0].mxu0
      %v2328 = vpop.f32.mrb[0].mxu0
      %v2329 = vadd.f32 0.0, %v2328
      %v2330 = vpop.f32.mrb[0].mxu0
      %2331 = vmatprep.mubr.bf16.mxu0 0
      %2332 = vmatmul.mubr.bf16.gmra.mrb[0].mxu0 %v2266
      %v2333 = vpop.f32.mrb[0].mxu0
      %v2334 = vadd.f32 0.0, %v2333
      %v2335 = vpop.f32.mrb[0].mxu0
      %v2336 = vpop.f32.mrb[0].mxu0
      %v2337 = vadd.f32 0.0, %v2336
      %v2338 = vpop.f32.mrb[0].mxu0
      %2339 = vmatprep.mubr.bf16.mxu0 0
      %2340 = vmatmul.mubr.bf16.gmra.mrb[0].mxu0 %v2269
      %v2341 = vpop.f32.mrb[0].mxu0
      %v2342 = vadd.f32 0.0, %v2341
      %v2343 = vpop.f32.mrb[0].mxu0
      %v2344 = vpop.f32.mrb[0].mxu0
      %v2345 = vadd.f32 0.0, %v2344
      %v2346 = vpop.f32.mrb[0].mxu0
      %2347 = vdwg.mxu0
      %v2348 = vsel %vm871, %v2318, -inf
      %2349 = vmax.xlane.f32.xlu0 %v2348
      %v2350 = vpop.xlane.xlu0 %2349
      %v2351 = vsel %vm871, %v2321, -inf
      %2352 = vmax.xlane.f32.xlu0 %v2351
      %v2353 = vpop.xlane.xlu0 %2352
      %v2354 = vsel %vm871, %v2326, -inf
      %2355 = vmax.xlane.f32.xlu0 %v2354
      %v2356 = vpop.xlane.xlu0 %2355
      %v2357 = vsel %vm871, %v2329, -inf
      %2358 = vmax.xlane.f32.xlu0 %v2357
      %v2359 = vpop.xlane.xlu0 %2358
      %v2360 = vsel %vm871, %v2334, -inf
      %2361 = vmax.xlane.f32.xlu0 %v2360
      %v2362 = vpop.xlane.xlu0 %2361
      %v2363 = vsel %vm871, %v2337, -inf
      %2364 = vmax.xlane.f32.xlu0 %v2363
      %v2365 = vpop.xlane.xlu0 %2364
      %v2366 = vsel %vm871, %v2342, -inf
      %2367 = vmax.xlane.f32.xlu0 %v2366
      %v2368 = vpop.xlane.xlu0 %2367
      %v2369 = vsel %vm871, %v2345, -inf
      %2370 = vmax.xlane.f32.xlu0 %v2369
      %v2371 = vpop.xlane.xlu0 %2370
      %v2372 = vsub.f32 %v2318, %v2350
      %v2373 = vsub.f32 %v2321, %v2353
      %v2374 = vsub.f32 %v2326, %v2356
      %v2375 = vsub.f32 %v2329, %v2359
      %v2376 = vsub.f32 %v2334, %v2362
      %v2377 = vsub.f32 %v2337, %v2365
      %v2378 = vsub.f32 %v2342, %v2368
      %v2379 = vsub.f32 %v2345, %v2371
      %v2380 = vmul.f32 %v2372, 1.442695
      %v2381 = vpow.pop %v2380
      %v2382 = vmul.f32 %v2373, 1.442695
      %v2383 = vpow.pop %v2382
      %v2384 = vmul.f32 %v2374, 1.442695
      %v2385 = vpow.pop %v2384
      %v2386 = vmul.f32 %v2375, 1.442695
      %v2387 = vpow.pop %v2386
      %v2388 = vmul.f32 %v2376, 1.442695
      %v2389 = vpow.pop %v2388
      %v2390 = vmul.f32 %v2377, 1.442695
      %v2391 = vpow.pop %v2390
      %v2392 = vmul.f32 %v2378, 1.442695
      %v2393 = vpow.pop %v2392
      %v2394 = vmul.f32 %v2379, 1.442695
      %v2395 = vpow.pop %v2394
      %v2396 = vsel %vm871, %v2381, 0.0
      %2397 = vadd.xlane.f32.xlu0 %v2396
      %v2398 = vpop.xlane.xlu0 %2397
      %v2399 = vsel %vm871, %v2383, 0.0
      %2400 = vadd.xlane.f32.xlu0 %v2399
      %v2401 = vpop.xlane.xlu0 %2400
      %v2402 = vsel %vm871, %v2385, 0.0
      %2403 = vadd.xlane.f32.xlu0 %v2402
      %v2404 = vpop.xlane.xlu0 %2403
      %v2405 = vsel %vm871, %v2387, 0.0
      %2406 = vadd.xlane.f32.xlu0 %v2405
      %v2407 = vpop.xlane.xlu0 %2406
      %v2408 = vsel %vm871, %v2389, 0.0
      %2409 = vadd.xlane.f32.xlu0 %v2408
      %v2410 = vpop.xlane.xlu0 %2409
      %v2411 = vsel %vm871, %v2391, 0.0
      %2412 = vadd.xlane.f32.xlu0 %v2411
      %v2413 = vpop.xlane.xlu0 %2412
      %v2414 = vsel %vm871, %v2393, 0.0
      %2415 = vadd.xlane.f32.xlu0 %v2414
      %v2416 = vpop.xlane.xlu0 %2415
      %v2417 = vsel %vm871, %v2395, 0.0
      %2418 = vadd.xlane.f32.xlu0 %v2417
      %v2419 = vpop.xlane.xlu0 %2418
      %v2420 = vrcp.pop %v2398
      %v2421 = vrcp.pop %v2401
      %v2422 = vrcp.pop %v2404
      %v2423 = vrcp.pop %v2407
      %v2424 = vrcp.pop %v2410
      %v2425 = vrcp.pop %v2413
      %v2426 = vrcp.pop %v2416
      %v2427 = vrcp.pop %v2419
      %v2428 = vmul.f32 %v2381, %v2420
      %v2429 = vmul.f32 %v2383, %v2421
      %v2430 = vmul.f32 %v2385, %v2422
      %v2431 = vmul.f32 %v2387, %v2423
      %v2432 = vmul.f32 %v2389, %v2424
      %v2433 = vmul.f32 %v2391, %v2425
      %v2434 = vmul.f32 %v2393, %v2426
      %v2435 = vmul.f32 %v2395, %v2427
      %v2436 = vpack.c.bf16 %v2429, %v2428
      %v2437 = vpack.c.bf16 %v2431, %v2430
      %v2438 = vpack.c.bf16 %v2433, %v2432
      %v2439 = vpack.c.bf16 %v2435, %v2434
      %2440 = vrot.lane.b32.xlu0 %v2243, 64
      %v2441 = vpop.permute.xlu0 %2440
      %2442 = vrot.lane.b32.xlu0 %v2244, 64
      %v2443 = vpop.permute.xlu0 %2442
      %2444 = vrot.lane.b32.xlu0 %v2245, 64
      %v2445 = vpop.permute.xlu0 %2444
      %2446 = vrot.lane.b32.xlu0 %v2246, 64
      %v2447 = vpop.permute.xlu0 %2446
      %v2453 = vsel %vm871, %v2436, 0
      %v2456 = vsel %vm871, %v2437, 0
      %v2459 = vsel %vm871, %v2438, 0
      %v2462 = vsel %vm871, %v2439, 0
      %2464 = vmatprep.subr.bf16.mxu0 0
      %2465 = vmatpush1.bf16.msra.mxu0 %v2441
      %2466 = vmatprep.subr.bf16.mxu0 0
      %2467 = vmatpush1.bf16.msra.mxu0 %v2443
      %2468 = vmatprep.subr.bf16.mxu0 0
      %2469 = vmatpush1.bf16.msra.mxu0 %v2445
      %2470 = vmatprep.subr.bf16.mxu0 0
      %2471 = vmatpush1.bf16.msra.mxu0 %v2447
      %2472 = vmatprep.subr.bf16.mxu0 0
      %2473 = vmatpush1.bf16.msra.mxu0 0
      %2474 = vmatprep.subr.bf16.mxu0 0
      %2475 = vmatpush1.bf16.msra.mxu0 0
      %2476 = vmatprep.subr.bf16.mxu0 0
      %2477 = vmatpush1.bf16.msra.mxu0 0
      %2478 = vmatprep.subr.bf16.mxu0 0
      %2479 = vmatpush1.bf16.msra.mxu0 0
      %2480 = vmatprep.subr.bf16.mxu0 0
      %2481 = vmatpush1.bf16.msra.mxu0 0
      %2482 = vmatprep.subr.bf16.mxu0 0
      %2483 = vmatpush1.bf16.msra.mxu0 0
      %2484 = vmatprep.subr.bf16.mxu0 0
      %2485 = vmatpush1.bf16.msra.mxu0 0
      %2486 = vmatprep.subr.bf16.mxu0 0
      %2487 = vmatpush1.bf16.msra.mxu0 0
      %2488 = vmatprep.subr.bf16.mxu0 0
      %2489 = vmatpush1.bf16.msra.mxu0 0
      %2490 = vmatprep.subr.bf16.mxu0 0
      %2491 = vmatpush1.bf16.msra.mxu0 0
      %2492 = vmatprep.subr.bf16.mxu0 0
      %2493 = vmatpush1.bf16.msra.mxu0 0
      %2494 = vmatprep.subr.bf16.mxu0 0
      %2495 = vmatpush1.bf16.msra.mxu0 0
      %2496 = vmatprep.mubr.bf16.mxu0 0
      %2497 = vmatmul.mubr.bf16.gmra.mrb[0].mxu0 %v2453
      %v2498 = vpop.f32.mrb[0].mxu0
      %v2499 = vadd.f32 0.0, %v2498
      %v2500 = vpop.f32.mrb[0].mxu0
      %v2501 = vpop.f32.mrb[0].mxu0
      %v2502 = vadd.f32 0.0, %v2501
      %v2503 = vpop.f32.mrb[0].mxu0
      %2504 = vmatprep.mubr.bf16.mxu0 0
      %2505 = vmatmul.mubr.bf16.gmra.mrb[0].mxu0 %v2456
      %v2506 = vpop.f32.mrb[0].mxu0
      %v2507 = vadd.f32 0.0, %v2506
      %v2508 = vpop.f32.mrb[0].mxu0
      %v2509 = vpop.f32.mrb[0].mxu0
      %v2510 = vadd.f32 0.0, %v2509
      %v2511 = vpop.f32.mrb[0].mxu0
      %2512 = vmatprep.mubr.bf16.mxu0 0
      %2513 = vmatmul.mubr.bf16.gmra.mrb[0].mxu0 %v2459
      %v2514 = vpop.f32.mrb[0].mxu0
      %v2515 = vadd.f32 0.0, %v2514
      %v2516 = vpop.f32.mrb[0].mxu0
      %v2517 = vpop.f32.mrb[0].mxu0
      %v2518 = vadd.f32 0.0, %v2517
      %v2519 = vpop.f32.mrb[0].mxu0
      %2520 = vmatprep.mubr.bf16.mxu0 0
      %2521 = vmatmul.mubr.bf16.gmra.mrb[0].mxu0 %v2462
      %v2522 = vpop.f32.mrb[0].mxu0
      %v2523 = vadd.f32 0.0, %v2522
      %v2524 = vpop.f32.mrb[0].mxu0
      %v2525 = vpop.f32.mrb[0].mxu0
      %v2526 = vadd.f32 0.0, %v2525
      %v2527 = vpop.f32.mrb[0].mxu0
      %2528 = vdwg.mxu0
      %v2529 = vpack.c.bf16 %v2502, %v2499
      %v2530 = vpack.c.bf16 %v2510, %v2507
      %v2531 = vpack.c.bf16 %v2518, %v2515
      %v2532 = vpack.c.bf16 %v2526, %v2523
      %s2533 = scalar_lea.vmem %s8, 16
      %v2534 = vld [vmem:[%s2533] sm:$0xf]
      %v2535 = vld [vmem:[%s2533 + $0x4] sm:$0xf]
      %v2536 = vld [vmem:[%s2533 + $0x8] sm:$0xf]
      %v2537 = vld [vmem:[%s2533 + $0xc] sm:$0xf]
      %v2542 = vunpack.c.l.b16 %v2534
      %v2543 = vunpack.c.l.b16 %v2535
      %v2544 = vunpack.c.l.b16 %v2536
      %v2545 = vunpack.c.l.b16 %v2537
      %v2546 = vpack.c.b16 %v2543, %v2542
      %v2547 = vpack.c.b16 %v2545, %v2544
      %v2551 = vsel %vm1134, %v2529, 0
      %v2554 = vsel %vm1134, %v2530, 0
      %v2557 = vsel %vm1134, %v2531, 0
      %v2560 = vsel %vm1134, %v2532, 0
      %2562 = vmatprep.subr.bf16.mxu0 0
      %2563 = vmatpush1.bf16.msra.mxu0 %v2546
      %2564 = vmatprep.subr.bf16.mxu0 0
      %2565 = vmatpush1.bf16.msra.mxu0 %v2547
      %2566 = vmatprep.subr.bf16.mxu0 0
      %2567 = vmatpush1.bf16.msra.mxu0 0
      %2568 = vmatprep.subr.bf16.mxu0 0
      %2569 = vmatpush1.bf16.msra.mxu0 0
      %2570 = vmatprep.subr.bf16.mxu0 0
      %2571 = vmatpush1.bf16.msra.mxu0 0
      %2572 = vmatprep.subr.bf16.mxu0 0
      %2573 = vmatpush1.bf16.msra.mxu0 0
      %2574 = vmatprep.subr.bf16.mxu0 0
      %2575 = vmatpush1.bf16.msra.mxu0 0
      %2576 = vmatprep.subr.bf16.mxu0 0
      %2577 = vmatpush1.bf16.msra.mxu0 0
      %2578 = vmatprep.subr.bf16.mxu0 0
      %2579 = vmatpush1.bf16.msra.mxu0 0
      %2580 = vmatprep.subr.bf16.mxu0 0
      %2581 = vmatpush1.bf16.msra.mxu0 0
      %2582 = vmatprep.subr.bf16.mxu0 0
      %2583 = vmatpush1.bf16.msra.mxu0 0
      %2584 = vmatprep.subr.bf16.mxu0 0
      %2585 = vmatpush1.bf16.msra.mxu0 0
      %2586 = vmatprep.subr.bf16.mxu0 0
      %2587 = vmatpush1.bf16.msra.mxu0 0
      %2588 = vmatprep.subr.bf16.mxu0 0
      %2589 = vmatpush1.bf16.msra.mxu0 0
      %2590 = vmatprep.subr.bf16.mxu0 0
      %2591 = vmatpush1.bf16.msra.mxu0 0
      %2592 = vmatprep.subr.bf16.mxu0 0
      %2593 = vmatpush1.bf16.msra.mxu0 0
      %2594 = vmatprep.mubr.bf16.mxu0 0
      %2595 = vmatmul.mubr.bf16.gmra.mrb[0].mxu0 %v2551
      %v2596 = vpop.f32.mrb[0].mxu0
      %v2597 = vadd.f32 0.0, %v2596
      %v2598 = vpop.f32.mrb[0].mxu0
      %v2599 = vpop.f32.mrb[0].mxu0
      %v2600 = vadd.f32 0.0, %v2599
      %v2601 = vpop.f32.mrb[0].mxu0
      %2602 = vmatprep.mubr.bf16.mxu0 0
      %2603 = vmatmul.mubr.bf16.gmra.mrb[0].mxu0 %v2554
      %v2604 = vpop.f32.mrb[0].mxu0
      %v2605 = vadd.f32 0.0, %v2604
      %v2606 = vpop.f32.mrb[0].mxu0
      %v2607 = vpop.f32.mrb[0].mxu0
      %v2608 = vadd.f32 0.0, %v2607
      %v2609 = vpop.f32.mrb[0].mxu0
      %2610 = vmatprep.mubr.bf16.mxu0 0
      %2611 = vmatmul.mubr.bf16.gmra.mrb[0].mxu0 %v2557
      %v2612 = vpop.f32.mrb[0].mxu0
      %v2613 = vadd.f32 0.0, %v2612
      %v2614 = vpop.f32.mrb[0].mxu0
      %v2615 = vpop.f32.mrb[0].mxu0
      %v2616 = vadd.f32 0.0, %v2615
      %v2617 = vpop.f32.mrb[0].mxu0
      %2618 = vmatprep.mubr.bf16.mxu0 0
      %2619 = vmatmul.mubr.bf16.gmra.mrb[0].mxu0 %v2560
      %v2620 = vpop.f32.mrb[0].mxu0
      %v2621 = vadd.f32 0.0, %v2620
      %v2622 = vpop.f32.mrb[0].mxu0
      %v2623 = vpop.f32.mrb[0].mxu0
      %v2624 = vadd.f32 0.0, %v2623
      %v2625 = vpop.f32.mrb[0].mxu0
      %2626 = vdwg.mxu0
      %v2627 = vadd.f32 %v1985, %v2597
      %v2628 = vadd.f32 %v1986, %v2600
      %v2629 = vadd.f32 %v1987, %v2605
      %v2630 = vadd.f32 %v1988, %v2608
      %v2631 = vadd.f32 %v1989, %v2613
      %v2632 = vadd.f32 %v1990, %v2616
      %v2633 = vadd.f32 %v1991, %v2621
      %v2634 = vadd.f32 %v1992, %v2624
      %s2635 = scalar_lea.vmem %s9, 1
      %v2636 = vld [vmem:[%s2635] sm:$0x1]
      %v2638 = vlaneseq
      %v2639 = vshrl.u32 %v2638, 7
      %v2640 = vsub.s32 0, %v2639
      %v2641 = vrot.slane %v2636, %v2640
      %v2643 = vadd.f32 %v2627, %v2641
      %v2644 = vadd.f32 %v2628, %v2641
      %v2645 = vadd.f32 %v2629, %v2641
      %v2646 = vadd.f32 %v2630, %v2641
      %v2647 = vadd.f32 %v2631, %v2641
      %v2648 = vadd.f32 %v2632, %v2641
      %v2649 = vadd.f32 %v2633, %v2641
      %v2650 = vadd.f32 %v2634, %v2641
      %s2651 = scalar_lea.vmem %s5, 3
      %v2652 = vld [vmem:[%s2651] sm:$0x1]
      %s2653 = scalar_lea.vmem %s6, 3
      %v2654 = vld [vmem:[%s2653] sm:$0x1]
      %v2655 = vsel %vm871, %v2643, 0.0
      %2656 = vadd.xlane.f32.xlu0 %v2655
      %v2657 = vpop.xlane.xlu0 %2656
      %v2658 = vsel %vm871, %v2644, 0.0
      %2659 = vadd.xlane.f32.xlu0 %v2658
      %v2660 = vpop.xlane.xlu0 %2659
      %v2661 = vsel %vm871, %v2645, 0.0
      %2662 = vadd.xlane.f32.xlu0 %v2661
      %v2663 = vpop.xlane.xlu0 %2662
      %v2664 = vsel %vm871, %v2646, 0.0
      %2665 = vadd.xlane.f32.xlu0 %v2664
      %v2666 = vpop.xlane.xlu0 %2665
      %v2667 = vsel %vm871, %v2647, 0.0
      %2668 = vadd.xlane.f32.xlu0 %v2667
      %v2669 = vpop.xlane.xlu0 %2668
      %v2670 = vsel %vm871, %v2648, 0.0
      %2671 = vadd.xlane.f32.xlu0 %v2670
      %v2672 = vpop.xlane.xlu0 %2671
      %v2673 = vsel %vm871, %v2649, 0.0
      %2674 = vadd.xlane.f32.xlu0 %v2673
      %v2675 = vpop.xlane.xlu0 %2674
      %v2676 = vsel %vm871, %v2650, 0.0
      %2677 = vadd.xlane.f32.xlu0 %v2676
      %v2678 = vpop.xlane.xlu0 %2677
      %v2679 = vmul.f32 %v2657, %v896
      %v2680 = vmul.f32 %v2660, %v896
      %v2681 = vmul.f32 %v2663, %v896
      %v2682 = vmul.f32 %v2666, %v896
      %v2683 = vmul.f32 %v2669, %v896
      %v2684 = vmul.f32 %v2672, %v896
      %v2685 = vmul.f32 %v2675, %v896
      %v2686 = vmul.f32 %v2678, %v896
      %v2687 = vsub.f32 %v2643, %v2679
      %v2688 = vsub.f32 %v2644, %v2680
      %v2689 = vsub.f32 %v2645, %v2681
      %v2690 = vsub.f32 %v2646, %v2682
      %v2691 = vsub.f32 %v2647, %v2683
      %v2692 = vsub.f32 %v2648, %v2684
      %v2693 = vsub.f32 %v2649, %v2685
      %v2694 = vsub.f32 %v2650, %v2686
      %v2695 = vmul.f32 %v2687, %v2687
      %v2696 = vmul.f32 %v2688, %v2688
      %v2697 = vmul.f32 %v2689, %v2689
      %v2698 = vmul.f32 %v2690, %v2690
      %v2699 = vmul.f32 %v2691, %v2691
      %v2700 = vmul.f32 %v2692, %v2692
      %v2701 = vmul.f32 %v2693, %v2693
      %v2702 = vmul.f32 %v2694, %v2694
      %v2703 = vsel %vm871, %v2695, 0.0
      %2704 = vadd.xlane.f32.xlu0 %v2703
      %v2705 = vpop.xlane.xlu0 %2704
      %v2706 = vsel %vm871, %v2696, 0.0
      %2707 = vadd.xlane.f32.xlu0 %v2706
      %v2708 = vpop.xlane.xlu0 %2707
      %v2709 = vsel %vm871, %v2697, 0.0
      %2710 = vadd.xlane.f32.xlu0 %v2709
      %v2711 = vpop.xlane.xlu0 %2710
      %v2712 = vsel %vm871, %v2698, 0.0
      %2713 = vadd.xlane.f32.xlu0 %v2712
      %v2714 = vpop.xlane.xlu0 %2713
      %v2715 = vsel %vm871, %v2699, 0.0
      %2716 = vadd.xlane.f32.xlu0 %v2715
      %v2717 = vpop.xlane.xlu0 %2716
      %v2718 = vsel %vm871, %v2700, 0.0
      %2719 = vadd.xlane.f32.xlu0 %v2718
      %v2720 = vpop.xlane.xlu0 %2719
      %v2721 = vsel %vm871, %v2701, 0.0
      %2722 = vadd.xlane.f32.xlu0 %v2721
      %v2723 = vpop.xlane.xlu0 %2722
      %v2724 = vsel %vm871, %v2702, 0.0
      %2725 = vadd.xlane.f32.xlu0 %v2724
      %v2726 = vpop.xlane.xlu0 %2725
      %v2727 = vmul.f32 %v2705, %v896
      %v2728 = vmul.f32 %v2708, %v896
      %v2729 = vmul.f32 %v2711, %v896
      %v2730 = vmul.f32 %v2714, %v896
      %v2731 = vmul.f32 %v2717, %v896
      %v2732 = vmul.f32 %v2720, %v896
      %v2733 = vmul.f32 %v2723, %v896
      %v2734 = vmul.f32 %v2726, %v896
      %v2735 = vadd.f32 %v2727, 1e-05
      %v2736 = vadd.f32 %v2728, 1e-05
      %v2737 = vadd.f32 %v2729, 1e-05
      %v2738 = vadd.f32 %v2730, 1e-05
      %v2739 = vadd.f32 %v2731, 1e-05
      %v2740 = vadd.f32 %v2732, 1e-05
      %v2741 = vadd.f32 %v2733, 1e-05
      %v2742 = vadd.f32 %v2734, 1e-05
      %v2743 = vrsqrt.pop %v2735
      %v2744 = vrsqrt.pop %v2736
      %v2745 = vrsqrt.pop %v2737
      %v2746 = vrsqrt.pop %v2738
      %v2747 = vrsqrt.pop %v2739
      %v2748 = vrsqrt.pop %v2740
      %v2749 = vrsqrt.pop %v2741
      %v2750 = vrsqrt.pop %v2742
      %v2751 = vmul.f32 %v2687, %v2743
      %v2752 = vmul.f32 %v2688, %v2744
      %v2753 = vmul.f32 %v2689, %v2745
      %v2754 = vmul.f32 %v2690, %v2746
      %v2755 = vmul.f32 %v2691, %v2747
      %v2756 = vmul.f32 %v2692, %v2748
      %v2757 = vmul.f32 %v2693, %v2749
      %v2758 = vmul.f32 %v2694, %v2750
      %v2760 = vlaneseq
      %v2761 = vshrl.u32 %v2760, 7
      %v2762 = vsub.s32 0, %v2761
      %v2763 = vrot.slane %v2652, %v2762
      %v2765 = vmul.f32 %v2751, %v2763
      %v2766 = vmul.f32 %v2752, %v2763
      %v2767 = vmul.f32 %v2753, %v2763
      %v2768 = vmul.f32 %v2754, %v2763
      %v2769 = vmul.f32 %v2755, %v2763
      %v2770 = vmul.f32 %v2756, %v2763
      %v2771 = vmul.f32 %v2757, %v2763
      %v2772 = vmul.f32 %v2758, %v2763
      %v2774 = vlaneseq
      %v2775 = vshrl.u32 %v2774, 7
      %v2776 = vsub.s32 0, %v2775
      %v2777 = vrot.slane %v2654, %v2776
      %v2779 = vadd.f32 %v2765, %v2777
      %v2780 = vadd.f32 %v2766, %v2777
      %v2781 = vadd.f32 %v2767, %v2777
      %v2782 = vadd.f32 %v2768, %v2777
      %v2783 = vadd.f32 %v2769, %v2777
      %v2784 = vadd.f32 %v2770, %v2777
      %v2785 = vadd.f32 %v2771, %v2777
      %v2786 = vadd.f32 %v2772, %v2777
      %v2787 = vpack.c.bf16 %v2780, %v2779
      %v2788 = vpack.c.bf16 %v2782, %v2781
      %v2789 = vpack.c.bf16 %v2784, %v2783
      %v2790 = vpack.c.bf16 %v2786, %v2785
      %s2791 = scalar_lea.vmem %s10, 32
      %v2792 = vld [vmem:[%s2791] sm:$0xf]
      %v2793 = vld [vmem:[%s2791 + $0x4] sm:$0xf]
      %v2794 = vld [vmem:[%s2791 + $0x8] sm:$0xf]
      %v2795 = vld [vmem:[%s2791 + $0xc] sm:$0xf]
      %v2796 = vld [vmem:[%s2791 + $0x10] sm:$0xf]
      %v2797 = vld [vmem:[%s2791 + $0x14] sm:$0xf]
      %v2798 = vld [vmem:[%s2791 + $0x18] sm:$0xf]
      %v2799 = vld [vmem:[%s2791 + $0x1c] sm:$0xf]
      %s2800 = scalar_lea.vmem %s11, 1
      %v2801 = vld [vmem:[%s2800] sm:$0x1]
      %v2803 = vlaneseq
      %v2804 = vshrl.u32 %v2803, 7
      %v2805 = vsub.s32 0, %v2804
      %v2806 = vrot.slane %v2801, %v2805
      %v2816 = vunpack.c.l.b16 %v2792
      %v2817 = vunpack.c.l.b16 %v2793
      %v2818 = vunpack.c.l.b16 %v2794
      %v2819 = vunpack.c.l.b16 %v2795
      %v2820 = vunpack.c.l.b16 %v2796
      %v2821 = vunpack.c.l.b16 %v2797
      %v2822 = vunpack.c.l.b16 %v2798
      %v2823 = vunpack.c.l.b16 %v2799
      %v2824 = vpack.c.b16 %v2817, %v2816
      %v2825 = vpack.c.b16 %v2819, %v2818
      %v2826 = vpack.c.b16 %v2821, %v2820
      %v2827 = vpack.c.b16 %v2823, %v2822
      %v2833 = vsel %vm871, %v2787, 0
      %v2836 = vsel %vm871, %v2788, 0
      %v2839 = vsel %vm871, %v2789, 0
      %v2842 = vsel %vm871, %v2790, 0
      %2844 = vmatprep.subr.bf16.mxu0 0
      %2845 = vmatpush1.bf16.msra.mxu0 %v2824
      %2846 = vmatprep.subr.bf16.mxu0 0
      %2847 = vmatpush1.bf16.msra.mxu0 %v2825
      %2848 = vmatprep.subr.bf16.mxu0 0
      %2849 = vmatpush1.bf16.msra.mxu0 %v2826
      %2850 = vmatprep.subr.bf16.mxu0 0
      %2851 = vmatpush1.bf16.msra.mxu0 %v2827
      %2852 = vmatprep.subr.bf16.mxu0 0
      %2853 = vmatpush1.bf16.msra.mxu0 0
      %2854 = vmatprep.subr.bf16.mxu0 0
      %2855 = vmatpush1.bf16.msra.mxu0 0
      %2856 = vmatprep.subr.bf16.mxu0 0
      %2857 = vmatpush1.bf16.msra.mxu0 0
      %2858 = vmatprep.subr.bf16.mxu0 0
      %2859 = vmatpush1.bf16.msra.mxu0 0
      %2860 = vmatprep.subr.bf16.mxu0 0
      %2861 = vmatpush1.bf16.msra.mxu0 0
      %2862 = vmatprep.subr.bf16.mxu0 0
      %2863 = vmatpush1.bf16.msra.mxu0 0
      %2864 = vmatprep.subr.bf16.mxu0 0
      %2865 = vmatpush1.bf16.msra.mxu0 0
      %2866 = vmatprep.subr.bf16.mxu0 0
      %2867 = vmatpush1.bf16.msra.mxu0 0
      %2868 = vmatprep.subr.bf16.mxu0 0
      %2869 = vmatpush1.bf16.msra.mxu0 0
      %2870 = vmatprep.subr.bf16.mxu0 0
      %2871 = vmatpush1.bf16.msra.mxu0 0
      %2872 = vmatprep.subr.bf16.mxu0 0
      %2873 = vmatpush1.bf16.msra.mxu0 0
      %2874 = vmatprep.subr.bf16.mxu0 0
      %2875 = vmatpush1.bf16.msra.mxu0 0
      %2876 = vmatprep.mubr.bf16.mxu0 0
      %2877 = vmatmul.mubr.bf16.gmra.mrb[0].mxu0 %v2833
      %v2878 = vpop.f32.mrb[0].mxu0
      %v2879 = vadd.f32 %v2806, %v2878
      %v2880 = vpop.f32.mrb[0].mxu0
      %v2881 = vpop.f32.mrb[0].mxu0
      %v2882 = vadd.f32 %v2806, %v2881
      %v2883 = vpop.f32.mrb[0].mxu0
      %2884 = vmatprep.mubr.bf16.mxu0 0
      %2885 = vmatmul.mubr.bf16.gmra.mrb[0].mxu0 %v2836
      %v2886 = vpop.f32.mrb[0].mxu0
      %v2887 = vadd.f32 %v2806, %v2886
      %v2888 = vpop.f32.mrb[0].mxu0
      %v2889 = vpop.f32.mrb[0].mxu0
      %v2890 = vadd.f32 %v2806, %v2889
      %v2891 = vpop.f32.mrb[0].mxu0
      %2892 = vmatprep.mubr.bf16.mxu0 0
      %2893 = vmatmul.mubr.bf16.gmra.mrb[0].mxu0 %v2839
      %v2894 = vpop.f32.mrb[0].mxu0
      %v2895 = vadd.f32 %v2806, %v2894
      %v2896 = vpop.f32.mrb[0].mxu0
      %v2897 = vpop.f32.mrb[0].mxu0
      %v2898 = vadd.f32 %v2806, %v2897
      %v2899 = vpop.f32.mrb[0].mxu0
      %2900 = vmatprep.mubr.bf16.mxu0 0
      %2901 = vmatmul.mubr.bf16.gmra.mrb[0].mxu0 %v2842
      %v2902 = vpop.f32.mrb[0].mxu0
      %v2903 = vadd.f32 %v2806, %v2902
      %v2904 = vpop.f32.mrb[0].mxu0
      %v2905 = vpop.f32.mrb[0].mxu0
      %v2906 = vadd.f32 %v2806, %v2905
      %v2907 = vpop.f32.mrb[0].mxu0
      %2908 = vdwg.mxu0
      %v2909 = vxor.u32 %v2879, 2147483648
      %v2910 = vxor.u32 %v2882, 2147483648
      %v2911 = vxor.u32 %v2887, 2147483648
      %v2912 = vxor.u32 %v2890, 2147483648
      %v2913 = vxor.u32 %v2895, 2147483648
      %v2914 = vxor.u32 %v2898, 2147483648
      %v2915 = vxor.u32 %v2903, 2147483648
      %v2916 = vxor.u32 %v2906, 2147483648
      %v2917 = vmul.f32 %v2909, 1.442695
      %v2918 = vpow.pop %v2917
      %v2919 = vmul.f32 %v2910, 1.442695
      %v2920 = vpow.pop %v2919
      %v2921 = vmul.f32 %v2911, 1.442695
      %v2922 = vpow.pop %v2921
      %v2923 = vmul.f32 %v2912, 1.442695
      %v2924 = vpow.pop %v2923
      %v2925 = vmul.f32 %v2913, 1.442695
      %v2926 = vpow.pop %v2925
      %v2927 = vmul.f32 %v2914, 1.442695
      %v2928 = vpow.pop %v2927
      %v2929 = vmul.f32 %v2915, 1.442695
      %v2930 = vpow.pop %v2929
      %v2931 = vmul.f32 %v2916, 1.442695
      %v2932 = vpow.pop %v2931
      %v2933 = vadd.f32 %v2918, 1.0
      %v2934 = vadd.f32 %v2920, 1.0
      %v2935 = vadd.f32 %v2922, 1.0
      %v2936 = vadd.f32 %v2924, 1.0
      %v2937 = vadd.f32 %v2926, 1.0
      %v2938 = vadd.f32 %v2928, 1.0
      %v2939 = vadd.f32 %v2930, 1.0
      %v2940 = vadd.f32 %v2932, 1.0
      %v2941 = vrcp.pop %v2933
      %v2942 = vmul.f32 1.0, %v2941
      %v2943 = vrcp.pop %v2934
      %v2944 = vmul.f32 1.0, %v2943
      %v2945 = vrcp.pop %v2935
      %v2946 = vmul.f32 1.0, %v2945
      %v2947 = vrcp.pop %v2936
      %v2948 = vmul.f32 1.0, %v2947
      %v2949 = vrcp.pop %v2937
      %v2950 = vmul.f32 1.0, %v2949
      %v2951 = vrcp.pop %v2938
      %v2952 = vmul.f32 1.0, %v2951
      %v2953 = vrcp.pop %v2939
      %v2954 = vmul.f32 1.0, %v2953
      %v2955 = vrcp.pop %v2940
      %v2956 = vmul.f32 1.0, %v2955
      %v2957 = vmul.f32 %v2879, %v2942
      %v2958 = vmul.f32 %v2882, %v2944
      %v2959 = vmul.f32 %v2887, %v2946
      %v2960 = vmul.f32 %v2890, %v2948
      %v2961 = vmul.f32 %v2895, %v2950
      %v2962 = vmul.f32 %v2898, %v2952
      %v2963 = vmul.f32 %v2903, %v2954
      %v2964 = vmul.f32 %v2906, %v2956
      %v2965 = vpack.c.bf16 %v2958, %v2957
      %v2966 = vpack.c.bf16 %v2960, %v2959
      %v2967 = vpack.c.bf16 %v2962, %v2961
      %v2968 = vpack.c.bf16 %v2964, %v2963
      %s2969 = scalar_lea.vmem %s12, 64
      %v2970 = vld [vmem:[%s2969] sm:$0xf]
      %v2971 = vld [vmem:[%s2969 + $0x4] sm:$0xf]
      %v2972 = vld [vmem:[%s2969 + $0x8] sm:$0xf]
      %v2973 = vld [vmem:[%s2969 + $0xc] sm:$0xf]
      %v2974 = vld [vmem:[%s2969 + $0x10] sm:$0xf]
      %v2975 = vld [vmem:[%s2969 + $0x14] sm:$0xf]
      %v2976 = vld [vmem:[%s2969 + $0x18] sm:$0xf]
      %v2977 = vld [vmem:[%s2969 + $0x1c] sm:$0xf]
      %v2978 = vld [vmem:[%s2969 + $0x20] sm:$0xf]
      %v2979 = vld [vmem:[%s2969 + $0x24] sm:$0xf]
      %v2980 = vld [vmem:[%s2969 + $0x28] sm:$0xf]
      %v2981 = vld [vmem:[%s2969 + $0x2c] sm:$0xf]
      %v2982 = vld [vmem:[%s2969 + $0x30] sm:$0xf]
      %v2983 = vld [vmem:[%s2969 + $0x34] sm:$0xf]
      %v2984 = vld [vmem:[%s2969 + $0x38] sm:$0xf]
      %v2985 = vld [vmem:[%s2969 + $0x3c] sm:$0xf]
      %v3002 = vunpack.c.l.b16 %v2970
      %v3003 = vunpack.c.l.b16 %v2971
      %v3004 = vunpack.c.l.b16 %v2972
      %v3005 = vunpack.c.l.b16 %v2973
      %v3006 = vunpack.c.l.b16 %v2974
      %v3007 = vunpack.c.l.b16 %v2975
      %v3008 = vunpack.c.l.b16 %v2976
      %v3009 = vunpack.c.l.b16 %v2977
      %v3010 = vunpack.c.l.b16 %v2978
      %v3011 = vunpack.c.l.b16 %v2979
      %v3012 = vunpack.c.l.b16 %v2980
      %v3013 = vunpack.c.l.b16 %v2981
      %v3014 = vunpack.c.l.b16 %v2982
      %v3015 = vunpack.c.l.b16 %v2983
      %v3016 = vunpack.c.l.b16 %v2984
      %v3017 = vunpack.c.l.b16 %v2985
      %v3018 = vpack.c.b16 %v3003, %v3002
      %v3019 = vpack.c.b16 %v3005, %v3004
      %v3020 = vpack.c.b16 %v3007, %v3006
      %v3021 = vpack.c.b16 %v3009, %v3008
      %v3022 = vpack.c.b16 %v3011, %v3010
      %v3023 = vpack.c.b16 %v3013, %v3012
      %v3024 = vpack.c.b16 %v3015, %v3014
      %v3025 = vpack.c.b16 %v3017, %v3016
      %3034 = vmatprep.subr.bf16.mxu0 0
      %3035 = vmatpush1.bf16.msra.mxu0 %v3018
      %3036 = vmatprep.subr.bf16.mxu0 0
      %3037 = vmatpush1.bf16.msra.mxu0 %v3019
      %3038 = vmatprep.subr.bf16.mxu0 0
      %3039 = vmatpush1.bf16.msra.mxu0 %v3020
      %3040 = vmatprep.subr.bf16.mxu0 0
      %3041 = vmatpush1.bf16.msra.mxu0 %v3021
      %3042 = vmatprep.subr.bf16.mxu0 0
      %3043 = vmatpush1.bf16.msra.mxu0 %v3022
      %3044 = vmatprep.subr.bf16.mxu0 0
      %3045 = vmatpush1.bf16.msra.mxu0 %v3023
      %3046 = vmatprep.subr.bf16.mxu0 0
      %3047 = vmatpush1.bf16.msra.mxu0 %v3024
      %3048 = vmatprep.subr.bf16.mxu0 0
      %3049 = vmatpush1.bf16.msra.mxu0 %v3025
      %3050 = vmatprep.subr.bf16.mxu0 0
      %3051 = vmatpush1.bf16.msra.mxu0 0
      %3052 = vmatprep.subr.bf16.mxu0 0
      %3053 = vmatpush1.bf16.msra.mxu0 0
      %3054 = vmatprep.subr.bf16.mxu0 0
      %3055 = vmatpush1.bf16.msra.mxu0 0
      %3056 = vmatprep.subr.bf16.mxu0 0
      %3057 = vmatpush1.bf16.msra.mxu0 0
      %3058 = vmatprep.subr.bf16.mxu0 0
      %3059 = vmatpush1.bf16.msra.mxu0 0
      %3060 = vmatprep.subr.bf16.mxu0 0
      %3061 = vmatpush1.bf16.msra.mxu0 0
      %3062 = vmatprep.subr.bf16.mxu0 0
      %3063 = vmatpush1.bf16.msra.mxu0 0
      %3064 = vmatprep.subr.bf16.mxu0 0
      %3065 = vmatpush1.bf16.msra.mxu0 0
      %3066 = vmatprep.mubr.bf16.mxu0 0
      %3067 = vmatmul.mubr.bf16.gmra.mrb[0].mxu0 %v2965
      %v3068 = vpop.f32.mrb[0].mxu0
      %v3069 = vadd.f32 0.0, %v3068
      %v3070 = vpop.f32.mrb[0].mxu0
      %v3071 = vpop.f32.mrb[0].mxu0
      %v3072 = vadd.f32 0.0, %v3071
      %v3073 = vpop.f32.mrb[0].mxu0
      %3074 = vmatprep.mubr.bf16.mxu0 0
      %3075 = vmatmul.mubr.bf16.gmra.mrb[0].mxu0 %v2966
      %v3076 = vpop.f32.mrb[0].mxu0
      %v3077 = vadd.f32 0.0, %v3076
      %v3078 = vpop.f32.mrb[0].mxu0
      %v3079 = vpop.f32.mrb[0].mxu0
      %v3080 = vadd.f32 0.0, %v3079
      %v3081 = vpop.f32.mrb[0].mxu0
      %3082 = vmatprep.mubr.bf16.mxu0 0
      %3083 = vmatmul.mubr.bf16.gmra.mrb[0].mxu0 %v2967
      %v3084 = vpop.f32.mrb[0].mxu0
      %v3085 = vadd.f32 0.0, %v3084
      %v3086 = vpop.f32.mrb[0].mxu0
      %v3087 = vpop.f32.mrb[0].mxu0
      %v3088 = vadd.f32 0.0, %v3087
      %v3089 = vpop.f32.mrb[0].mxu0
      %3090 = vmatprep.mubr.bf16.mxu0 0
      %3091 = vmatmul.mubr.bf16.gmra.mrb[0].mxu0 %v2968
      %v3092 = vpop.f32.mrb[0].mxu0
      %v3093 = vadd.f32 0.0, %v3092
      %v3094 = vpop.f32.mrb[0].mxu0
      %v3095 = vpop.f32.mrb[0].mxu0
      %v3096 = vadd.f32 0.0, %v3095
      %v3097 = vpop.f32.mrb[0].mxu0
      %3098 = vdwg.mxu0
      %v3099 = vadd.f32 %v2643, %v3069
      %v3100 = vadd.f32 %v2644, %v3072
      %v3101 = vadd.f32 %v2645, %v3077
      %v3102 = vadd.f32 %v2646, %v3080
      %v3103 = vadd.f32 %v2647, %v3085
      %v3104 = vadd.f32 %v2648, %v3088
      %v3105 = vadd.f32 %v2649, %v3093
      %v3106 = vadd.f32 %v2650, %v3096
      %s3107 = scalar_lea.vmem %s13, 1
      %v3108 = vld [vmem:[%s3107] sm:$0x1]
      %v3110 = vlaneseq
      %v3111 = vshrl.u32 %v3110, 7
      %v3112 = vsub.s32 0, %v3111
      %v3113 = vrot.slane %v3108, %v3112
      %v3115 = vadd.f32 %v3099, %v3113
      %v3116 = vadd.f32 %v3100, %v3113
      %v3117 = vadd.f32 %v3101, %v3113
      %v3118 = vadd.f32 %v3102, %v3113
      %v3119 = vadd.f32 %v3103, %v3113
      %v3120 = vadd.f32 %v3104, %v3113
      %v3121 = vadd.f32 %v3105, %v3113
      %v3122 = vadd.f32 %v3106, %v3113
      %v3123 = vld [vmem:[%s14] sm:$0x3]
      %v3124 = vpack.c.bf16 %v3116, %v3115
      %v3125 = vpack.c.bf16 %v3118, %v3117
      %v3126 = vpack.c.bf16 %v3120, %v3119
      %v3127 = vpack.c.bf16 %v3122, %v3121
      %v3128 = vld [vmem:[%s15] sm:$0xf]
      %3130 = vset.pattern.permute.xlu0 0
      %3131 = vperm.xlu0 %3130, %v3128
      %v3132 = vpop.permute.xlu0 %3131
      %v3135 = vsel %vm871, %v3123, 0
      %v3138 = vsel %vm871, %v3124, 0
      %v3141 = vsel %vm871, %v3125, 0
      %v3144 = vsel %vm871, %v3126, 0
      %v3147 = vsel %vm871, %v3127, 0
      %3149 = vmatprep.subr.bf16.mxu0 0
      %3150 = vmatpush1.bf16.xpose.msra.mxu0 %v3138
      %3151 = vmatprep.subr.bf16.mxu0 0
      %3152 = vmatpush1.bf16.xpose.msra.mxu0 %v3141
      %3153 = vmatprep.subr.bf16.mxu0 0
      %3154 = vmatpush1.bf16.xpose.msra.mxu0 %v3144
      %3155 = vmatprep.subr.bf16.mxu0 0
      %3156 = vmatpush1.bf16.xpose.msra.mxu0 %v3147
      %3157 = vmatprep.subr.bf16.mxu0 0
      %3158 = vmatpush1.bf16.xpose.msra.mxu0 0
      %3159 = vmatprep.subr.bf16.mxu0 0
      %3160 = vmatpush1.bf16.xpose.msra.mxu0 0
      %3161 = vmatprep.subr.bf16.mxu0 0
      %3162 = vmatpush1.bf16.xpose.msra.mxu0 0
      %3163 = vmatprep.subr.bf16.mxu0 0
      %3164 = vmatpush1.bf16.xpose.msra.mxu0 0
      %3165 = vmatprep.subr.bf16.mxu0 0
      %3166 = vmatpush1.bf16.xpose.msra.mxu0 0
      %3167 = vmatprep.subr.bf16.mxu0 0
      %3168 = vmatpush1.bf16.xpose.msra.mxu0 0
      %3169 = vmatprep.subr.bf16.mxu0 0
      %3170 = vmatpush1.bf16.xpose.msra.mxu0 0
      %3171 = vmatprep.subr.bf16.mxu0 0
      %3172 = vmatpush1.bf16.xpose.msra.mxu0 0
      %3173 = vmatprep.subr.bf16.mxu0 0
      %3174 = vmatpush1.bf16.xpose.msra.mxu0 0
      %3175 = vmatprep.subr.bf16.mxu0 0
      %3176 = vmatpush1.bf16.xpose.msra.mxu0 0
      %3177 = vmatprep.subr.bf16.mxu0 0
      %3178 = vmatpush1.bf16.xpose.msra.mxu0 0
      %3179 = vmatprep.subr.bf16.mxu0 0
      %3180 = vmatpush1.bf16.xpose.msra.mxu0 0
      %3181 = vmatprep.mubr.bf16.mxu0 0
      %3182 = vmatmul.mubr.bf16.gmra.mrb[0].mxu0 %v3135
      %v3183 = vpop.f32.mrb[0].mxu0
      %v3184 = vadd.f32 %v3132, %v3183
      %v3185 = vpop.f32.mrb[0].mxu0
      %v3186 = vpop.f32.mrb[0].mxu0
      %v3187 = vpop.f32.mrb[0].mxu0
      %3188 = vdwg.mxu0
      %v3189 = vxor.u32 %v3184, 2147483648
      %v3190 = vmul.f32 %v3189, 1.442695
      %v3191 = vpow.pop %v3190
      %v3192 = vadd.f32 %v3191, 1.0
      %v3193 = vrcp.pop %v3192
      %v3194 = vmul.f32 1.0, %v3193
      %v3195 = vmul.f32 %v3184, %v3194
      %v3196 = vld [vmem:[%s516 + $0x20] sm:$0xf]
      %v3197 = vld [vmem:[%s516 + $0x24] sm:$0xf]
      %v3198 = vld [vmem:[%s516 + $0x28] sm:$0xf]
      %v3199 = vld [vmem:[%s516 + $0x2c] sm:$0xf]
      %v3200 = vld [vmem:[%s516 + $0x30] sm:$0xf]
      %v3201 = vld [vmem:[%s516 + $0x34] sm:$0xf]
      %v3202 = vld [vmem:[%s516 + $0x38] sm:$0xf]
      %v3203 = vld [vmem:[%s516 + $0x3c] sm:$0xf]
      %v3212 = vunpack.c.l.b16 %v3196
      %v3213 = vunpack.c.l.b16 %v3197
      %v3214 = vunpack.c.l.b16 %v3198
      %v3215 = vunpack.c.l.b16 %v3199
      %v3216 = vunpack.c.l.b16 %v3200
      %v3217 = vunpack.c.l.b16 %v3201
      %v3218 = vunpack.c.l.b16 %v3202
      %v3219 = vunpack.c.l.b16 %v3203
      %v3220 = vpack.c.b16 %v3213, %v3212
      %v3221 = vpack.c.b16 %v3215, %v3214
      %v3222 = vpack.c.b16 %v3217, %v3216
      %v3223 = vpack.c.b16 %v3219, %v3218
      %v3225 = vsel %vm582, %v3220, 0
      %v3228 = vsel %vm582, %v3221, 0
      %v3231 = vsel %vm582, %v3222, 0
      %v3234 = vsel %vm582, %v3223, 0
      %3236 = vmatprep.subr.bf16.mxu0 0
      %3237 = vmatpush1.bf16.msra.mxu0 %v576
      %3238 = vmatprep.subr.bf16.mxu0 0
      %3239 = vmatpush1.bf16.msra.mxu0 %v577
      %3240 = vmatprep.subr.bf16.mxu0 0
      %3241 = vmatpush1.bf16.msra.mxu0 %v578
      %3242 = vmatprep.subr.bf16.mxu0 0
      %3243 = vmatpush1.bf16.msra.mxu0 0
      %3244 = vmatprep.subr.bf16.mxu0 0
      %3245 = vmatpush1.bf16.msra.mxu0 0
      %3246 = vmatprep.subr.bf16.mxu0 0
      %3247 = vmatpush1.bf16.msra.mxu0 0
      %3248 = vmatprep.subr.bf16.mxu0 0
      %3249 = vmatpush1.bf16.msra.mxu0 0
      %3250 = vmatprep.subr.bf16.mxu0 0
      %3251 = vmatpush1.bf16.msra.mxu0 0
      %3252 = vmatprep.subr.bf16.mxu0 0
      %3253 = vmatpush1.bf16.msra.mxu0 0
      %3254 = vmatprep.subr.bf16.mxu0 0
      %3255 = vmatpush1.bf16.msra.mxu0 0
      %3256 = vmatprep.subr.bf16.mxu0 0
      %3257 = vmatpush1.bf16.msra.mxu0 0
      %3258 = vmatprep.subr.bf16.mxu0 0
      %3259 = vmatpush1.bf16.msra.mxu0 0
      %3260 = vmatprep.subr.bf16.mxu0 0
      %3261 = vmatpush1.bf16.msra.mxu0 0
      %3262 = vmatprep.subr.bf16.mxu0 0
      %3263 = vmatpush1.bf16.msra.mxu0 0
      %3264 = vmatprep.subr.bf16.mxu0 0
      %3265 = vmatpush1.bf16.msra.mxu0 0
      %3266 = vmatprep.subr.bf16.mxu0 0
      %3267 = vmatpush1.bf16.msra.mxu0 0
      %3268 = vmatprep.mubr.bf16.mxu0 0
      %3269 = vmatmul.mubr.bf16.gmra.mrb[0].mxu0 %v3225
      %v3270 = vpop.f32.mrb[0].mxu0
      %v3271 = vadd.f32 %v542, %v3270
      %v3272 = vpop.f32.mrb[0].mxu0
      %v3273 = vpop.f32.mrb[0].mxu0
      %v3274 = vadd.f32 %v542, %v3273
      %v3275 = vpop.f32.mrb[0].mxu0
      %3276 = vmatprep.mubr.bf16.mxu0 0
      %3277 = vmatmul.mubr.bf16.gmra.mrb[0].mxu0 %v3228
      %v3278 = vpop.f32.mrb[0].mxu0
      %v3279 = vadd.f32 %v542, %v3278
      %v3280 = vpop.f32.mrb[0].mxu0
      %v3281 = vpop.f32.mrb[0].mxu0
      %v3282 = vadd.f32 %v542, %v3281
      %v3283 = vpop.f32.mrb[0].mxu0
      %3284 = vmatprep.mubr.bf16.mxu0 0
      %3285 = vmatmul.mubr.bf16.gmra.mrb[0].mxu0 %v3231
      %v3286 = vpop.f32.mrb[0].mxu0
      %v3287 = vadd.f32 %v542, %v3286
      %v3288 = vpop.f32.mrb[0].mxu0
      %v3289 = vpop.f32.mrb[0].mxu0
      %v3290 = vadd.f32 %v542, %v3289
      %v3291 = vpop.f32.mrb[0].mxu0
      %3292 = vmatprep.mubr.bf16.mxu0 0
      %3293 = vmatmul.mubr.bf16.gmra.mrb[0].mxu0 %v3234
      %v3294 = vpop.f32.mrb[0].mxu0
      %v3295 = vadd.f32 %v542, %v3294
      %v3296 = vpop.f32.mrb[0].mxu0
      %v3297 = vpop.f32.mrb[0].mxu0
      %v3298 = vadd.f32 %v542, %v3297
      %v3299 = vpop.f32.mrb[0].mxu0
      %3300 = vdwg.mxu0
      %v3301 = vxor.u32 %v3271, 2147483648
      %v3302 = vxor.u32 %v3274, 2147483648
      %v3303 = vxor.u32 %v3279, 2147483648
      %v3304 = vxor.u32 %v3282, 2147483648
      %v3305 = vxor.u32 %v3287, 2147483648
      %v3306 = vxor.u32 %v3290, 2147483648
      %v3307 = vxor.u32 %v3295, 2147483648
      %v3308 = vxor.u32 %v3298, 2147483648
      %v3309 = vmul.f32 %v3301, 1.442695
      %v3310 = vpow.pop %v3309
      %v3311 = vmul.f32 %v3302, 1.442695
      %v3312 = vpow.pop %v3311
      %v3313 = vmul.f32 %v3303, 1.442695
      %v3314 = vpow.pop %v3313
      %v3315 = vmul.f32 %v3304, 1.442695
      %v3316 = vpow.pop %v3315
      %v3317 = vmul.f32 %v3305, 1.442695
      %v3318 = vpow.pop %v3317
      %v3319 = vmul.f32 %v3306, 1.442695
      %v3320 = vpow.pop %v3319
      %v3321 = vmul.f32 %v3307, 1.442695
      %v3322 = vpow.pop %v3321
      %v3323 = vmul.f32 %v3308, 1.442695
      %v3324 = vpow.pop %v3323
      %v3325 = vadd.f32 %v3310, 1.0
      %v3326 = vadd.f32 %v3312, 1.0
      %v3327 = vadd.f32 %v3314, 1.0
      %v3328 = vadd.f32 %v3316, 1.0
      %v3329 = vadd.f32 %v3318, 1.0
      %v3330 = vadd.f32 %v3320, 1.0
      %v3331 = vadd.f32 %v3322, 1.0
      %v3332 = vadd.f32 %v3324, 1.0
      %v3333 = vrcp.pop %v3325
      %v3334 = vmul.f32 1.0, %v3333
      %v3335 = vrcp.pop %v3326
      %v3336 = vmul.f32 1.0, %v3335
      %v3337 = vrcp.pop %v3327
      %v3338 = vmul.f32 1.0, %v3337
      %v3339 = vrcp.pop %v3328
      %v3340 = vmul.f32 1.0, %v3339
      %v3341 = vrcp.pop %v3329
      %v3342 = vmul.f32 1.0, %v3341
      %v3343 = vrcp.pop %v3330
      %v3344 = vmul.f32 1.0, %v3343
      %v3345 = vrcp.pop %v3331
      %v3346 = vmul.f32 1.0, %v3345
      %v3347 = vrcp.pop %v3332
      %v3348 = vmul.f32 1.0, %v3347
      %v3349 = vmul.f32 %v3271, %v3334
      %v3350 = vmul.f32 %v3274, %v3336
      %v3351 = vmul.f32 %v3279, %v3338
      %v3352 = vmul.f32 %v3282, %v3340
      %v3353 = vmul.f32 %v3287, %v3342
      %v3354 = vmul.f32 %v3290, %v3344
      %v3355 = vmul.f32 %v3295, %v3346
      %v3356 = vmul.f32 %v3298, %v3348
      %v3357 = vpack.c.bf16 %v3350, %v3349
      %v3358 = vpack.c.bf16 %v3352, %v3351
      %v3359 = vpack.c.bf16 %v3354, %v3353
      %v3360 = vpack.c.bf16 %v3356, %v3355
      %v3362 = vsel %vm735, %v3357, 0
      %v3365 = vsel %vm735, %v3358, 0
      %v3368 = vsel %vm735, %v3359, 0
      %v3371 = vsel %vm735, %v3360, 0
      %3373 = vmatprep.subr.bf16.mxu0 0
      %3374 = vmatpush1.bf16.msra.mxu0 %v733
      %3375 = vmatprep.subr.bf16.mxu0 0
      %3376 = vmatpush1.bf16.msra.mxu0 0
      %3377 = vmatprep.subr.bf16.mxu0 0
      %3378 = vmatpush1.bf16.msra.mxu0 0
      %3379 = vmatprep.subr.bf16.mxu0 0
      %3380 = vmatpush1.bf16.msra.mxu0 0
      %3381 = vmatprep.subr.bf16.mxu0 0
      %3382 = vmatpush1.bf16.msra.mxu0 0
      %3383 = vmatprep.subr.bf16.mxu0 0
      %3384 = vmatpush1.bf16.msra.mxu0 0
      %3385 = vmatprep.subr.bf16.mxu0 0
      %3386 = vmatpush1.bf16.msra.mxu0 0
      %3387 = vmatprep.subr.bf16.mxu0 0
      %3388 = vmatpush1.bf16.msra.mxu0 0
      %3389 = vmatprep.subr.bf16.mxu0 0
      %3390 = vmatpush1.bf16.msra.mxu0 0
      %3391 = vmatprep.subr.bf16.mxu0 0
      %3392 = vmatpush1.bf16.msra.mxu0 0
      %3393 = vmatprep.subr.bf16.mxu0 0
      %3394 = vmatpush1.bf16.msra.mxu0 0
      %3395 = vmatprep.subr.bf16.mxu0 0
      %3396 = vmatpush1.bf16.msra.mxu0 0
      %3397 = vmatprep.subr.bf16.mxu0 0
      %3398 = vmatpush1.bf16.msra.mxu0 0
      %3399 = vmatprep.subr.bf16.mxu0 0
      %3400 = vmatpush1.bf16.msra.mxu0 0
      %3401 = vmatprep.subr.bf16.mxu0 0
      %3402 = vmatpush1.bf16.msra.mxu0 0
      %3403 = vmatprep.subr.bf16.mxu0 0
      %3404 = vmatpush1.bf16.msra.mxu0 0
      %3405 = vmatprep.mubr.bf16.mxu0 0
      %3406 = vmatmul.mubr.bf16.gmra.mrb[0].mxu0 %v3362
      %v3407 = vpop.f32.mrb[0].mxu0
      %v3408 = vadd.f32 %v727, %v3407
      %v3409 = vpop.f32.mrb[0].mxu0
      %v3410 = vpop.f32.mrb[0].mxu0
      %v3411 = vadd.f32 %v727, %v3410
      %v3412 = vpop.f32.mrb[0].mxu0
      %3413 = vmatprep.mubr.bf16.mxu0 0
      %3414 = vmatmul.mubr.bf16.gmra.mrb[0].mxu0 %v3365
      %v3415 = vpop.f32.mrb[0].mxu0
      %v3416 = vadd.f32 %v727, %v3415
      %v3417 = vpop.f32.mrb[0].mxu0
      %v3418 = vpop.f32.mrb[0].mxu0
      %v3419 = vadd.f32 %v727, %v3418
      %v3420 = vpop.f32.mrb[0].mxu0
      %3421 = vmatprep.mubr.bf16.mxu0 0
      %3422 = vmatmul.mubr.bf16.gmra.mrb[0].mxu0 %v3368
      %v3423 = vpop.f32.mrb[0].mxu0
      %v3424 = vadd.f32 %v727, %v3423
      %v3425 = vpop.f32.mrb[0].mxu0
      %v3426 = vpop.f32.mrb[0].mxu0
      %v3427 = vadd.f32 %v727, %v3426
      %v3428 = vpop.f32.mrb[0].mxu0
      %3429 = vmatprep.mubr.bf16.mxu0 0
      %3430 = vmatmul.mubr.bf16.gmra.mrb[0].mxu0 %v3371
      %v3431 = vpop.f32.mrb[0].mxu0
      %v3432 = vadd.f32 %v727, %v3431
      %v3433 = vpop.f32.mrb[0].mxu0
      %v3434 = vpop.f32.mrb[0].mxu0
      %v3435 = vadd.f32 %v727, %v3434
      %v3436 = vpop.f32.mrb[0].mxu0
      %3437 = vdwg.mxu0
      %v3438 = vxor.u32 %v3408, 2147483648
      %v3439 = vxor.u32 %v3411, 2147483648
      %v3440 = vxor.u32 %v3416, 2147483648
      %v3441 = vxor.u32 %v3419, 2147483648
      %v3442 = vxor.u32 %v3424, 2147483648
      %v3443 = vxor.u32 %v3427, 2147483648
      %v3444 = vxor.u32 %v3432, 2147483648
      %v3445 = vxor.u32 %v3435, 2147483648
      %v3446 = vmul.f32 %v3438, 1.442695
      %v3447 = vpow.pop %v3446
      %v3448 = vmul.f32 %v3439, 1.442695
      %v3449 = vpow.pop %v3448
      %v3450 = vmul.f32 %v3440, 1.442695
      %v3451 = vpow.pop %v3450
      %v3452 = vmul.f32 %v3441, 1.442695
      %v3453 = vpow.pop %v3452
      %v3454 = vmul.f32 %v3442, 1.442695
      %v3455 = vpow.pop %v3454
      %v3456 = vmul.f32 %v3443, 1.442695
      %v3457 = vpow.pop %v3456
      %v3458 = vmul.f32 %v3444, 1.442695
      %v3459 = vpow.pop %v3458
      %v3460 = vmul.f32 %v3445, 1.442695
      %v3461 = vpow.pop %v3460
      %v3462 = vadd.f32 %v3447, 1.0
      %v3463 = vadd.f32 %v3449, 1.0
      %v3464 = vadd.f32 %v3451, 1.0
      %v3465 = vadd.f32 %v3453, 1.0
      %v3466 = vadd.f32 %v3455, 1.0
      %v3467 = vadd.f32 %v3457, 1.0
      %v3468 = vadd.f32 %v3459, 1.0
      %v3469 = vadd.f32 %v3461, 1.0
      %v3470 = vrcp.pop %v3462
      %v3471 = vmul.f32 1.0, %v3470
      %v3472 = vrcp.pop %v3463
      %v3473 = vmul.f32 1.0, %v3472
      %v3474 = vrcp.pop %v3464
      %v3475 = vmul.f32 1.0, %v3474
      %v3476 = vrcp.pop %v3465
      %v3477 = vmul.f32 1.0, %v3476
      %v3478 = vrcp.pop %v3466
      %v3479 = vmul.f32 1.0, %v3478
      %v3480 = vrcp.pop %v3467
      %v3481 = vmul.f32 1.0, %v3480
      %v3482 = vrcp.pop %v3468
      %v3483 = vmul.f32 1.0, %v3482
      %v3484 = vrcp.pop %v3469
      %v3485 = vmul.f32 1.0, %v3484
      %v3486 = vmul.f32 %v3408, %v3471
      %v3487 = vmul.f32 %v3411, %v3473
      %v3488 = vmul.f32 %v3416, %v3475
      %v3489 = vmul.f32 %v3419, %v3477
      %v3490 = vmul.f32 %v3424, %v3479
      %v3491 = vmul.f32 %v3427, %v3481
      %v3492 = vmul.f32 %v3432, %v3483
      %v3493 = vmul.f32 %v3435, %v3485
      %v3494 = vsel %vm871, %v3486, 0.0
      %3495 = vadd.xlane.f32.xlu0 %v3494
      %v3496 = vpop.xlane.xlu0 %3495
      %v3497 = vsel %vm871, %v3487, 0.0
      %3498 = vadd.xlane.f32.xlu0 %v3497
      %v3499 = vpop.xlane.xlu0 %3498
      %v3500 = vsel %vm871, %v3488, 0.0
      %3501 = vadd.xlane.f32.xlu0 %v3500
      %v3502 = vpop.xlane.xlu0 %3501
      %v3503 = vsel %vm871, %v3489, 0.0
      %3504 = vadd.xlane.f32.xlu0 %v3503
      %v3505 = vpop.xlane.xlu0 %3504
      %v3506 = vsel %vm871, %v3490, 0.0
      %3507 = vadd.xlane.f32.xlu0 %v3506
      %v3508 = vpop.xlane.xlu0 %3507
      %v3509 = vsel %vm871, %v3491, 0.0
      %3510 = vadd.xlane.f32.xlu0 %v3509
      %v3511 = vpop.xlane.xlu0 %3510
      %v3512 = vsel %vm871, %v3492, 0.0
      %3513 = vadd.xlane.f32.xlu0 %v3512
      %v3514 = vpop.xlane.xlu0 %3513
      %v3515 = vsel %vm871, %v3493, 0.0
      %3516 = vadd.xlane.f32.xlu0 %v3515
      %v3517 = vpop.xlane.xlu0 %3516
      %v3518 = vmul.f32 %v3496, %v896
      %v3519 = vmul.f32 %v3499, %v896
      %v3520 = vmul.f32 %v3502, %v896
      %v3521 = vmul.f32 %v3505, %v896
      %v3522 = vmul.f32 %v3508, %v896
      %v3523 = vmul.f32 %v3511, %v896
      %v3524 = vmul.f32 %v3514, %v896
      %v3525 = vmul.f32 %v3517, %v896
      %v3526 = vsub.f32 %v3486, %v3518
      %v3527 = vsub.f32 %v3487, %v3519
      %v3528 = vsub.f32 %v3488, %v3520
      %v3529 = vsub.f32 %v3489, %v3521
      %v3530 = vsub.f32 %v3490, %v3522
      %v3531 = vsub.f32 %v3491, %v3523
      %v3532 = vsub.f32 %v3492, %v3524
      %v3533 = vsub.f32 %v3493, %v3525
      %v3534 = vmul.f32 %v3526, %v3526
      %v3535 = vmul.f32 %v3527, %v3527
      %v3536 = vmul.f32 %v3528, %v3528
      %v3537 = vmul.f32 %v3529, %v3529
      %v3538 = vmul.f32 %v3530, %v3530
      %v3539 = vmul.f32 %v3531, %v3531
      %v3540 = vmul.f32 %v3532, %v3532
      %v3541 = vmul.f32 %v3533, %v3533
      %v3542 = vsel %vm871, %v3534, 0.0
      %3543 = vadd.xlane.f32.xlu0 %v3542
      %v3544 = vpop.xlane.xlu0 %3543
      %v3545 = vsel %vm871, %v3535, 0.0
      %3546 = vadd.xlane.f32.xlu0 %v3545
      %v3547 = vpop.xlane.xlu0 %3546
      %v3548 = vsel %vm871, %v3536, 0.0
      %3549 = vadd.xlane.f32.xlu0 %v3548
      %v3550 = vpop.xlane.xlu0 %3549
      %v3551 = vsel %vm871, %v3537, 0.0
      %3552 = vadd.xlane.f32.xlu0 %v3551
      %v3553 = vpop.xlane.xlu0 %3552
      %v3554 = vsel %vm871, %v3538, 0.0
      %3555 = vadd.xlane.f32.xlu0 %v3554
      %v3556 = vpop.xlane.xlu0 %3555
      %v3557 = vsel %vm871, %v3539, 0.0
      %3558 = vadd.xlane.f32.xlu0 %v3557
      %v3559 = vpop.xlane.xlu0 %3558
      %v3560 = vsel %vm871, %v3540, 0.0
      %3561 = vadd.xlane.f32.xlu0 %v3560
      %v3562 = vpop.xlane.xlu0 %3561
      %v3563 = vsel %vm871, %v3541, 0.0
      %3564 = vadd.xlane.f32.xlu0 %v3563
      %v3565 = vpop.xlane.xlu0 %3564
      %v3566 = vmul.f32 %v3544, %v896
      %v3567 = vmul.f32 %v3547, %v896
      %v3568 = vmul.f32 %v3550, %v896
      %v3569 = vmul.f32 %v3553, %v896
      %v3570 = vmul.f32 %v3556, %v896
      %v3571 = vmul.f32 %v3559, %v896
      %v3572 = vmul.f32 %v3562, %v896
      %v3573 = vmul.f32 %v3565, %v896
      %v3574 = vadd.f32 %v3566, 1e-05
      %v3575 = vadd.f32 %v3567, 1e-05
      %v3576 = vadd.f32 %v3568, 1e-05
      %v3577 = vadd.f32 %v3569, 1e-05
      %v3578 = vadd.f32 %v3570, 1e-05
      %v3579 = vadd.f32 %v3571, 1e-05
      %v3580 = vadd.f32 %v3572, 1e-05
      %v3581 = vadd.f32 %v3573, 1e-05
      %v3582 = vrsqrt.pop %v3574
      %v3583 = vrsqrt.pop %v3575
      %v3584 = vrsqrt.pop %v3576
      %v3585 = vrsqrt.pop %v3577
      %v3586 = vrsqrt.pop %v3578
      %v3587 = vrsqrt.pop %v3579
      %v3588 = vrsqrt.pop %v3580
      %v3589 = vrsqrt.pop %v3581
      %v3590 = vmul.f32 %v3526, %v3582
      %v3591 = vmul.f32 %v3527, %v3583
      %v3592 = vmul.f32 %v3528, %v3584
      %v3593 = vmul.f32 %v3529, %v3585
      %v3594 = vmul.f32 %v3530, %v3586
      %v3595 = vmul.f32 %v3531, %v3587
      %v3596 = vmul.f32 %v3532, %v3588
      %v3597 = vmul.f32 %v3533, %v3589
      %v3598 = vmul.f32 %v3590, %v981
      %v3599 = vmul.f32 %v3591, %v981
      %v3600 = vmul.f32 %v3592, %v981
      %v3601 = vmul.f32 %v3593, %v981
      %v3602 = vmul.f32 %v3594, %v981
      %v3603 = vmul.f32 %v3595, %v981
      %v3604 = vmul.f32 %v3596, %v981
      %v3605 = vmul.f32 %v3597, %v981
      %v3606 = vadd.f32 %v3598, %v995
      %v3607 = vadd.f32 %v3599, %v995
      %v3608 = vadd.f32 %v3600, %v995
      %v3609 = vadd.f32 %v3601, %v995
      %v3610 = vadd.f32 %v3602, %v995
      %v3611 = vadd.f32 %v3603, %v995
      %v3612 = vadd.f32 %v3604, %v995
      %v3613 = vadd.f32 %v3605, %v995
      %v3614 = vpack.c.bf16 %v3607, %v3606
      %v3615 = vpack.c.bf16 %v3609, %v3608
      %v3616 = vpack.c.bf16 %v3611, %v3610
      %v3617 = vpack.c.bf16 %v3613, %v3612
      %v3619 = vsel %vm871, %v3614, 0
      %v3622 = vsel %vm871, %v3615, 0
      %v3625 = vsel %vm871, %v3616, 0
      %v3628 = vsel %vm871, %v3617, 0
      %3630 = vmatprep.subr.bf16.mxu0 0
      %3631 = vmatpush1.bf16.msra.mxu0 %v1033
      %3632 = vmatprep.subr.bf16.mxu0 0
      %3633 = vmatpush1.bf16.msra.mxu0 %v1034
      %3634 = vmatprep.subr.bf16.mxu0 0
      %3635 = vmatpush1.bf16.msra.mxu0 %v1035
      %3636 = vmatprep.subr.bf16.mxu0 0
      %3637 = vmatpush1.bf16.msra.mxu0 %v1036
      %3638 = vmatprep.subr.bf16.mxu0 0
      %3639 = vmatpush1.bf16.msra.mxu0 0
      %3640 = vmatprep.subr.bf16.mxu0 0
      %3641 = vmatpush1.bf16.msra.mxu0 0
      %3642 = vmatprep.subr.bf16.mxu0 0
      %3643 = vmatpush1.bf16.msra.mxu0 0
      %3644 = vmatprep.subr.bf16.mxu0 0
      %3645 = vmatpush1.bf16.msra.mxu0 0
      %3646 = vmatprep.subr.bf16.mxu0 0
      %3647 = vmatpush1.bf16.msra.mxu0 0
      %3648 = vmatprep.subr.bf16.mxu0 0
      %3649 = vmatpush1.bf16.msra.mxu0 0
      %3650 = vmatprep.subr.bf16.mxu0 0
      %3651 = vmatpush1.bf16.msra.mxu0 0
      %3652 = vmatprep.subr.bf16.mxu0 0
      %3653 = vmatpush1.bf16.msra.mxu0 0
      %3654 = vmatprep.subr.bf16.mxu0 0
      %3655 = vmatpush1.bf16.msra.mxu0 0
      %3656 = vmatprep.subr.bf16.mxu0 0
      %3657 = vmatpush1.bf16.msra.mxu0 0
      %3658 = vmatprep.subr.bf16.mxu0 0
      %3659 = vmatpush1.bf16.msra.mxu0 0
      %3660 = vmatprep.subr.bf16.mxu0 0
      %3661 = vmatpush1.bf16.msra.mxu0 0
      %3662 = vmatprep.mubr.bf16.mxu0 0
      %3663 = vmatmul.mubr.bf16.gmra.mrb[0].mxu0 %v3619
      %v3664 = vpop.f32.mrb[0].mxu0
      %v3665 = vadd.f32 0.0, %v3664
      %v3666 = vpop.f32.mrb[0].mxu0
      %v3667 = vpop.f32.mrb[0].mxu0
      %v3668 = vadd.f32 0.0, %v3667
      %v3669 = vpop.f32.mrb[0].mxu0
      %3670 = vmatprep.mubr.bf16.mxu0 0
      %3671 = vmatmul.mubr.bf16.gmra.mrb[0].mxu0 %v3622
      %v3672 = vpop.f32.mrb[0].mxu0
      %v3673 = vadd.f32 0.0, %v3672
      %v3674 = vpop.f32.mrb[0].mxu0
      %v3675 = vpop.f32.mrb[0].mxu0
      %v3676 = vadd.f32 0.0, %v3675
      %v3677 = vpop.f32.mrb[0].mxu0
      %3678 = vmatprep.mubr.bf16.mxu0 0
      %3679 = vmatmul.mubr.bf16.gmra.mrb[0].mxu0 %v3625
      %v3680 = vpop.f32.mrb[0].mxu0
      %v3681 = vadd.f32 0.0, %v3680
      %v3682 = vpop.f32.mrb[0].mxu0
      %v3683 = vpop.f32.mrb[0].mxu0
      %v3684 = vadd.f32 0.0, %v3683
      %v3685 = vpop.f32.mrb[0].mxu0
      %3686 = vmatprep.mubr.bf16.mxu0 0
      %3687 = vmatmul.mubr.bf16.gmra.mrb[0].mxu0 %v3628
      %v3688 = vpop.f32.mrb[0].mxu0
      %v3689 = vadd.f32 0.0, %v3688
      %v3690 = vpop.f32.mrb[0].mxu0
      %v3691 = vpop.f32.mrb[0].mxu0
      %v3692 = vadd.f32 0.0, %v3691
      %v3693 = vpop.f32.mrb[0].mxu0
      %3694 = vdwg.mxu0
      %v3695 = vpack.c.bf16 %v3668, %v3665
      %v3696 = vpack.c.bf16 %v3676, %v3673
      %v3697 = vpack.c.bf16 %v3684, %v3681
      %v3698 = vpack.c.bf16 %v3692, %v3689
      %3703 = vrot.lane.b32.xlu0 %v3695, 96
      %v3704 = vpop.permute.xlu0 %3703
      %3705 = vrot.lane.b32.xlu0 %v3696, 96
      %v3706 = vpop.permute.xlu0 %3705
      %3707 = vrot.lane.b32.xlu0 %v3697, 96
      %v3708 = vpop.permute.xlu0 %3707
      %3709 = vrot.lane.b32.xlu0 %v3698, 96
      %v3710 = vpop.permute.xlu0 %3709
      %v3712 = vsel %vm1134, %v3695, 0
      %v3715 = vsel %vm1134, %v3696, 0
      %v3718 = vsel %vm1134, %v3697, 0
      %v3721 = vsel %vm1134, %v3698, 0
      %v3724 = vsel %vm1134, %v3704, 0
      %v3727 = vsel %vm1134, %v3706, 0
      %v3730 = vsel %vm1134, %v3708, 0
      %v3733 = vsel %vm1134, %v3710, 0
      %3735 = vmatprep.subr.bf16.mxu0 0
      %3736 = vmatpush1.bf16.xpose.msra.mxu0 %v3724
      %3737 = vmatprep.subr.bf16.mxu0 0
      %3738 = vmatpush1.bf16.xpose.msra.mxu0 %v3727
      %3739 = vmatprep.subr.bf16.mxu0 0
      %3740 = vmatpush1.bf16.xpose.msra.mxu0 %v3730
      %3741 = vmatprep.subr.bf16.mxu0 0
      %3742 = vmatpush1.bf16.xpose.msra.mxu0 %v3733
      %3743 = vmatprep.subr.bf16.mxu0 0
      %3744 = vmatpush1.bf16.xpose.msra.mxu0 0
      %3745 = vmatprep.subr.bf16.mxu0 0
      %3746 = vmatpush1.bf16.xpose.msra.mxu0 0
      %3747 = vmatprep.subr.bf16.mxu0 0
      %3748 = vmatpush1.bf16.xpose.msra.mxu0 0
      %3749 = vmatprep.subr.bf16.mxu0 0
      %3750 = vmatpush1.bf16.xpose.msra.mxu0 0
      %3751 = vmatprep.subr.bf16.mxu0 0
      %3752 = vmatpush1.bf16.xpose.msra.mxu0 0
      %3753 = vmatprep.subr.bf16.mxu0 0
      %3754 = vmatpush1.bf16.xpose.msra.mxu0 0
      %3755 = vmatprep.subr.bf16.mxu0 0
      %3756 = vmatpush1.bf16.xpose.msra.mxu0 0
      %3757 = vmatprep.subr.bf16.mxu0 0
      %3758 = vmatpush1.bf16.xpose.msra.mxu0 0
      %3759 = vmatprep.subr.bf16.mxu0 0
      %3760 = vmatpush1.bf16.xpose.msra.mxu0 0
      %3761 = vmatprep.subr.bf16.mxu0 0
      %3762 = vmatpush1.bf16.xpose.msra.mxu0 0
      %3763 = vmatprep.subr.bf16.mxu0 0
      %3764 = vmatpush1.bf16.xpose.msra.mxu0 0
      %3765 = vmatprep.subr.bf16.mxu0 0
      %3766 = vmatpush1.bf16.xpose.msra.mxu0 0
      %3767 = vmatprep.mubr.bf16.mxu0 0
      %3768 = vmatmul.mubr.bf16.gmra.mrb[0].mxu0 %v3712
      %v3769 = vpop.f32.mrb[0].mxu0
      %v3770 = vadd.f32 0.0, %v3769
      %v3771 = vpop.f32.mrb[0].mxu0
      %v3772 = vpop.f32.mrb[0].mxu0
      %v3773 = vadd.f32 0.0, %v3772
      %v3774 = vpop.f32.mrb[0].mxu0
      %3775 = vmatprep.mubr.bf16.mxu0 0
      %3776 = vmatmul.mubr.bf16.gmra.mrb[0].mxu0 %v3715
      %v3777 = vpop.f32.mrb[0].mxu0
      %v3778 = vadd.f32 0.0, %v3777
      %v3779 = vpop.f32.mrb[0].mxu0
      %v3780 = vpop.f32.mrb[0].mxu0
      %v3781 = vadd.f32 0.0, %v3780
      %v3782 = vpop.f32.mrb[0].mxu0
      %3783 = vmatprep.mubr.bf16.mxu0 0
      %3784 = vmatmul.mubr.bf16.gmra.mrb[0].mxu0 %v3718
      %v3785 = vpop.f32.mrb[0].mxu0
      %v3786 = vadd.f32 0.0, %v3785
      %v3787 = vpop.f32.mrb[0].mxu0
      %v3788 = vpop.f32.mrb[0].mxu0
      %v3789 = vadd.f32 0.0, %v3788
      %v3790 = vpop.f32.mrb[0].mxu0
      %3791 = vmatprep.mubr.bf16.mxu0 0
      %3792 = vmatmul.mubr.bf16.gmra.mrb[0].mxu0 %v3721
      %v3793 = vpop.f32.mrb[0].mxu0
      %v3794 = vadd.f32 0.0, %v3793
      %v3795 = vpop.f32.mrb[0].mxu0
      %v3796 = vpop.f32.mrb[0].mxu0
      %v3797 = vadd.f32 0.0, %v3796
      %v3798 = vpop.f32.mrb[0].mxu0
      %3799 = vdwg.mxu0
      %v3800 = vsel %vm871, %v3770, -inf
      %3801 = vmax.xlane.f32.xlu0 %v3800
      %v3802 = vpop.xlane.xlu0 %3801
      %v3803 = vsel %vm871, %v3773, -inf
      %3804 = vmax.xlane.f32.xlu0 %v3803
      %v3805 = vpop.xlane.xlu0 %3804
      %v3806 = vsel %vm871, %v3778, -inf
      %3807 = vmax.xlane.f32.xlu0 %v3806
      %v3808 = vpop.xlane.xlu0 %3807
      %v3809 = vsel %vm871, %v3781, -inf
      %3810 = vmax.xlane.f32.xlu0 %v3809
      %v3811 = vpop.xlane.xlu0 %3810
      %v3812 = vsel %vm871, %v3786, -inf
      %3813 = vmax.xlane.f32.xlu0 %v3812
      %v3814 = vpop.xlane.xlu0 %3813
      %v3815 = vsel %vm871, %v3789, -inf
      %3816 = vmax.xlane.f32.xlu0 %v3815
      %v3817 = vpop.xlane.xlu0 %3816
      %v3818 = vsel %vm871, %v3794, -inf
      %3819 = vmax.xlane.f32.xlu0 %v3818
      %v3820 = vpop.xlane.xlu0 %3819
      %v3821 = vsel %vm871, %v3797, -inf
      %3822 = vmax.xlane.f32.xlu0 %v3821
      %v3823 = vpop.xlane.xlu0 %3822
      %v3824 = vsub.f32 %v3770, %v3802
      %v3825 = vsub.f32 %v3773, %v3805
      %v3826 = vsub.f32 %v3778, %v3808
      %v3827 = vsub.f32 %v3781, %v3811
      %v3828 = vsub.f32 %v3786, %v3814
      %v3829 = vsub.f32 %v3789, %v3817
      %v3830 = vsub.f32 %v3794, %v3820
      %v3831 = vsub.f32 %v3797, %v3823
      %v3832 = vmul.f32 %v3824, 1.442695
      %v3833 = vpow.pop %v3832
      %v3834 = vmul.f32 %v3825, 1.442695
      %v3835 = vpow.pop %v3834
      %v3836 = vmul.f32 %v3826, 1.442695
      %v3837 = vpow.pop %v3836
      %v3838 = vmul.f32 %v3827, 1.442695
      %v3839 = vpow.pop %v3838
      %v3840 = vmul.f32 %v3828, 1.442695
      %v3841 = vpow.pop %v3840
      %v3842 = vmul.f32 %v3829, 1.442695
      %v3843 = vpow.pop %v3842
      %v3844 = vmul.f32 %v3830, 1.442695
      %v3845 = vpow.pop %v3844
      %v3846 = vmul.f32 %v3831, 1.442695
      %v3847 = vpow.pop %v3846
      %v3848 = vsel %vm871, %v3833, 0.0
      %3849 = vadd.xlane.f32.xlu0 %v3848
      %v3850 = vpop.xlane.xlu0 %3849
      %v3851 = vsel %vm871, %v3835, 0.0
      %3852 = vadd.xlane.f32.xlu0 %v3851
      %v3853 = vpop.xlane.xlu0 %3852
      %v3854 = vsel %vm871, %v3837, 0.0
      %3855 = vadd.xlane.f32.xlu0 %v3854
      %v3856 = vpop.xlane.xlu0 %3855
      %v3857 = vsel %vm871, %v3839, 0.0
      %3858 = vadd.xlane.f32.xlu0 %v3857
      %v3859 = vpop.xlane.xlu0 %3858
      %v3860 = vsel %vm871, %v3841, 0.0
      %3861 = vadd.xlane.f32.xlu0 %v3860
      %v3862 = vpop.xlane.xlu0 %3861
      %v3863 = vsel %vm871, %v3843, 0.0
      %3864 = vadd.xlane.f32.xlu0 %v3863
      %v3865 = vpop.xlane.xlu0 %3864
      %v3866 = vsel %vm871, %v3845, 0.0
      %3867 = vadd.xlane.f32.xlu0 %v3866
      %v3868 = vpop.xlane.xlu0 %3867
      %v3869 = vsel %vm871, %v3847, 0.0
      %3870 = vadd.xlane.f32.xlu0 %v3869
      %v3871 = vpop.xlane.xlu0 %3870
      %v3872 = vrcp.pop %v3850
      %v3873 = vrcp.pop %v3853
      %v3874 = vrcp.pop %v3856
      %v3875 = vrcp.pop %v3859
      %v3876 = vrcp.pop %v3862
      %v3877 = vrcp.pop %v3865
      %v3878 = vrcp.pop %v3868
      %v3879 = vrcp.pop %v3871
      %v3880 = vmul.f32 %v3833, %v3872
      %v3881 = vmul.f32 %v3835, %v3873
      %v3882 = vmul.f32 %v3837, %v3874
      %v3883 = vmul.f32 %v3839, %v3875
      %v3884 = vmul.f32 %v3841, %v3876
      %v3885 = vmul.f32 %v3843, %v3877
      %v3886 = vmul.f32 %v3845, %v3878
      %v3887 = vmul.f32 %v3847, %v3879
      %v3888 = vpack.c.bf16 %v3881, %v3880
      %v3889 = vpack.c.bf16 %v3883, %v3882
      %v3890 = vpack.c.bf16 %v3885, %v3884
      %v3891 = vpack.c.bf16 %v3887, %v3886
      %3892 = vrot.lane.b32.xlu0 %v3695, 64
      %v3893 = vpop.permute.xlu0 %3892
      %3894 = vrot.lane.b32.xlu0 %v3696, 64
      %v3895 = vpop.permute.xlu0 %3894
      %3896 = vrot.lane.b32.xlu0 %v3697, 64
      %v3897 = vpop.permute.xlu0 %3896
      %3898 = vrot.lane.b32.xlu0 %v3698, 64
      %v3899 = vpop.permute.xlu0 %3898
      %v3905 = vsel %vm871, %v3888, 0
      %v3908 = vsel %vm871, %v3889, 0
      %v3911 = vsel %vm871, %v3890, 0
      %v3914 = vsel %vm871, %v3891, 0
      %3916 = vmatprep.subr.bf16.mxu0 0
      %3917 = vmatpush1.bf16.msra.mxu0 %v3893
      %3918 = vmatprep.subr.bf16.mxu0 0
      %3919 = vmatpush1.bf16.msra.mxu0 %v3895
      %3920 = vmatprep.subr.bf16.mxu0 0
      %3921 = vmatpush1.bf16.msra.mxu0 %v3897
      %3922 = vmatprep.subr.bf16.mxu0 0
      %3923 = vmatpush1.bf16.msra.mxu0 %v3899
      %3924 = vmatprep.subr.bf16.mxu0 0
      %3925 = vmatpush1.bf16.msra.mxu0 0
      %3926 = vmatprep.subr.bf16.mxu0 0
      %3927 = vmatpush1.bf16.msra.mxu0 0
      %3928 = vmatprep.subr.bf16.mxu0 0
      %3929 = vmatpush1.bf16.msra.mxu0 0
      %3930 = vmatprep.subr.bf16.mxu0 0
      %3931 = vmatpush1.bf16.msra.mxu0 0
      %3932 = vmatprep.subr.bf16.mxu0 0
      %3933 = vmatpush1.bf16.msra.mxu0 0
      %3934 = vmatprep.subr.bf16.mxu0 0
      %3935 = vmatpush1.bf16.msra.mxu0 0
      %3936 = vmatprep.subr.bf16.mxu0 0
      %3937 = vmatpush1.bf16.msra.mxu0 0
      %3938 = vmatprep.subr.bf16.mxu0 0
      %3939 = vmatpush1.bf16.msra.mxu0 0
      %3940 = vmatprep.subr.bf16.mxu0 0
      %3941 = vmatpush1.bf16.msra.mxu0 0
      %3942 = vmatprep.subr.bf16.mxu0 0
      %3943 = vmatpush1.bf16.msra.mxu0 0
      %3944 = vmatprep.subr.bf16.mxu0 0
      %3945 = vmatpush1.bf16.msra.mxu0 0
      %3946 = vmatprep.subr.bf16.mxu0 0
      %3947 = vmatpush1.bf16.msra.mxu0 0
      %3948 = vmatprep.mubr.bf16.mxu0 0
      %3949 = vmatmul.mubr.bf16.gmra.mrb[0].mxu0 %v3905
      %v3950 = vpop.f32.mrb[0].mxu0
      %v3951 = vadd.f32 0.0, %v3950
      %v3952 = vpop.f32.mrb[0].mxu0
      %v3953 = vpop.f32.mrb[0].mxu0
      %v3954 = vadd.f32 0.0, %v3953
      %v3955 = vpop.f32.mrb[0].mxu0
      %3956 = vmatprep.mubr.bf16.mxu0 0
      %3957 = vmatmul.mubr.bf16.gmra.mrb[0].mxu0 %v3908
      %v3958 = vpop.f32.mrb[0].mxu0
      %v3959 = vadd.f32 0.0, %v3958
      %v3960 = vpop.f32.mrb[0].mxu0
      %v3961 = vpop.f32.mrb[0].mxu0
      %v3962 = vadd.f32 0.0, %v3961
      %v3963 = vpop.f32.mrb[0].mxu0
      %3964 = vmatprep.mubr.bf16.mxu0 0
      %3965 = vmatmul.mubr.bf16.gmra.mrb[0].mxu0 %v3911
      %v3966 = vpop.f32.mrb[0].mxu0
      %v3967 = vadd.f32 0.0, %v3966
      %v3968 = vpop.f32.mrb[0].mxu0
      %v3969 = vpop.f32.mrb[0].mxu0
      %v3970 = vadd.f32 0.0, %v3969
      %v3971 = vpop.f32.mrb[0].mxu0
      %3972 = vmatprep.mubr.bf16.mxu0 0
      %3973 = vmatmul.mubr.bf16.gmra.mrb[0].mxu0 %v3914
      %v3974 = vpop.f32.mrb[0].mxu0
      %v3975 = vadd.f32 0.0, %v3974
      %v3976 = vpop.f32.mrb[0].mxu0
      %v3977 = vpop.f32.mrb[0].mxu0
      %v3978 = vadd.f32 0.0, %v3977
      %v3979 = vpop.f32.mrb[0].mxu0
      %3980 = vdwg.mxu0
      %v3981 = vpack.c.bf16 %v3954, %v3951
      %v3982 = vpack.c.bf16 %v3962, %v3959
      %v3983 = vpack.c.bf16 %v3970, %v3967
      %v3984 = vpack.c.bf16 %v3978, %v3975
      %v3986 = vsel %vm1134, %v3981, 0
      %v3989 = vsel %vm1134, %v3982, 0
      %v3992 = vsel %vm1134, %v3983, 0
      %v3995 = vsel %vm1134, %v3984, 0
      %3997 = vmatprep.subr.bf16.mxu0 0
      %3998 = vmatpush1.bf16.msra.mxu0 %v1421
      %3999 = vmatprep.subr.bf16.mxu0 0
      %4000 = vmatpush1.bf16.msra.mxu0 %v1422
      %4001 = vmatprep.subr.bf16.mxu0 0
      %4002 = vmatpush1.bf16.msra.mxu0 0
      %4003 = vmatprep.subr.bf16.mxu0 0
      %4004 = vmatpush1.bf16.msra.mxu0 0
      %4005 = vmatprep.subr.bf16.mxu0 0
      %4006 = vmatpush1.bf16.msra.mxu0 0
      %4007 = vmatprep.subr.bf16.mxu0 0
      %4008 = vmatpush1.bf16.msra.mxu0 0
      %4009 = vmatprep.subr.bf16.mxu0 0
      %4010 = vmatpush1.bf16.msra.mxu0 0
      %4011 = vmatprep.subr.bf16.mxu0 0
      %4012 = vmatpush1.bf16.msra.mxu0 0
      %4013 = vmatprep.subr.bf16.mxu0 0
      %4014 = vmatpush1.bf16.msra.mxu0 0
      %4015 = vmatprep.subr.bf16.mxu0 0
      %4016 = vmatpush1.bf16.msra.mxu0 0
      %4017 = vmatprep.subr.bf16.mxu0 0
      %4018 = vmatpush1.bf16.msra.mxu0 0
      %4019 = vmatprep.subr.bf16.mxu0 0
      %4020 = vmatpush1.bf16.msra.mxu0 0
      %4021 = vmatprep.subr.bf16.mxu0 0
      %4022 = vmatpush1.bf16.msra.mxu0 0
      %4023 = vmatprep.subr.bf16.mxu0 0
      %4024 = vmatpush1.bf16.msra.mxu0 0
      %4025 = vmatprep.subr.bf16.mxu0 0
      %4026 = vmatpush1.bf16.msra.mxu0 0
      %4027 = vmatprep.subr.bf16.mxu0 0
      %4028 = vmatpush1.bf16.msra.mxu0 0
      %4029 = vmatprep.mubr.bf16.mxu0 0
      %4030 = vmatmul.mubr.bf16.gmra.mrb[0].mxu0 %v3986
      %v4031 = vpop.f32.mrb[0].mxu0
      %v4032 = vadd.f32 0.0, %v4031
      %v4033 = vpop.f32.mrb[0].mxu0
      %v4034 = vpop.f32.mrb[0].mxu0
      %v4035 = vadd.f32 0.0, %v4034
      %v4036 = vpop.f32.mrb[0].mxu0
      %4037 = vmatprep.mubr.bf16.mxu0 0
      %4038 = vmatmul.mubr.bf16.gmra.mrb[0].mxu0 %v3989
      %v4039 = vpop.f32.mrb[0].mxu0
      %v4040 = vadd.f32 0.0, %v4039
      %v4041 = vpop.f32.mrb[0].mxu0
      %v4042 = vpop.f32.mrb[0].mxu0
      %v4043 = vadd.f32 0.0, %v4042
      %v4044 = vpop.f32.mrb[0].mxu0
      %4045 = vmatprep.mubr.bf16.mxu0 0
      %4046 = vmatmul.mubr.bf16.gmra.mrb[0].mxu0 %v3992
      %v4047 = vpop.f32.mrb[0].mxu0
      %v4048 = vadd.f32 0.0, %v4047
      %v4049 = vpop.f32.mrb[0].mxu0
      %v4050 = vpop.f32.mrb[0].mxu0
      %v4051 = vadd.f32 0.0, %v4050
      %v4052 = vpop.f32.mrb[0].mxu0
      %4053 = vmatprep.mubr.bf16.mxu0 0
      %4054 = vmatmul.mubr.bf16.gmra.mrb[0].mxu0 %v3995
      %v4055 = vpop.f32.mrb[0].mxu0
      %v4056 = vadd.f32 0.0, %v4055
      %v4057 = vpop.f32.mrb[0].mxu0
      %v4058 = vpop.f32.mrb[0].mxu0
      %v4059 = vadd.f32 0.0, %v4058
      %v4060 = vpop.f32.mrb[0].mxu0
      %4061 = vdwg.mxu0
      %v4062 = vadd.f32 %v3486, %v4032
      %v4063 = vadd.f32 %v3487, %v4035
      %v4064 = vadd.f32 %v3488, %v4040
      %v4065 = vadd.f32 %v3489, %v4043
      %v4066 = vadd.f32 %v3490, %v4048
      %v4067 = vadd.f32 %v3491, %v4051
      %v4068 = vadd.f32 %v3492, %v4056
      %v4069 = vadd.f32 %v3493, %v4059
      %v4070 = vadd.f32 %v4062, %v1515
      %v4071 = vadd.f32 %v4063, %v1515
      %v4072 = vadd.f32 %v4064, %v1515
      %v4073 = vadd.f32 %v4065, %v1515
      %v4074 = vadd.f32 %v4066, %v1515
      %v4075 = vadd.f32 %v4067, %v1515
      %v4076 = vadd.f32 %v4068, %v1515
      %v4077 = vadd.f32 %v4069, %v1515
      %v4078 = vsel %vm871, %v4070, 0.0
      %4079 = vadd.xlane.f32.xlu0 %v4078
      %v4080 = vpop.xlane.xlu0 %4079
      %v4081 = vsel %vm871, %v4071, 0.0
      %4082 = vadd.xlane.f32.xlu0 %v4081
      %v4083 = vpop.xlane.xlu0 %4082
      %v4084 = vsel %vm871, %v4072, 0.0
      %4085 = vadd.xlane.f32.xlu0 %v4084
      %v4086 = vpop.xlane.xlu0 %4085
      %v4087 = vsel %vm871, %v4073, 0.0
      %4088 = vadd.xlane.f32.xlu0 %v4087
      %v4089 = vpop.xlane.xlu0 %4088
      %v4090 = vsel %vm871, %v4074, 0.0
      %4091 = vadd.xlane.f32.xlu0 %v4090
      %v4092 = vpop.xlane.xlu0 %4091
      %v4093 = vsel %vm871, %v4075, 0.0
      %4094 = vadd.xlane.f32.xlu0 %v4093
      %v4095 = vpop.xlane.xlu0 %4094
      %v4096 = vsel %vm871, %v4076, 0.0
      %4097 = vadd.xlane.f32.xlu0 %v4096
      %v4098 = vpop.xlane.xlu0 %4097
      %v4099 = vsel %vm871, %v4077, 0.0
      %4100 = vadd.xlane.f32.xlu0 %v4099
      %v4101 = vpop.xlane.xlu0 %4100
      %v4102 = vmul.f32 %v4080, %v896
      %v4103 = vmul.f32 %v4083, %v896
      %v4104 = vmul.f32 %v4086, %v896
      %v4105 = vmul.f32 %v4089, %v896
      %v4106 = vmul.f32 %v4092, %v896
      %v4107 = vmul.f32 %v4095, %v896
      %v4108 = vmul.f32 %v4098, %v896
      %v4109 = vmul.f32 %v4101, %v896
      %v4110 = vsub.f32 %v4070, %v4102
      %v4111 = vsub.f32 %v4071, %v4103
      %v4112 = vsub.f32 %v4072, %v4104
      %v4113 = vsub.f32 %v4073, %v4105
      %v4114 = vsub.f32 %v4074, %v4106
      %v4115 = vsub.f32 %v4075, %v4107
      %v4116 = vsub.f32 %v4076, %v4108
      %v4117 = vsub.f32 %v4077, %v4109
      %v4118 = vmul.f32 %v4110, %v4110
      %v4119 = vmul.f32 %v4111, %v4111
      %v4120 = vmul.f32 %v4112, %v4112
      %v4121 = vmul.f32 %v4113, %v4113
      %v4122 = vmul.f32 %v4114, %v4114
      %v4123 = vmul.f32 %v4115, %v4115
      %v4124 = vmul.f32 %v4116, %v4116
      %v4125 = vmul.f32 %v4117, %v4117
      %v4126 = vsel %vm871, %v4118, 0.0
      %4127 = vadd.xlane.f32.xlu0 %v4126
      %v4128 = vpop.xlane.xlu0 %4127
      %v4129 = vsel %vm871, %v4119, 0.0
      %4130 = vadd.xlane.f32.xlu0 %v4129
      %v4131 = vpop.xlane.xlu0 %4130
      %v4132 = vsel %vm871, %v4120, 0.0
      %4133 = vadd.xlane.f32.xlu0 %v4132
      %v4134 = vpop.xlane.xlu0 %4133
      %v4135 = vsel %vm871, %v4121, 0.0
      %4136 = vadd.xlane.f32.xlu0 %v4135
      %v4137 = vpop.xlane.xlu0 %4136
      %v4138 = vsel %vm871, %v4122, 0.0
      %4139 = vadd.xlane.f32.xlu0 %v4138
      %v4140 = vpop.xlane.xlu0 %4139
      %v4141 = vsel %vm871, %v4123, 0.0
      %4142 = vadd.xlane.f32.xlu0 %v4141
      %v4143 = vpop.xlane.xlu0 %4142
      %v4144 = vsel %vm871, %v4124, 0.0
      %4145 = vadd.xlane.f32.xlu0 %v4144
      %v4146 = vpop.xlane.xlu0 %4145
      %v4147 = vsel %vm871, %v4125, 0.0
      %4148 = vadd.xlane.f32.xlu0 %v4147
      %v4149 = vpop.xlane.xlu0 %4148
      %v4150 = vmul.f32 %v4128, %v896
      %v4151 = vmul.f32 %v4131, %v896
      %v4152 = vmul.f32 %v4134, %v896
      %v4153 = vmul.f32 %v4137, %v896
      %v4154 = vmul.f32 %v4140, %v896
      %v4155 = vmul.f32 %v4143, %v896
      %v4156 = vmul.f32 %v4146, %v896
      %v4157 = vmul.f32 %v4149, %v896
      %v4158 = vadd.f32 %v4150, 1e-05
      %v4159 = vadd.f32 %v4151, 1e-05
      %v4160 = vadd.f32 %v4152, 1e-05
      %v4161 = vadd.f32 %v4153, 1e-05
      %v4162 = vadd.f32 %v4154, 1e-05
      %v4163 = vadd.f32 %v4155, 1e-05
      %v4164 = vadd.f32 %v4156, 1e-05
      %v4165 = vadd.f32 %v4157, 1e-05
      %v4166 = vrsqrt.pop %v4158
      %v4167 = vrsqrt.pop %v4159
      %v4168 = vrsqrt.pop %v4160
      %v4169 = vrsqrt.pop %v4161
      %v4170 = vrsqrt.pop %v4162
      %v4171 = vrsqrt.pop %v4163
      %v4172 = vrsqrt.pop %v4164
      %v4173 = vrsqrt.pop %v4165
      %v4174 = vmul.f32 %v4110, %v4166
      %v4175 = vmul.f32 %v4111, %v4167
      %v4176 = vmul.f32 %v4112, %v4168
      %v4177 = vmul.f32 %v4113, %v4169
      %v4178 = vmul.f32 %v4114, %v4170
      %v4179 = vmul.f32 %v4115, %v4171
      %v4180 = vmul.f32 %v4116, %v4172
      %v4181 = vmul.f32 %v4117, %v4173
      %v4182 = vmul.f32 %v4174, %v1637
      %v4183 = vmul.f32 %v4175, %v1637
      %v4184 = vmul.f32 %v4176, %v1637
      %v4185 = vmul.f32 %v4177, %v1637
      %v4186 = vmul.f32 %v4178, %v1637
      %v4187 = vmul.f32 %v4179, %v1637
      %v4188 = vmul.f32 %v4180, %v1637
      %v4189 = vmul.f32 %v4181, %v1637
      %v4190 = vadd.f32 %v4182, %v1651
      %v4191 = vadd.f32 %v4183, %v1651
      %v4192 = vadd.f32 %v4184, %v1651
      %v4193 = vadd.f32 %v4185, %v1651
      %v4194 = vadd.f32 %v4186, %v1651
      %v4195 = vadd.f32 %v4187, %v1651
      %v4196 = vadd.f32 %v4188, %v1651
      %v4197 = vadd.f32 %v4189, %v1651
      %v4198 = vpack.c.bf16 %v4191, %v4190
      %v4199 = vpack.c.bf16 %v4193, %v4192
      %v4200 = vpack.c.bf16 %v4195, %v4194
      %v4201 = vpack.c.bf16 %v4197, %v4196
      %v4203 = vsel %vm871, %v4198, 0
      %v4206 = vsel %vm871, %v4199, 0
      %v4209 = vsel %vm871, %v4200, 0
      %v4212 = vsel %vm871, %v4201, 0
      %4214 = vmatprep.subr.bf16.mxu0 0
      %4215 = vmatpush1.bf16.msra.mxu0 %v1696
      %4216 = vmatprep.subr.bf16.mxu0 0
      %4217 = vmatpush1.bf16.msra.mxu0 %v1697
      %4218 = vmatprep.subr.bf16.mxu0 0
      %4219 = vmatpush1.bf16.msra.mxu0 %v1698
      %4220 = vmatprep.subr.bf16.mxu0 0
      %4221 = vmatpush1.bf16.msra.mxu0 %v1699
      %4222 = vmatprep.subr.bf16.mxu0 0
      %4223 = vmatpush1.bf16.msra.mxu0 0
      %4224 = vmatprep.subr.bf16.mxu0 0
      %4225 = vmatpush1.bf16.msra.mxu0 0
      %4226 = vmatprep.subr.bf16.mxu0 0
      %4227 = vmatpush1.bf16.msra.mxu0 0
      %4228 = vmatprep.subr.bf16.mxu0 0
      %4229 = vmatpush1.bf16.msra.mxu0 0
      %4230 = vmatprep.subr.bf16.mxu0 0
      %4231 = vmatpush1.bf16.msra.mxu0 0
      %4232 = vmatprep.subr.bf16.mxu0 0
      %4233 = vmatpush1.bf16.msra.mxu0 0
      %4234 = vmatprep.subr.bf16.mxu0 0
      %4235 = vmatpush1.bf16.msra.mxu0 0
      %4236 = vmatprep.subr.bf16.mxu0 0
      %4237 = vmatpush1.bf16.msra.mxu0 0
      %4238 = vmatprep.subr.bf16.mxu0 0
      %4239 = vmatpush1.bf16.msra.mxu0 0
      %4240 = vmatprep.subr.bf16.mxu0 0
      %4241 = vmatpush1.bf16.msra.mxu0 0
      %4242 = vmatprep.subr.bf16.mxu0 0
      %4243 = vmatpush1.bf16.msra.mxu0 0
      %4244 = vmatprep.subr.bf16.mxu0 0
      %4245 = vmatpush1.bf16.msra.mxu0 0
      %4246 = vmatprep.mubr.bf16.mxu0 0
      %4247 = vmatmul.mubr.bf16.gmra.mrb[0].mxu0 %v4203
      %v4248 = vpop.f32.mrb[0].mxu0
      %v4249 = vadd.f32 %v1678, %v4248
      %v4250 = vpop.f32.mrb[0].mxu0
      %v4251 = vpop.f32.mrb[0].mxu0
      %v4252 = vadd.f32 %v1678, %v4251
      %v4253 = vpop.f32.mrb[0].mxu0
      %4254 = vmatprep.mubr.bf16.mxu0 0
      %4255 = vmatmul.mubr.bf16.gmra.mrb[0].mxu0 %v4206
      %v4256 = vpop.f32.mrb[0].mxu0
      %v4257 = vadd.f32 %v1678, %v4256
      %v4258 = vpop.f32.mrb[0].mxu0
      %v4259 = vpop.f32.mrb[0].mxu0
      %v4260 = vadd.f32 %v1678, %v4259
      %v4261 = vpop.f32.mrb[0].mxu0
      %4262 = vmatprep.mubr.bf16.mxu0 0
      %4263 = vmatmul.mubr.bf16.gmra.mrb[0].mxu0 %v4209
      %v4264 = vpop.f32.mrb[0].mxu0
      %v4265 = vadd.f32 %v1678, %v4264
      %v4266 = vpop.f32.mrb[0].mxu0
      %v4267 = vpop.f32.mrb[0].mxu0
      %v4268 = vadd.f32 %v1678, %v4267
      %v4269 = vpop.f32.mrb[0].mxu0
      %4270 = vmatprep.mubr.bf16.mxu0 0
      %4271 = vmatmul.mubr.bf16.gmra.mrb[0].mxu0 %v4212
      %v4272 = vpop.f32.mrb[0].mxu0
      %v4273 = vadd.f32 %v1678, %v4272
      %v4274 = vpop.f32.mrb[0].mxu0
      %v4275 = vpop.f32.mrb[0].mxu0
      %v4276 = vadd.f32 %v1678, %v4275
      %v4277 = vpop.f32.mrb[0].mxu0
      %4278 = vdwg.mxu0
      %v4279 = vxor.u32 %v4249, 2147483648
      %v4280 = vxor.u32 %v4252, 2147483648
      %v4281 = vxor.u32 %v4257, 2147483648
      %v4282 = vxor.u32 %v4260, 2147483648
      %v4283 = vxor.u32 %v4265, 2147483648
      %v4284 = vxor.u32 %v4268, 2147483648
      %v4285 = vxor.u32 %v4273, 2147483648
      %v4286 = vxor.u32 %v4276, 2147483648
      %v4287 = vmul.f32 %v4279, 1.442695
      %v4288 = vpow.pop %v4287
      %v4289 = vmul.f32 %v4280, 1.442695
      %v4290 = vpow.pop %v4289
      %v4291 = vmul.f32 %v4281, 1.442695
      %v4292 = vpow.pop %v4291
      %v4293 = vmul.f32 %v4282, 1.442695
      %v4294 = vpow.pop %v4293
      %v4295 = vmul.f32 %v4283, 1.442695
      %v4296 = vpow.pop %v4295
      %v4297 = vmul.f32 %v4284, 1.442695
      %v4298 = vpow.pop %v4297
      %v4299 = vmul.f32 %v4285, 1.442695
      %v4300 = vpow.pop %v4299
      %v4301 = vmul.f32 %v4286, 1.442695
      %v4302 = vpow.pop %v4301
      %v4303 = vadd.f32 %v4288, 1.0
      %v4304 = vadd.f32 %v4290, 1.0
      %v4305 = vadd.f32 %v4292, 1.0
      %v4306 = vadd.f32 %v4294, 1.0
      %v4307 = vadd.f32 %v4296, 1.0
      %v4308 = vadd.f32 %v4298, 1.0
      %v4309 = vadd.f32 %v4300, 1.0
      %v4310 = vadd.f32 %v4302, 1.0
      %v4311 = vrcp.pop %v4303
      %v4312 = vmul.f32 1.0, %v4311
      %v4313 = vrcp.pop %v4304
      %v4314 = vmul.f32 1.0, %v4313
      %v4315 = vrcp.pop %v4305
      %v4316 = vmul.f32 1.0, %v4315
      %v4317 = vrcp.pop %v4306
      %v4318 = vmul.f32 1.0, %v4317
      %v4319 = vrcp.pop %v4307
      %v4320 = vmul.f32 1.0, %v4319
      %v4321 = vrcp.pop %v4308
      %v4322 = vmul.f32 1.0, %v4321
      %v4323 = vrcp.pop %v4309
      %v4324 = vmul.f32 1.0, %v4323
      %v4325 = vrcp.pop %v4310
      %v4326 = vmul.f32 1.0, %v4325
      %v4327 = vmul.f32 %v4249, %v4312
      %v4328 = vmul.f32 %v4252, %v4314
      %v4329 = vmul.f32 %v4257, %v4316
      %v4330 = vmul.f32 %v4260, %v4318
      %v4331 = vmul.f32 %v4265, %v4320
      %v4332 = vmul.f32 %v4268, %v4322
      %v4333 = vmul.f32 %v4273, %v4324
      %v4334 = vmul.f32 %v4276, %v4326
      %v4335 = vpack.c.bf16 %v4328, %v4327
      %v4336 = vpack.c.bf16 %v4330, %v4329
      %v4337 = vpack.c.bf16 %v4332, %v4331
      %v4338 = vpack.c.bf16 %v4334, %v4333
      %4339 = vmatprep.subr.bf16.mxu0 0
      %4340 = vmatpush1.bf16.msra.mxu0 %v1889
      %4341 = vmatprep.subr.bf16.mxu0 0
      %4342 = vmatpush1.bf16.msra.mxu0 %v1890
      %4343 = vmatprep.subr.bf16.mxu0 0
      %4344 = vmatpush1.bf16.msra.mxu0 %v1891
      %4345 = vmatprep.subr.bf16.mxu0 0
      %4346 = vmatpush1.bf16.msra.mxu0 %v1892
      %4347 = vmatprep.subr.bf16.mxu0 0
      %4348 = vmatpush1.bf16.msra.mxu0 %v1893
      %4349 = vmatprep.subr.bf16.mxu0 0
      %4350 = vmatpush1.bf16.msra.mxu0 %v1894
      %4351 = vmatprep.subr.bf16.mxu0 0
      %4352 = vmatpush1.bf16.msra.mxu0 %v1895
      %4353 = vmatprep.subr.bf16.mxu0 0
      %4354 = vmatpush1.bf16.msra.mxu0 %v1896
      %4355 = vmatprep.subr.bf16.mxu0 0
      %4356 = vmatpush1.bf16.msra.mxu0 0
      %4357 = vmatprep.subr.bf16.mxu0 0
      %4358 = vmatpush1.bf16.msra.mxu0 0
      %4359 = vmatprep.subr.bf16.mxu0 0
      %4360 = vmatpush1.bf16.msra.mxu0 0
      %4361 = vmatprep.subr.bf16.mxu0 0
      %4362 = vmatpush1.bf16.msra.mxu0 0
      %4363 = vmatprep.subr.bf16.mxu0 0
      %4364 = vmatpush1.bf16.msra.mxu0 0
      %4365 = vmatprep.subr.bf16.mxu0 0
      %4366 = vmatpush1.bf16.msra.mxu0 0
      %4367 = vmatprep.subr.bf16.mxu0 0
      %4368 = vmatpush1.bf16.msra.mxu0 0
      %4369 = vmatprep.subr.bf16.mxu0 0
      %4370 = vmatpush1.bf16.msra.mxu0 0
      %4371 = vmatprep.mubr.bf16.mxu0 0
      %4372 = vmatmul.mubr.bf16.gmra.mrb[0].mxu0 %v4335
      %v4373 = vpop.f32.mrb[0].mxu0
      %v4374 = vadd.f32 0.0, %v4373
      %v4375 = vpop.f32.mrb[0].mxu0
      %v4376 = vpop.f32.mrb[0].mxu0
      %v4377 = vadd.f32 0.0, %v4376
      %v4378 = vpop.f32.mrb[0].mxu0
      %4379 = vmatprep.mubr.bf16.mxu0 0
      %4380 = vmatmul.mubr.bf16.gmra.mrb[0].mxu0 %v4336
      %v4381 = vpop.f32.mrb[0].mxu0
      %v4382 = vadd.f32 0.0, %v4381
      %v4383 = vpop.f32.mrb[0].mxu0
      %v4384 = vpop.f32.mrb[0].mxu0
      %v4385 = vadd.f32 0.0, %v4384
      %v4386 = vpop.f32.mrb[0].mxu0
      %4387 = vmatprep.mubr.bf16.mxu0 0
      %4388 = vmatmul.mubr.bf16.gmra.mrb[0].mxu0 %v4337
      %v4389 = vpop.f32.mrb[0].mxu0
      %v4390 = vadd.f32 0.0, %v4389
      %v4391 = vpop.f32.mrb[0].mxu0
      %v4392 = vpop.f32.mrb[0].mxu0
      %v4393 = vadd.f32 0.0, %v4392
      %v4394 = vpop.f32.mrb[0].mxu0
      %4395 = vmatprep.mubr.bf16.mxu0 0
      %4396 = vmatmul.mubr.bf16.gmra.mrb[0].mxu0 %v4338
      %v4397 = vpop.f32.mrb[0].mxu0
      %v4398 = vadd.f32 0.0, %v4397
      %v4399 = vpop.f32.mrb[0].mxu0
      %v4400 = vpop.f32.mrb[0].mxu0
      %v4401 = vadd.f32 0.0, %v4400
      %v4402 = vpop.f32.mrb[0].mxu0
      %4403 = vdwg.mxu0
      %v4404 = vadd.f32 %v4070, %v4374
      %v4405 = vadd.f32 %v4071, %v4377
      %v4406 = vadd.f32 %v4072, %v4382
      %v4407 = vadd.f32 %v4073, %v4385
      %v4408 = vadd.f32 %v4074, %v4390
      %v4409 = vadd.f32 %v4075, %v4393
      %v4410 = vadd.f32 %v4076, %v4398
      %v4411 = vadd.f32 %v4077, %v4401
      %v4412 = vadd.f32 %v4404, %v1983
      %v4413 = vadd.f32 %v4405, %v1983
      %v4414 = vadd.f32 %v4406, %v1983
      %v4415 = vadd.f32 %v4407, %v1983
      %v4416 = vadd.f32 %v4408, %v1983
      %v4417 = vadd.f32 %v4409, %v1983
      %v4418 = vadd.f32 %v4410, %v1983
      %v4419 = vadd.f32 %v4411, %v1983
      %v4420 = vsel %vm871, %v4412, 0.0
      %4421 = vadd.xlane.f32.xlu0 %v4420
      %v4422 = vpop.xlane.xlu0 %4421
      %v4423 = vsel %vm871, %v4413, 0.0
      %4424 = vadd.xlane.f32.xlu0 %v4423
      %v4425 = vpop.xlane.xlu0 %4424
      %v4426 = vsel %vm871, %v4414, 0.0
      %4427 = vadd.xlane.f32.xlu0 %v4426
      %v4428 = vpop.xlane.xlu0 %4427
      %v4429 = vsel %vm871, %v4415, 0.0
      %4430 = vadd.xlane.f32.xlu0 %v4429
      %v4431 = vpop.xlane.xlu0 %4430
      %v4432 = vsel %vm871, %v4416, 0.0
      %4433 = vadd.xlane.f32.xlu0 %v4432
      %v4434 = vpop.xlane.xlu0 %4433
      %v4435 = vsel %vm871, %v4417, 0.0
      %4436 = vadd.xlane.f32.xlu0 %v4435
      %v4437 = vpop.xlane.xlu0 %4436
      %v4438 = vsel %vm871, %v4418, 0.0
      %4439 = vadd.xlane.f32.xlu0 %v4438
      %v4440 = vpop.xlane.xlu0 %4439
      %v4441 = vsel %vm871, %v4419, 0.0
      %4442 = vadd.xlane.f32.xlu0 %v4441
      %v4443 = vpop.xlane.xlu0 %4442
      %v4444 = vmul.f32 %v4422, %v896
      %v4445 = vmul.f32 %v4425, %v896
      %v4446 = vmul.f32 %v4428, %v896
      %v4447 = vmul.f32 %v4431, %v896
      %v4448 = vmul.f32 %v4434, %v896
      %v4449 = vmul.f32 %v4437, %v896
      %v4450 = vmul.f32 %v4440, %v896
      %v4451 = vmul.f32 %v4443, %v896
      %v4452 = vsub.f32 %v4412, %v4444
      %v4453 = vsub.f32 %v4413, %v4445
      %v4454 = vsub.f32 %v4414, %v4446
      %v4455 = vsub.f32 %v4415, %v4447
      %v4456 = vsub.f32 %v4416, %v4448
      %v4457 = vsub.f32 %v4417, %v4449
      %v4458 = vsub.f32 %v4418, %v4450
      %v4459 = vsub.f32 %v4419, %v4451
      %v4460 = vmul.f32 %v4452, %v4452
      %v4461 = vmul.f32 %v4453, %v4453
      %v4462 = vmul.f32 %v4454, %v4454
      %v4463 = vmul.f32 %v4455, %v4455
      %v4464 = vmul.f32 %v4456, %v4456
      %v4465 = vmul.f32 %v4457, %v4457
      %v4466 = vmul.f32 %v4458, %v4458
      %v4467 = vmul.f32 %v4459, %v4459
      %v4468 = vsel %vm871, %v4460, 0.0
      %4469 = vadd.xlane.f32.xlu0 %v4468
      %v4470 = vpop.xlane.xlu0 %4469
      %v4471 = vsel %vm871, %v4461, 0.0
      %4472 = vadd.xlane.f32.xlu0 %v4471
      %v4473 = vpop.xlane.xlu0 %4472
      %v4474 = vsel %vm871, %v4462, 0.0
      %4475 = vadd.xlane.f32.xlu0 %v4474
      %v4476 = vpop.xlane.xlu0 %4475
      %v4477 = vsel %vm871, %v4463, 0.0
      %4478 = vadd.xlane.f32.xlu0 %v4477
      %v4479 = vpop.xlane.xlu0 %4478
      %v4480 = vsel %vm871, %v4464, 0.0
      %4481 = vadd.xlane.f32.xlu0 %v4480
      %v4482 = vpop.xlane.xlu0 %4481
      %v4483 = vsel %vm871, %v4465, 0.0
      %4484 = vadd.xlane.f32.xlu0 %v4483
      %v4485 = vpop.xlane.xlu0 %4484
      %v4486 = vsel %vm871, %v4466, 0.0
      %4487 = vadd.xlane.f32.xlu0 %v4486
      %v4488 = vpop.xlane.xlu0 %4487
      %v4489 = vsel %vm871, %v4467, 0.0
      %4490 = vadd.xlane.f32.xlu0 %v4489
      %v4491 = vpop.xlane.xlu0 %4490
      %v4492 = vmul.f32 %v4470, %v896
      %v4493 = vmul.f32 %v4473, %v896
      %v4494 = vmul.f32 %v4476, %v896
      %v4495 = vmul.f32 %v4479, %v896
      %v4496 = vmul.f32 %v4482, %v896
      %v4497 = vmul.f32 %v4485, %v896
      %v4498 = vmul.f32 %v4488, %v896
      %v4499 = vmul.f32 %v4491, %v896
      %v4500 = vadd.f32 %v4492, 1e-05
      %v4501 = vadd.f32 %v4493, 1e-05
      %v4502 = vadd.f32 %v4494, 1e-05
      %v4503 = vadd.f32 %v4495, 1e-05
      %v4504 = vadd.f32 %v4496, 1e-05
      %v4505 = vadd.f32 %v4497, 1e-05
      %v4506 = vadd.f32 %v4498, 1e-05
      %v4507 = vadd.f32 %v4499, 1e-05
      %v4508 = vrsqrt.pop %v4500
      %v4509 = vrsqrt.pop %v4501
      %v4510 = vrsqrt.pop %v4502
      %v4511 = vrsqrt.pop %v4503
      %v4512 = vrsqrt.pop %v4504
      %v4513 = vrsqrt.pop %v4505
      %v4514 = vrsqrt.pop %v4506
      %v4515 = vrsqrt.pop %v4507
      %v4516 = vmul.f32 %v4452, %v4508
      %v4517 = vmul.f32 %v4453, %v4509
      %v4518 = vmul.f32 %v4454, %v4510
      %v4519 = vmul.f32 %v4455, %v4511
      %v4520 = vmul.f32 %v4456, %v4512
      %v4521 = vmul.f32 %v4457, %v4513
      %v4522 = vmul.f32 %v4458, %v4514
      %v4523 = vmul.f32 %v4459, %v4515
      %v4524 = vmul.f32 %v4516, %v2105
      %v4525 = vmul.f32 %v4517, %v2105
      %v4526 = vmul.f32 %v4518, %v2105
      %v4527 = vmul.f32 %v4519, %v2105
      %v4528 = vmul.f32 %v4520, %v2105
      %v4529 = vmul.f32 %v4521, %v2105
      %v4530 = vmul.f32 %v4522, %v2105
      %v4531 = vmul.f32 %v4523, %v2105
      %v4532 = vadd.f32 %v4524, %v2119
      %v4533 = vadd.f32 %v4525, %v2119
      %v4534 = vadd.f32 %v4526, %v2119
      %v4535 = vadd.f32 %v4527, %v2119
      %v4536 = vadd.f32 %v4528, %v2119
      %v4537 = vadd.f32 %v4529, %v2119
      %v4538 = vadd.f32 %v4530, %v2119
      %v4539 = vadd.f32 %v4531, %v2119
      %v4540 = vpack.c.bf16 %v4533, %v4532
      %v4541 = vpack.c.bf16 %v4535, %v4534
      %v4542 = vpack.c.bf16 %v4537, %v4536
      %v4543 = vpack.c.bf16 %v4539, %v4538
      %v4545 = vsel %vm871, %v4540, 0
      %v4548 = vsel %vm871, %v4541, 0
      %v4551 = vsel %vm871, %v4542, 0
      %v4554 = vsel %vm871, %v4543, 0
      %4556 = vmatprep.subr.bf16.mxu0 0
      %4557 = vmatpush1.bf16.msra.mxu0 %v2158
      %4558 = vmatprep.subr.bf16.mxu0 0
      %4559 = vmatpush1.bf16.msra.mxu0 %v2159
      %4560 = vmatprep.subr.bf16.mxu0 0
      %4561 = vmatpush1.bf16.msra.mxu0 %v2160
      %4562 = vmatprep.subr.bf16.mxu0 0
      %4563 = vmatpush1.bf16.msra.mxu0 %v2161
      %4564 = vmatprep.subr.bf16.mxu0 0
      %4565 = vmatpush1.bf16.msra.mxu0 0
      %4566 = vmatprep.subr.bf16.mxu0 0
      %4567 = vmatpush1.bf16.msra.mxu0 0
      %4568 = vmatprep.subr.bf16.mxu0 0
      %4569 = vmatpush1.bf16.msra.mxu0 0
      %4570 = vmatprep.subr.bf16.mxu0 0
      %4571 = vmatpush1.bf16.msra.mxu0 0
      %4572 = vmatprep.subr.bf16.mxu0 0
      %4573 = vmatpush1.bf16.msra.mxu0 0
      %4574 = vmatprep.subr.bf16.mxu0 0
      %4575 = vmatpush1.bf16.msra.mxu0 0
      %4576 = vmatprep.subr.bf16.mxu0 0
      %4577 = vmatpush1.bf16.msra.mxu0 0
      %4578 = vmatprep.subr.bf16.mxu0 0
      %4579 = vmatpush1.bf16.msra.mxu0 0
      %4580 = vmatprep.subr.bf16.mxu0 0
      %4581 = vmatpush1.bf16.msra.mxu0 0
      %4582 = vmatprep.subr.bf16.mxu0 0
      %4583 = vmatpush1.bf16.msra.mxu0 0
      %4584 = vmatprep.subr.bf16.mxu0 0
      %4585 = vmatpush1.bf16.msra.mxu0 0
      %4586 = vmatprep.subr.bf16.mxu0 0
      %4587 = vmatpush1.bf16.msra.mxu0 0
      %4588 = vmatprep.mubr.bf16.mxu0 0
      %4589 = vmatmul.mubr.bf16.gmra.mrb[0].mxu0 %v4545
      %v4590 = vpop.f32.mrb[0].mxu0
      %v4591 = vadd.f32 0.0, %v4590
      %v4592 = vpop.f32.mrb[0].mxu0
      %v4593 = vpop.f32.mrb[0].mxu0
      %v4594 = vadd.f32 0.0, %v4593
      %v4595 = vpop.f32.mrb[0].mxu0
      %4596 = vmatprep.mubr.bf16.mxu0 0
      %4597 = vmatmul.mubr.bf16.gmra.mrb[0].mxu0 %v4548
      %v4598 = vpop.f32.mrb[0].mxu0
      %v4599 = vadd.f32 0.0, %v4598
      %v4600 = vpop.f32.mrb[0].mxu0
      %v4601 = vpop.f32.mrb[0].mxu0
      %v4602 = vadd.f32 0.0, %v4601
      %v4603 = vpop.f32.mrb[0].mxu0
      %4604 = vmatprep.mubr.bf16.mxu0 0
      %4605 = vmatmul.mubr.bf16.gmra.mrb[0].mxu0 %v4551
      %v4606 = vpop.f32.mrb[0].mxu0
      %v4607 = vadd.f32 0.0, %v4606
      %v4608 = vpop.f32.mrb[0].mxu0
      %v4609 = vpop.f32.mrb[0].mxu0
      %v4610 = vadd.f32 0.0, %v4609
      %v4611 = vpop.f32.mrb[0].mxu0
      %4612 = vmatprep.mubr.bf16.mxu0 0
      %4613 = vmatmul.mubr.bf16.gmra.mrb[0].mxu0 %v4554
      %v4614 = vpop.f32.mrb[0].mxu0
      %v4615 = vadd.f32 0.0, %v4614
      %v4616 = vpop.f32.mrb[0].mxu0
      %v4617 = vpop.f32.mrb[0].mxu0
      %v4618 = vadd.f32 0.0, %v4617
      %v4619 = vpop.f32.mrb[0].mxu0
      %4620 = vdwg.mxu0
      %v4621 = vpack.c.bf16 %v4594, %v4591
      %v4622 = vpack.c.bf16 %v4602, %v4599
      %v4623 = vpack.c.bf16 %v4610, %v4607
      %v4624 = vpack.c.bf16 %v4618, %v4615
      %4629 = vrot.lane.b32.xlu0 %v4621, 96
      %v4630 = vpop.permute.xlu0 %4629
      %4631 = vrot.lane.b32.xlu0 %v4622, 96
      %v4632 = vpop.permute.xlu0 %4631
      %4633 = vrot.lane.b32.xlu0 %v4623, 96
      %v4634 = vpop.permute.xlu0 %4633
      %4635 = vrot.lane.b32.xlu0 %v4624, 96
      %v4636 = vpop.permute.xlu0 %4635
      %v4638 = vsel %vm1134, %v4621, 0
      %v4641 = vsel %vm1134, %v4622, 0
      %v4644 = vsel %vm1134, %v4623, 0
      %v4647 = vsel %vm1134, %v4624, 0
      %v4650 = vsel %vm1134, %v4630, 0
      %v4653 = vsel %vm1134, %v4632, 0
      %v4656 = vsel %vm1134, %v4634, 0
      %v4659 = vsel %vm1134, %v4636, 0
      %4661 = vmatprep.subr.bf16.mxu0 0
      %4662 = vmatpush1.bf16.xpose.msra.mxu0 %v4650
      %4663 = vmatprep.subr.bf16.mxu0 0
      %4664 = vmatpush1.bf16.xpose.msra.mxu0 %v4653
      %4665 = vmatprep.subr.bf16.mxu0 0
      %4666 = vmatpush1.bf16.xpose.msra.mxu0 %v4656
      %4667 = vmatprep.subr.bf16.mxu0 0
      %4668 = vmatpush1.bf16.xpose.msra.mxu0 %v4659
      %4669 = vmatprep.subr.bf16.mxu0 0
      %4670 = vmatpush1.bf16.xpose.msra.mxu0 0
      %4671 = vmatprep.subr.bf16.mxu0 0
      %4672 = vmatpush1.bf16.xpose.msra.mxu0 0
      %4673 = vmatprep.subr.bf16.mxu0 0
      %4674 = vmatpush1.bf16.xpose.msra.mxu0 0
      %4675 = vmatprep.subr.bf16.mxu0 0
      %4676 = vmatpush1.bf16.xpose.msra.mxu0 0
      %4677 = vmatprep.subr.bf16.mxu0 0
      %4678 = vmatpush1.bf16.xpose.msra.mxu0 0
      %4679 = vmatprep.subr.bf16.mxu0 0
      %4680 = vmatpush1.bf16.xpose.msra.mxu0 0
      %4681 = vmatprep.subr.bf16.mxu0 0
      %4682 = vmatpush1.bf16.xpose.msra.mxu0 0
      %4683 = vmatprep.subr.bf16.mxu0 0
      %4684 = vmatpush1.bf16.xpose.msra.mxu0 0
      %4685 = vmatprep.subr.bf16.mxu0 0
      %4686 = vmatpush1.bf16.xpose.msra.mxu0 0
      %4687 = vmatprep.subr.bf16.mxu0 0
      %4688 = vmatpush1.bf16.xpose.msra.mxu0 0
      %4689 = vmatprep.subr.bf16.mxu0 0
      %4690 = vmatpush1.bf16.xpose.msra.mxu0 0
      %4691 = vmatprep.subr.bf16.mxu0 0
      %4692 = vmatpush1.bf16.xpose.msra.mxu0 0
      %4693 = vmatprep.mubr.bf16.mxu0 0
      %4694 = vmatmul.mubr.bf16.gmra.mrb[0].mxu0 %v4638
      %v4695 = vpop.f32.mrb[0].mxu0
      %v4696 = vadd.f32 0.0, %v4695
      %v4697 = vpop.f32.mrb[0].mxu0
      %v4698 = vpop.f32.mrb[0].mxu0
      %v4699 = vadd.f32 0.0, %v4698
      %v4700 = vpop.f32.mrb[0].mxu0
      %4701 = vmatprep.mubr.bf16.mxu0 0
      %4702 = vmatmul.mubr.bf16.gmra.mrb[0].mxu0 %v4641
      %v4703 = vpop.f32.mrb[0].mxu0
      %v4704 = vadd.f32 0.0, %v4703
      %v4705 = vpop.f32.mrb[0].mxu0
      %v4706 = vpop.f32.mrb[0].mxu0
      %v4707 = vadd.f32 0.0, %v4706
      %v4708 = vpop.f32.mrb[0].mxu0
      %4709 = vmatprep.mubr.bf16.mxu0 0
      %4710 = vmatmul.mubr.bf16.gmra.mrb[0].mxu0 %v4644
      %v4711 = vpop.f32.mrb[0].mxu0
      %v4712 = vadd.f32 0.0, %v4711
      %v4713 = vpop.f32.mrb[0].mxu0
      %v4714 = vpop.f32.mrb[0].mxu0
      %v4715 = vadd.f32 0.0, %v4714
      %v4716 = vpop.f32.mrb[0].mxu0
      %4717 = vmatprep.mubr.bf16.mxu0 0
      %4718 = vmatmul.mubr.bf16.gmra.mrb[0].mxu0 %v4647
      %v4719 = vpop.f32.mrb[0].mxu0
      %v4720 = vadd.f32 0.0, %v4719
      %v4721 = vpop.f32.mrb[0].mxu0
      %v4722 = vpop.f32.mrb[0].mxu0
      %v4723 = vadd.f32 0.0, %v4722
      %v4724 = vpop.f32.mrb[0].mxu0
      %4725 = vdwg.mxu0
      %v4726 = vsel %vm871, %v4696, -inf
      %4727 = vmax.xlane.f32.xlu0 %v4726
      %v4728 = vpop.xlane.xlu0 %4727
      %v4729 = vsel %vm871, %v4699, -inf
      %4730 = vmax.xlane.f32.xlu0 %v4729
      %v4731 = vpop.xlane.xlu0 %4730
      %v4732 = vsel %vm871, %v4704, -inf
      %4733 = vmax.xlane.f32.xlu0 %v4732
      %v4734 = vpop.xlane.xlu0 %4733
      %v4735 = vsel %vm871, %v4707, -inf
      %4736 = vmax.xlane.f32.xlu0 %v4735
      %v4737 = vpop.xlane.xlu0 %4736
      %v4738 = vsel %vm871, %v4712, -inf
      %4739 = vmax.xlane.f32.xlu0 %v4738
      %v4740 = vpop.xlane.xlu0 %4739
      %v4741 = vsel %vm871, %v4715, -inf
      %4742 = vmax.xlane.f32.xlu0 %v4741
      %v4743 = vpop.xlane.xlu0 %4742
      %v4744 = vsel %vm871, %v4720, -inf
      %4745 = vmax.xlane.f32.xlu0 %v4744
      %v4746 = vpop.xlane.xlu0 %4745
      %v4747 = vsel %vm871, %v4723, -inf
      %4748 = vmax.xlane.f32.xlu0 %v4747
      %v4749 = vpop.xlane.xlu0 %4748
      %v4750 = vsub.f32 %v4696, %v4728
      %v4751 = vsub.f32 %v4699, %v4731
      %v4752 = vsub.f32 %v4704, %v4734
      %v4753 = vsub.f32 %v4707, %v4737
      %v4754 = vsub.f32 %v4712, %v4740
      %v4755 = vsub.f32 %v4715, %v4743
      %v4756 = vsub.f32 %v4720, %v4746
      %v4757 = vsub.f32 %v4723, %v4749
      %v4758 = vmul.f32 %v4750, 1.442695
      %v4759 = vpow.pop %v4758
      %v4760 = vmul.f32 %v4751, 1.442695
      %v4761 = vpow.pop %v4760
      %v4762 = vmul.f32 %v4752, 1.442695
      %v4763 = vpow.pop %v4762
      %v4764 = vmul.f32 %v4753, 1.442695
      %v4765 = vpow.pop %v4764
      %v4766 = vmul.f32 %v4754, 1.442695
      %v4767 = vpow.pop %v4766
      %v4768 = vmul.f32 %v4755, 1.442695
      %v4769 = vpow.pop %v4768
      %v4770 = vmul.f32 %v4756, 1.442695
      %v4771 = vpow.pop %v4770
      %v4772 = vmul.f32 %v4757, 1.442695
      %v4773 = vpow.pop %v4772
      %v4774 = vsel %vm871, %v4759, 0.0
      %4775 = vadd.xlane.f32.xlu0 %v4774
      %v4776 = vpop.xlane.xlu0 %4775
      %v4777 = vsel %vm871, %v4761, 0.0
      %4778 = vadd.xlane.f32.xlu0 %v4777
      %v4779 = vpop.xlane.xlu0 %4778
      %v4780 = vsel %vm871, %v4763, 0.0
      %4781 = vadd.xlane.f32.xlu0 %v4780
      %v4782 = vpop.xlane.xlu0 %4781
      %v4783 = vsel %vm871, %v4765, 0.0
      %4784 = vadd.xlane.f32.xlu0 %v4783
      %v4785 = vpop.xlane.xlu0 %4784
      %v4786 = vsel %vm871, %v4767, 0.0
      %4787 = vadd.xlane.f32.xlu0 %v4786
      %v4788 = vpop.xlane.xlu0 %4787
      %v4789 = vsel %vm871, %v4769, 0.0
      %4790 = vadd.xlane.f32.xlu0 %v4789
      %v4791 = vpop.xlane.xlu0 %4790
      %v4792 = vsel %vm871, %v4771, 0.0
      %4793 = vadd.xlane.f32.xlu0 %v4792
      %v4794 = vpop.xlane.xlu0 %4793
      %v4795 = vsel %vm871, %v4773, 0.0
      %4796 = vadd.xlane.f32.xlu0 %v4795
      %v4797 = vpop.xlane.xlu0 %4796
      %v4798 = vrcp.pop %v4776
      %v4799 = vrcp.pop %v4779
      %v4800 = vrcp.pop %v4782
      %v4801 = vrcp.pop %v4785
      %v4802 = vrcp.pop %v4788
      %v4803 = vrcp.pop %v4791
      %v4804 = vrcp.pop %v4794
      %v4805 = vrcp.pop %v4797
      %v4806 = vmul.f32 %v4759, %v4798
      %v4807 = vmul.f32 %v4761, %v4799
      %v4808 = vmul.f32 %v4763, %v4800
      %v4809 = vmul.f32 %v4765, %v4801
      %v4810 = vmul.f32 %v4767, %v4802
      %v4811 = vmul.f32 %v4769, %v4803
      %v4812 = vmul.f32 %v4771, %v4804
      %v4813 = vmul.f32 %v4773, %v4805
      %v4814 = vpack.c.bf16 %v4807, %v4806
      %v4815 = vpack.c.bf16 %v4809, %v4808
      %v4816 = vpack.c.bf16 %v4811, %v4810
      %v4817 = vpack.c.bf16 %v4813, %v4812
      %4818 = vrot.lane.b32.xlu0 %v4621, 64
      %v4819 = vpop.permute.xlu0 %4818
      %4820 = vrot.lane.b32.xlu0 %v4622, 64
      %v4821 = vpop.permute.xlu0 %4820
      %4822 = vrot.lane.b32.xlu0 %v4623, 64
      %v4823 = vpop.permute.xlu0 %4822
      %4824 = vrot.lane.b32.xlu0 %v4624, 64
      %v4825 = vpop.permute.xlu0 %4824
      %v4831 = vsel %vm871, %v4814, 0
      %v4834 = vsel %vm871, %v4815, 0
      %v4837 = vsel %vm871, %v4816, 0
      %v4840 = vsel %vm871, %v4817, 0
      %4842 = vmatprep.subr.bf16.mxu0 0
      %4843 = vmatpush1.bf16.msra.mxu0 %v4819
      %4844 = vmatprep.subr.bf16.mxu0 0
      %4845 = vmatpush1.bf16.msra.mxu0 %v4821
      %4846 = vmatprep.subr.bf16.mxu0 0
      %4847 = vmatpush1.bf16.msra.mxu0 %v4823
      %4848 = vmatprep.subr.bf16.mxu0 0
      %4849 = vmatpush1.bf16.msra.mxu0 %v4825
      %4850 = vmatprep.subr.bf16.mxu0 0
      %4851 = vmatpush1.bf16.msra.mxu0 0
      %4852 = vmatprep.subr.bf16.mxu0 0
      %4853 = vmatpush1.bf16.msra.mxu0 0
      %4854 = vmatprep.subr.bf16.mxu0 0
      %4855 = vmatpush1.bf16.msra.mxu0 0
      %4856 = vmatprep.subr.bf16.mxu0 0
      %4857 = vmatpush1.bf16.msra.mxu0 0
      %4858 = vmatprep.subr.bf16.mxu0 0
      %4859 = vmatpush1.bf16.msra.mxu0 0
      %4860 = vmatprep.subr.bf16.mxu0 0
      %4861 = vmatpush1.bf16.msra.mxu0 0
      %4862 = vmatprep.subr.bf16.mxu0 0
      %4863 = vmatpush1.bf16.msra.mxu0 0
      %4864 = vmatprep.subr.bf16.mxu0 0
      %4865 = vmatpush1.bf16.msra.mxu0 0
      %4866 = vmatprep.subr.bf16.mxu0 0
      %4867 = vmatpush1.bf16.msra.mxu0 0
      %4868 = vmatprep.subr.bf16.mxu0 0
      %4869 = vmatpush1.bf16.msra.mxu0 0
      %4870 = vmatprep.subr.bf16.mxu0 0
      %4871 = vmatpush1.bf16.msra.mxu0 0
      %4872 = vmatprep.subr.bf16.mxu0 0
      %4873 = vmatpush1.bf16.msra.mxu0 0
      %4874 = vmatprep.mubr.bf16.mxu0 0
      %4875 = vmatmul.mubr.bf16.gmra.mrb[0].mxu0 %v4831
      %v4876 = vpop.f32.mrb[0].mxu0
      %v4877 = vadd.f32 0.0, %v4876
      %v4878 = vpop.f32.mrb[0].mxu0
      %v4879 = vpop.f32.mrb[0].mxu0
      %v4880 = vadd.f32 0.0, %v4879
      %v4881 = vpop.f32.mrb[0].mxu0
      %4882 = vmatprep.mubr.bf16.mxu0 0
      %4883 = vmatmul.mubr.bf16.gmra.mrb[0].mxu0 %v4834
      %v4884 = vpop.f32.mrb[0].mxu0
      %v4885 = vadd.f32 0.0, %v4884
      %v4886 = vpop.f32.mrb[0].mxu0
      %v4887 = vpop.f32.mrb[0].mxu0
      %v4888 = vadd.f32 0.0, %v4887
      %v4889 = vpop.f32.mrb[0].mxu0
      %4890 = vmatprep.mubr.bf16.mxu0 0
      %4891 = vmatmul.mubr.bf16.gmra.mrb[0].mxu0 %v4837
      %v4892 = vpop.f32.mrb[0].mxu0
      %v4893 = vadd.f32 0.0, %v4892
      %v4894 = vpop.f32.mrb[0].mxu0
      %v4895 = vpop.f32.mrb[0].mxu0
      %v4896 = vadd.f32 0.0, %v4895
      %v4897 = vpop.f32.mrb[0].mxu0
      %4898 = vmatprep.mubr.bf16.mxu0 0
      %4899 = vmatmul.mubr.bf16.gmra.mrb[0].mxu0 %v4840
      %v4900 = vpop.f32.mrb[0].mxu0
      %v4901 = vadd.f32 0.0, %v4900
      %v4902 = vpop.f32.mrb[0].mxu0
      %v4903 = vpop.f32.mrb[0].mxu0
      %v4904 = vadd.f32 0.0, %v4903
      %v4905 = vpop.f32.mrb[0].mxu0
      %4906 = vdwg.mxu0
      %v4907 = vpack.c.bf16 %v4880, %v4877
      %v4908 = vpack.c.bf16 %v4888, %v4885
      %v4909 = vpack.c.bf16 %v4896, %v4893
      %v4910 = vpack.c.bf16 %v4904, %v4901
      %v4912 = vsel %vm1134, %v4907, 0
      %v4915 = vsel %vm1134, %v4908, 0
      %v4918 = vsel %vm1134, %v4909, 0
      %v4921 = vsel %vm1134, %v4910, 0
      %4923 = vmatprep.subr.bf16.mxu0 0
      %4924 = vmatpush1.bf16.msra.mxu0 %v2546
      %4925 = vmatprep.subr.bf16.mxu0 0
      %4926 = vmatpush1.bf16.msra.mxu0 %v2547
      %4927 = vmatprep.subr.bf16.mxu0 0
      %4928 = vmatpush1.bf16.msra.mxu0 0
      %4929 = vmatprep.subr.bf16.mxu0 0
      %4930 = vmatpush1.bf16.msra.mxu0 0
      %4931 = vmatprep.subr.bf16.mxu0 0
      %4932 = vmatpush1.bf16.msra.mxu0 0
      %4933 = vmatprep.subr.bf16.mxu0 0
      %4934 = vmatpush1.bf16.msra.mxu0 0
      %4935 = vmatprep.subr.bf16.mxu0 0
      %4936 = vmatpush1.bf16.msra.mxu0 0
      %4937 = vmatprep.subr.bf16.mxu0 0
      %4938 = vmatpush1.bf16.msra.mxu0 0
      %4939 = vmatprep.subr.bf16.mxu0 0
      %4940 = vmatpush1.bf16.msra.mxu0 0
      %4941 = vmatprep.subr.bf16.mxu0 0
      %4942 = vmatpush1.bf16.msra.mxu0 0
      %4943 = vmatprep.subr.bf16.mxu0 0
      %4944 = vmatpush1.bf16.msra.mxu0 0
      %4945 = vmatprep.subr.bf16.mxu0 0
      %4946 = vmatpush1.bf16.msra.mxu0 0
      %4947 = vmatprep.subr.bf16.mxu0 0
      %4948 = vmatpush1.bf16.msra.mxu0 0
      %4949 = vmatprep.subr.bf16.mxu0 0
      %4950 = vmatpush1.bf16.msra.mxu0 0
      %4951 = vmatprep.subr.bf16.mxu0 0
      %4952 = vmatpush1.bf16.msra.mxu0 0
      %4953 = vmatprep.subr.bf16.mxu0 0
      %4954 = vmatpush1.bf16.msra.mxu0 0
      %4955 = vmatprep.mubr.bf16.mxu0 0
      %4956 = vmatmul.mubr.bf16.gmra.mrb[0].mxu0 %v4912
      %v4957 = vpop.f32.mrb[0].mxu0
      %v4958 = vadd.f32 0.0, %v4957
      %v4959 = vpop.f32.mrb[0].mxu0
      %v4960 = vpop.f32.mrb[0].mxu0
      %v4961 = vadd.f32 0.0, %v4960
      %v4962 = vpop.f32.mrb[0].mxu0
      %4963 = vmatprep.mubr.bf16.mxu0 0
      %4964 = vmatmul.mubr.bf16.gmra.mrb[0].mxu0 %v4915
      %v4965 = vpop.f32.mrb[0].mxu0
      %v4966 = vadd.f32 0.0, %v4965
      %v4967 = vpop.f32.mrb[0].mxu0
      %v4968 = vpop.f32.mrb[0].mxu0
      %v4969 = vadd.f32 0.0, %v4968
      %v4970 = vpop.f32.mrb[0].mxu0
      %4971 = vmatprep.mubr.bf16.mxu0 0
      %4972 = vmatmul.mubr.bf16.gmra.mrb[0].mxu0 %v4918
      %v4973 = vpop.f32.mrb[0].mxu0
      %v4974 = vadd.f32 0.0, %v4973
      %v4975 = vpop.f32.mrb[0].mxu0
      %v4976 = vpop.f32.mrb[0].mxu0
      %v4977 = vadd.f32 0.0, %v4976
      %v4978 = vpop.f32.mrb[0].mxu0
      %4979 = vmatprep.mubr.bf16.mxu0 0
      %4980 = vmatmul.mubr.bf16.gmra.mrb[0].mxu0 %v4921
      %v4981 = vpop.f32.mrb[0].mxu0
      %v4982 = vadd.f32 0.0, %v4981
      %v4983 = vpop.f32.mrb[0].mxu0
      %v4984 = vpop.f32.mrb[0].mxu0
      %v4985 = vadd.f32 0.0, %v4984
      %v4986 = vpop.f32.mrb[0].mxu0
      %4987 = vdwg.mxu0
      %v4988 = vadd.f32 %v4412, %v4958
      %v4989 = vadd.f32 %v4413, %v4961
      %v4990 = vadd.f32 %v4414, %v4966
      %v4991 = vadd.f32 %v4415, %v4969
      %v4992 = vadd.f32 %v4416, %v4974
      %v4993 = vadd.f32 %v4417, %v4977
      %v4994 = vadd.f32 %v4418, %v4982
      %v4995 = vadd.f32 %v4419, %v4985
      %v4996 = vadd.f32 %v4988, %v2641
      %v4997 = vadd.f32 %v4989, %v2641
      %v4998 = vadd.f32 %v4990, %v2641
      %v4999 = vadd.f32 %v4991, %v2641
      %v5000 = vadd.f32 %v4992, %v2641
      %v5001 = vadd.f32 %v4993, %v2641
      %v5002 = vadd.f32 %v4994, %v2641
      %v5003 = vadd.f32 %v4995, %v2641
      %v5004 = vsel %vm871, %v4996, 0.0
      %5005 = vadd.xlane.f32.xlu0 %v5004
      %v5006 = vpop.xlane.xlu0 %5005
      %v5007 = vsel %vm871, %v4997, 0.0
      %5008 = vadd.xlane.f32.xlu0 %v5007
      %v5009 = vpop.xlane.xlu0 %5008
      %v5010 = vsel %vm871, %v4998, 0.0
      %5011 = vadd.xlane.f32.xlu0 %v5010
      %v5012 = vpop.xlane.xlu0 %5011
      %v5013 = vsel %vm871, %v4999, 0.0
      %5014 = vadd.xlane.f32.xlu0 %v5013
      %v5015 = vpop.xlane.xlu0 %5014
      %v5016 = vsel %vm871, %v5000, 0.0
      %5017 = vadd.xlane.f32.xlu0 %v5016
      %v5018 = vpop.xlane.xlu0 %5017
      %v5019 = vsel %vm871, %v5001, 0.0
      %5020 = vadd.xlane.f32.xlu0 %v5019
      %v5021 = vpop.xlane.xlu0 %5020
      %v5022 = vsel %vm871, %v5002, 0.0
      %5023 = vadd.xlane.f32.xlu0 %v5022
      %v5024 = vpop.xlane.xlu0 %5023
      %v5025 = vsel %vm871, %v5003, 0.0
      %5026 = vadd.xlane.f32.xlu0 %v5025
      %v5027 = vpop.xlane.xlu0 %5026
      %v5028 = vmul.f32 %v5006, %v896
      %v5029 = vmul.f32 %v5009, %v896
      %v5030 = vmul.f32 %v5012, %v896
      %v5031 = vmul.f32 %v5015, %v896
      %v5032 = vmul.f32 %v5018, %v896
      %v5033 = vmul.f32 %v5021, %v896
      %v5034 = vmul.f32 %v5024, %v896
      %v5035 = vmul.f32 %v5027, %v896
      %v5036 = vsub.f32 %v4996, %v5028
      %v5037 = vsub.f32 %v4997, %v5029
      %v5038 = vsub.f32 %v4998, %v5030
      %v5039 = vsub.f32 %v4999, %v5031
      %v5040 = vsub.f32 %v5000, %v5032
      %v5041 = vsub.f32 %v5001, %v5033
      %v5042 = vsub.f32 %v5002, %v5034
      %v5043 = vsub.f32 %v5003, %v5035
      %v5044 = vmul.f32 %v5036, %v5036
      %v5045 = vmul.f32 %v5037, %v5037
      %v5046 = vmul.f32 %v5038, %v5038
      %v5047 = vmul.f32 %v5039, %v5039
      %v5048 = vmul.f32 %v5040, %v5040
      %v5049 = vmul.f32 %v5041, %v5041
      %v5050 = vmul.f32 %v5042, %v5042
      %v5051 = vmul.f32 %v5043, %v5043
      %v5052 = vsel %vm871, %v5044, 0.0
      %5053 = vadd.xlane.f32.xlu0 %v5052
      %v5054 = vpop.xlane.xlu0 %5053
      %v5055 = vsel %vm871, %v5045, 0.0
      %5056 = vadd.xlane.f32.xlu0 %v5055
      %v5057 = vpop.xlane.xlu0 %5056
      %v5058 = vsel %vm871, %v5046, 0.0
      %5059 = vadd.xlane.f32.xlu0 %v5058
      %v5060 = vpop.xlane.xlu0 %5059
      %v5061 = vsel %vm871, %v5047, 0.0
      %5062 = vadd.xlane.f32.xlu0 %v5061
      %v5063 = vpop.xlane.xlu0 %5062
      %v5064 = vsel %vm871, %v5048, 0.0
      %5065 = vadd.xlane.f32.xlu0 %v5064
      %v5066 = vpop.xlane.xlu0 %5065
      %v5067 = vsel %vm871, %v5049, 0.0
      %5068 = vadd.xlane.f32.xlu0 %v5067
      %v5069 = vpop.xlane.xlu0 %5068
      %v5070 = vsel %vm871, %v5050, 0.0
      %5071 = vadd.xlane.f32.xlu0 %v5070
      %v5072 = vpop.xlane.xlu0 %5071
      %v5073 = vsel %vm871, %v5051, 0.0
      %5074 = vadd.xlane.f32.xlu0 %v5073
      %v5075 = vpop.xlane.xlu0 %5074
      %v5076 = vmul.f32 %v5054, %v896
      %v5077 = vmul.f32 %v5057, %v896
      %v5078 = vmul.f32 %v5060, %v896
      %v5079 = vmul.f32 %v5063, %v896
      %v5080 = vmul.f32 %v5066, %v896
      %v5081 = vmul.f32 %v5069, %v896
      %v5082 = vmul.f32 %v5072, %v896
      %v5083 = vmul.f32 %v5075, %v896
      %v5084 = vadd.f32 %v5076, 1e-05
      %v5085 = vadd.f32 %v5077, 1e-05
      %v5086 = vadd.f32 %v5078, 1e-05
      %v5087 = vadd.f32 %v5079, 1e-05
      %v5088 = vadd.f32 %v5080, 1e-05
      %v5089 = vadd.f32 %v5081, 1e-05
      %v5090 = vadd.f32 %v5082, 1e-05
      %v5091 = vadd.f32 %v5083, 1e-05
      %v5092 = vrsqrt.pop %v5084
      %v5093 = vrsqrt.pop %v5085
      %v5094 = vrsqrt.pop %v5086
      %v5095 = vrsqrt.pop %v5087
      %v5096 = vrsqrt.pop %v5088
      %v5097 = vrsqrt.pop %v5089
      %v5098 = vrsqrt.pop %v5090
      %v5099 = vrsqrt.pop %v5091
      %v5100 = vmul.f32 %v5036, %v5092
      %v5101 = vmul.f32 %v5037, %v5093
      %v5102 = vmul.f32 %v5038, %v5094
      %v5103 = vmul.f32 %v5039, %v5095
      %v5104 = vmul.f32 %v5040, %v5096
      %v5105 = vmul.f32 %v5041, %v5097
      %v5106 = vmul.f32 %v5042, %v5098
      %v5107 = vmul.f32 %v5043, %v5099
      %v5108 = vmul.f32 %v5100, %v2763
      %v5109 = vmul.f32 %v5101, %v2763
      %v5110 = vmul.f32 %v5102, %v2763
      %v5111 = vmul.f32 %v5103, %v2763
      %v5112 = vmul.f32 %v5104, %v2763
      %v5113 = vmul.f32 %v5105, %v2763
      %v5114 = vmul.f32 %v5106, %v2763
      %v5115 = vmul.f32 %v5107, %v2763
      %v5116 = vadd.f32 %v5108, %v2777
      %v5117 = vadd.f32 %v5109, %v2777
      %v5118 = vadd.f32 %v5110, %v2777
      %v5119 = vadd.f32 %v5111, %v2777
      %v5120 = vadd.f32 %v5112, %v2777
      %v5121 = vadd.f32 %v5113, %v2777
      %v5122 = vadd.f32 %v5114, %v2777
      %v5123 = vadd.f32 %v5115, %v2777
      %v5124 = vpack.c.bf16 %v5117, %v5116
      %v5125 = vpack.c.bf16 %v5119, %v5118
      %v5126 = vpack.c.bf16 %v5121, %v5120
      %v5127 = vpack.c.bf16 %v5123, %v5122
      %v5129 = vsel %vm871, %v5124, 0
      %v5132 = vsel %vm871, %v5125, 0
      %v5135 = vsel %vm871, %v5126, 0
      %v5138 = vsel %vm871, %v5127, 0
      %5140 = vmatprep.subr.bf16.mxu0 0
      %5141 = vmatpush1.bf16.msra.mxu0 %v2824
      %5142 = vmatprep.subr.bf16.mxu0 0
      %5143 = vmatpush1.bf16.msra.mxu0 %v2825
      %5144 = vmatprep.subr.bf16.mxu0 0
      %5145 = vmatpush1.bf16.msra.mxu0 %v2826
      %5146 = vmatprep.subr.bf16.mxu0 0
      %5147 = vmatpush1.bf16.msra.mxu0 %v2827
      %5148 = vmatprep.subr.bf16.mxu0 0
      %5149 = vmatpush1.bf16.msra.mxu0 0
      %5150 = vmatprep.subr.bf16.mxu0 0
      %5151 = vmatpush1.bf16.msra.mxu0 0
      %5152 = vmatprep.subr.bf16.mxu0 0
      %5153 = vmatpush1.bf16.msra.mxu0 0
      %5154 = vmatprep.subr.bf16.mxu0 0
      %5155 = vmatpush1.bf16.msra.mxu0 0
      %5156 = vmatprep.subr.bf16.mxu0 0
      %5157 = vmatpush1.bf16.msra.mxu0 0
      %5158 = vmatprep.subr.bf16.mxu0 0
      %5159 = vmatpush1.bf16.msra.mxu0 0
      %5160 = vmatprep.subr.bf16.mxu0 0
      %5161 = vmatpush1.bf16.msra.mxu0 0
      %5162 = vmatprep.subr.bf16.mxu0 0
      %5163 = vmatpush1.bf16.msra.mxu0 0
      %5164 = vmatprep.subr.bf16.mxu0 0
      %5165 = vmatpush1.bf16.msra.mxu0 0
      %5166 = vmatprep.subr.bf16.mxu0 0
      %5167 = vmatpush1.bf16.msra.mxu0 0
      %5168 = vmatprep.subr.bf16.mxu0 0
      %5169 = vmatpush1.bf16.msra.mxu0 0
      %5170 = vmatprep.subr.bf16.mxu0 0
      %5171 = vmatpush1.bf16.msra.mxu0 0
      %5172 = vmatprep.mubr.bf16.mxu0 0
      %5173 = vmatmul.mubr.bf16.gmra.mrb[0].mxu0 %v5129
      %v5174 = vpop.f32.mrb[0].mxu0
      %v5175 = vadd.f32 %v2806, %v5174
      %v5176 = vpop.f32.mrb[0].mxu0
      %v5177 = vpop.f32.mrb[0].mxu0
      %v5178 = vadd.f32 %v2806, %v5177
      %v5179 = vpop.f32.mrb[0].mxu0
      %5180 = vmatprep.mubr.bf16.mxu0 0
      %5181 = vmatmul.mubr.bf16.gmra.mrb[0].mxu0 %v5132
      %v5182 = vpop.f32.mrb[0].mxu0
      %v5183 = vadd.f32 %v2806, %v5182
      %v5184 = vpop.f32.mrb[0].mxu0
      %v5185 = vpop.f32.mrb[0].mxu0
      %v5186 = vadd.f32 %v2806, %v5185
      %v5187 = vpop.f32.mrb[0].mxu0
      %5188 = vmatprep.mubr.bf16.mxu0 0
      %5189 = vmatmul.mubr.bf16.gmra.mrb[0].mxu0 %v5135
      %v5190 = vpop.f32.mrb[0].mxu0
      %v5191 = vadd.f32 %v2806, %v5190
      %v5192 = vpop.f32.mrb[0].mxu0
      %v5193 = vpop.f32.mrb[0].mxu0
      %v5194 = vadd.f32 %v2806, %v5193
      %v5195 = vpop.f32.mrb[0].mxu0
      %5196 = vmatprep.mubr.bf16.mxu0 0
      %5197 = vmatmul.mubr.bf16.gmra.mrb[0].mxu0 %v5138
      %v5198 = vpop.f32.mrb[0].mxu0
      %v5199 = vadd.f32 %v2806, %v5198
      %v5200 = vpop.f32.mrb[0].mxu0
      %v5201 = vpop.f32.mrb[0].mxu0
      %v5202 = vadd.f32 %v2806, %v5201
      %v5203 = vpop.f32.mrb[0].mxu0
      %5204 = vdwg.mxu0
      %v5205 = vxor.u32 %v5175, 2147483648
      %v5206 = vxor.u32 %v5178, 2147483648
      %v5207 = vxor.u32 %v5183, 2147483648
      %v5208 = vxor.u32 %v5186, 2147483648
      %v5209 = vxor.u32 %v5191, 2147483648
      %v5210 = vxor.u32 %v5194, 2147483648
      %v5211 = vxor.u32 %v5199, 2147483648
      %v5212 = vxor.u32 %v5202, 2147483648
      %v5213 = vmul.f32 %v5205, 1.442695
      %v5214 = vpow.pop %v5213
      %v5215 = vmul.f32 %v5206, 1.442695
      %v5216 = vpow.pop %v5215
      %v5217 = vmul.f32 %v5207, 1.442695
      %v5218 = vpow.pop %v5217
      %v5219 = vmul.f32 %v5208, 1.442695
      %v5220 = vpow.pop %v5219
      %v5221 = vmul.f32 %v5209, 1.442695
      %v5222 = vpow.pop %v5221
      %v5223 = vmul.f32 %v5210, 1.442695
      %v5224 = vpow.pop %v5223
      %v5225 = vmul.f32 %v5211, 1.442695
      %v5226 = vpow.pop %v5225
      %v5227 = vmul.f32 %v5212, 1.442695
      %v5228 = vpow.pop %v5227
      %v5229 = vadd.f32 %v5214, 1.0
      %v5230 = vadd.f32 %v5216, 1.0
      %v5231 = vadd.f32 %v5218, 1.0
      %v5232 = vadd.f32 %v5220, 1.0
      %v5233 = vadd.f32 %v5222, 1.0
      %v5234 = vadd.f32 %v5224, 1.0
      %v5235 = vadd.f32 %v5226, 1.0
      %v5236 = vadd.f32 %v5228, 1.0
      %v5237 = vrcp.pop %v5229
      %v5238 = vmul.f32 1.0, %v5237
      %v5239 = vrcp.pop %v5230
      %v5240 = vmul.f32 1.0, %v5239
      %v5241 = vrcp.pop %v5231
      %v5242 = vmul.f32 1.0, %v5241
      %v5243 = vrcp.pop %v5232
      %v5244 = vmul.f32 1.0, %v5243
      %v5245 = vrcp.pop %v5233
      %v5246 = vmul.f32 1.0, %v5245
      %v5247 = vrcp.pop %v5234
      %v5248 = vmul.f32 1.0, %v5247
      %v5249 = vrcp.pop %v5235
      %v5250 = vmul.f32 1.0, %v5249
      %v5251 = vrcp.pop %v5236
      %v5252 = vmul.f32 1.0, %v5251
      %v5253 = vmul.f32 %v5175, %v5238
      %v5254 = vmul.f32 %v5178, %v5240
      %v5255 = vmul.f32 %v5183, %v5242
      %v5256 = vmul.f32 %v5186, %v5244
      %v5257 = vmul.f32 %v5191, %v5246
      %v5258 = vmul.f32 %v5194, %v5248
      %v5259 = vmul.f32 %v5199, %v5250
      %v5260 = vmul.f32 %v5202, %v5252
      %v5261 = vpack.c.bf16 %v5254, %v5253
      %v5262 = vpack.c.bf16 %v5256, %v5255
      %v5263 = vpack.c.bf16 %v5258, %v5257
      %v5264 = vpack.c.bf16 %v5260, %v5259
      %5265 = vmatprep.subr.bf16.mxu0 0
      %5266 = vmatpush1.bf16.msra.mxu0 %v3018
      %5267 = vmatprep.subr.bf16.mxu0 0
      %5268 = vmatpush1.bf16.msra.mxu0 %v3019
      %5269 = vmatprep.subr.bf16.mxu0 0
      %5270 = vmatpush1.bf16.msra.mxu0 %v3020
      %5271 = vmatprep.subr.bf16.mxu0 0
      %5272 = vmatpush1.bf16.msra.mxu0 %v3021
      %5273 = vmatprep.subr.bf16.mxu0 0
      %5274 = vmatpush1.bf16.msra.mxu0 %v3022
      %5275 = vmatprep.subr.bf16.mxu0 0
      %5276 = vmatpush1.bf16.msra.mxu0 %v3023
      %5277 = vmatprep.subr.bf16.mxu0 0
      %5278 = vmatpush1.bf16.msra.mxu0 %v3024
      %5279 = vmatprep.subr.bf16.mxu0 0
      %5280 = vmatpush1.bf16.msra.mxu0 %v3025
      %5281 = vmatprep.subr.bf16.mxu0 0
      %5282 = vmatpush1.bf16.msra.mxu0 0
      %5283 = vmatprep.subr.bf16.mxu0 0
      %5284 = vmatpush1.bf16.msra.mxu0 0
      %5285 = vmatprep.subr.bf16.mxu0 0
      %5286 = vmatpush1.bf16.msra.mxu0 0
      %5287 = vmatprep.subr.bf16.mxu0 0
      %5288 = vmatpush1.bf16.msra.mxu0 0
      %5289 = vmatprep.subr.bf16.mxu0 0
      %5290 = vmatpush1.bf16.msra.mxu0 0
      %5291 = vmatprep.subr.bf16.mxu0 0
      %5292 = vmatpush1.bf16.msra.mxu0 0
      %5293 = vmatprep.subr.bf16.mxu0 0
      %5294 = vmatpush1.bf16.msra.mxu0 0
      %5295 = vmatprep.subr.bf16.mxu0 0
      %5296 = vmatpush1.bf16.msra.mxu0 0
      %5297 = vmatprep.mubr.bf16.mxu0 0
      %5298 = vmatmul.mubr.bf16.gmra.mrb[0].mxu0 %v5261
      %v5299 = vpop.f32.mrb[0].mxu0
      %v5300 = vadd.f32 0.0, %v5299
      %v5301 = vpop.f32.mrb[0].mxu0
      %v5302 = vpop.f32.mrb[0].mxu0
      %v5303 = vadd.f32 0.0, %v5302
      %v5304 = vpop.f32.mrb[0].mxu0
      %5305 = vmatprep.mubr.bf16.mxu0 0
      %5306 = vmatmul.mubr.bf16.gmra.mrb[0].mxu0 %v5262
      %v5307 = vpop.f32.mrb[0].mxu0
      %v5308 = vadd.f32 0.0, %v5307
      %v5309 = vpop.f32.mrb[0].mxu0
      %v5310 = vpop.f32.mrb[0].mxu0
      %v5311 = vadd.f32 0.0, %v5310
      %v5312 = vpop.f32.mrb[0].mxu0
      %5313 = vmatprep.mubr.bf16.mxu0 0
      %5314 = vmatmul.mubr.bf16.gmra.mrb[0].mxu0 %v5263
      %v5315 = vpop.f32.mrb[0].mxu0
      %v5316 = vadd.f32 0.0, %v5315
      %v5317 = vpop.f32.mrb[0].mxu0
      %v5318 = vpop.f32.mrb[0].mxu0
      %v5319 = vadd.f32 0.0, %v5318
      %v5320 = vpop.f32.mrb[0].mxu0
      %5321 = vmatprep.mubr.bf16.mxu0 0
      %5322 = vmatmul.mubr.bf16.gmra.mrb[0].mxu0 %v5264
      %v5323 = vpop.f32.mrb[0].mxu0
      %v5324 = vadd.f32 0.0, %v5323
      %v5325 = vpop.f32.mrb[0].mxu0
      %v5326 = vpop.f32.mrb[0].mxu0
      %v5327 = vadd.f32 0.0, %v5326
      %v5328 = vpop.f32.mrb[0].mxu0
      %5329 = vdwg.mxu0
      %v5330 = vadd.f32 %v4996, %v5300
      %v5331 = vadd.f32 %v4997, %v5303
      %v5332 = vadd.f32 %v4998, %v5308
      %v5333 = vadd.f32 %v4999, %v5311
      %v5334 = vadd.f32 %v5000, %v5316
      %v5335 = vadd.f32 %v5001, %v5319
      %v5336 = vadd.f32 %v5002, %v5324
      %v5337 = vadd.f32 %v5003, %v5327
      %v5338 = vadd.f32 %v5330, %v3113
      %v5339 = vadd.f32 %v5331, %v3113
      %v5340 = vadd.f32 %v5332, %v3113
      %v5341 = vadd.f32 %v5333, %v3113
      %v5342 = vadd.f32 %v5334, %v3113
      %v5343 = vadd.f32 %v5335, %v3113
      %v5344 = vadd.f32 %v5336, %v3113
      %v5345 = vadd.f32 %v5337, %v3113
      %v5346 = vpack.c.bf16 %v5339, %v5338
      %v5347 = vpack.c.bf16 %v5341, %v5340
      %v5348 = vpack.c.bf16 %v5343, %v5342
      %v5349 = vpack.c.bf16 %v5345, %v5344
      %v5351 = vsel %vm871, %v5346, 0
      %v5354 = vsel %vm871, %v5347, 0
      %v5357 = vsel %vm871, %v5348, 0
      %v5360 = vsel %vm871, %v5349, 0
      %5362 = vmatprep.subr.bf16.mxu0 0
      %5363 = vmatpush1.bf16.xpose.msra.mxu0 %v5351
      %5364 = vmatprep.subr.bf16.mxu0 0
      %5365 = vmatpush1.bf16.xpose.msra.mxu0 %v5354
      %5366 = vmatprep.subr.bf16.mxu0 0
      %5367 = vmatpush1.bf16.xpose.msra.mxu0 %v5357
      %5368 = vmatprep.subr.bf16.mxu0 0
      %5369 = vmatpush1.bf16.xpose.msra.mxu0 %v5360
      %5370 = vmatprep.subr.bf16.mxu0 0
      %5371 = vmatpush1.bf16.xpose.msra.mxu0 0
      %5372 = vmatprep.subr.bf16.mxu0 0
      %5373 = vmatpush1.bf16.xpose.msra.mxu0 0
      %5374 = vmatprep.subr.bf16.mxu0 0
      %5375 = vmatpush1.bf16.xpose.msra.mxu0 0
      %5376 = vmatprep.subr.bf16.mxu0 0
      %5377 = vmatpush1.bf16.xpose.msra.mxu0 0
      %5378 = vmatprep.subr.bf16.mxu0 0
      %5379 = vmatpush1.bf16.xpose.msra.mxu0 0
      %5380 = vmatprep.subr.bf16.mxu0 0
      %5381 = vmatpush1.bf16.xpose.msra.mxu0 0
      %5382 = vmatprep.subr.bf16.mxu0 0
      %5383 = vmatpush1.bf16.xpose.msra.mxu0 0
      %5384 = vmatprep.subr.bf16.mxu0 0
      %5385 = vmatpush1.bf16.xpose.msra.mxu0 0
      %5386 = vmatprep.subr.bf16.mxu0 0
      %5387 = vmatpush1.bf16.xpose.msra.mxu0 0
      %5388 = vmatprep.subr.bf16.mxu0 0
      %5389 = vmatpush1.bf16.xpose.msra.mxu0 0
      %5390 = vmatprep.subr.bf16.mxu0 0
      %5391 = vmatpush1.bf16.xpose.msra.mxu0 0
      %5392 = vmatprep.subr.bf16.mxu0 0
      %5393 = vmatpush1.bf16.xpose.msra.mxu0 0
      %5394 = vmatprep.mubr.bf16.mxu0 0
      %5395 = vmatmul.mubr.bf16.gmra.mrb[0].mxu0 %v3135
      %v5396 = vpop.f32.mrb[0].mxu0
      %v5397 = vadd.f32 %v3132, %v5396
      %v5398 = vpop.f32.mrb[0].mxu0
      %v5399 = vpop.f32.mrb[0].mxu0
      %v5400 = vpop.f32.mrb[0].mxu0
      %5401 = vdwg.mxu0
      %v5402 = vxor.u32 %v5397, 2147483648
      %v5403 = vmul.f32 %v5402, 1.442695
      %v5404 = vpow.pop %v5403
      %v5405 = vadd.f32 %v5404, 1.0
      %v5406 = vrcp.pop %v5405
      %v5407 = vmul.f32 1.0, %v5406
      %v5408 = vmul.f32 %v5397, %v5407
      %5410 = vrot.lane.b32.xlu0 %v5408, 64
      %v5411 = vpop.permute.xlu0 %5410
      %v5413 = vsel %vm871, %v3195, %v5411
      %5414 = vst [vmem:[%s521] sm:$0xf] %v5413
      %p5415 = scmp.lt.s32.totalorder %s27, 3
      %s5416 = scalar_select %p5415, %s27, 3
      %s5417 = smul.addr %s5416, 4
      %s5418 = scalar_lea.vmem %s16, %s5417
      // Predicated region
      $region85: #{mobilevit_block.2} parent=83 // pred_check
        %p5419 = pneg %p386
      $region86: #{mobilevit_block.2} parent=83 // pred_check_branch
        %5421 = sbr.rel (%p5419) target = $region88
      $region87: #{mobilevit_block.2} parent=83 // pred_region
        _
      $region88: #{mobilevit_block.2} parent=83 // pred_fallthru
        _
    $region84: #{mobilevit_block.2} parent=5 // pred_fallthru
      _
    %p5422 = scmp.le.s32.totalorder 2, %s22
    // Predicated region
    $region89: #{mobilevit_block.2} parent=5 // pred_check
      %p5423 = pneg %p5422
    $region90: #{mobilevit_block.2} parent=5 // pred_check_branch
      %5425 = sbr.rel (%p5423) target = $region92
    $region91: #{mobilevit_block.2} parent=5 // pred_region
      %s5426 = ssub.s32 %s22, 2
      // Predicated region
      $region93: #{mobilevit_block.2} parent=91 // pred_check
        %p5427 = pneg %p392
      $region94: #{mobilevit_block.2} parent=91 // pred_check_branch
        %5429 = sbr.rel (%p5427) target = $region96
      $region95: #{mobilevit_block.2} parent=91 // pred_region
        %p5430 = scmp.lt.s32.totalorder %s28, 3
        %s5431 = scalar_select %p5430, %s28, 3
        %s5432 = smul.addr %s5431, 4
        %s5433 = scalar_lea.vmem %s16, %s5432
      $region96: #{mobilevit_block.2} parent=91 // pred_fallthru
        _
    $region92: #{mobilevit_block.2} parent=5 // pred_fallthru
      _
  $region6: #{mobilevit_block.2} parent=0 // loop_footer
    %s26 = sadd.s32 1, %s22
  $region7: #{mobilevit_block.2} parent=0 // loop_footer_branch
    %21 = sbr.rel target = $region3
  $region8: #{mobilevit_block.2} parent=0 // loop_exit
    _

</llo_original>
